<compile_context>
chip_gen: v6e
topology: v6e:2x2x1
jax: 0.10.0
libtpu: 0.0.40
codegen_flags: <defaults>
</compile_context>

<pallas_src>
import jax
import jax.numpy as jnp
from jax.experimental import pallas as pl
from jax.experimental.pallas import tpu as pltpu


# ----------------------------------------------------------------------------
# Fused kernel factory
# ----------------------------------------------------------------------------
def _make_up_kernel(*, Din, Hin, Win, C, td):
    """Build the fused Up kernel for fixed (static) shapes.

    Internal layout:
      scratch u_ref[kd_parity, kh_parity, s, t, (w_up, c)]  -- the upsampled tile in
      D/H parity-split form, H padded by 1 row and W padded by 1 (w,c)-group on each
      side so every depthwise tap is a static slice (no boundary selects).
        s in [0, td+2): input-depth window plane (true depth = d0 - 1 + s)
        t in [0, Hin+2): input-H index + 1 (rows 0 / Hin+1 are the zero pad)
        lanes: (Wout + 2) * C, data at lane offset C.
    """
    Dw = td + 2                 # input-depth window incl. halo of 1 on each side
    Wout = 2 * Win
    WC = Wout * C               # fused (w_up, c) lane width of the data
    WpC = (Wout + 2) * C        # lane width of the W-padded scratch

    def kernel(x_ref, wct_ref, wpw_ref, vec_ref, out_ref, u_ref):
        dt = pl.program_id(1)
        d0 = dt * td                                   # first true input depth of tile

        # Scratch pad frame (H rows 0/Hin+1, W lane borders) must read as zeros.
        u_ref[...] = jnp.zeros_like(u_ref)

        # ---- ConvTranspose3d(k=2, s=2): one matmul per (kd, kh) sub-voxel -------
        # rows = (depth-window, H) of the input, contraction = fused (w_in, c_in),
        # cols = fused (w_up = 2*w_in + kw, c_out)  -> the W interleave is free.
        row0 = pl.multiple_of(dt * (td * Hin), Hin)
        x2d = x_ref[pl.ds(row0, Dw * Hin), :]          # (Dw*Hin, Win*Cin)

        # Halo planes that fall outside the volume become the zero padding of the
        # upsampled tensor (they'd otherwise carry the ConvTranspose bias).
        lo_valid = (d0 >= 1).astype(jnp.float32)
        hi_valid = (d0 + td < Din).astype(jnp.float32)

        bias_ct = vec_ref[3]                           # (WC,) lane-tiled bias
        for kd in range(2):
            for kh in range(2):
                r = jnp.dot(x2d, wct_ref[2 * kd + kh],
                            preferred_element_type=jnp.float32) + bias_ct
                for s in range(Dw):                    # plane-wise store (no reshape)
                    rs = r[s * Hin:(s + 1) * Hin, :]
                    if s == 0:
                        rs = rs * lo_valid
                    if s == Dw - 1:
                        rs = rs * hi_valid
                    u_ref[kd, kh, s, 1:1 + Hin, C:C + WC] = rs

        # ---- depthwise3x3x3(*bn1) -> ReLU6 -> pointwise(*bn2*bn3) -> +res*bn3 ----
        wpw = wpw_ref[...]                             # (WC, WC) block-diag pointwise
        t1 = vec_ref[0]                                # bn1 shift
        s3 = vec_ref[1]                                # bn3 scale (residual path)
        bias_f = vec_ref[2]                            # bn2.shift*bn3.scale + bn3.shift
        taps = [vec_ref[4 + t] for t in range(27)]     # hoisted lane-tiled dw weights

        for pd in range(2):                            # output depth parity
            for di in range(td):                       # output depth plane (pair)
                halves = []
                for ph in range(2):                    # output H parity
                    acc = jnp.zeros((Hin, WC), jnp.float32)
                    for kd in range(3):
                        dq, dpar = divmod(pd + kd - 1, 2)
                        for kh in range(3):
                            hq, hpar = divmod(ph + kh - 1, 2)
                            for kw in range(3):
                                src = u_ref[dpar, hpar, di + dq + 1,
                                            hq + 1:hq + 1 + Hin,
                                            kw * C:kw * C + WC]
                                acc = acc + src * taps[(kd * 3 + kh) * 3 + kw]
                    y = jnp.clip(acc + t1, 0.0, 6.0)
                    y2 = jnp.dot(y, wpw, preferred_element_type=jnp.float32)
                    resid = u_ref[pd, ph, di + 1, 1:1 + Hin, C:C + WC]
                    halves.append(resid * s3 + y2 + bias_f)
                # lane-dense store: last dim = 2*WC (128 lanes for the test shapes)
                out_ref[di, pd, :, :] = jnp.concatenate(
                    halves, axis=-1).astype(out_ref.dtype)

    return kernel


# ----------------------------------------------------------------------------
# Parameter folding / wrapper (accepts & returns PyTorch-style NCDHW)
# ----------------------------------------------------------------------------
def bn_fold(bn, eps=1e-5):
    scale = bn["gamma"] / jnp.sqrt(bn["var"] + eps)
    shift = bn["beta"] - bn["mean"] * scale
    return scale, shift


def up_forward(x_ncdhw, params):
    N, Cin, Din, Hin, Win = x_ncdhw.shape
    C = params["b_ct"].shape[0]
    Dout, Hout, Wout = 2 * Din, 2 * Hin, 2 * Win
    WC = Wout * C

    # depth tile (input domain); keep >= 2 tiles when possible so the grid pipelines
    cands = [t for t in (8, 4, 2, 1) if Din % t == 0 and Din // t >= 2]
    td = cands[0] if cands else Din
    Dw, nD, WpC = td + 2, Din // td, (Wout + 2) * C

    # ---- input: NCDHW -> NDHWC, zero depth halo, fuse (D,H) rows & (W,Cin) lanes --
    xt = jnp.transpose(x_ncdhw, (0, 2, 3, 4, 1)).astype(jnp.float32)
    xp = jnp.pad(xt, ((0, 0), (1, 1), (0, 0), (0, 0), (0, 0)))
    xp = xp.reshape(N, (Din + 2) * Hin, Win * Cin)

    # ---- fold BatchNorms (inference-mode running stats) --------------------------
    s1, t1 = bn_fold(params["bn1"])
    s2, t2 = bn_fold(params["bn2"])
    s3, t3 = bn_fold(params["bn3"])

    # ---- ConvTranspose weights: per (kd,kh), block-diagonal over w_in -------------
    # wct_big[kd*2+kh][(w_in, c_in), (w_up=2*w_in+kw, c_out)]
    wct = params["w_ct"]                                          # (Cin, C, 2, 2, 2)
    B = jnp.transpose(wct, (2, 3, 0, 4, 1)).reshape(2, 2, Cin, 2 * C)
    eye_w = jnp.eye(Win, dtype=jnp.float32)
    wct_big = jnp.einsum("uv,abcj->abucvj", eye_w, B).reshape(4, Win * Cin, WC)

    # ---- depthwise weights folded with BN1 scale, tiled across the W lanes --------
    wdw = jnp.transpose(params["w_dw"][:, 0], (1, 2, 3, 0)) * s1  # (3,3,3,C)
    wdw_lane = jnp.tile(wdw.reshape(27, C), (1, Wout))            # (27, WC)

    # ---- pointwise conv folded with BN2*BN3, block-diagonal over w_up -------------
    wpw_eff = (params["w_pw"][:, :, 0, 0, 0] * (s2 * s3)[:, None]).T   # (c_in, c_out)
    eye_wo = jnp.eye(Wout, dtype=jnp.float32)
    wpw_big = jnp.einsum("uv,ij->uivj", eye_wo, wpw_eff).reshape(WC, WC)

    # ---- all per-channel vectors + 27 taps packed into one array ------------------
    vecs = jnp.concatenate(
        [jnp.stack([jnp.tile(t1, Wout),
                    jnp.tile(s3, Wout),
                    jnp.tile(t2 * s3 + t3, Wout),
                    jnp.tile(params["b_ct"], Wout)], axis=0),
         wdw_lane], axis=0)                                       # (31, WC)

    kernel = _make_up_kernel(Din=Din, Hin=Hin, Win=Win, C=C, td=td)

    out5 = pl.pallas_call(
        kernel,
        out_shape=jax.ShapeDtypeStruct((N, Din, 2, Hin, 2 * WC), jnp.float32),
        grid=(N, nD),
        in_specs=[
            # full per-batch input stays VMEM-resident across the D-tile axis
            pl.BlockSpec((None, (Din + 2) * Hin, Win * Cin), lambda n, d: (n, 0, 0)),
            pl.BlockSpec((4, Win * Cin, WC), lambda n, d: (0, 0, 0)),
            pl.BlockSpec((WC, WC), lambda n, d: (0, 0)),
            pl.BlockSpec((4 + 27, WC), lambda n, d: (0, 0)),
        ],
        out_specs=pl.BlockSpec((None, td, 2, Hin, 2 * WC),
                               lambda n, d: (n, d, 0, 0, 0)),
        scratch_shapes=[pltpu.VMEM((2, 2, Dw, Hin + 2, WpC), jnp.float32)],
        compiler_params=pltpu.CompilerParams(
            dimension_semantics=("parallel", "parallel"),
            vmem_limit_bytes=32 * 1024 * 1024),
    )(xp, wct_big, wpw_big, vecs)

    # (d, pd), (h, ph), (w, c) are adjacent & in order -> pure reshape, then the one
    # unavoidable layout transpose back to NCDHW.
    out = out5.reshape(N, Dout, Hout, Wout, C)
    return jnp.transpose(out, (0, 4, 1, 2, 3))


# ----------------------------------------------------------------------------
# Parameter init (PyTorch-shaped tensors)
# ----------------------------------------------------------------------------
def init_params(key, c_in, c_out):
    keys = jax.random.split(key, 16)
    k = iter(keys)
    p = {
        "w_ct": 0.2 * jax.random.normal(next(k), (c_in, c_out, 2, 2, 2), jnp.float32),
        "b_ct": 0.1 * jax.random.normal(next(k), (c_out,), jnp.float32),
        "w_dw": 0.2 * jax.random.normal(next(k), (c_out, 1, 3, 3, 3), jnp.float32),
        "w_pw": 0.2 * jax.random.normal(next(k), (c_out, c_out, 1, 1, 1), jnp.float32),
    }
    for name in ("bn1", "bn2", "bn3"):
        p[name] = {
            "gamma": 1.0 + 0.1 * jax.random.normal(next(k), (c_out,), jnp.float32),
            "beta": 0.1 * jax.random.normal(next(k), (c_out,), jnp.float32),
            "mean": 0.1 * jax.random.normal(next(k), (c_out,), jnp.float32),
            "var": jax.random.uniform(next(k), (c_out,), jnp.float32, 0.5, 1.5),
        }
    return p


# ----------------------------------------------------------------------------
# Pure-JAX reference (no Pallas) for the correctness check
# ----------------------------------------------------------------------------
def ref_forward(x_ncdhw, params, eps=1e-5):
    N, Cin, D, H, W = x_ncdhw.shape
    Cout = params["b_ct"].shape[0]
    x = jnp.transpose(x_ncdhw, (0, 2, 3, 4, 1)).astype(jnp.float32)

    up = jnp.zeros((N, 2 * D, 2 * H, 2 * W, Cout), jnp.float32)
    for kd in range(2):
        for kh in range(2):
            for kw in range(2):
                contrib = jnp.einsum("ndhwi,io->ndhwo", x,
                                     params["w_ct"][:, :, kd, kh, kw])
                up = up.at[:, kd::2, kh::2, kw::2, :].set(contrib)
    up = up + params["b_ct"]

    def bn(v, bnp):
        return (v - bnp["mean"]) / jnp.sqrt(bnp["var"] + eps) * bnp["gamma"] + bnp["beta"]

    Do, Ho, Wo = 2 * D, 2 * H, 2 * W
    xp = jnp.pad(up, ((0, 0), (1, 1), (1, 1), (1, 1), (0, 0)))
    acc = jnp.zeros_like(up)
    for kd in range(3):
        for kh in range(3):
            for kw in range(3):
                acc = acc + xp[:, kd:kd + Do, kh:kh + Ho, kw:kw + Wo, :] \
                            * params["w_dw"][:, 0, kd, kh, kw]
    y = jnp.clip(bn(acc, params["bn1"]), 0.0, 6.0)
    y = jnp.einsum("ndhwc,oc->ndhwo", y, params["w_pw"][:, :, 0, 0, 0])
    y = bn(y, params["bn2"])
    out = bn(up + y, params["bn3"])
    return jnp.transpose(out, (0, 4, 1, 2, 3))


# ----------------------------------------------------------------------------
if __name__ == "__main__":
    key = jax.random.PRNGKey(0)
    k_x, k_p = jax.random.split(key)

    N, Cin, Cout, D, H, W = 2, 4, 8, 4, 4, 4
    x = jax.random.normal(k_x, (N, Cin, D, H, W), jnp.float32)
    params = init_params(k_p, Cin, Cout)

    out = jax.block_until_ready(up_forward(x, params))
    assert out.shape == (N, Cout, 2 * D, 2 * H, 2 * W), out.shape

    ref = ref_forward(x, params)
    assert jnp.allclose(out, ref, atol=1e-2, rtol=1e-2), float(
        jnp.max(jnp.abs(out - ref)))

    print("KERNEL_OK")
</pallas_src>

<mosaic_0001>
module attributes {stable_mosaic.version = 11 : i64} {
  func.func @kernel(%arg0: i32, %arg1: i32, %arg2: memref<1x24x16xf32, #tpu.memory_space<vmem>>, %arg3: memref<4x16x64xf32, #tpu.memory_space<vmem>>, %arg4: memref<64x64xf32, #tpu.memory_space<vmem>>, %arg5: memref<31x64xf32, #tpu.memory_space<vmem>>, %arg6: memref<1x2x2x4x128xf32, #tpu.memory_space<vmem>>, %arg7: memref<2x2x4x6x80xf32, #tpu.memory_space<vmem>>) attributes {dimension_semantics = [#tpu.dimension_semantics<parallel>, #tpu.dimension_semantics<parallel>], iteration_bounds = array<i64: 2, 2>, scalar_prefetch = 0 : i64, scratch_operands = 1 : i64, tpu.core_type = #tpu.core_type<tc>, window_params = [{transform_indices = @transform_0, window_bounds = array<i64: 1, 24, 16>}, {pipeline_mode = #tpu.pipeline_mode<synchronous>, transform_indices = @transform_1, window_bounds = array<i64: 4, 16, 64>}, {pipeline_mode = #tpu.pipeline_mode<synchronous>, transform_indices = @transform_2, window_bounds = array<i64: 64, 64>}, {pipeline_mode = #tpu.pipeline_mode<synchronous>, transform_indices = @transform_3, window_bounds = array<i64: 31, 64>}, {transform_indices = @transform_4, window_bounds = array<i64: 1, 2, 2, 4, 128>}]} {
    %c2_i32 = arith.constant 2 : i32
    %0 = arith.muli %arg1, %c2_i32 : i32
    %cst = arith.constant 0.000000e+00 : f32
    %1 = vector.broadcast %cst : f32 to vector<2x2x4x6x80xf32>
    %c0 = arith.constant 0 : index
    %c0_0 = arith.constant 0 : index
    %c0_1 = arith.constant 0 : index
    %c0_2 = arith.constant 0 : index
    %c0_3 = arith.constant 0 : index
    %2 = vector.load %arg7[%c0, %c0_0, %c0_1, %c0_2, %c0_3] : memref<2x2x4x6x80xf32, #tpu.memory_space<vmem>>, vector<2x2x4x6x80xf32>
    tpu.vector_store %arg7[%c0, %c0_0, %c0_1, %c0_2, %c0_3], %1 {strides = array<i32>} : memref<2x2x4x6x80xf32, #tpu.memory_space<vmem>>, vector<2x2x4x6x80xf32>,
    %c8_i32 = arith.constant 8 : i32
    %3 = arith.muli %arg1, %c8_i32 : i32
    %4 = tpu.assume_multiple %3, 4 : i32
    %c0_4 = arith.constant 0 : index
    %5 = arith.index_cast %4 : i32 to index
    %c0_5 = arith.constant 0 : index
    %6 = vector.load %arg2[%c0_4, %5, %c0_5] : memref<1x24x16xf32, #tpu.memory_space<vmem>>, vector<1x16x16xf32>
    %7 = vector.shape_cast %6 : vector<1x16x16xf32> to vector<16x16xf32>
    %c1_i32 = arith.constant 1 : i32
    %8 = arith.cmpi sge, %0, %c1_i32 : i32
    %9 = arith.extui %8 : i1 to i32
    %10 = arith.sitofp %9 : i32 to f32
    %c2_i32_6 = arith.constant 2 : i32
    %11 = arith.addi %0, %c2_i32_6 : i32
    %c4_i32 = arith.constant 4 : i32
    %12 = arith.cmpi slt, %11, %c4_i32 : i32
    %13 = arith.extui %12 : i1 to i32
    %14 = arith.sitofp %13 : i32 to f32
    %c3 = arith.constant 3 : index
    %c0_7 = arith.constant 0 : index
    %15 = vector.load %arg5[%c3, %c0_7] : memref<31x64xf32, #tpu.memory_space<vmem>>, vector<1x64xf32>
    %16 = vector.shape_cast %15 : vector<1x64xf32> to vector<64xf32>
    %c0_8 = arith.constant 0 : index
    %c0_9 = arith.constant 0 : index
    %c0_10 = arith.constant 0 : index
    %17 = vector.load %arg3[%c0_8, %c0_9, %c0_10] : memref<4x16x64xf32, #tpu.memory_space<vmem>>, vector<1x16x64xf32>
    %18 = vector.shape_cast %17 : vector<1x16x64xf32> to vector<16x64xf32>
    %cst_11 = arith.constant dense<0.000000e+00> : vector<16x64xf32>
    %19 = tpu.matmul %7, %18, %cst_11 {dimension_numbers = #tpu.dot_dimension_numbers<[1], [0], [0], [1], [0, 0, 1, 1], [], []>} : vector<16x16xf32>, vector<16x64xf32>, vector<16x64xf32> -> vector<16x64xf32>
    %20 = vector.shape_cast %16 : vector<64xf32> to vector<1x64xf32>
    %21 = vector.broadcast %20 : vector<1x64xf32> to vector<16x64xf32>
    %22 = arith.addf %19, %21 : vector<16x64xf32>
    %23 = vector.extract_strided_slice %22 {offsets = [0, 0], sizes = [4, 64], strides = [1, 1]} : vector<16x64xf32> to vector<4x64xf32>
    %24 = vector.broadcast %10 : f32 to vector<4x64xf32>
    %25 = arith.mulf %23, %24 : vector<4x64xf32>
    %c0_12 = arith.constant 0 : index
    %c0_13 = arith.constant 0 : index
    %c0_14 = arith.constant 0 : index
    %c1 = arith.constant 1 : index
    %c8 = arith.constant 8 : index
    %26 = vector.load %arg7[%c0_12, %c0_13, %c0_14, %c1, %c8] : memref<2x2x4x6x80xf32, #tpu.memory_space<vmem>>, vector<1x1x1x4x64xf32>
    %27 = vector.shape_cast %26 : vector<1x1x1x4x64xf32> to vector<4x64xf32>
    %28 = vector.shape_cast %25 : vector<4x64xf32> to vector<1x1x1x4x64xf32>
    tpu.vector_store %arg7[%c0_12, %c0_13, %c0_14, %c1, %c8], %28 {strides = array<i32>} : memref<2x2x4x6x80xf32, #tpu.memory_space<vmem>>, vector<1x1x1x4x64xf32>,
    %29 = vector.extract_strided_slice %22 {offsets = [4, 0], sizes = [4, 64], strides = [1, 1]} : vector<16x64xf32> to vector<4x64xf32>
    %c0_15 = arith.constant 0 : index
    %c0_16 = arith.constant 0 : index
    %c1_17 = arith.constant 1 : index
    %c1_18 = arith.constant 1 : index
    %c8_19 = arith.constant 8 : index
    %30 = vector.load %arg7[%c0_15, %c0_16, %c1_17, %c1_18, %c8_19] : memref<2x2x4x6x80xf32, #tpu.memory_space<vmem>>, vector<1x1x1x4x64xf32>
    %31 = vector.shape_cast %30 : vector<1x1x1x4x64xf32> to vector<4x64xf32>
    %32 = vector.shape_cast %29 : vector<4x64xf32> to vector<1x1x1x4x64xf32>
    tpu.vector_store %arg7[%c0_15, %c0_16, %c1_17, %c1_18, %c8_19], %32 {strides = array<i32>} : memref<2x2x4x6x80xf32, #tpu.memory_space<vmem>>, vector<1x1x1x4x64xf32>,
    %33 = vector.extract_strided_slice %22 {offsets = [8, 0], sizes = [4, 64], strides = [1, 1]} : vector<16x64xf32> to vector<4x64xf32>
    %c0_20 = arith.constant 0 : index
    %c0_21 = arith.constant 0 : index
    %c2 = arith.constant 2 : index
    %c1_22 = arith.constant 1 : index
    %c8_23 = arith.constant 8 : index
    %34 = vector.load %arg7[%c0_20, %c0_21, %c2, %c1_22, %c8_23] : memref<2x2x4x6x80xf32, #tpu.memory_space<vmem>>, vector<1x1x1x4x64xf32>
    %35 = vector.shape_cast %34 : vector<1x1x1x4x64xf32> to vector<4x64xf32>
    %36 = vector.shape_cast %33 : vector<4x64xf32> to vector<1x1x1x4x64xf32>
    tpu.vector_store %arg7[%c0_20, %c0_21, %c2, %c1_22, %c8_23], %36 {strides = array<i32>} : memref<2x2x4x6x80xf32, #tpu.memory_space<vmem>>, vector<1x1x1x4x64xf32>,
    %37 = vector.extract_strided_slice %22 {offsets = [12, 0], sizes = [4, 64], strides = [1, 1]} : vector<16x64xf32> to vector<4x64xf32>
    %38 = vector.broadcast %14 : f32 to vector<4x64xf32>
    %39 = arith.mulf %37, %38 : vector<4x64xf32>
    %c0_24 = arith.constant 0 : index
    %c0_25 = arith.constant 0 : index
    %c3_26 = arith.constant 3 : index
    %c1_27 = arith.constant 1 : index
    %c8_28 = arith.constant 8 : index
    %40 = vector.load %arg7[%c0_24, %c0_25, %c3_26, %c1_27, %c8_28] : memref<2x2x4x6x80xf32, #tpu.memory_space<vmem>>, vector<1x1x1x4x64xf32>
    %41 = vector.shape_cast %40 : vector<1x1x1x4x64xf32> to vector<4x64xf32>
    %42 = vector.shape_cast %39 : vector<4x64xf32> to vector<1x1x1x4x64xf32>
    tpu.vector_store %arg7[%c0_24, %c0_25, %c3_26, %c1_27, %c8_28], %42 {strides = array<i32>} : memref<2x2x4x6x80xf32, #tpu.memory_space<vmem>>, vector<1x1x1x4x64xf32>,
    %c1_29 = arith.constant 1 : index
    %c0_30 = arith.constant 0 : index
    %c0_31 = arith.constant 0 : index
    %43 = vector.load %arg3[%c1_29, %c0_30, %c0_31] : memref<4x16x64xf32, #tpu.memory_space<vmem>>, vector<1x16x64xf32>
    %44 = vector.shape_cast %43 : vector<1x16x64xf32> to vector<16x64xf32>
    %cst_32 = arith.constant dense<0.000000e+00> : vector<16x64xf32>
    %45 = tpu.matmul %7, %44, %cst_32 {dimension_numbers = #tpu.dot_dimension_numbers<[1], [0], [0], [1], [0, 0, 1, 1], [], []>} : vector<16x16xf32>, vector<16x64xf32>, vector<16x64xf32> -> vector<16x64xf32>
    %46 = vector.shape_cast %16 : vector<64xf32> to vector<1x64xf32>
    %47 = vector.broadcast %46 : vector<1x64xf32> to vector<16x64xf32>
    %48 = arith.addf %45, %47 : vector<16x64xf32>
    %49 = vector.extract_strided_slice %48 {offsets = [0, 0], sizes = [4, 64], strides = [1, 1]} : vector<16x64xf32> to vector<4x64xf32>
    %50 = vector.broadcast %10 : f32 to vector<4x64xf32>
    %51 = arith.mulf %49, %50 : vector<4x64xf32>
    %c0_33 = arith.constant 0 : index
    %c1_34 = arith.constant 1 : index
    %c0_35 = arith.constant 0 : index
    %c1_36 = arith.constant 1 : index
    %c8_37 = arith.constant 8 : index
    %52 = vector.load %arg7[%c0_33, %c1_34, %c0_35, %c1_36, %c8_37] : memref<2x2x4x6x80xf32, #tpu.memory_space<vmem>>, vector<1x1x1x4x64xf32>
    %53 = vector.shape_cast %52 : vector<1x1x1x4x64xf32> to vector<4x64xf32>
    %54 = vector.shape_cast %51 : vector<4x64xf32> to vector<1x1x1x4x64xf32>
    tpu.vector_store %arg7[%c0_33, %c1_34, %c0_35, %c1_36, %c8_37], %54 {strides = array<i32>} : memref<2x2x4x6x80xf32, #tpu.memory_space<vmem>>, vector<1x1x1x4x64xf32>,
    %55 = vector.extract_strided_slice %48 {offsets = [4, 0], sizes = [4, 64], strides = [1, 1]} : vector<16x64xf32> to vector<4x64xf32>
    %c0_38 = arith.constant 0 : index
    %c1_39 = arith.constant 1 : index
    %c1_40 = arith.constant 1 : index
    %c1_41 = arith.constant 1 : index
    %c8_42 = arith.constant 8 : index
    %56 = vector.load %arg7[%c0_38, %c1_39, %c1_40, %c1_41, %c8_42] : memref<2x2x4x6x80xf32, #tpu.memory_space<vmem>>, vector<1x1x1x4x64xf32>
    %57 = vector.shape_cast %56 : vector<1x1x1x4x64xf32> to vector<4x64xf32>
    %58 = vector.shape_cast %55 : vector<4x64xf32> to vector<1x1x1x4x64xf32>
    tpu.vector_store %arg7[%c0_38, %c1_39, %c1_40, %c1_41, %c8_42], %58 {strides = array<i32>} : memref<2x2x4x6x80xf32, #tpu.memory_space<vmem>>, vector<1x1x1x4x64xf32>,
    %59 = vector.extract_strided_slice %48 {offsets = [8, 0], sizes = [4, 64], strides = [1, 1]} : vector<16x64xf32> to vector<4x64xf32>
    %c0_43 = arith.constant 0 : index
    %c1_44 = arith.constant 1 : index
    %c2_45 = arith.constant 2 : index
    %c1_46 = arith.constant 1 : index
    %c8_47 = arith.constant 8 : index
    %60 = vector.load %arg7[%c0_43, %c1_44, %c2_45, %c1_46, %c8_47] : memref<2x2x4x6x80xf32, #tpu.memory_space<vmem>>, vector<1x1x1x4x64xf32>
    %61 = vector.shape_cast %60 : vector<1x1x1x4x64xf32> to vector<4x64xf32>
    %62 = vector.shape_cast %59 : vector<4x64xf32> to vector<1x1x1x4x64xf32>
    tpu.vector_store %arg7[%c0_43, %c1_44, %c2_45, %c1_46, %c8_47], %62 {strides = array<i32>} : memref<2x2x4x6x80xf32, #tpu.memory_space<vmem>>, vector<1x1x1x4x64xf32>,
    %63 = vector.extract_strided_slice %48 {offsets = [12, 0], sizes = [4, 64], strides = [1, 1]} : vector<16x64xf32> to vector<4x64xf32>
    %64 = vector.broadcast %14 : f32 to vector<4x64xf32>
    %65 = arith.mulf %63, %64 : vector<4x64xf32>
    %c0_48 = arith.constant 0 : index
    %c1_49 = arith.constant 1 : index
    %c3_50 = arith.constant 3 : index
    %c1_51 = arith.constant 1 : index
    %c8_52 = arith.constant 8 : index
    %66 = vector.load %arg7[%c0_48, %c1_49, %c3_50, %c1_51, %c8_52] : memref<2x2x4x6x80xf32, #tpu.memory_space<vmem>>, vector<1x1x1x4x64xf32>
    %67 = vector.shape_cast %66 : vector<1x1x1x4x64xf32> to vector<4x64xf32>
    %68 = vector.shape_cast %65 : vector<4x64xf32> to vector<1x1x1x4x64xf32>
    tpu.vector_store %arg7[%c0_48, %c1_49, %c3_50, %c1_51, %c8_52], %68 {strides = array<i32>} : memref<2x2x4x6x80xf32, #tpu.memory_space<vmem>>, vector<1x1x1x4x64xf32>,
    %c2_53 = arith.constant 2 : index
    %c0_54 = arith.constant 0 : index
    %c0_55 = arith.constant 0 : index
    %69 = vector.load %arg3[%c2_53, %c0_54, %c0_55] : memref<4x16x64xf32, #tpu.memory_space<vmem>>, vector<1x16x64xf32>
    %70 = vector.shape_cast %69 : vector<1x16x64xf32> to vector<16x64xf32>
    %cst_56 = arith.constant dense<0.000000e+00> : vector<16x64xf32>
    %71 = tpu.matmul %7, %70, %cst_56 {dimension_numbers = #tpu.dot_dimension_numbers<[1], [0], [0], [1], [0, 0, 1, 1], [], []>} : vector<16x16xf32>, vector<16x64xf32>, vector<16x64xf32> -> vector<16x64xf32>
    %72 = vector.shape_cast %16 : vector<64xf32> to vector<1x64xf32>
    %73 = vector.broadcast %72 : vector<1x64xf32> to vector<16x64xf32>
    %74 = arith.addf %71, %73 : vector<16x64xf32>
    %75 = vector.extract_strided_slice %74 {offsets = [0, 0], sizes = [4, 64], strides = [1, 1]} : vector<16x64xf32> to vector<4x64xf32>
    %76 = vector.broadcast %10 : f32 to vector<4x64xf32>
    %77 = arith.mulf %75, %76 : vector<4x64xf32>
    %c1_57 = arith.constant 1 : index
    %c0_58 = arith.constant 0 : index
    %c0_59 = arith.constant 0 : index
    %c1_60 = arith.constant 1 : index
    %c8_61 = arith.constant 8 : index
    %78 = vector.load %arg7[%c1_57, %c0_58, %c0_59, %c1_60, %c8_61] : memref<2x2x4x6x80xf32, #tpu.memory_space<vmem>>, vector<1x1x1x4x64xf32>
    %79 = vector.shape_cast %78 : vector<1x1x1x4x64xf32> to vector<4x64xf32>
    %80 = vector.shape_cast %77 : vector<4x64xf32> to vector<1x1x1x4x64xf32>
    tpu.vector_store %arg7[%c1_57, %c0_58, %c0_59, %c1_60, %c8_61], %80 {strides = array<i32>} : memref<2x2x4x6x80xf32, #tpu.memory_space<vmem>>, vector<1x1x1x4x64xf32>,
    %81 = vector.extract_strided_slice %74 {offsets = [4, 0], sizes = [4, 64], strides = [1, 1]} : vector<16x64xf32> to vector<4x64xf32>
    %c1_62 = arith.constant 1 : index
    %c0_63 = arith.constant 0 : index
    %c1_64 = arith.constant 1 : index
    %c1_65 = arith.constant 1 : index
    %c8_66 = arith.constant 8 : index
    %82 = vector.load %arg7[%c1_62, %c0_63, %c1_64, %c1_65, %c8_66] : memref<2x2x4x6x80xf32, #tpu.memory_space<vmem>>, vector<1x1x1x4x64xf32>
    %83 = vector.shape_cast %82 : vector<1x1x1x4x64xf32> to vector<4x64xf32>
    %84 = vector.shape_cast %81 : vector<4x64xf32> to vector<1x1x1x4x64xf32>
    tpu.vector_store %arg7[%c1_62, %c0_63, %c1_64, %c1_65, %c8_66], %84 {strides = array<i32>} : memref<2x2x4x6x80xf32, #tpu.memory_space<vmem>>, vector<1x1x1x4x64xf32>,
    %85 = vector.extract_strided_slice %74 {offsets = [8, 0], sizes = [4, 64], strides = [1, 1]} : vector<16x64xf32> to vector<4x64xf32>
    %c1_67 = arith.constant 1 : index
    %c0_68 = arith.constant 0 : index
    %c2_69 = arith.constant 2 : index
    %c1_70 = arith.constant 1 : index
    %c8_71 = arith.constant 8 : index
    %86 = vector.load %arg7[%c1_67, %c0_68, %c2_69, %c1_70, %c8_71] : memref<2x2x4x6x80xf32, #tpu.memory_space<vmem>>, vector<1x1x1x4x64xf32>
    %87 = vector.shape_cast %86 : vector<1x1x1x4x64xf32> to vector<4x64xf32>
    %88 = vector.shape_cast %85 : vector<4x64xf32> to vector<1x1x1x4x64xf32>
    tpu.vector_store %arg7[%c1_67, %c0_68, %c2_69, %c1_70, %c8_71], %88 {strides = array<i32>} : memref<2x2x4x6x80xf32, #tpu.memory_space<vmem>>, vector<1x1x1x4x64xf32>,
    %89 = vector.extract_strided_slice %74 {offsets = [12, 0], sizes = [4, 64], strides = [1, 1]} : vector<16x64xf32> to vector<4x64xf32>
    %90 = vector.broadcast %14 : f32 to vector<4x64xf32>
    %91 = arith.mulf %89, %90 : vector<4x64xf32>
    %c1_72 = arith.constant 1 : index
    %c0_73 = arith.constant 0 : index
    %c3_74 = arith.constant 3 : index
    %c1_75 = arith.constant 1 : index
    %c8_76 = arith.constant 8 : index
    %92 = vector.load %arg7[%c1_72, %c0_73, %c3_74, %c1_75, %c8_76] : memref<2x2x4x6x80xf32, #tpu.memory_space<vmem>>, vector<1x1x1x4x64xf32>
    %93 = vector.shape_cast %92 : vector<1x1x1x4x64xf32> to vector<4x64xf32>
    %94 = vector.shape_cast %91 : vector<4x64xf32> to vector<1x1x1x4x64xf32>
    tpu.vector_store %arg7[%c1_72, %c0_73, %c3_74, %c1_75, %c8_76], %94 {strides = array<i32>} : memref<2x2x4x6x80xf32, #tpu.memory_space<vmem>>, vector<1x1x1x4x64xf32>,
    %c3_77 = arith.constant 3 : index
    %c0_78 = arith.constant 0 : index
    %c0_79 = arith.constant 0 : index
    %95 = vector.load %arg3[%c3_77, %c0_78, %c0_79] : memref<4x16x64xf32, #tpu.memory_space<vmem>>, vector<1x16x64xf32>
    %96 = vector.shape_cast %95 : vector<1x16x64xf32> to vector<16x64xf32>
    %cst_80 = arith.constant dense<0.000000e+00> : vector<16x64xf32>
    %97 = tpu.matmul %7, %96, %cst_80 {dimension_numbers = #tpu.dot_dimension_numbers<[1], [0], [0], [1], [0, 0, 1, 1], [], []>} : vector<16x16xf32>, vector<16x64xf32>, vector<16x64xf32> -> vector<16x64xf32>
    %98 = vector.shape_cast %16 : vector<64xf32> to vector<1x64xf32>
    %99 = vector.broadcast %98 : vector<1x64xf32> to vector<16x64xf32>
    %100 = arith.addf %97, %99 : vector<16x64xf32>
    %101 = vector.extract_strided_slice %100 {offsets = [0, 0], sizes = [4, 64], strides = [1, 1]} : vector<16x64xf32> to vector<4x64xf32>
    %102 = vector.broadcast %10 : f32 to vector<4x64xf32>
    %103 = arith.mulf %101, %102 : vector<4x64xf32>
    %c1_81 = arith.constant 1 : index
    %c1_82 = arith.constant 1 : index
    %c0_83 = arith.constant 0 : index
    %c1_84 = arith.constant 1 : index
    %c8_85 = arith.constant 8 : index
    %104 = vector.load %arg7[%c1_81, %c1_82, %c0_83, %c1_84, %c8_85] : memref<2x2x4x6x80xf32, #tpu.memory_space<vmem>>, vector<1x1x1x4x64xf32>
    %105 = vector.shape_cast %104 : vector<1x1x1x4x64xf32> to vector<4x64xf32>
    %106 = vector.shape_cast %103 : vector<4x64xf32> to vector<1x1x1x4x64xf32>
    tpu.vector_store %arg7[%c1_81, %c1_82, %c0_83, %c1_84, %c8_85], %106 {strides = array<i32>} : memref<2x2x4x6x80xf32, #tpu.memory_space<vmem>>, vector<1x1x1x4x64xf32>,
    %107 = vector.extract_strided_slice %100 {offsets = [4, 0], sizes = [4, 64], strides = [1, 1]} : vector<16x64xf32> to vector<4x64xf32>
    %c1_86 = arith.constant 1 : index
    %c1_87 = arith.constant 1 : index
    %c1_88 = arith.constant 1 : index
    %c1_89 = arith.constant 1 : index
    %c8_90 = arith.constant 8 : index
    %108 = vector.load %arg7[%c1_86, %c1_87, %c1_88, %c1_89, %c8_90] : memref<2x2x4x6x80xf32, #tpu.memory_space<vmem>>, vector<1x1x1x4x64xf32>
    %109 = vector.shape_cast %108 : vector<1x1x1x4x64xf32> to vector<4x64xf32>
    %110 = vector.shape_cast %107 : vector<4x64xf32> to vector<1x1x1x4x64xf32>
    tpu.vector_store %arg7[%c1_86, %c1_87, %c1_88, %c1_89, %c8_90], %110 {strides = array<i32>} : memref<2x2x4x6x80xf32, #tpu.memory_space<vmem>>, vector<1x1x1x4x64xf32>,
    %111 = vector.extract_strided_slice %100 {offsets = [8, 0], sizes = [4, 64], strides = [1, 1]} : vector<16x64xf32> to vector<4x64xf32>
    %c1_91 = arith.constant 1 : index
    %c1_92 = arith.constant 1 : index
    %c2_93 = arith.constant 2 : index
    %c1_94 = arith.constant 1 : index
    %c8_95 = arith.constant 8 : index
    %112 = vector.load %arg7[%c1_91, %c1_92, %c2_93, %c1_94, %c8_95] : memref<2x2x4x6x80xf32, #tpu.memory_space<vmem>>, vector<1x1x1x4x64xf32>
    %113 = vector.shape_cast %112 : vector<1x1x1x4x64xf32> to vector<4x64xf32>
    %114 = vector.shape_cast %111 : vector<4x64xf32> to vector<1x1x1x4x64xf32>
    tpu.vector_store %arg7[%c1_91, %c1_92, %c2_93, %c1_94, %c8_95], %114 {strides = array<i32>} : memref<2x2x4x6x80xf32, #tpu.memory_space<vmem>>, vector<1x1x1x4x64xf32>,
    %115 = vector.extract_strided_slice %100 {offsets = [12, 0], sizes = [4, 64], strides = [1, 1]} : vector<16x64xf32> to vector<4x64xf32>
    %116 = vector.broadcast %14 : f32 to vector<4x64xf32>
    %117 = arith.mulf %115, %116 : vector<4x64xf32>
    %c1_96 = arith.constant 1 : index
    %c1_97 = arith.constant 1 : index
    %c3_98 = arith.constant 3 : index
    %c1_99 = arith.constant 1 : index
    %c8_100 = arith.constant 8 : index
    %118 = vector.load %arg7[%c1_96, %c1_97, %c3_98, %c1_99, %c8_100] : memref<2x2x4x6x80xf32, #tpu.memory_space<vmem>>, vector<1x1x1x4x64xf32>
    %119 = vector.shape_cast %118 : vector<1x1x1x4x64xf32> to vector<4x64xf32>
    %120 = vector.shape_cast %117 : vector<4x64xf32> to vector<1x1x1x4x64xf32>
    tpu.vector_store %arg7[%c1_96, %c1_97, %c3_98, %c1_99, %c8_100], %120 {strides = array<i32>} : memref<2x2x4x6x80xf32, #tpu.memory_space<vmem>>, vector<1x1x1x4x64xf32>,
    %c0_101 = arith.constant 0 : index
    %c0_102 = arith.constant 0 : index
    %121 = vector.load %arg4[%c0_101, %c0_102] : memref<64x64xf32, #tpu.memory_space<vmem>>, vector<64x64xf32>
    %c0_103 = arith.constant 0 : index
    %c0_104 = arith.constant 0 : index
    %122 = vector.load %arg5[%c0_103, %c0_104] : memref<31x64xf32, #tpu.memory_space<vmem>>, vector<1x64xf32>
    %123 = vector.shape_cast %122 : vector<1x64xf32> to vector<64xf32>
    %c1_105 = arith.constant 1 : index
    %c0_106 = arith.constant 0 : index
    %124 = vector.load %arg5[%c1_105, %c0_106] : memref<31x64xf32, #tpu.memory_space<vmem>>, vector<1x64xf32>
    %125 = vector.shape_cast %124 : vector<1x64xf32> to vector<64xf32>
    %c2_107 = arith.constant 2 : index
    %c0_108 = arith.constant 0 : index
    %126 = vector.load %arg5[%c2_107, %c0_108] : memref<31x64xf32, #tpu.memory_space<vmem>>, vector<1x64xf32>
    %127 = vector.shape_cast %126 : vector<1x64xf32> to vector<64xf32>
    %c4 = arith.constant 4 : index
    %c0_109 = arith.constant 0 : index
    %128 = vector.load %arg5[%c4, %c0_109] : memref<31x64xf32, #tpu.memory_space<vmem>>, vector<1x64xf32>
    %129 = vector.shape_cast %128 : vector<1x64xf32> to vector<64xf32>
    %c5 = arith.constant 5 : index
    %c0_110 = arith.constant 0 : index
    %130 = vector.load %arg5[%c5, %c0_110] : memref<31x64xf32, #tpu.memory_space<vmem>>, vector<1x64xf32>
    %131 = vector.shape_cast %130 : vector<1x64xf32> to vector<64xf32>
    %c6 = arith.constant 6 : index
    %c0_111 = arith.constant 0 : index
    %132 = vector.load %arg5[%c6, %c0_111] : memref<31x64xf32, #tpu.memory_space<vmem>>, vector<1x64xf32>
    %133 = vector.shape_cast %132 : vector<1x64xf32> to vector<64xf32>
    %c7 = arith.constant 7 : index
    %c0_112 = arith.constant 0 : index
    %134 = vector.load %arg5[%c7, %c0_112] : memref<31x64xf32, #tpu.memory_space<vmem>>, vector<1x64xf32>
    %135 = vector.shape_cast %134 : vector<1x64xf32> to vector<64xf32>
    %c8_113 = arith.constant 8 : index
    %c0_114 = arith.constant 0 : index
    %136 = vector.load %arg5[%c8_113, %c0_114] : memref<31x64xf32, #tpu.memory_space<vmem>>, vector<1x64xf32>
    %137 = vector.shape_cast %136 : vector<1x64xf32> to vector<64xf32>
    %c9 = arith.constant 9 : index
    %c0_115 = arith.constant 0 : index
    %138 = vector.load %arg5[%c9, %c0_115] : memref<31x64xf32, #tpu.memory_space<vmem>>, vector<1x64xf32>
    %139 = vector.shape_cast %138 : vector<1x64xf32> to vector<64xf32>
    %c10 = arith.constant 10 : index
    %c0_116 = arith.constant 0 : index
    %140 = vector.load %arg5[%c10, %c0_116] : memref<31x64xf32, #tpu.memory_space<vmem>>, vector<1x64xf32>
    %141 = vector.shape_cast %140 : vector<1x64xf32> to vector<64xf32>
    %c11 = arith.constant 11 : index
    %c0_117 = arith.constant 0 : index
    %142 = vector.load %arg5[%c11, %c0_117] : memref<31x64xf32, #tpu.memory_space<vmem>>, vector<1x64xf32>
    %143 = vector.shape_cast %142 : vector<1x64xf32> to vector<64xf32>
    %c12 = arith.constant 12 : index
    %c0_118 = arith.constant 0 : index
    %144 = vector.load %arg5[%c12, %c0_118] : memref<31x64xf32, #tpu.memory_space<vmem>>, vector<1x64xf32>
    %145 = vector.shape_cast %144 : vector<1x64xf32> to vector<64xf32>
    %c13 = arith.constant 13 : index
    %c0_119 = arith.constant 0 : index
    %146 = vector.load %arg5[%c13, %c0_119] : memref<31x64xf32, #tpu.memory_space<vmem>>, vector<1x64xf32>
    %147 = vector.shape_cast %146 : vector<1x64xf32> to vector<64xf32>
    %c14 = arith.constant 14 : index
    %c0_120 = arith.constant 0 : index
    %148 = vector.load %arg5[%c14, %c0_120] : memref<31x64xf32, #tpu.memory_space<vmem>>, vector<1x64xf32>
    %149 = vector.shape_cast %148 : vector<1x64xf32> to vector<64xf32>
    %c15 = arith.constant 15 : index
    %c0_121 = arith.constant 0 : index
    %150 = vector.load %arg5[%c15, %c0_121] : memref<31x64xf32, #tpu.memory_space<vmem>>, vector<1x64xf32>
    %151 = vector.shape_cast %150 : vector<1x64xf32> to vector<64xf32>
    %c16 = arith.constant 16 : index
    %c0_122 = arith.constant 0 : index
    %152 = vector.load %arg5[%c16, %c0_122] : memref<31x64xf32, #tpu.memory_space<vmem>>, vector<1x64xf32>
    %153 = vector.shape_cast %152 : vector<1x64xf32> to vector<64xf32>
    %c17 = arith.constant 17 : index
    %c0_123 = arith.constant 0 : index
    %154 = vector.load %arg5[%c17, %c0_123] : memref<31x64xf32, #tpu.memory_space<vmem>>, vector<1x64xf32>
    %155 = vector.shape_cast %154 : vector<1x64xf32> to vector<64xf32>
    %c18 = arith.constant 18 : index
    %c0_124 = arith.constant 0 : index
    %156 = vector.load %arg5[%c18, %c0_124] : memref<31x64xf32, #tpu.memory_space<vmem>>, vector<1x64xf32>
    %157 = vector.shape_cast %156 : vector<1x64xf32> to vector<64xf32>
    %c19 = arith.constant 19 : index
    %c0_125 = arith.constant 0 : index
    %158 = vector.load %arg5[%c19, %c0_125] : memref<31x64xf32, #tpu.memory_space<vmem>>, vector<1x64xf32>
    %159 = vector.shape_cast %158 : vector<1x64xf32> to vector<64xf32>
    %c20 = arith.constant 20 : index
    %c0_126 = arith.constant 0 : index
    %160 = vector.load %arg5[%c20, %c0_126] : memref<31x64xf32, #tpu.memory_space<vmem>>, vector<1x64xf32>
    %161 = vector.shape_cast %160 : vector<1x64xf32> to vector<64xf32>
    %c21 = arith.constant 21 : index
    %c0_127 = arith.constant 0 : index
    %162 = vector.load %arg5[%c21, %c0_127] : memref<31x64xf32, #tpu.memory_space<vmem>>, vector<1x64xf32>
    %163 = vector.shape_cast %162 : vector<1x64xf32> to vector<64xf32>
    %c22 = arith.constant 22 : index
    %c0_128 = arith.constant 0 : index
    %164 = vector.load %arg5[%c22, %c0_128] : memref<31x64xf32, #tpu.memory_space<vmem>>, vector<1x64xf32>
    %165 = vector.shape_cast %164 : vector<1x64xf32> to vector<64xf32>
    %c23 = arith.constant 23 : index
    %c0_129 = arith.constant 0 : index
    %166 = vector.load %arg5[%c23, %c0_129] : memref<31x64xf32, #tpu.memory_space<vmem>>, vector<1x64xf32>
    %167 = vector.shape_cast %166 : vector<1x64xf32> to vector<64xf32>
    %c24 = arith.constant 24 : index
    %c0_130 = arith.constant 0 : index
    %168 = vector.load %arg5[%c24, %c0_130] : memref<31x64xf32, #tpu.memory_space<vmem>>, vector<1x64xf32>
    %169 = vector.shape_cast %168 : vector<1x64xf32> to vector<64xf32>
    %c25 = arith.constant 25 : index
    %c0_131 = arith.constant 0 : index
    %170 = vector.load %arg5[%c25, %c0_131] : memref<31x64xf32, #tpu.memory_space<vmem>>, vector<1x64xf32>
    %171 = vector.shape_cast %170 : vector<1x64xf32> to vector<64xf32>
    %c26 = arith.constant 26 : index
    %c0_132 = arith.constant 0 : index
    %172 = vector.load %arg5[%c26, %c0_132] : memref<31x64xf32, #tpu.memory_space<vmem>>, vector<1x64xf32>
    %173 = vector.shape_cast %172 : vector<1x64xf32> to vector<64xf32>
    %c27 = arith.constant 27 : index
    %c0_133 = arith.constant 0 : index
    %174 = vector.load %arg5[%c27, %c0_133] : memref<31x64xf32, #tpu.memory_space<vmem>>, vector<1x64xf32>
    %175 = vector.shape_cast %174 : vector<1x64xf32> to vector<64xf32>
    %c28 = arith.constant 28 : index
    %c0_134 = arith.constant 0 : index
    %176 = vector.load %arg5[%c28, %c0_134] : memref<31x64xf32, #tpu.memory_space<vmem>>, vector<1x64xf32>
    %177 = vector.shape_cast %176 : vector<1x64xf32> to vector<64xf32>
    %c29 = arith.constant 29 : index
    %c0_135 = arith.constant 0 : index
    %178 = vector.load %arg5[%c29, %c0_135] : memref<31x64xf32, #tpu.memory_space<vmem>>, vector<1x64xf32>
    %179 = vector.shape_cast %178 : vector<1x64xf32> to vector<64xf32>
    %c30 = arith.constant 30 : index
    %c0_136 = arith.constant 0 : index
    %180 = vector.load %arg5[%c30, %c0_136] : memref<31x64xf32, #tpu.memory_space<vmem>>, vector<1x64xf32>
    %181 = vector.shape_cast %180 : vector<1x64xf32> to vector<64xf32>
    %cst_137 = arith.constant 0.000000e+00 : f32
    %182 = vector.broadcast %cst_137 : f32 to vector<4x64xf32>
    %c1_138 = arith.constant 1 : index
    %c1_139 = arith.constant 1 : index
    %c0_140 = arith.constant 0 : index
    %c0_141 = arith.constant 0 : index
    %c0_142 = arith.constant 0 : index
    %183 = vector.load %arg7[%c1_138, %c1_139, %c0_140, %c0_141, %c0_142] : memref<2x2x4x6x80xf32, #tpu.memory_space<vmem>>, vector<1x1x1x4x64xf32>
    %184 = vector.shape_cast %183 : vector<1x1x1x4x64xf32> to vector<4x64xf32>
    %185 = vector.shape_cast %129 : vector<64xf32> to vector<1x64xf32>
    %186 = vector.broadcast %185 : vector<1x64xf32> to vector<4x64xf32>
    %187 = arith.mulf %184, %186 : vector<4x64xf32>
    %188 = arith.addf %182, %187 : vector<4x64xf32>
    %c1_143 = arith.constant 1 : index
    %c1_144 = arith.constant 1 : index
    %c0_145 = arith.constant 0 : index
    %c0_146 = arith.constant 0 : index
    %c8_147 = arith.constant 8 : index
    %189 = vector.load %arg7[%c1_143, %c1_144, %c0_145, %c0_146, %c8_147] : memref<2x2x4x6x80xf32, #tpu.memory_space<vmem>>, vector<1x1x1x4x64xf32>
    %190 = vector.shape_cast %189 : vector<1x1x1x4x64xf32> to vector<4x64xf32>
    %191 = vector.shape_cast %131 : vector<64xf32> to vector<1x64xf32>
    %192 = vector.broadcast %191 : vector<1x64xf32> to vector<4x64xf32>
    %193 = arith.mulf %190, %192 : vector<4x64xf32>
    %194 = arith.addf %188, %193 : vector<4x64xf32>
    %c1_148 = arith.constant 1 : index
    %c1_149 = arith.constant 1 : index
    %c0_150 = arith.constant 0 : index
    %c0_151 = arith.constant 0 : index
    %c16_152 = arith.constant 16 : index
    %195 = vector.load %arg7[%c1_148, %c1_149, %c0_150, %c0_151, %c16_152] : memref<2x2x4x6x80xf32, #tpu.memory_space<vmem>>, vector<1x1x1x4x64xf32>
    %196 = vector.shape_cast %195 : vector<1x1x1x4x64xf32> to vector<4x64xf32>
    %197 = vector.shape_cast %133 : vector<64xf32> to vector<1x64xf32>
    %198 = vector.broadcast %197 : vector<1x64xf32> to vector<4x64xf32>
    %199 = arith.mulf %196, %198 : vector<4x64xf32>
    %200 = arith.addf %194, %199 : vector<4x64xf32>
    %c1_153 = arith.constant 1 : index
    %c0_154 = arith.constant 0 : index
    %c0_155 = arith.constant 0 : index
    %c1_156 = arith.constant 1 : index
    %c0_157 = arith.constant 0 : index
    %201 = vector.load %arg7[%c1_153, %c0_154, %c0_155, %c1_156, %c0_157] : memref<2x2x4x6x80xf32, #tpu.memory_space<vmem>>, vector<1x1x1x4x64xf32>
    %202 = vector.shape_cast %201 : vector<1x1x1x4x64xf32> to vector<4x64xf32>
    %203 = vector.shape_cast %135 : vector<64xf32> to vector<1x64xf32>
    %204 = vector.broadcast %203 : vector<1x64xf32> to vector<4x64xf32>
    %205 = arith.mulf %202, %204 : vector<4x64xf32>
    %206 = arith.addf %200, %205 : vector<4x64xf32>
    %c1_158 = arith.constant 1 : index
    %c0_159 = arith.constant 0 : index
    %c0_160 = arith.constant 0 : index
    %c1_161 = arith.constant 1 : index
    %c8_162 = arith.constant 8 : index
    %207 = vector.load %arg7[%c1_158, %c0_159, %c0_160, %c1_161, %c8_162] : memref<2x2x4x6x80xf32, #tpu.memory_space<vmem>>, vector<1x1x1x4x64xf32>
    %208 = vector.shape_cast %207 : vector<1x1x1x4x64xf32> to vector<4x64xf32>
    %209 = vector.shape_cast %137 : vector<64xf32> to vector<1x64xf32>
    %210 = vector.broadcast %209 : vector<1x64xf32> to vector<4x64xf32>
    %211 = arith.mulf %208, %210 : vector<4x64xf32>
    %212 = arith.addf %206, %211 : vector<4x64xf32>
    %c1_163 = arith.constant 1 : index
    %c0_164 = arith.constant 0 : index
    %c0_165 = arith.constant 0 : index
    %c1_166 = arith.constant 1 : index
    %c16_167 = arith.constant 16 : index
    %213 = vector.load %arg7[%c1_163, %c0_164, %c0_165, %c1_166, %c16_167] : memref<2x2x4x6x80xf32, #tpu.memory_space<vmem>>, vector<1x1x1x4x64xf32>
    %214 = vector.shape_cast %213 : vector<1x1x1x4x64xf32> to vector<4x64xf32>
    %215 = vector.shape_cast %139 : vector<64xf32> to vector<1x64xf32>
    %216 = vector.broadcast %215 : vector<1x64xf32> to vector<4x64xf32>
    %217 = arith.mulf %214, %216 : vector<4x64xf32>
    %218 = arith.addf %212, %217 : vector<4x64xf32>
    %c1_168 = arith.constant 1 : index
    %c1_169 = arith.constant 1 : index
    %c0_170 = arith.constant 0 : index
    %c1_171 = arith.constant 1 : index
    %c0_172 = arith.constant 0 : index
    %219 = vector.load %arg7[%c1_168, %c1_169, %c0_170, %c1_171, %c0_172] : memref<2x2x4x6x80xf32, #tpu.memory_space<vmem>>, vector<1x1x1x4x64xf32>
    %220 = vector.shape_cast %219 : vector<1x1x1x4x64xf32> to vector<4x64xf32>
    %221 = vector.shape_cast %141 : vector<64xf32> to vector<1x64xf32>
    %222 = vector.broadcast %221 : vector<1x64xf32> to vector<4x64xf32>
    %223 = arith.mulf %220, %222 : vector<4x64xf32>
    %224 = arith.addf %218, %223 : vector<4x64xf32>
    %c1_173 = arith.constant 1 : index
    %c1_174 = arith.constant 1 : index
    %c0_175 = arith.constant 0 : index
    %c1_176 = arith.constant 1 : index
    %c8_177 = arith.constant 8 : index
    %225 = vector.load %arg7[%c1_173, %c1_174, %c0_175, %c1_176, %c8_177] : memref<2x2x4x6x80xf32, #tpu.memory_space<vmem>>, vector<1x1x1x4x64xf32>
    %226 = vector.shape_cast %225 : vector<1x1x1x4x64xf32> to vector<4x64xf32>
    %227 = vector.shape_cast %143 : vector<64xf32> to vector<1x64xf32>
    %228 = vector.broadcast %227 : vector<1x64xf32> to vector<4x64xf32>
    %229 = arith.mulf %226, %228 : vector<4x64xf32>
    %230 = arith.addf %224, %229 : vector<4x64xf32>
    %c1_178 = arith.constant 1 : index
    %c1_179 = arith.constant 1 : index
    %c0_180 = arith.constant 0 : index
    %c1_181 = arith.constant 1 : index
    %c16_182 = arith.constant 16 : index
    %231 = vector.load %arg7[%c1_178, %c1_179, %c0_180, %c1_181, %c16_182] : memref<2x2x4x6x80xf32, #tpu.memory_space<vmem>>, vector<1x1x1x4x64xf32>
    %232 = vector.shape_cast %231 : vector<1x1x1x4x64xf32> to vector<4x64xf32>
    %233 = vector.shape_cast %145 : vector<64xf32> to vector<1x64xf32>
    %234 = vector.broadcast %233 : vector<1x64xf32> to vector<4x64xf32>
    %235 = arith.mulf %232, %234 : vector<4x64xf32>
    %236 = arith.addf %230, %235 : vector<4x64xf32>
    %c0_183 = arith.constant 0 : index
    %c1_184 = arith.constant 1 : index
    %c1_185 = arith.constant 1 : index
    %c0_186 = arith.constant 0 : index
    %c0_187 = arith.constant 0 : index
    %237 = vector.load %arg7[%c0_183, %c1_184, %c1_185, %c0_186, %c0_187] : memref<2x2x4x6x80xf32, #tpu.memory_space<vmem>>, vector<1x1x1x4x64xf32>
    %238 = vector.shape_cast %237 : vector<1x1x1x4x64xf32> to vector<4x64xf32>
    %239 = vector.shape_cast %147 : vector<64xf32> to vector<1x64xf32>
    %240 = vector.broadcast %239 : vector<1x64xf32> to vector<4x64xf32>
    %241 = arith.mulf %238, %240 : vector<4x64xf32>
    %242 = arith.addf %236, %241 : vector<4x64xf32>
    %c0_188 = arith.constant 0 : index
    %c1_189 = arith.constant 1 : index
    %c1_190 = arith.constant 1 : index
    %c0_191 = arith.constant 0 : index
    %c8_192 = arith.constant 8 : index
    %243 = vector.load %arg7[%c0_188, %c1_189, %c1_190, %c0_191, %c8_192] : memref<2x2x4x6x80xf32, #tpu.memory_space<vmem>>, vector<1x1x1x4x64xf32>
    %244 = vector.shape_cast %243 : vector<1x1x1x4x64xf32> to vector<4x64xf32>
    %245 = vector.shape_cast %149 : vector<64xf32> to vector<1x64xf32>
    %246 = vector.broadcast %245 : vector<1x64xf32> to vector<4x64xf32>
    %247 = arith.mulf %244, %246 : vector<4x64xf32>
    %248 = arith.addf %242, %247 : vector<4x64xf32>
    %c0_193 = arith.constant 0 : index
    %c1_194 = arith.constant 1 : index
    %c1_195 = arith.constant 1 : index
    %c0_196 = arith.constant 0 : index
    %c16_197 = arith.constant 16 : index
    %249 = vector.load %arg7[%c0_193, %c1_194, %c1_195, %c0_196, %c16_197] : memref<2x2x4x6x80xf32, #tpu.memory_space<vmem>>, vector<1x1x1x4x64xf32>
    %250 = vector.shape_cast %249 : vector<1x1x1x4x64xf32> to vector<4x64xf32>
    %251 = vector.shape_cast %151 : vector<64xf32> to vector<1x64xf32>
    %252 = vector.broadcast %251 : vector<1x64xf32> to vector<4x64xf32>
    %253 = arith.mulf %250, %252 : vector<4x64xf32>
    %254 = arith.addf %248, %253 : vector<4x64xf32>
    %c0_198 = arith.constant 0 : index
    %c0_199 = arith.constant 0 : index
    %c1_200 = arith.constant 1 : index
    %c1_201 = arith.constant 1 : index
    %c0_202 = arith.constant 0 : index
    %255 = vector.load %arg7[%c0_198, %c0_199, %c1_200, %c1_201, %c0_202] : memref<2x2x4x6x80xf32, #tpu.memory_space<vmem>>, vector<1x1x1x4x64xf32>
    %256 = vector.shape_cast %255 : vector<1x1x1x4x64xf32> to vector<4x64xf32>
    %257 = vector.shape_cast %153 : vector<64xf32> to vector<1x64xf32>
    %258 = vector.broadcast %257 : vector<1x64xf32> to vector<4x64xf32>
    %259 = arith.mulf %256, %258 : vector<4x64xf32>
    %260 = arith.addf %254, %259 : vector<4x64xf32>
    %c0_203 = arith.constant 0 : index
    %c0_204 = arith.constant 0 : index
    %c1_205 = arith.constant 1 : index
    %c1_206 = arith.constant 1 : index
    %c8_207 = arith.constant 8 : index
    %261 = vector.load %arg7[%c0_203, %c0_204, %c1_205, %c1_206, %c8_207] : memref<2x2x4x6x80xf32, #tpu.memory_space<vmem>>, vector<1x1x1x4x64xf32>
    %262 = vector.shape_cast %261 : vector<1x1x1x4x64xf32> to vector<4x64xf32>
    %263 = vector.shape_cast %155 : vector<64xf32> to vector<1x64xf32>
    %264 = vector.broadcast %263 : vector<1x64xf32> to vector<4x64xf32>
    %265 = arith.mulf %262, %264 : vector<4x64xf32>
    %266 = arith.addf %260, %265 : vector<4x64xf32>
    %c0_208 = arith.constant 0 : index
    %c0_209 = arith.constant 0 : index
    %c1_210 = arith.constant 1 : index
    %c1_211 = arith.constant 1 : index
    %c16_212 = arith.constant 16 : index
    %267 = vector.load %arg7[%c0_208, %c0_209, %c1_210, %c1_211, %c16_212] : memref<2x2x4x6x80xf32, #tpu.memory_space<vmem>>, vector<1x1x1x4x64xf32>
    %268 = vector.shape_cast %267 : vector<1x1x1x4x64xf32> to vector<4x64xf32>
    %269 = vector.shape_cast %157 : vector<64xf32> to vector<1x64xf32>
    %270 = vector.broadcast %269 : vector<1x64xf32> to vector<4x64xf32>
    %271 = arith.mulf %268, %270 : vector<4x64xf32>
    %272 = arith.addf %266, %271 : vector<4x64xf32>
    %c0_213 = arith.constant 0 : index
    %c1_214 = arith.constant 1 : index
    %c1_215 = arith.constant 1 : index
    %c1_216 = arith.constant 1 : index
    %c0_217 = arith.constant 0 : index
    %273 = vector.load %arg7[%c0_213, %c1_214, %c1_215, %c1_216, %c0_217] : memref<2x2x4x6x80xf32, #tpu.memory_space<vmem>>, vector<1x1x1x4x64xf32>
    %274 = vector.shape_cast %273 : vector<1x1x1x4x64xf32> to vector<4x64xf32>
    %275 = vector.shape_cast %159 : vector<64xf32> to vector<1x64xf32>
    %276 = vector.broadcast %275 : vector<1x64xf32> to vector<4x64xf32>
    %277 = arith.mulf %274, %276 : vector<4x64xf32>
    %278 = arith.addf %272, %277 : vector<4x64xf32>
    %c0_218 = arith.constant 0 : index
    %c1_219 = arith.constant 1 : index
    %c1_220 = arith.constant 1 : index
    %c1_221 = arith.constant 1 : index
    %c8_222 = arith.constant 8 : index
    %279 = vector.load %arg7[%c0_218, %c1_219, %c1_220, %c1_221, %c8_222] : memref<2x2x4x6x80xf32, #tpu.memory_space<vmem>>, vector<1x1x1x4x64xf32>
    %280 = vector.shape_cast %279 : vector<1x1x1x4x64xf32> to vector<4x64xf32>
    %281 = vector.shape_cast %161 : vector<64xf32> to vector<1x64xf32>
    %282 = vector.broadcast %281 : vector<1x64xf32> to vector<4x64xf32>
    %283 = arith.mulf %280, %282 : vector<4x64xf32>
    %284 = arith.addf %278, %283 : vector<4x64xf32>
    %c0_223 = arith.constant 0 : index
    %c1_224 = arith.constant 1 : index
    %c1_225 = arith.constant 1 : index
    %c1_226 = arith.constant 1 : index
    %c16_227 = arith.constant 16 : index
    %285 = vector.load %arg7[%c0_223, %c1_224, %c1_225, %c1_226, %c16_227] : memref<2x2x4x6x80xf32, #tpu.memory_space<vmem>>, vector<1x1x1x4x64xf32>
    %286 = vector.shape_cast %285 : vector<1x1x1x4x64xf32> to vector<4x64xf32>
    %287 = vector.shape_cast %163 : vector<64xf32> to vector<1x64xf32>
    %288 = vector.broadcast %287 : vector<1x64xf32> to vector<4x64xf32>
    %289 = arith.mulf %286, %288 : vector<4x64xf32>
    %290 = arith.addf %284, %289 : vector<4x64xf32>
    %c1_228 = arith.constant 1 : index
    %c1_229 = arith.constant 1 : index
    %c1_230 = arith.constant 1 : index
    %c0_231 = arith.constant 0 : index
    %c0_232 = arith.constant 0 : index
    %291 = vector.load %arg7[%c1_228, %c1_229, %c1_230, %c0_231, %c0_232] : memref<2x2x4x6x80xf32, #tpu.memory_space<vmem>>, vector<1x1x1x4x64xf32>
    %292 = vector.shape_cast %291 : vector<1x1x1x4x64xf32> to vector<4x64xf32>
    %293 = vector.shape_cast %165 : vector<64xf32> to vector<1x64xf32>
    %294 = vector.broadcast %293 : vector<1x64xf32> to vector<4x64xf32>
    %295 = arith.mulf %292, %294 : vector<4x64xf32>
    %296 = arith.addf %290, %295 : vector<4x64xf32>
    %c1_233 = arith.constant 1 : index
    %c1_234 = arith.constant 1 : index
    %c1_235 = arith.constant 1 : index
    %c0_236 = arith.constant 0 : index
    %c8_237 = arith.constant 8 : index
    %297 = vector.load %arg7[%c1_233, %c1_234, %c1_235, %c0_236, %c8_237] : memref<2x2x4x6x80xf32, #tpu.memory_space<vmem>>, vector<1x1x1x4x64xf32>
    %298 = vector.shape_cast %297 : vector<1x1x1x4x64xf32> to vector<4x64xf32>
    %299 = vector.shape_cast %167 : vector<64xf32> to vector<1x64xf32>
    %300 = vector.broadcast %299 : vector<1x64xf32> to vector<4x64xf32>
    %301 = arith.mulf %298, %300 : vector<4x64xf32>
    %302 = arith.addf %296, %301 : vector<4x64xf32>
    %c1_238 = arith.constant 1 : index
    %c1_239 = arith.constant 1 : index
    %c1_240 = arith.constant 1 : index
    %c0_241 = arith.constant 0 : index
    %c16_242 = arith.constant 16 : index
    %303 = vector.load %arg7[%c1_238, %c1_239, %c1_240, %c0_241, %c16_242] : memref<2x2x4x6x80xf32, #tpu.memory_space<vmem>>, vector<1x1x1x4x64xf32>
    %304 = vector.shape_cast %303 : vector<1x1x1x4x64xf32> to vector<4x64xf32>
    %305 = vector.shape_cast %169 : vector<64xf32> to vector<1x64xf32>
    %306 = vector.broadcast %305 : vector<1x64xf32> to vector<4x64xf32>
    %307 = arith.mulf %304, %306 : vector<4x64xf32>
    %308 = arith.addf %302, %307 : vector<4x64xf32>
    %c1_243 = arith.constant 1 : index
    %c0_244 = arith.constant 0 : index
    %c1_245 = arith.constant 1 : index
    %c1_246 = arith.constant 1 : index
    %c0_247 = arith.constant 0 : index
    %309 = vector.load %arg7[%c1_243, %c0_244, %c1_245, %c1_246, %c0_247] : memref<2x2x4x6x80xf32, #tpu.memory_space<vmem>>, vector<1x1x1x4x64xf32>
    %310 = vector.shape_cast %309 : vector<1x1x1x4x64xf32> to vector<4x64xf32>
    %311 = vector.shape_cast %171 : vector<64xf32> to vector<1x64xf32>
    %312 = vector.broadcast %311 : vector<1x64xf32> to vector<4x64xf32>
    %313 = arith.mulf %310, %312 : vector<4x64xf32>
    %314 = arith.addf %308, %313 : vector<4x64xf32>
    %c1_248 = arith.constant 1 : index
    %c0_249 = arith.constant 0 : index
    %c1_250 = arith.constant 1 : index
    %c1_251 = arith.constant 1 : index
    %c8_252 = arith.constant 8 : index
    %315 = vector.load %arg7[%c1_248, %c0_249, %c1_250, %c1_251, %c8_252] : memref<2x2x4x6x80xf32, #tpu.memory_space<vmem>>, vector<1x1x1x4x64xf32>
    %316 = vector.shape_cast %315 : vector<1x1x1x4x64xf32> to vector<4x64xf32>
    %317 = vector.shape_cast %173 : vector<64xf32> to vector<1x64xf32>
    %318 = vector.broadcast %317 : vector<1x64xf32> to vector<4x64xf32>
    %319 = arith.mulf %316, %318 : vector<4x64xf32>
    %320 = arith.addf %314, %319 : vector<4x64xf32>
    %c1_253 = arith.constant 1 : index
    %c0_254 = arith.constant 0 : index
    %c1_255 = arith.constant 1 : index
    %c1_256 = arith.constant 1 : index
    %c16_257 = arith.constant 16 : index
    %321 = vector.load %arg7[%c1_253, %c0_254, %c1_255, %c1_256, %c16_257] : memref<2x2x4x6x80xf32, #tpu.memory_space<vmem>>, vector<1x1x1x4x64xf32>
    %322 = vector.shape_cast %321 : vector<1x1x1x4x64xf32> to vector<4x64xf32>
    %323 = vector.shape_cast %175 : vector<64xf32> to vector<1x64xf32>
    %324 = vector.broadcast %323 : vector<1x64xf32> to vector<4x64xf32>
    %325 = arith.mulf %322, %324 : vector<4x64xf32>
    %326 = arith.addf %320, %325 : vector<4x64xf32>
    %c1_258 = arith.constant 1 : index
    %c1_259 = arith.constant 1 : index
    %c1_260 = arith.constant 1 : index
    %c1_261 = arith.constant 1 : index
    %c0_262 = arith.constant 0 : index
    %327 = vector.load %arg7[%c1_258, %c1_259, %c1_260, %c1_261, %c0_262] : memref<2x2x4x6x80xf32, #tpu.memory_space<vmem>>, vector<1x1x1x4x64xf32>
    %328 = vector.shape_cast %327 : vector<1x1x1x4x64xf32> to vector<4x64xf32>
    %329 = vector.shape_cast %177 : vector<64xf32> to vector<1x64xf32>
    %330 = vector.broadcast %329 : vector<1x64xf32> to vector<4x64xf32>
    %331 = arith.mulf %328, %330 : vector<4x64xf32>
    %332 = arith.addf %326, %331 : vector<4x64xf32>
    %c1_263 = arith.constant 1 : index
    %c1_264 = arith.constant 1 : index
    %c1_265 = arith.constant 1 : index
    %c1_266 = arith.constant 1 : index
    %c8_267 = arith.constant 8 : index
    %333 = vector.load %arg7[%c1_263, %c1_264, %c1_265, %c1_266, %c8_267] : memref<2x2x4x6x80xf32, #tpu.memory_space<vmem>>, vector<1x1x1x4x64xf32>
    %334 = vector.shape_cast %333 : vector<1x1x1x4x64xf32> to vector<4x64xf32>
    %335 = vector.shape_cast %179 : vector<64xf32> to vector<1x64xf32>
    %336 = vector.broadcast %335 : vector<1x64xf32> to vector<4x64xf32>
    %337 = arith.mulf %334, %336 : vector<4x64xf32>
    %338 = arith.addf %332, %337 : vector<4x64xf32>
    %c1_268 = arith.constant 1 : index
    %c1_269 = arith.constant 1 : index
    %c1_270 = arith.constant 1 : index
    %c1_271 = arith.constant 1 : index
    %c16_272 = arith.constant 16 : index
    %339 = vector.load %arg7[%c1_268, %c1_269, %c1_270, %c1_271, %c16_272] : memref<2x2x4x6x80xf32, #tpu.memory_space<vmem>>, vector<1x1x1x4x64xf32>
    %340 = vector.shape_cast %339 : vector<1x1x1x4x64xf32> to vector<4x64xf32>
    %341 = vector.shape_cast %181 : vector<64xf32> to vector<1x64xf32>
    %342 = vector.broadcast %341 : vector<1x64xf32> to vector<4x64xf32>
    %343 = arith.mulf %340, %342 : vector<4x64xf32>
    %344 = arith.addf %338, %343 : vector<4x64xf32>
    %345 = vector.shape_cast %123 : vector<64xf32> to vector<1x64xf32>
    %346 = vector.broadcast %345 : vector<1x64xf32> to vector<4x64xf32>
    %347 = arith.addf %344, %346 : vector<4x64xf32>
    %cst_273 = arith.constant 0.000000e+00 : f32
    %cst_274 = arith.constant 6.000000e+00 : f32
    %348 = vector.broadcast %cst_273 : f32 to vector<4x64xf32>
    %349 = arith.maximumf %348, %347 : vector<4x64xf32>
    %350 = vector.broadcast %cst_274 : f32 to vector<4x64xf32>
    %351 = arith.minimumf %350, %349 : vector<4x64xf32>
    %cst_275 = arith.constant dense<0.000000e+00> : vector<4x64xf32>
    %352 = tpu.matmul %351, %121, %cst_275 {dimension_numbers = #tpu.dot_dimension_numbers<[1], [0], [0], [1], [0, 0, 1, 1], [], []>} : vector<4x64xf32>, vector<64x64xf32>, vector<4x64xf32> -> vector<4x64xf32>
    %c0_276 = arith.constant 0 : index
    %c0_277 = arith.constant 0 : index
    %c1_278 = arith.constant 1 : index
    %c1_279 = arith.constant 1 : index
    %c8_280 = arith.constant 8 : index
    %353 = vector.load %arg7[%c0_276, %c0_277, %c1_278, %c1_279, %c8_280] : memref<2x2x4x6x80xf32, #tpu.memory_space<vmem>>, vector<1x1x1x4x64xf32>
    %354 = vector.shape_cast %353 : vector<1x1x1x4x64xf32> to vector<4x64xf32>
    %355 = vector.shape_cast %125 : vector<64xf32> to vector<1x64xf32>
    %356 = vector.broadcast %355 : vector<1x64xf32> to vector<4x64xf32>
    %357 = arith.mulf %354, %356 : vector<4x64xf32>
    %358 = arith.addf %357, %352 : vector<4x64xf32>
    %359 = vector.shape_cast %127 : vector<64xf32> to vector<1x64xf32>
    %360 = vector.broadcast %359 : vector<1x64xf32> to vector<4x64xf32>
    %361 = arith.addf %358, %360 : vector<4x64xf32>
    %cst_281 = arith.constant 0.000000e+00 : f32
    %362 = vector.broadcast %cst_281 : f32 to vector<4x64xf32>
    %c1_282 = arith.constant 1 : index
    %c0_283 = arith.constant 0 : index
    %c0_284 = arith.constant 0 : index
    %c1_285 = arith.constant 1 : index
    %c0_286 = arith.constant 0 : index
    %363 = vector.load %arg7[%c1_282, %c0_283, %c0_284, %c1_285, %c0_286] : memref<2x2x4x6x80xf32, #tpu.memory_space<vmem>>, vector<1x1x1x4x64xf32>
    %364 = vector.shape_cast %363 : vector<1x1x1x4x64xf32> to vector<4x64xf32>
    %365 = vector.shape_cast %129 : vector<64xf32> to vector<1x64xf32>
    %366 = vector.broadcast %365 : vector<1x64xf32> to vector<4x64xf32>
    %367 = arith.mulf %364, %366 : vector<4x64xf32>
    %368 = arith.addf %362, %367 : vector<4x64xf32>
    %c1_287 = arith.constant 1 : index
    %c0_288 = arith.constant 0 : index
    %c0_289 = arith.constant 0 : index
    %c1_290 = arith.constant 1 : index
    %c8_291 = arith.constant 8 : index
    %369 = vector.load %arg7[%c1_287, %c0_288, %c0_289, %c1_290, %c8_291] : memref<2x2x4x6x80xf32, #tpu.memory_space<vmem>>, vector<1x1x1x4x64xf32>
    %370 = vector.shape_cast %369 : vector<1x1x1x4x64xf32> to vector<4x64xf32>
    %371 = vector.shape_cast %131 : vector<64xf32> to vector<1x64xf32>
    %372 = vector.broadcast %371 : vector<1x64xf32> to vector<4x64xf32>
    %373 = arith.mulf %370, %372 : vector<4x64xf32>
    %374 = arith.addf %368, %373 : vector<4x64xf32>
    %c1_292 = arith.constant 1 : index
    %c0_293 = arith.constant 0 : index
    %c0_294 = arith.constant 0 : index
    %c1_295 = arith.constant 1 : index
    %c16_296 = arith.constant 16 : index
    %375 = vector.load %arg7[%c1_292, %c0_293, %c0_294, %c1_295, %c16_296] : memref<2x2x4x6x80xf32, #tpu.memory_space<vmem>>, vector<1x1x1x4x64xf32>
    %376 = vector.shape_cast %375 : vector<1x1x1x4x64xf32> to vector<4x64xf32>
    %377 = vector.shape_cast %133 : vector<64xf32> to vector<1x64xf32>
    %378 = vector.broadcast %377 : vector<1x64xf32> to vector<4x64xf32>
    %379 = arith.mulf %376, %378 : vector<4x64xf32>
    %380 = arith.addf %374, %379 : vector<4x64xf32>
    %c1_297 = arith.constant 1 : index
    %c1_298 = arith.constant 1 : index
    %c0_299 = arith.constant 0 : index
    %c1_300 = arith.constant 1 : index
    %c0_301 = arith.constant 0 : index
    %381 = vector.load %arg7[%c1_297, %c1_298, %c0_299, %c1_300, %c0_301] : memref<2x2x4x6x80xf32, #tpu.memory_space<vmem>>, vector<1x1x1x4x64xf32>
    %382 = vector.shape_cast %381 : vector<1x1x1x4x64xf32> to vector<4x64xf32>
    %383 = vector.shape_cast %135 : vector<64xf32> to vector<1x64xf32>
    %384 = vector.broadcast %383 : vector<1x64xf32> to vector<4x64xf32>
    %385 = arith.mulf %382, %384 : vector<4x64xf32>
    %386 = arith.addf %380, %385 : vector<4x64xf32>
    %c1_302 = arith.constant 1 : index
    %c1_303 = arith.constant 1 : index
    %c0_304 = arith.constant 0 : index
    %c1_305 = arith.constant 1 : index
    %c8_306 = arith.constant 8 : index
    %387 = vector.load %arg7[%c1_302, %c1_303, %c0_304, %c1_305, %c8_306] : memref<2x2x4x6x80xf32, #tpu.memory_space<vmem>>, vector<1x1x1x4x64xf32>
    %388 = vector.shape_cast %387 : vector<1x1x1x4x64xf32> to vector<4x64xf32>
    %389 = vector.shape_cast %137 : vector<64xf32> to vector<1x64xf32>
    %390 = vector.broadcast %389 : vector<1x64xf32> to vector<4x64xf32>
    %391 = arith.mulf %388, %390 : vector<4x64xf32>
    %392 = arith.addf %386, %391 : vector<4x64xf32>
    %c1_307 = arith.constant 1 : index
    %c1_308 = arith.constant 1 : index
    %c0_309 = arith.constant 0 : index
    %c1_310 = arith.constant 1 : index
    %c16_311 = arith.constant 16 : index
    %393 = vector.load %arg7[%c1_307, %c1_308, %c0_309, %c1_310, %c16_311] : memref<2x2x4x6x80xf32, #tpu.memory_space<vmem>>, vector<1x1x1x4x64xf32>
    %394 = vector.shape_cast %393 : vector<1x1x1x4x64xf32> to vector<4x64xf32>
    %395 = vector.shape_cast %139 : vector<64xf32> to vector<1x64xf32>
    %396 = vector.broadcast %395 : vector<1x64xf32> to vector<4x64xf32>
    %397 = arith.mulf %394, %396 : vector<4x64xf32>
    %398 = arith.addf %392, %397 : vector<4x64xf32>
    %c1_312 = arith.constant 1 : index
    %c0_313 = arith.constant 0 : index
    %c0_314 = arith.constant 0 : index
    %c2_315 = arith.constant 2 : index
    %c0_316 = arith.constant 0 : index
    %399 = vector.load %arg7[%c1_312, %c0_313, %c0_314, %c2_315, %c0_316] : memref<2x2x4x6x80xf32, #tpu.memory_space<vmem>>, vector<1x1x1x4x64xf32>
    %400 = vector.shape_cast %399 : vector<1x1x1x4x64xf32> to vector<4x64xf32>
    %401 = vector.shape_cast %141 : vector<64xf32> to vector<1x64xf32>
    %402 = vector.broadcast %401 : vector<1x64xf32> to vector<4x64xf32>
    %403 = arith.mulf %400, %402 : vector<4x64xf32>
    %404 = arith.addf %398, %403 : vector<4x64xf32>
    %c1_317 = arith.constant 1 : index
    %c0_318 = arith.constant 0 : index
    %c0_319 = arith.constant 0 : index
    %c2_320 = arith.constant 2 : index
    %c8_321 = arith.constant 8 : index
    %405 = vector.load %arg7[%c1_317, %c0_318, %c0_319, %c2_320, %c8_321] : memref<2x2x4x6x80xf32, #tpu.memory_space<vmem>>, vector<1x1x1x4x64xf32>
    %406 = vector.shape_cast %405 : vector<1x1x1x4x64xf32> to vector<4x64xf32>
    %407 = vector.shape_cast %143 : vector<64xf32> to vector<1x64xf32>
    %408 = vector.broadcast %407 : vector<1x64xf32> to vector<4x64xf32>
    %409 = arith.mulf %406, %408 : vector<4x64xf32>
    %410 = arith.addf %404, %409 : vector<4x64xf32>
    %c1_322 = arith.constant 1 : index
    %c0_323 = arith.constant 0 : index
    %c0_324 = arith.constant 0 : index
    %c2_325 = arith.constant 2 : index
    %c16_326 = arith.constant 16 : index
    %411 = vector.load %arg7[%c1_322, %c0_323, %c0_324, %c2_325, %c16_326] : memref<2x2x4x6x80xf32, #tpu.memory_space<vmem>>, vector<1x1x1x4x64xf32>
    %412 = vector.shape_cast %411 : vector<1x1x1x4x64xf32> to vector<4x64xf32>
    %413 = vector.shape_cast %145 : vector<64xf32> to vector<1x64xf32>
    %414 = vector.broadcast %413 : vector<1x64xf32> to vector<4x64xf32>
    %415 = arith.mulf %412, %414 : vector<4x64xf32>
    %416 = arith.addf %410, %415 : vector<4x64xf32>
    %c0_327 = arith.constant 0 : index
    %c0_328 = arith.constant 0 : index
    %c1_329 = arith.constant 1 : index
    %c1_330 = arith.constant 1 : index
    %c0_331 = arith.constant 0 : index
    %417 = vector.load %arg7[%c0_327, %c0_328, %c1_329, %c1_330, %c0_331] : memref<2x2x4x6x80xf32, #tpu.memory_space<vmem>>, vector<1x1x1x4x64xf32>
    %418 = vector.shape_cast %417 : vector<1x1x1x4x64xf32> to vector<4x64xf32>
    %419 = vector.shape_cast %147 : vector<64xf32> to vector<1x64xf32>
    %420 = vector.broadcast %419 : vector<1x64xf32> to vector<4x64xf32>
    %421 = arith.mulf %418, %420 : vector<4x64xf32>
    %422 = arith.addf %416, %421 : vector<4x64xf32>
    %c0_332 = arith.constant 0 : index
    %c0_333 = arith.constant 0 : index
    %c1_334 = arith.constant 1 : index
    %c1_335 = arith.constant 1 : index
    %c8_336 = arith.constant 8 : index
    %423 = vector.load %arg7[%c0_332, %c0_333, %c1_334, %c1_335, %c8_336] : memref<2x2x4x6x80xf32, #tpu.memory_space<vmem>>, vector<1x1x1x4x64xf32>
    %424 = vector.shape_cast %423 : vector<1x1x1x4x64xf32> to vector<4x64xf32>
    %425 = vector.shape_cast %149 : vector<64xf32> to vector<1x64xf32>
    %426 = vector.broadcast %425 : vector<1x64xf32> to vector<4x64xf32>
    %427 = arith.mulf %424, %426 : vector<4x64xf32>
    %428 = arith.addf %422, %427 : vector<4x64xf32>
    %c0_337 = arith.constant 0 : index
    %c0_338 = arith.constant 0 : index
    %c1_339 = arith.constant 1 : index
    %c1_340 = arith.constant 1 : index
    %c16_341 = arith.constant 16 : index
    %429 = vector.load %arg7[%c0_337, %c0_338, %c1_339, %c1_340, %c16_341] : memref<2x2x4x6x80xf32, #tpu.memory_space<vmem>>, vector<1x1x1x4x64xf32>
    %430 = vector.shape_cast %429 : vector<1x1x1x4x64xf32> to vector<4x64xf32>
    %431 = vector.shape_cast %151 : vector<64xf32> to vector<1x64xf32>
    %432 = vector.broadcast %431 : vector<1x64xf32> to vector<4x64xf32>
    %433 = arith.mulf %430, %432 : vector<4x64xf32>
    %434 = arith.addf %428, %433 : vector<4x64xf32>
    %c0_342 = arith.constant 0 : index
    %c1_343 = arith.constant 1 : index
    %c1_344 = arith.constant 1 : index
    %c1_345 = arith.constant 1 : index
    %c0_346 = arith.constant 0 : index
    %435 = vector.load %arg7[%c0_342, %c1_343, %c1_344, %c1_345, %c0_346] : memref<2x2x4x6x80xf32, #tpu.memory_space<vmem>>, vector<1x1x1x4x64xf32>
    %436 = vector.shape_cast %435 : vector<1x1x1x4x64xf32> to vector<4x64xf32>
    %437 = vector.shape_cast %153 : vector<64xf32> to vector<1x64xf32>
    %438 = vector.broadcast %437 : vector<1x64xf32> to vector<4x64xf32>
    %439 = arith.mulf %436, %438 : vector<4x64xf32>
    %440 = arith.addf %434, %439 : vector<4x64xf32>
    %c0_347 = arith.constant 0 : index
    %c1_348 = arith.constant 1 : index
    %c1_349 = arith.constant 1 : index
    %c1_350 = arith.constant 1 : index
    %c8_351 = arith.constant 8 : index
    %441 = vector.load %arg7[%c0_347, %c1_348, %c1_349, %c1_350, %c8_351] : memref<2x2x4x6x80xf32, #tpu.memory_space<vmem>>, vector<1x1x1x4x64xf32>
    %442 = vector.shape_cast %441 : vector<1x1x1x4x64xf32> to vector<4x64xf32>
    %443 = vector.shape_cast %155 : vector<64xf32> to vector<1x64xf32>
    %444 = vector.broadcast %443 : vector<1x64xf32> to vector<4x64xf32>
    %445 = arith.mulf %442, %444 : vector<4x64xf32>
    %446 = arith.addf %440, %445 : vector<4x64xf32>
    %c0_352 = arith.constant 0 : index
    %c1_353 = arith.constant 1 : index
    %c1_354 = arith.constant 1 : index
    %c1_355 = arith.constant 1 : index
    %c16_356 = arith.constant 16 : index
    %447 = vector.load %arg7[%c0_352, %c1_353, %c1_354, %c1_355, %c16_356] : memref<2x2x4x6x80xf32, #tpu.memory_space<vmem>>, vector<1x1x1x4x64xf32>
    %448 = vector.shape_cast %447 : vector<1x1x1x4x64xf32> to vector<4x64xf32>
    %449 = vector.shape_cast %157 : vector<64xf32> to vector<1x64xf32>
    %450 = vector.broadcast %449 : vector<1x64xf32> to vector<4x64xf32>
    %451 = arith.mulf %448, %450 : vector<4x64xf32>
    %452 = arith.addf %446, %451 : vector<4x64xf32>
    %c0_357 = arith.constant 0 : index
    %c0_358 = arith.constant 0 : index
    %c1_359 = arith.constant 1 : index
    %c2_360 = arith.constant 2 : index
    %c0_361 = arith.constant 0 : index
    %453 = vector.load %arg7[%c0_357, %c0_358, %c1_359, %c2_360, %c0_361] : memref<2x2x4x6x80xf32, #tpu.memory_space<vmem>>, vector<1x1x1x4x64xf32>
    %454 = vector.shape_cast %453 : vector<1x1x1x4x64xf32> to vector<4x64xf32>
    %455 = vector.shape_cast %159 : vector<64xf32> to vector<1x64xf32>
    %456 = vector.broadcast %455 : vector<1x64xf32> to vector<4x64xf32>
    %457 = arith.mulf %454, %456 : vector<4x64xf32>
    %458 = arith.addf %452, %457 : vector<4x64xf32>
    %c0_362 = arith.constant 0 : index
    %c0_363 = arith.constant 0 : index
    %c1_364 = arith.constant 1 : index
    %c2_365 = arith.constant 2 : index
    %c8_366 = arith.constant 8 : index
    %459 = vector.load %arg7[%c0_362, %c0_363, %c1_364, %c2_365, %c8_366] : memref<2x2x4x6x80xf32, #tpu.memory_space<vmem>>, vector<1x1x1x4x64xf32>
    %460 = vector.shape_cast %459 : vector<1x1x1x4x64xf32> to vector<4x64xf32>
    %461 = vector.shape_cast %161 : vector<64xf32> to vector<1x64xf32>
    %462 = vector.broadcast %461 : vector<1x64xf32> to vector<4x64xf32>
    %463 = arith.mulf %460, %462 : vector<4x64xf32>
    %464 = arith.addf %458, %463 : vector<4x64xf32>
    %c0_367 = arith.constant 0 : index
    %c0_368 = arith.constant 0 : index
    %c1_369 = arith.constant 1 : index
    %c2_370 = arith.constant 2 : index
    %c16_371 = arith.constant 16 : index
    %465 = vector.load %arg7[%c0_367, %c0_368, %c1_369, %c2_370, %c16_371] : memref<2x2x4x6x80xf32, #tpu.memory_space<vmem>>, vector<1x1x1x4x64xf32>
    %466 = vector.shape_cast %465 : vector<1x1x1x4x64xf32> to vector<4x64xf32>
    %467 = vector.shape_cast %163 : vector<64xf32> to vector<1x64xf32>
    %468 = vector.broadcast %467 : vector<1x64xf32> to vector<4x64xf32>
    %469 = arith.mulf %466, %468 : vector<4x64xf32>
    %470 = arith.addf %464, %469 : vector<4x64xf32>
    %c1_372 = arith.constant 1 : index
    %c0_373 = arith.constant 0 : index
    %c1_374 = arith.constant 1 : index
    %c1_375 = arith.constant 1 : index
    %c0_376 = arith.constant 0 : index
    %471 = vector.load %arg7[%c1_372, %c0_373, %c1_374, %c1_375, %c0_376] : memref<2x2x4x6x80xf32, #tpu.memory_space<vmem>>, vector<1x1x1x4x64xf32>
    %472 = vector.shape_cast %471 : vector<1x1x1x4x64xf32> to vector<4x64xf32>
    %473 = vector.shape_cast %165 : vector<64xf32> to vector<1x64xf32>
    %474 = vector.broadcast %473 : vector<1x64xf32> to vector<4x64xf32>
    %475 = arith.mulf %472, %474 : vector<4x64xf32>
    %476 = arith.addf %470, %475 : vector<4x64xf32>
    %c1_377 = arith.constant 1 : index
    %c0_378 = arith.constant 0 : index
    %c1_379 = arith.constant 1 : index
    %c1_380 = arith.constant 1 : index
    %c8_381 = arith.constant 8 : index
    %477 = vector.load %arg7[%c1_377, %c0_378, %c1_379, %c1_380, %c8_381] : memref<2x2x4x6x80xf32, #tpu.memory_space<vmem>>, vector<1x1x1x4x64xf32>
    %478 = vector.shape_cast %477 : vector<1x1x1x4x64xf32> to vector<4x64xf32>
    %479 = vector.shape_cast %167 : vector<64xf32> to vector<1x64xf32>
    %480 = vector.broadcast %479 : vector<1x64xf32> to vector<4x64xf32>
    %481 = arith.mulf %478, %480 : vector<4x64xf32>
    %482 = arith.addf %476, %481 : vector<4x64xf32>
    %c1_382 = arith.constant 1 : index
    %c0_383 = arith.constant 0 : index
    %c1_384 = arith.constant 1 : index
    %c1_385 = arith.constant 1 : index
    %c16_386 = arith.constant 16 : index
    %483 = vector.load %arg7[%c1_382, %c0_383, %c1_384, %c1_385, %c16_386] : memref<2x2x4x6x80xf32, #tpu.memory_space<vmem>>, vector<1x1x1x4x64xf32>
    %484 = vector.shape_cast %483 : vector<1x1x1x4x64xf32> to vector<4x64xf32>
    %485 = vector.shape_cast %169 : vector<64xf32> to vector<1x64xf32>
    %486 = vector.broadcast %485 : vector<1x64xf32> to vector<4x64xf32>
    %487 = arith.mulf %484, %486 : vector<4x64xf32>
    %488 = arith.addf %482, %487 : vector<4x64xf32>
    %c1_387 = arith.constant 1 : index
    %c1_388 = arith.constant 1 : index
    %c1_389 = arith.constant 1 : index
    %c1_390 = arith.constant 1 : index
    %c0_391 = arith.constant 0 : index
    %489 = vector.load %arg7[%c1_387, %c1_388, %c1_389, %c1_390, %c0_391] : memref<2x2x4x6x80xf32, #tpu.memory_space<vmem>>, vector<1x1x1x4x64xf32>
    %490 = vector.shape_cast %489 : vector<1x1x1x4x64xf32> to vector<4x64xf32>
    %491 = vector.shape_cast %171 : vector<64xf32> to vector<1x64xf32>
    %492 = vector.broadcast %491 : vector<1x64xf32> to vector<4x64xf32>
    %493 = arith.mulf %490, %492 : vector<4x64xf32>
    %494 = arith.addf %488, %493 : vector<4x64xf32>
    %c1_392 = arith.constant 1 : index
    %c1_393 = arith.constant 1 : index
    %c1_394 = arith.constant 1 : index
    %c1_395 = arith.constant 1 : index
    %c8_396 = arith.constant 8 : index
    %495 = vector.load %arg7[%c1_392, %c1_393, %c1_394, %c1_395, %c8_396] : memref<2x2x4x6x80xf32, #tpu.memory_space<vmem>>, vector<1x1x1x4x64xf32>
    %496 = vector.shape_cast %495 : vector<1x1x1x4x64xf32> to vector<4x64xf32>
    %497 = vector.shape_cast %173 : vector<64xf32> to vector<1x64xf32>
    %498 = vector.broadcast %497 : vector<1x64xf32> to vector<4x64xf32>
    %499 = arith.mulf %496, %498 : vector<4x64xf32>
    %500 = arith.addf %494, %499 : vector<4x64xf32>
    %c1_397 = arith.constant 1 : index
    %c1_398 = arith.constant 1 : index
    %c1_399 = arith.constant 1 : index
    %c1_400 = arith.constant 1 : index
    %c16_401 = arith.constant 16 : index
    %501 = vector.load %arg7[%c1_397, %c1_398, %c1_399, %c1_400, %c16_401] : memref<2x2x4x6x80xf32, #tpu.memory_space<vmem>>, vector<1x1x1x4x64xf32>
    %502 = vector.shape_cast %501 : vector<1x1x1x4x64xf32> to vector<4x64xf32>
    %503 = vector.shape_cast %175 : vector<64xf32> to vector<1x64xf32>
    %504 = vector.broadcast %503 : vector<1x64xf32> to vector<4x64xf32>
    %505 = arith.mulf %502, %504 : vector<4x64xf32>
    %506 = arith.addf %500, %505 : vector<4x64xf32>
    %c1_402 = arith.constant 1 : index
    %c0_403 = arith.constant 0 : index
    %c1_404 = arith.constant 1 : index
    %c2_405 = arith.constant 2 : index
    %c0_406 = arith.constant 0 : index
    %507 = vector.load %arg7[%c1_402, %c0_403, %c1_404, %c2_405, %c0_406] : memref<2x2x4x6x80xf32, #tpu.memory_space<vmem>>, vector<1x1x1x4x64xf32>
    %508 = vector.shape_cast %507 : vector<1x1x1x4x64xf32> to vector<4x64xf32>
    %509 = vector.shape_cast %177 : vector<64xf32> to vector<1x64xf32>
    %510 = vector.broadcast %509 : vector<1x64xf32> to vector<4x64xf32>
    %511 = arith.mulf %508, %510 : vector<4x64xf32>
    %512 = arith.addf %506, %511 : vector<4x64xf32>
    %c1_407 = arith.constant 1 : index
    %c0_408 = arith.constant 0 : index
    %c1_409 = arith.constant 1 : index
    %c2_410 = arith.constant 2 : index
    %c8_411 = arith.constant 8 : index
    %513 = vector.load %arg7[%c1_407, %c0_408, %c1_409, %c2_410, %c8_411] : memref<2x2x4x6x80xf32, #tpu.memory_space<vmem>>, vector<1x1x1x4x64xf32>
    %514 = vector.shape_cast %513 : vector<1x1x1x4x64xf32> to vector<4x64xf32>
    %515 = vector.shape_cast %179 : vector<64xf32> to vector<1x64xf32>
    %516 = vector.broadcast %515 : vector<1x64xf32> to vector<4x64xf32>
    %517 = arith.mulf %514, %516 : vector<4x64xf32>
    %518 = arith.addf %512, %517 : vector<4x64xf32>
    %c1_412 = arith.constant 1 : index
    %c0_413 = arith.constant 0 : index
    %c1_414 = arith.constant 1 : index
    %c2_415 = arith.constant 2 : index
    %c16_416 = arith.constant 16 : index
    %519 = vector.load %arg7[%c1_412, %c0_413, %c1_414, %c2_415, %c16_416] : memref<2x2x4x6x80xf32, #tpu.memory_space<vmem>>, vector<1x1x1x4x64xf32>
    %520 = vector.shape_cast %519 : vector<1x1x1x4x64xf32> to vector<4x64xf32>
    %521 = vector.shape_cast %181 : vector<64xf32> to vector<1x64xf32>
    %522 = vector.broadcast %521 : vector<1x64xf32> to vector<4x64xf32>
    %523 = arith.mulf %520, %522 : vector<4x64xf32>
    %524 = arith.addf %518, %523 : vector<4x64xf32>
    %525 = vector.shape_cast %123 : vector<64xf32> to vector<1x64xf32>
    %526 = vector.broadcast %525 : vector<1x64xf32> to vector<4x64xf32>
    %527 = arith.addf %524, %526 : vector<4x64xf32>
    %cst_417 = arith.constant 0.000000e+00 : f32
    %cst_418 = arith.constant 6.000000e+00 : f32
    %528 = vector.broadcast %cst_417 : f32 to vector<4x64xf32>
    %529 = arith.maximumf %528, %527 : vector<4x64xf32>
    %530 = vector.broadcast %cst_418 : f32 to vector<4x64xf32>
    %531 = arith.minimumf %530, %529 : vector<4x64xf32>
    %cst_419 = arith.constant dense<0.000000e+00> : vector<4x64xf32>
    %532 = tpu.matmul %531, %121, %cst_419 {dimension_numbers = #tpu.dot_dimension_numbers<[1], [0], [0], [1], [0, 0, 1, 1], [], []>} : vector<4x64xf32>, vector<64x64xf32>, vector<4x64xf32> -> vector<4x64xf32>
    %c0_420 = arith.constant 0 : index
    %c1_421 = arith.constant 1 : index
    %c1_422 = arith.constant 1 : index
    %c1_423 = arith.constant 1 : index
    %c8_424 = arith.constant 8 : index
    %533 = vector.load %arg7[%c0_420, %c1_421, %c1_422, %c1_423, %c8_424] : memref<2x2x4x6x80xf32, #tpu.memory_space<vmem>>, vector<1x1x1x4x64xf32>
    %534 = vector.shape_cast %533 : vector<1x1x1x4x64xf32> to vector<4x64xf32>
    %535 = vector.shape_cast %125 : vector<64xf32> to vector<1x64xf32>
    %536 = vector.broadcast %535 : vector<1x64xf32> to vector<4x64xf32>
    %537 = arith.mulf %534, %536 : vector<4x64xf32>
    %538 = arith.addf %537, %532 : vector<4x64xf32>
    %539 = vector.shape_cast %127 : vector<64xf32> to vector<1x64xf32>
    %540 = vector.broadcast %539 : vector<1x64xf32> to vector<4x64xf32>
    %541 = arith.addf %538, %540 : vector<4x64xf32>
    %542 = tpu.concatenate %361, %541 in 1 : vector<4x64xf32>, vector<4x64xf32> -> vector<4x128xf32>
    %c0_425 = arith.constant 0 : index
    %c0_426 = arith.constant 0 : index
    %c0_427 = arith.constant 0 : index
    %c0_428 = arith.constant 0 : index
    %c0_429 = arith.constant 0 : index
    %543 = vector.load %arg6[%c0_425, %c0_426, %c0_427, %c0_428, %c0_429] : memref<1x2x2x4x128xf32, #tpu.memory_space<vmem>>, vector<1x1x1x4x128xf32>
    %544 = vector.shape_cast %543 : vector<1x1x1x4x128xf32> to vector<4x128xf32>
    %545 = vector.shape_cast %542 : vector<4x128xf32> to vector<1x1x1x4x128xf32>
    tpu.vector_store %arg6[%c0_425, %c0_426, %c0_427, %c0_428, %c0_429], %545 {strides = array<i32>} : memref<1x2x2x4x128xf32, #tpu.memory_space<vmem>>, vector<1x1x1x4x128xf32>,
    %cst_430 = arith.constant 0.000000e+00 : f32
    %546 = vector.broadcast %cst_430 : f32 to vector<4x64xf32>
    %c1_431 = arith.constant 1 : index
    %c1_432 = arith.constant 1 : index
    %c1_433 = arith.constant 1 : index
    %c0_434 = arith.constant 0 : index
    %c0_435 = arith.constant 0 : index
    %547 = vector.load %arg7[%c1_431, %c1_432, %c1_433, %c0_434, %c0_435] : memref<2x2x4x6x80xf32, #tpu.memory_space<vmem>>, vector<1x1x1x4x64xf32>
    %548 = vector.shape_cast %547 : vector<1x1x1x4x64xf32> to vector<4x64xf32>
    %549 = vector.shape_cast %129 : vector<64xf32> to vector<1x64xf32>
    %550 = vector.broadcast %549 : vector<1x64xf32> to vector<4x64xf32>
    %551 = arith.mulf %548, %550 : vector<4x64xf32>
    %552 = arith.addf %546, %551 : vector<4x64xf32>
    %c1_436 = arith.constant 1 : index
    %c1_437 = arith.constant 1 : index
    %c1_438 = arith.constant 1 : index
    %c0_439 = arith.constant 0 : index
    %c8_440 = arith.constant 8 : index
    %553 = vector.load %arg7[%c1_436, %c1_437, %c1_438, %c0_439, %c8_440] : memref<2x2x4x6x80xf32, #tpu.memory_space<vmem>>, vector<1x1x1x4x64xf32>
    %554 = vector.shape_cast %553 : vector<1x1x1x4x64xf32> to vector<4x64xf32>
    %555 = vector.shape_cast %131 : vector<64xf32> to vector<1x64xf32>
    %556 = vector.broadcast %555 : vector<1x64xf32> to vector<4x64xf32>
    %557 = arith.mulf %554, %556 : vector<4x64xf32>
    %558 = arith.addf %552, %557 : vector<4x64xf32>
    %c1_441 = arith.constant 1 : index
    %c1_442 = arith.constant 1 : index
    %c1_443 = arith.constant 1 : index
    %c0_444 = arith.constant 0 : index
    %c16_445 = arith.constant 16 : index
    %559 = vector.load %arg7[%c1_441, %c1_442, %c1_443, %c0_444, %c16_445] : memref<2x2x4x6x80xf32, #tpu.memory_space<vmem>>, vector<1x1x1x4x64xf32>
    %560 = vector.shape_cast %559 : vector<1x1x1x4x64xf32> to vector<4x64xf32>
    %561 = vector.shape_cast %133 : vector<64xf32> to vector<1x64xf32>
    %562 = vector.broadcast %561 : vector<1x64xf32> to vector<4x64xf32>
    %563 = arith.mulf %560, %562 : vector<4x64xf32>
    %564 = arith.addf %558, %563 : vector<4x64xf32>
    %c1_446 = arith.constant 1 : index
    %c0_447 = arith.constant 0 : index
    %c1_448 = arith.constant 1 : index
    %c1_449 = arith.constant 1 : index
    %c0_450 = arith.constant 0 : index
    %565 = vector.load %arg7[%c1_446, %c0_447, %c1_448, %c1_449, %c0_450] : memref<2x2x4x6x80xf32, #tpu.memory_space<vmem>>, vector<1x1x1x4x64xf32>
    %566 = vector.shape_cast %565 : vector<1x1x1x4x64xf32> to vector<4x64xf32>
    %567 = vector.shape_cast %135 : vector<64xf32> to vector<1x64xf32>
    %568 = vector.broadcast %567 : vector<1x64xf32> to vector<4x64xf32>
    %569 = arith.mulf %566, %568 : vector<4x64xf32>
    %570 = arith.addf %564, %569 : vector<4x64xf32>
    %c1_451 = arith.constant 1 : index
    %c0_452 = arith.constant 0 : index
    %c1_453 = arith.constant 1 : index
    %c1_454 = arith.constant 1 : index
    %c8_455 = arith.constant 8 : index
    %571 = vector.load %arg7[%c1_451, %c0_452, %c1_453, %c1_454, %c8_455] : memref<2x2x4x6x80xf32, #tpu.memory_space<vmem>>, vector<1x1x1x4x64xf32>
    %572 = vector.shape_cast %571 : vector<1x1x1x4x64xf32> to vector<4x64xf32>
    %573 = vector.shape_cast %137 : vector<64xf32> to vector<1x64xf32>
    %574 = vector.broadcast %573 : vector<1x64xf32> to vector<4x64xf32>
    %575 = arith.mulf %572, %574 : vector<4x64xf32>
    %576 = arith.addf %570, %575 : vector<4x64xf32>
    %c1_456 = arith.constant 1 : index
    %c0_457 = arith.constant 0 : index
    %c1_458 = arith.constant 1 : index
    %c1_459 = arith.constant 1 : index
    %c16_460 = arith.constant 16 : index
    %577 = vector.load %arg7[%c1_456, %c0_457, %c1_458, %c1_459, %c16_460] : memref<2x2x4x6x80xf32, #tpu.memory_space<vmem>>, vector<1x1x1x4x64xf32>
    %578 = vector.shape_cast %577 : vector<1x1x1x4x64xf32> to vector<4x64xf32>
    %579 = vector.shape_cast %139 : vector<64xf32> to vector<1x64xf32>
    %580 = vector.broadcast %579 : vector<1x64xf32> to vector<4x64xf32>
    %581 = arith.mulf %578, %580 : vector<4x64xf32>
    %582 = arith.addf %576, %581 : vector<4x64xf32>
    %c1_461 = arith.constant 1 : index
    %c1_462 = arith.constant 1 : index
    %c1_463 = arith.constant 1 : index
    %c1_464 = arith.constant 1 : index
    %c0_465 = arith.constant 0 : index
    %583 = vector.load %arg7[%c1_461, %c1_462, %c1_463, %c1_464, %c0_465] : memref<2x2x4x6x80xf32, #tpu.memory_space<vmem>>, vector<1x1x1x4x64xf32>
    %584 = vector.shape_cast %583 : vector<1x1x1x4x64xf32> to vector<4x64xf32>
    %585 = vector.shape_cast %141 : vector<64xf32> to vector<1x64xf32>
    %586 = vector.broadcast %585 : vector<1x64xf32> to vector<4x64xf32>
    %587 = arith.mulf %584, %586 : vector<4x64xf32>
    %588 = arith.addf %582, %587 : vector<4x64xf32>
    %c1_466 = arith.constant 1 : index
    %c1_467 = arith.constant 1 : index
    %c1_468 = arith.constant 1 : index
    %c1_469 = arith.constant 1 : index
    %c8_470 = arith.constant 8 : index
    %589 = vector.load %arg7[%c1_466, %c1_467, %c1_468, %c1_469, %c8_470] : memref<2x2x4x6x80xf32, #tpu.memory_space<vmem>>, vector<1x1x1x4x64xf32>
    %590 = vector.shape_cast %589 : vector<1x1x1x4x64xf32> to vector<4x64xf32>
    %591 = vector.shape_cast %143 : vector<64xf32> to vector<1x64xf32>
    %592 = vector.broadcast %591 : vector<1x64xf32> to vector<4x64xf32>
    %593 = arith.mulf %590, %592 : vector<4x64xf32>
    %594 = arith.addf %588, %593 : vector<4x64xf32>
    %c1_471 = arith.constant 1 : index
    %c1_472 = arith.constant 1 : index
    %c1_473 = arith.constant 1 : index
    %c1_474 = arith.constant 1 : index
    %c16_475 = arith.constant 16 : index
    %595 = vector.load %arg7[%c1_471, %c1_472, %c1_473, %c1_474, %c16_475] : memref<2x2x4x6x80xf32, #tpu.memory_space<vmem>>, vector<1x1x1x4x64xf32>
    %596 = vector.shape_cast %595 : vector<1x1x1x4x64xf32> to vector<4x64xf32>
    %597 = vector.shape_cast %145 : vector<64xf32> to vector<1x64xf32>
    %598 = vector.broadcast %597 : vector<1x64xf32> to vector<4x64xf32>
    %599 = arith.mulf %596, %598 : vector<4x64xf32>
    %600 = arith.addf %594, %599 : vector<4x64xf32>
    %c0_476 = arith.constant 0 : index
    %c1_477 = arith.constant 1 : index
    %c2_478 = arith.constant 2 : index
    %c0_479 = arith.constant 0 : index
    %c0_480 = arith.constant 0 : index
    %601 = vector.load %arg7[%c0_476, %c1_477, %c2_478, %c0_479, %c0_480] : memref<2x2x4x6x80xf32, #tpu.memory_space<vmem>>, vector<1x1x1x4x64xf32>
    %602 = vector.shape_cast %601 : vector<1x1x1x4x64xf32> to vector<4x64xf32>
    %603 = vector.shape_cast %147 : vector<64xf32> to vector<1x64xf32>
    %604 = vector.broadcast %603 : vector<1x64xf32> to vector<4x64xf32>
    %605 = arith.mulf %602, %604 : vector<4x64xf32>
    %606 = arith.addf %600, %605 : vector<4x64xf32>
    %c0_481 = arith.constant 0 : index
    %c1_482 = arith.constant 1 : index
    %c2_483 = arith.constant 2 : index
    %c0_484 = arith.constant 0 : index
    %c8_485 = arith.constant 8 : index
    %607 = vector.load %arg7[%c0_481, %c1_482, %c2_483, %c0_484, %c8_485] : memref<2x2x4x6x80xf32, #tpu.memory_space<vmem>>, vector<1x1x1x4x64xf32>
    %608 = vector.shape_cast %607 : vector<1x1x1x4x64xf32> to vector<4x64xf32>
    %609 = vector.shape_cast %149 : vector<64xf32> to vector<1x64xf32>
    %610 = vector.broadcast %609 : vector<1x64xf32> to vector<4x64xf32>
    %611 = arith.mulf %608, %610 : vector<4x64xf32>
    %612 = arith.addf %606, %611 : vector<4x64xf32>
    %c0_486 = arith.constant 0 : index
    %c1_487 = arith.constant 1 : index
    %c2_488 = arith.constant 2 : index
    %c0_489 = arith.constant 0 : index
    %c16_490 = arith.constant 16 : index
    %613 = vector.load %arg7[%c0_486, %c1_487, %c2_488, %c0_489, %c16_490] : memref<2x2x4x6x80xf32, #tpu.memory_space<vmem>>, vector<1x1x1x4x64xf32>
    %614 = vector.shape_cast %613 : vector<1x1x1x4x64xf32> to vector<4x64xf32>
    %615 = vector.shape_cast %151 : vector<64xf32> to vector<1x64xf32>
    %616 = vector.broadcast %615 : vector<1x64xf32> to vector<4x64xf32>
    %617 = arith.mulf %614, %616 : vector<4x64xf32>
    %618 = arith.addf %612, %617 : vector<4x64xf32>
    %c0_491 = arith.constant 0 : index
    %c0_492 = arith.constant 0 : index
    %c2_493 = arith.constant 2 : index
    %c1_494 = arith.constant 1 : index
    %c0_495 = arith.constant 0 : index
    %619 = vector.load %arg7[%c0_491, %c0_492, %c2_493, %c1_494, %c0_495] : memref<2x2x4x6x80xf32, #tpu.memory_space<vmem>>, vector<1x1x1x4x64xf32>
    %620 = vector.shape_cast %619 : vector<1x1x1x4x64xf32> to vector<4x64xf32>
    %621 = vector.shape_cast %153 : vector<64xf32> to vector<1x64xf32>
    %622 = vector.broadcast %621 : vector<1x64xf32> to vector<4x64xf32>
    %623 = arith.mulf %620, %622 : vector<4x64xf32>
    %624 = arith.addf %618, %623 : vector<4x64xf32>
    %c0_496 = arith.constant 0 : index
    %c0_497 = arith.constant 0 : index
    %c2_498 = arith.constant 2 : index
    %c1_499 = arith.constant 1 : index
    %c8_500 = arith.constant 8 : index
    %625 = vector.load %arg7[%c0_496, %c0_497, %c2_498, %c1_499, %c8_500] : memref<2x2x4x6x80xf32, #tpu.memory_space<vmem>>, vector<1x1x1x4x64xf32>
    %626 = vector.shape_cast %625 : vector<1x1x1x4x64xf32> to vector<4x64xf32>
    %627 = vector.shape_cast %155 : vector<64xf32> to vector<1x64xf32>
    %628 = vector.broadcast %627 : vector<1x64xf32> to vector<4x64xf32>
    %629 = arith.mulf %626, %628 : vector<4x64xf32>
    %630 = arith.addf %624, %629 : vector<4x64xf32>
    %c0_501 = arith.constant 0 : index
    %c0_502 = arith.constant 0 : index
    %c2_503 = arith.constant 2 : index
    %c1_504 = arith.constant 1 : index
    %c16_505 = arith.constant 16 : index
    %631 = vector.load %arg7[%c0_501, %c0_502, %c2_503, %c1_504, %c16_505] : memref<2x2x4x6x80xf32, #tpu.memory_space<vmem>>, vector<1x1x1x4x64xf32>
    %632 = vector.shape_cast %631 : vector<1x1x1x4x64xf32> to vector<4x64xf32>
    %633 = vector.shape_cast %157 : vector<64xf32> to vector<1x64xf32>
    %634 = vector.broadcast %633 : vector<1x64xf32> to vector<4x64xf32>
    %635 = arith.mulf %632, %634 : vector<4x64xf32>
    %636 = arith.addf %630, %635 : vector<4x64xf32>
    %c0_506 = arith.constant 0 : index
    %c1_507 = arith.constant 1 : index
    %c2_508 = arith.constant 2 : index
    %c1_509 = arith.constant 1 : index
    %c0_510 = arith.constant 0 : index
    %637 = vector.load %arg7[%c0_506, %c1_507, %c2_508, %c1_509, %c0_510] : memref<2x2x4x6x80xf32, #tpu.memory_space<vmem>>, vector<1x1x1x4x64xf32>
    %638 = vector.shape_cast %637 : vector<1x1x1x4x64xf32> to vector<4x64xf32>
    %639 = vector.shape_cast %159 : vector<64xf32> to vector<1x64xf32>
    %640 = vector.broadcast %639 : vector<1x64xf32> to vector<4x64xf32>
    %641 = arith.mulf %638, %640 : vector<4x64xf32>
    %642 = arith.addf %636, %641 : vector<4x64xf32>
    %c0_511 = arith.constant 0 : index
    %c1_512 = arith.constant 1 : index
    %c2_513 = arith.constant 2 : index
    %c1_514 = arith.constant 1 : index
    %c8_515 = arith.constant 8 : index
    %643 = vector.load %arg7[%c0_511, %c1_512, %c2_513, %c1_514, %c8_515] : memref<2x2x4x6x80xf32, #tpu.memory_space<vmem>>, vector<1x1x1x4x64xf32>
    %644 = vector.shape_cast %643 : vector<1x1x1x4x64xf32> to vector<4x64xf32>
    %645 = vector.shape_cast %161 : vector<64xf32> to vector<1x64xf32>
    %646 = vector.broadcast %645 : vector<1x64xf32> to vector<4x64xf32>
    %647 = arith.mulf %644, %646 : vector<4x64xf32>
    %648 = arith.addf %642, %647 : vector<4x64xf32>
    %c0_516 = arith.constant 0 : index
    %c1_517 = arith.constant 1 : index
    %c2_518 = arith.constant 2 : index
    %c1_519 = arith.constant 1 : index
    %c16_520 = arith.constant 16 : index
    %649 = vector.load %arg7[%c0_516, %c1_517, %c2_518, %c1_519, %c16_520] : memref<2x2x4x6x80xf32, #tpu.memory_space<vmem>>, vector<1x1x1x4x64xf32>
    %650 = vector.shape_cast %649 : vector<1x1x1x4x64xf32> to vector<4x64xf32>
    %651 = vector.shape_cast %163 : vector<64xf32> to vector<1x64xf32>
    %652 = vector.broadcast %651 : vector<1x64xf32> to vector<4x64xf32>
    %653 = arith.mulf %650, %652 : vector<4x64xf32>
    %654 = arith.addf %648, %653 : vector<4x64xf32>
    %c1_521 = arith.constant 1 : index
    %c1_522 = arith.constant 1 : index
    %c2_523 = arith.constant 2 : index
    %c0_524 = arith.constant 0 : index
    %c0_525 = arith.constant 0 : index
    %655 = vector.load %arg7[%c1_521, %c1_522, %c2_523, %c0_524, %c0_525] : memref<2x2x4x6x80xf32, #tpu.memory_space<vmem>>, vector<1x1x1x4x64xf32>
    %656 = vector.shape_cast %655 : vector<1x1x1x4x64xf32> to vector<4x64xf32>
    %657 = vector.shape_cast %165 : vector<64xf32> to vector<1x64xf32>
    %658 = vector.broadcast %657 : vector<1x64xf32> to vector<4x64xf32>
    %659 = arith.mulf %656, %658 : vector<4x64xf32>
    %660 = arith.addf %654, %659 : vector<4x64xf32>
    %c1_526 = arith.constant 1 : index
    %c1_527 = arith.constant 1 : index
    %c2_528 = arith.constant 2 : index
    %c0_529 = arith.constant 0 : index
    %c8_530 = arith.constant 8 : index
    %661 = vector.load %arg7[%c1_526, %c1_527, %c2_528, %c0_529, %c8_530] : memref<2x2x4x6x80xf32, #tpu.memory_space<vmem>>, vector<1x1x1x4x64xf32>
    %662 = vector.shape_cast %661 : vector<1x1x1x4x64xf32> to vector<4x64xf32>
    %663 = vector.shape_cast %167 : vector<64xf32> to vector<1x64xf32>
    %664 = vector.broadcast %663 : vector<1x64xf32> to vector<4x64xf32>
    %665 = arith.mulf %662, %664 : vector<4x64xf32>
    %666 = arith.addf %660, %665 : vector<4x64xf32>
    %c1_531 = arith.constant 1 : index
    %c1_532 = arith.constant 1 : index
    %c2_533 = arith.constant 2 : index
    %c0_534 = arith.constant 0 : index
    %c16_535 = arith.constant 16 : index
    %667 = vector.load %arg7[%c1_531, %c1_532, %c2_533, %c0_534, %c16_535] : memref<2x2x4x6x80xf32, #tpu.memory_space<vmem>>, vector<1x1x1x4x64xf32>
    %668 = vector.shape_cast %667 : vector<1x1x1x4x64xf32> to vector<4x64xf32>
    %669 = vector.shape_cast %169 : vector<64xf32> to vector<1x64xf32>
    %670 = vector.broadcast %669 : vector<1x64xf32> to vector<4x64xf32>
    %671 = arith.mulf %668, %670 : vector<4x64xf32>
    %672 = arith.addf %666, %671 : vector<4x64xf32>
    %c1_536 = arith.constant 1 : index
    %c0_537 = arith.constant 0 : index
    %c2_538 = arith.constant 2 : index
    %c1_539 = arith.constant 1 : index
    %c0_540 = arith.constant 0 : index
    %673 = vector.load %arg7[%c1_536, %c0_537, %c2_538, %c1_539, %c0_540] : memref<2x2x4x6x80xf32, #tpu.memory_space<vmem>>, vector<1x1x1x4x64xf32>
    %674 = vector.shape_cast %673 : vector<1x1x1x4x64xf32> to vector<4x64xf32>
    %675 = vector.shape_cast %171 : vector<64xf32> to vector<1x64xf32>
    %676 = vector.broadcast %675 : vector<1x64xf32> to vector<4x64xf32>
    %677 = arith.mulf %674, %676 : vector<4x64xf32>
    %678 = arith.addf %672, %677 : vector<4x64xf32>
    %c1_541 = arith.constant 1 : index
    %c0_542 = arith.constant 0 : index
    %c2_543 = arith.constant 2 : index
    %c1_544 = arith.constant 1 : index
    %c8_545 = arith.constant 8 : index
    %679 = vector.load %arg7[%c1_541, %c0_542, %c2_543, %c1_544, %c8_545] : memref<2x2x4x6x80xf32, #tpu.memory_space<vmem>>, vector<1x1x1x4x64xf32>
    %680 = vector.shape_cast %679 : vector<1x1x1x4x64xf32> to vector<4x64xf32>
    %681 = vector.shape_cast %173 : vector<64xf32> to vector<1x64xf32>
    %682 = vector.broadcast %681 : vector<1x64xf32> to vector<4x64xf32>
    %683 = arith.mulf %680, %682 : vector<4x64xf32>
    %684 = arith.addf %678, %683 : vector<4x64xf32>
    %c1_546 = arith.constant 1 : index
    %c0_547 = arith.constant 0 : index
    %c2_548 = arith.constant 2 : index
    %c1_549 = arith.constant 1 : index
    %c16_550 = arith.constant 16 : index
    %685 = vector.load %arg7[%c1_546, %c0_547, %c2_548, %c1_549, %c16_550] : memref<2x2x4x6x80xf32, #tpu.memory_space<vmem>>, vector<1x1x1x4x64xf32>
    %686 = vector.shape_cast %685 : vector<1x1x1x4x64xf32> to vector<4x64xf32>
    %687 = vector.shape_cast %175 : vector<64xf32> to vector<1x64xf32>
    %688 = vector.broadcast %687 : vector<1x64xf32> to vector<4x64xf32>
    %689 = arith.mulf %686, %688 : vector<4x64xf32>
    %690 = arith.addf %684, %689 : vector<4x64xf32>
    %c1_551 = arith.constant 1 : index
    %c1_552 = arith.constant 1 : index
    %c2_553 = arith.constant 2 : index
    %c1_554 = arith.constant 1 : index
    %c0_555 = arith.constant 0 : index
    %691 = vector.load %arg7[%c1_551, %c1_552, %c2_553, %c1_554, %c0_555] : memref<2x2x4x6x80xf32, #tpu.memory_space<vmem>>, vector<1x1x1x4x64xf32>
    %692 = vector.shape_cast %691 : vector<1x1x1x4x64xf32> to vector<4x64xf32>
    %693 = vector.shape_cast %177 : vector<64xf32> to vector<1x64xf32>
    %694 = vector.broadcast %693 : vector<1x64xf32> to vector<4x64xf32>
    %695 = arith.mulf %692, %694 : vector<4x64xf32>
    %696 = arith.addf %690, %695 : vector<4x64xf32>
    %c1_556 = arith.constant 1 : index
    %c1_557 = arith.constant 1 : index
    %c2_558 = arith.constant 2 : index
    %c1_559 = arith.constant 1 : index
    %c8_560 = arith.constant 8 : index
    %697 = vector.load %arg7[%c1_556, %c1_557, %c2_558, %c1_559, %c8_560] : memref<2x2x4x6x80xf32, #tpu.memory_space<vmem>>, vector<1x1x1x4x64xf32>
    %698 = vector.shape_cast %697 : vector<1x1x1x4x64xf32> to vector<4x64xf32>
    %699 = vector.shape_cast %179 : vector<64xf32> to vector<1x64xf32>
    %700 = vector.broadcast %699 : vector<1x64xf32> to vector<4x64xf32>
    %701 = arith.mulf %698, %700 : vector<4x64xf32>
    %702 = arith.addf %696, %701 : vector<4x64xf32>
    %c1_561 = arith.constant 1 : index
    %c1_562 = arith.constant 1 : index
    %c2_563 = arith.constant 2 : index
    %c1_564 = arith.constant 1 : index
    %c16_565 = arith.constant 16 : index
    %703 = vector.load %arg7[%c1_561, %c1_562, %c2_563, %c1_564, %c16_565] : memref<2x2x4x6x80xf32, #tpu.memory_space<vmem>>, vector<1x1x1x4x64xf32>
    %704 = vector.shape_cast %703 : vector<1x1x1x4x64xf32> to vector<4x64xf32>
    %705 = vector.shape_cast %181 : vector<64xf32> to vector<1x64xf32>
    %706 = vector.broadcast %705 : vector<1x64xf32> to vector<4x64xf32>
    %707 = arith.mulf %704, %706 : vector<4x64xf32>
    %708 = arith.addf %702, %707 : vector<4x64xf32>
    %709 = vector.shape_cast %123 : vector<64xf32> to vector<1x64xf32>
    %710 = vector.broadcast %709 : vector<1x64xf32> to vector<4x64xf32>
    %711 = arith.addf %708, %710 : vector<4x64xf32>
    %cst_566 = arith.constant 0.000000e+00 : f32
    %cst_567 = arith.constant 6.000000e+00 : f32
    %712 = vector.broadcast %cst_566 : f32 to vector<4x64xf32>
    %713 = arith.maximumf %712, %711 : vector<4x64xf32>
    %714 = vector.broadcast %cst_567 : f32 to vector<4x64xf32>
    %715 = arith.minimumf %714, %713 : vector<4x64xf32>
    %cst_568 = arith.constant dense<0.000000e+00> : vector<4x64xf32>
    %716 = tpu.matmul %715, %121, %cst_568 {dimension_numbers = #tpu.dot_dimension_numbers<[1], [0], [0], [1], [0, 0, 1, 1], [], []>} : vector<4x64xf32>, vector<64x64xf32>, vector<4x64xf32> -> vector<4x64xf32>
    %c0_569 = arith.constant 0 : index
    %c0_570 = arith.constant 0 : index
    %c2_571 = arith.constant 2 : index
    %c1_572 = arith.constant 1 : index
    %c8_573 = arith.constant 8 : index
    %717 = vector.load %arg7[%c0_569, %c0_570, %c2_571, %c1_572, %c8_573] : memref<2x2x4x6x80xf32, #tpu.memory_space<vmem>>, vector<1x1x1x4x64xf32>
    %718 = vector.shape_cast %717 : vector<1x1x1x4x64xf32> to vector<4x64xf32>
    %719 = vector.shape_cast %125 : vector<64xf32> to vector<1x64xf32>
    %720 = vector.broadcast %719 : vector<1x64xf32> to vector<4x64xf32>
    %721 = arith.mulf %718, %720 : vector<4x64xf32>
    %722 = arith.addf %721, %716 : vector<4x64xf32>
    %723 = vector.shape_cast %127 : vector<64xf32> to vector<1x64xf32>
    %724 = vector.broadcast %723 : vector<1x64xf32> to vector<4x64xf32>
    %725 = arith.addf %722, %724 : vector<4x64xf32>
    %cst_574 = arith.constant 0.000000e+00 : f32
    %726 = vector.broadcast %cst_574 : f32 to vector<4x64xf32>
    %c1_575 = arith.constant 1 : index
    %c0_576 = arith.constant 0 : index
    %c1_577 = arith.constant 1 : index
    %c1_578 = arith.constant 1 : index
    %c0_579 = arith.constant 0 : index
    %727 = vector.load %arg7[%c1_575, %c0_576, %c1_577, %c1_578, %c0_579] : memref<2x2x4x6x80xf32, #tpu.memory_space<vmem>>, vector<1x1x1x4x64xf32>
    %728 = vector.shape_cast %727 : vector<1x1x1x4x64xf32> to vector<4x64xf32>
    %729 = vector.shape_cast %129 : vector<64xf32> to vector<1x64xf32>
    %730 = vector.broadcast %729 : vector<1x64xf32> to vector<4x64xf32>
    %731 = arith.mulf %728, %730 : vector<4x64xf32>
    %732 = arith.addf %726, %731 : vector<4x64xf32>
    %c1_580 = arith.constant 1 : index
    %c0_581 = arith.constant 0 : index
    %c1_582 = arith.constant 1 : index
    %c1_583 = arith.constant 1 : index
    %c8_584 = arith.constant 8 : index
    %733 = vector.load %arg7[%c1_580, %c0_581, %c1_582, %c1_583, %c8_584] : memref<2x2x4x6x80xf32, #tpu.memory_space<vmem>>, vector<1x1x1x4x64xf32>
    %734 = vector.shape_cast %733 : vector<1x1x1x4x64xf32> to vector<4x64xf32>
    %735 = vector.shape_cast %131 : vector<64xf32> to vector<1x64xf32>
    %736 = vector.broadcast %735 : vector<1x64xf32> to vector<4x64xf32>
    %737 = arith.mulf %734, %736 : vector<4x64xf32>
    %738 = arith.addf %732, %737 : vector<4x64xf32>
    %c1_585 = arith.constant 1 : index
    %c0_586 = arith.constant 0 : index
    %c1_587 = arith.constant 1 : index
    %c1_588 = arith.constant 1 : index
    %c16_589 = arith.constant 16 : index
    %739 = vector.load %arg7[%c1_585, %c0_586, %c1_587, %c1_588, %c16_589] : memref<2x2x4x6x80xf32, #tpu.memory_space<vmem>>, vector<1x1x1x4x64xf32>
    %740 = vector.shape_cast %739 : vector<1x1x1x4x64xf32> to vector<4x64xf32>
    %741 = vector.shape_cast %133 : vector<64xf32> to vector<1x64xf32>
    %742 = vector.broadcast %741 : vector<1x64xf32> to vector<4x64xf32>
    %743 = arith.mulf %740, %742 : vector<4x64xf32>
    %744 = arith.addf %738, %743 : vector<4x64xf32>
    %c1_590 = arith.constant 1 : index
    %c1_591 = arith.constant 1 : index
    %c1_592 = arith.constant 1 : index
    %c1_593 = arith.constant 1 : index
    %c0_594 = arith.constant 0 : index
    %745 = vector.load %arg7[%c1_590, %c1_591, %c1_592, %c1_593, %c0_594] : memref<2x2x4x6x80xf32, #tpu.memory_space<vmem>>, vector<1x1x1x4x64xf32>
    %746 = vector.shape_cast %745 : vector<1x1x1x4x64xf32> to vector<4x64xf32>
    %747 = vector.shape_cast %135 : vector<64xf32> to vector<1x64xf32>
    %748 = vector.broadcast %747 : vector<1x64xf32> to vector<4x64xf32>
    %749 = arith.mulf %746, %748 : vector<4x64xf32>
    %750 = arith.addf %744, %749 : vector<4x64xf32>
    %c1_595 = arith.constant 1 : index
    %c1_596 = arith.constant 1 : index
    %c1_597 = arith.constant 1 : index
    %c1_598 = arith.constant 1 : index
    %c8_599 = arith.constant 8 : index
    %751 = vector.load %arg7[%c1_595, %c1_596, %c1_597, %c1_598, %c8_599] : memref<2x2x4x6x80xf32, #tpu.memory_space<vmem>>, vector<1x1x1x4x64xf32>
    %752 = vector.shape_cast %751 : vector<1x1x1x4x64xf32> to vector<4x64xf32>
    %753 = vector.shape_cast %137 : vector<64xf32> to vector<1x64xf32>
    %754 = vector.broadcast %753 : vector<1x64xf32> to vector<4x64xf32>
    %755 = arith.mulf %752, %754 : vector<4x64xf32>
    %756 = arith.addf %750, %755 : vector<4x64xf32>
    %c1_600 = arith.constant 1 : index
    %c1_601 = arith.constant 1 : index
    %c1_602 = arith.constant 1 : index
    %c1_603 = arith.constant 1 : index
    %c16_604 = arith.constant 16 : index
    %757 = vector.load %arg7[%c1_600, %c1_601, %c1_602, %c1_603, %c16_604] : memref<2x2x4x6x80xf32, #tpu.memory_space<vmem>>, vector<1x1x1x4x64xf32>
    %758 = vector.shape_cast %757 : vector<1x1x1x4x64xf32> to vector<4x64xf32>
    %759 = vector.shape_cast %139 : vector<64xf32> to vector<1x64xf32>
    %760 = vector.broadcast %759 : vector<1x64xf32> to vector<4x64xf32>
    %761 = arith.mulf %758, %760 : vector<4x64xf32>
    %762 = arith.addf %756, %761 : vector<4x64xf32>
    %c1_605 = arith.constant 1 : index
    %c0_606 = arith.constant 0 : index
    %c1_607 = arith.constant 1 : index
    %c2_608 = arith.constant 2 : index
    %c0_609 = arith.constant 0 : index
    %763 = vector.load %arg7[%c1_605, %c0_606, %c1_607, %c2_608, %c0_609] : memref<2x2x4x6x80xf32, #tpu.memory_space<vmem>>, vector<1x1x1x4x64xf32>
    %764 = vector.shape_cast %763 : vector<1x1x1x4x64xf32> to vector<4x64xf32>
    %765 = vector.shape_cast %141 : vector<64xf32> to vector<1x64xf32>
    %766 = vector.broadcast %765 : vector<1x64xf32> to vector<4x64xf32>
    %767 = arith.mulf %764, %766 : vector<4x64xf32>
    %768 = arith.addf %762, %767 : vector<4x64xf32>
    %c1_610 = arith.constant 1 : index
    %c0_611 = arith.constant 0 : index
    %c1_612 = arith.constant 1 : index
    %c2_613 = arith.constant 2 : index
    %c8_614 = arith.constant 8 : index
    %769 = vector.load %arg7[%c1_610, %c0_611, %c1_612, %c2_613, %c8_614] : memref<2x2x4x6x80xf32, #tpu.memory_space<vmem>>, vector<1x1x1x4x64xf32>
    %770 = vector.shape_cast %769 : vector<1x1x1x4x64xf32> to vector<4x64xf32>
    %771 = vector.shape_cast %143 : vector<64xf32> to vector<1x64xf32>
    %772 = vector.broadcast %771 : vector<1x64xf32> to vector<4x64xf32>
    %773 = arith.mulf %770, %772 : vector<4x64xf32>
    %774 = arith.addf %768, %773 : vector<4x64xf32>
    %c1_615 = arith.constant 1 : index
    %c0_616 = arith.constant 0 : index
    %c1_617 = arith.constant 1 : index
    %c2_618 = arith.constant 2 : index
    %c16_619 = arith.constant 16 : index
    %775 = vector.load %arg7[%c1_615, %c0_616, %c1_617, %c2_618, %c16_619] : memref<2x2x4x6x80xf32, #tpu.memory_space<vmem>>, vector<1x1x1x4x64xf32>
    %776 = vector.shape_cast %775 : vector<1x1x1x4x64xf32> to vector<4x64xf32>
    %777 = vector.shape_cast %145 : vector<64xf32> to vector<1x64xf32>
    %778 = vector.broadcast %777 : vector<1x64xf32> to vector<4x64xf32>
    %779 = arith.mulf %776, %778 : vector<4x64xf32>
    %780 = arith.addf %774, %779 : vector<4x64xf32>
    %c0_620 = arith.constant 0 : index
    %c0_621 = arith.constant 0 : index
    %c2_622 = arith.constant 2 : index
    %c1_623 = arith.constant 1 : index
    %c0_624 = arith.constant 0 : index
    %781 = vector.load %arg7[%c0_620, %c0_621, %c2_622, %c1_623, %c0_624] : memref<2x2x4x6x80xf32, #tpu.memory_space<vmem>>, vector<1x1x1x4x64xf32>
    %782 = vector.shape_cast %781 : vector<1x1x1x4x64xf32> to vector<4x64xf32>
    %783 = vector.shape_cast %147 : vector<64xf32> to vector<1x64xf32>
    %784 = vector.broadcast %783 : vector<1x64xf32> to vector<4x64xf32>
    %785 = arith.mulf %782, %784 : vector<4x64xf32>
    %786 = arith.addf %780, %785 : vector<4x64xf32>
    %c0_625 = arith.constant 0 : index
    %c0_626 = arith.constant 0 : index
    %c2_627 = arith.constant 2 : index
    %c1_628 = arith.constant 1 : index
    %c8_629 = arith.constant 8 : index
    %787 = vector.load %arg7[%c0_625, %c0_626, %c2_627, %c1_628, %c8_629] : memref<2x2x4x6x80xf32, #tpu.memory_space<vmem>>, vector<1x1x1x4x64xf32>
    %788 = vector.shape_cast %787 : vector<1x1x1x4x64xf32> to vector<4x64xf32>
    %789 = vector.shape_cast %149 : vector<64xf32> to vector<1x64xf32>
    %790 = vector.broadcast %789 : vector<1x64xf32> to vector<4x64xf32>
    %791 = arith.mulf %788, %790 : vector<4x64xf32>
    %792 = arith.addf %786, %791 : vector<4x64xf32>
    %c0_630 = arith.constant 0 : index
    %c0_631 = arith.constant 0 : index
    %c2_632 = arith.constant 2 : index
    %c1_633 = arith.constant 1 : index
    %c16_634 = arith.constant 16 : index
    %793 = vector.load %arg7[%c0_630, %c0_631, %c2_632, %c1_633, %c16_634] : memref<2x2x4x6x80xf32, #tpu.memory_space<vmem>>, vector<1x1x1x4x64xf32>
    %794 = vector.shape_cast %793 : vector<1x1x1x4x64xf32> to vector<4x64xf32>
    %795 = vector.shape_cast %151 : vector<64xf32> to vector<1x64xf32>
    %796 = vector.broadcast %795 : vector<1x64xf32> to vector<4x64xf32>
    %797 = arith.mulf %794, %796 : vector<4x64xf32>
    %798 = arith.addf %792, %797 : vector<4x64xf32>
    %c0_635 = arith.constant 0 : index
    %c1_636 = arith.constant 1 : index
    %c2_637 = arith.constant 2 : index
    %c1_638 = arith.constant 1 : index
    %c0_639 = arith.constant 0 : index
    %799 = vector.load %arg7[%c0_635, %c1_636, %c2_637, %c1_638, %c0_639] : memref<2x2x4x6x80xf32, #tpu.memory_space<vmem>>, vector<1x1x1x4x64xf32>
    %800 = vector.shape_cast %799 : vector<1x1x1x4x64xf32> to vector<4x64xf32>
    %801 = vector.shape_cast %153 : vector<64xf32> to vector<1x64xf32>
    %802 = vector.broadcast %801 : vector<1x64xf32> to vector<4x64xf32>
    %803 = arith.mulf %800, %802 : vector<4x64xf32>
    %804 = arith.addf %798, %803 : vector<4x64xf32>
    %c0_640 = arith.constant 0 : index
    %c1_641 = arith.constant 1 : index
    %c2_642 = arith.constant 2 : index
    %c1_643 = arith.constant 1 : index
    %c8_644 = arith.constant 8 : index
    %805 = vector.load %arg7[%c0_640, %c1_641, %c2_642, %c1_643, %c8_644] : memref<2x2x4x6x80xf32, #tpu.memory_space<vmem>>, vector<1x1x1x4x64xf32>
    %806 = vector.shape_cast %805 : vector<1x1x1x4x64xf32> to vector<4x64xf32>
    %807 = vector.shape_cast %155 : vector<64xf32> to vector<1x64xf32>
    %808 = vector.broadcast %807 : vector<1x64xf32> to vector<4x64xf32>
    %809 = arith.mulf %806, %808 : vector<4x64xf32>
    %810 = arith.addf %804, %809 : vector<4x64xf32>
    %c0_645 = arith.constant 0 : index
    %c1_646 = arith.constant 1 : index
    %c2_647 = arith.constant 2 : index
    %c1_648 = arith.constant 1 : index
    %c16_649 = arith.constant 16 : index
    %811 = vector.load %arg7[%c0_645, %c1_646, %c2_647, %c1_648, %c16_649] : memref<2x2x4x6x80xf32, #tpu.memory_space<vmem>>, vector<1x1x1x4x64xf32>
    %812 = vector.shape_cast %811 : vector<1x1x1x4x64xf32> to vector<4x64xf32>
    %813 = vector.shape_cast %157 : vector<64xf32> to vector<1x64xf32>
    %814 = vector.broadcast %813 : vector<1x64xf32> to vector<4x64xf32>
    %815 = arith.mulf %812, %814 : vector<4x64xf32>
    %816 = arith.addf %810, %815 : vector<4x64xf32>
    %c0_650 = arith.constant 0 : index
    %c0_651 = arith.constant 0 : index
    %c2_652 = arith.constant 2 : index
    %c2_653 = arith.constant 2 : index
    %c0_654 = arith.constant 0 : index
    %817 = vector.load %arg7[%c0_650, %c0_651, %c2_652, %c2_653, %c0_654] : memref<2x2x4x6x80xf32, #tpu.memory_space<vmem>>, vector<1x1x1x4x64xf32>
    %818 = vector.shape_cast %817 : vector<1x1x1x4x64xf32> to vector<4x64xf32>
    %819 = vector.shape_cast %159 : vector<64xf32> to vector<1x64xf32>
    %820 = vector.broadcast %819 : vector<1x64xf32> to vector<4x64xf32>
    %821 = arith.mulf %818, %820 : vector<4x64xf32>
    %822 = arith.addf %816, %821 : vector<4x64xf32>
    %c0_655 = arith.constant 0 : index
    %c0_656 = arith.constant 0 : index
    %c2_657 = arith.constant 2 : index
    %c2_658 = arith.constant 2 : index
    %c8_659 = arith.constant 8 : index
    %823 = vector.load %arg7[%c0_655, %c0_656, %c2_657, %c2_658, %c8_659] : memref<2x2x4x6x80xf32, #tpu.memory_space<vmem>>, vector<1x1x1x4x64xf32>
    %824 = vector.shape_cast %823 : vector<1x1x1x4x64xf32> to vector<4x64xf32>
    %825 = vector.shape_cast %161 : vector<64xf32> to vector<1x64xf32>
    %826 = vector.broadcast %825 : vector<1x64xf32> to vector<4x64xf32>
    %827 = arith.mulf %824, %826 : vector<4x64xf32>
    %828 = arith.addf %822, %827 : vector<4x64xf32>
    %c0_660 = arith.constant 0 : index
    %c0_661 = arith.constant 0 : index
    %c2_662 = arith.constant 2 : index
    %c2_663 = arith.constant 2 : index
    %c16_664 = arith.constant 16 : index
    %829 = vector.load %arg7[%c0_660, %c0_661, %c2_662, %c2_663, %c16_664] : memref<2x2x4x6x80xf32, #tpu.memory_space<vmem>>, vector<1x1x1x4x64xf32>
    %830 = vector.shape_cast %829 : vector<1x1x1x4x64xf32> to vector<4x64xf32>
    %831 = vector.shape_cast %163 : vector<64xf32> to vector<1x64xf32>
    %832 = vector.broadcast %831 : vector<1x64xf32> to vector<4x64xf32>
    %833 = arith.mulf %830, %832 : vector<4x64xf32>
    %834 = arith.addf %828, %833 : vector<4x64xf32>
    %c1_665 = arith.constant 1 : index
    %c0_666 = arith.constant 0 : index
    %c2_667 = arith.constant 2 : index
    %c1_668 = arith.constant 1 : index
    %c0_669 = arith.constant 0 : index
    %835 = vector.load %arg7[%c1_665, %c0_666, %c2_667, %c1_668, %c0_669] : memref<2x2x4x6x80xf32, #tpu.memory_space<vmem>>, vector<1x1x1x4x64xf32>
    %836 = vector.shape_cast %835 : vector<1x1x1x4x64xf32> to vector<4x64xf32>
    %837 = vector.shape_cast %165 : vector<64xf32> to vector<1x64xf32>
    %838 = vector.broadcast %837 : vector<1x64xf32> to vector<4x64xf32>
    %839 = arith.mulf %836, %838 : vector<4x64xf32>
    %840 = arith.addf %834, %839 : vector<4x64xf32>
    %c1_670 = arith.constant 1 : index
    %c0_671 = arith.constant 0 : index
    %c2_672 = arith.constant 2 : index
    %c1_673 = arith.constant 1 : index
    %c8_674 = arith.constant 8 : index
    %841 = vector.load %arg7[%c1_670, %c0_671, %c2_672, %c1_673, %c8_674] : memref<2x2x4x6x80xf32, #tpu.memory_space<vmem>>, vector<1x1x1x4x64xf32>
    %842 = vector.shape_cast %841 : vector<1x1x1x4x64xf32> to vector<4x64xf32>
    %843 = vector.shape_cast %167 : vector<64xf32> to vector<1x64xf32>
    %844 = vector.broadcast %843 : vector<1x64xf32> to vector<4x64xf32>
    %845 = arith.mulf %842, %844 : vector<4x64xf32>
    %846 = arith.addf %840, %845 : vector<4x64xf32>
    %c1_675 = arith.constant 1 : index
    %c0_676 = arith.constant 0 : index
    %c2_677 = arith.constant 2 : index
    %c1_678 = arith.constant 1 : index
    %c16_679 = arith.constant 16 : index
    %847 = vector.load %arg7[%c1_675, %c0_676, %c2_677, %c1_678, %c16_679] : memref<2x2x4x6x80xf32, #tpu.memory_space<vmem>>, vector<1x1x1x4x64xf32>
    %848 = vector.shape_cast %847 : vector<1x1x1x4x64xf32> to vector<4x64xf32>
    %849 = vector.shape_cast %169 : vector<64xf32> to vector<1x64xf32>
    %850 = vector.broadcast %849 : vector<1x64xf32> to vector<4x64xf32>
    %851 = arith.mulf %848, %850 : vector<4x64xf32>
    %852 = arith.addf %846, %851 : vector<4x64xf32>
    %c1_680 = arith.constant 1 : index
    %c1_681 = arith.constant 1 : index
    %c2_682 = arith.constant 2 : index
    %c1_683 = arith.constant 1 : index
    %c0_684 = arith.constant 0 : index
    %853 = vector.load %arg7[%c1_680, %c1_681, %c2_682, %c1_683, %c0_684] : memref<2x2x4x6x80xf32, #tpu.memory_space<vmem>>, vector<1x1x1x4x64xf32>
    %854 = vector.shape_cast %853 : vector<1x1x1x4x64xf32> to vector<4x64xf32>
    %855 = vector.shape_cast %171 : vector<64xf32> to vector<1x64xf32>
    %856 = vector.broadcast %855 : vector<1x64xf32> to vector<4x64xf32>
    %857 = arith.mulf %854, %856 : vector<4x64xf32>
    %858 = arith.addf %852, %857 : vector<4x64xf32>
    %c1_685 = arith.constant 1 : index
    %c1_686 = arith.constant 1 : index
    %c2_687 = arith.constant 2 : index
    %c1_688 = arith.constant 1 : index
    %c8_689 = arith.constant 8 : index
    %859 = vector.load %arg7[%c1_685, %c1_686, %c2_687, %c1_688, %c8_689] : memref<2x2x4x6x80xf32, #tpu.memory_space<vmem>>, vector<1x1x1x4x64xf32>
    %860 = vector.shape_cast %859 : vector<1x1x1x4x64xf32> to vector<4x64xf32>
    %861 = vector.shape_cast %173 : vector<64xf32> to vector<1x64xf32>
    %862 = vector.broadcast %861 : vector<1x64xf32> to vector<4x64xf32>
    %863 = arith.mulf %860, %862 : vector<4x64xf32>
    %864 = arith.addf %858, %863 : vector<4x64xf32>
    %c1_690 = arith.constant 1 : index
    %c1_691 = arith.constant 1 : index
    %c2_692 = arith.constant 2 : index
    %c1_693 = arith.constant 1 : index
    %c16_694 = arith.constant 16 : index
    %865 = vector.load %arg7[%c1_690, %c1_691, %c2_692, %c1_693, %c16_694] : memref<2x2x4x6x80xf32, #tpu.memory_space<vmem>>, vector<1x1x1x4x64xf32>
    %866 = vector.shape_cast %865 : vector<1x1x1x4x64xf32> to vector<4x64xf32>
    %867 = vector.shape_cast %175 : vector<64xf32> to vector<1x64xf32>
    %868 = vector.broadcast %867 : vector<1x64xf32> to vector<4x64xf32>
    %869 = arith.mulf %866, %868 : vector<4x64xf32>
    %870 = arith.addf %864, %869 : vector<4x64xf32>
    %c1_695 = arith.constant 1 : index
    %c0_696 = arith.constant 0 : index
    %c2_697 = arith.constant 2 : index
    %c2_698 = arith.constant 2 : index
    %c0_699 = arith.constant 0 : index
    %871 = vector.load %arg7[%c1_695, %c0_696, %c2_697, %c2_698, %c0_699] : memref<2x2x4x6x80xf32, #tpu.memory_space<vmem>>, vector<1x1x1x4x64xf32>
    %872 = vector.shape_cast %871 : vector<1x1x1x4x64xf32> to vector<4x64xf32>
    %873 = vector.shape_cast %177 : vector<64xf32> to vector<1x64xf32>
    %874 = vector.broadcast %873 : vector<1x64xf32> to vector<4x64xf32>
    %875 = arith.mulf %872, %874 : vector<4x64xf32>
    %876 = arith.addf %870, %875 : vector<4x64xf32>
    %c1_700 = arith.constant 1 : index
    %c0_701 = arith.constant 0 : index
    %c2_702 = arith.constant 2 : index
    %c2_703 = arith.constant 2 : index
    %c8_704 = arith.constant 8 : index
    %877 = vector.load %arg7[%c1_700, %c0_701, %c2_702, %c2_703, %c8_704] : memref<2x2x4x6x80xf32, #tpu.memory_space<vmem>>, vector<1x1x1x4x64xf32>
    %878 = vector.shape_cast %877 : vector<1x1x1x4x64xf32> to vector<4x64xf32>
    %879 = vector.shape_cast %179 : vector<64xf32> to vector<1x64xf32>
    %880 = vector.broadcast %879 : vector<1x64xf32> to vector<4x64xf32>
    %881 = arith.mulf %878, %880 : vector<4x64xf32>
    %882 = arith.addf %876, %881 : vector<4x64xf32>
    %c1_705 = arith.constant 1 : index
    %c0_706 = arith.constant 0 : index
    %c2_707 = arith.constant 2 : index
    %c2_708 = arith.constant 2 : index
    %c16_709 = arith.constant 16 : index
    %883 = vector.load %arg7[%c1_705, %c0_706, %c2_707, %c2_708, %c16_709] : memref<2x2x4x6x80xf32, #tpu.memory_space<vmem>>, vector<1x1x1x4x64xf32>
    %884 = vector.shape_cast %883 : vector<1x1x1x4x64xf32> to vector<4x64xf32>
    %885 = vector.shape_cast %181 : vector<64xf32> to vector<1x64xf32>
    %886 = vector.broadcast %885 : vector<1x64xf32> to vector<4x64xf32>
    %887 = arith.mulf %884, %886 : vector<4x64xf32>
    %888 = arith.addf %882, %887 : vector<4x64xf32>
    %889 = vector.shape_cast %123 : vector<64xf32> to vector<1x64xf32>
    %890 = vector.broadcast %889 : vector<1x64xf32> to vector<4x64xf32>
    %891 = arith.addf %888, %890 : vector<4x64xf32>
    %cst_710 = arith.constant 0.000000e+00 : f32
    %cst_711 = arith.constant 6.000000e+00 : f32
    %892 = vector.broadcast %cst_710 : f32 to vector<4x64xf32>
    %893 = arith.maximumf %892, %891 : vector<4x64xf32>
    %894 = vector.broadcast %cst_711 : f32 to vector<4x64xf32>
    %895 = arith.minimumf %894, %893 : vector<4x64xf32>
    %cst_712 = arith.constant dense<0.000000e+00> : vector<4x64xf32>
    %896 = tpu.matmul %895, %121, %cst_712 {dimension_numbers = #tpu.dot_dimension_numbers<[1], [0], [0], [1], [0, 0, 1, 1], [], []>} : vector<4x64xf32>, vector<64x64xf32>, vector<4x64xf32> -> vector<4x64xf32>
    %c0_713 = arith.constant 0 : index
    %c1_714 = arith.constant 1 : index
    %c2_715 = arith.constant 2 : index
    %c1_716 = arith.constant 1 : index
    %c8_717 = arith.constant 8 : index
    %897 = vector.load %arg7[%c0_713, %c1_714, %c2_715, %c1_716, %c8_717] : memref<2x2x4x6x80xf32, #tpu.memory_space<vmem>>, vector<1x1x1x4x64xf32>
    %898 = vector.shape_cast %897 : vector<1x1x1x4x64xf32> to vector<4x64xf32>
    %899 = vector.shape_cast %125 : vector<64xf32> to vector<1x64xf32>
    %900 = vector.broadcast %899 : vector<1x64xf32> to vector<4x64xf32>
    %901 = arith.mulf %898, %900 : vector<4x64xf32>
    %902 = arith.addf %901, %896 : vector<4x64xf32>
    %903 = vector.shape_cast %127 : vector<64xf32> to vector<1x64xf32>
    %904 = vector.broadcast %903 : vector<1x64xf32> to vector<4x64xf32>
    %905 = arith.addf %902, %904 : vector<4x64xf32>
    %906 = tpu.concatenate %725, %905 in 1 : vector<4x64xf32>, vector<4x64xf32> -> vector<4x128xf32>
    %c0_718 = arith.constant 0 : index
    %c1_719 = arith.constant 1 : index
    %c0_720 = arith.constant 0 : index
    %c0_721 = arith.constant 0 : index
    %c0_722 = arith.constant 0 : index
    %907 = vector.load %arg6[%c0_718, %c1_719, %c0_720, %c0_721, %c0_722] : memref<1x2x2x4x128xf32, #tpu.memory_space<vmem>>, vector<1x1x1x4x128xf32>
    %908 = vector.shape_cast %907 : vector<1x1x1x4x128xf32> to vector<4x128xf32>
    %909 = vector.shape_cast %906 : vector<4x128xf32> to vector<1x1x1x4x128xf32>
    tpu.vector_store %arg6[%c0_718, %c1_719, %c0_720, %c0_721, %c0_722], %909 {strides = array<i32>} : memref<1x2x2x4x128xf32, #tpu.memory_space<vmem>>, vector<1x1x1x4x128xf32>,
    %cst_723 = arith.constant 0.000000e+00 : f32
    %910 = vector.broadcast %cst_723 : f32 to vector<4x64xf32>
    %c0_724 = arith.constant 0 : index
    %c1_725 = arith.constant 1 : index
    %c1_726 = arith.constant 1 : index
    %c0_727 = arith.constant 0 : index
    %c0_728 = arith.constant 0 : index
    %911 = vector.load %arg7[%c0_724, %c1_725, %c1_726, %c0_727, %c0_728] : memref<2x2x4x6x80xf32, #tpu.memory_space<vmem>>, vector<1x1x1x4x64xf32>
    %912 = vector.shape_cast %911 : vector<1x1x1x4x64xf32> to vector<4x64xf32>
    %913 = vector.shape_cast %129 : vector<64xf32> to vector<1x64xf32>
    %914 = vector.broadcast %913 : vector<1x64xf32> to vector<4x64xf32>
    %915 = arith.mulf %912, %914 : vector<4x64xf32>
    %916 = arith.addf %910, %915 : vector<4x64xf32>
    %c0_729 = arith.constant 0 : index
    %c1_730 = arith.constant 1 : index
    %c1_731 = arith.constant 1 : index
    %c0_732 = arith.constant 0 : index
    %c8_733 = arith.constant 8 : index
    %917 = vector.load %arg7[%c0_729, %c1_730, %c1_731, %c0_732, %c8_733] : memref<2x2x4x6x80xf32, #tpu.memory_space<vmem>>, vector<1x1x1x4x64xf32>
    %918 = vector.shape_cast %917 : vector<1x1x1x4x64xf32> to vector<4x64xf32>
    %919 = vector.shape_cast %131 : vector<64xf32> to vector<1x64xf32>
    %920 = vector.broadcast %919 : vector<1x64xf32> to vector<4x64xf32>
    %921 = arith.mulf %918, %920 : vector<4x64xf32>
    %922 = arith.addf %916, %921 : vector<4x64xf32>
    %c0_734 = arith.constant 0 : index
    %c1_735 = arith.constant 1 : index
    %c1_736 = arith.constant 1 : index
    %c0_737 = arith.constant 0 : index
    %c16_738 = arith.constant 16 : index
    %923 = vector.load %arg7[%c0_734, %c1_735, %c1_736, %c0_737, %c16_738] : memref<2x2x4x6x80xf32, #tpu.memory_space<vmem>>, vector<1x1x1x4x64xf32>
    %924 = vector.shape_cast %923 : vector<1x1x1x4x64xf32> to vector<4x64xf32>
    %925 = vector.shape_cast %133 : vector<64xf32> to vector<1x64xf32>
    %926 = vector.broadcast %925 : vector<1x64xf32> to vector<4x64xf32>
    %927 = arith.mulf %924, %926 : vector<4x64xf32>
    %928 = arith.addf %922, %927 : vector<4x64xf32>
    %c0_739 = arith.constant 0 : index
    %c0_740 = arith.constant 0 : index
    %c1_741 = arith.constant 1 : index
    %c1_742 = arith.constant 1 : index
    %c0_743 = arith.constant 0 : index
    %929 = vector.load %arg7[%c0_739, %c0_740, %c1_741, %c1_742, %c0_743] : memref<2x2x4x6x80xf32, #tpu.memory_space<vmem>>, vector<1x1x1x4x64xf32>
    %930 = vector.shape_cast %929 : vector<1x1x1x4x64xf32> to vector<4x64xf32>
    %931 = vector.shape_cast %135 : vector<64xf32> to vector<1x64xf32>
    %932 = vector.broadcast %931 : vector<1x64xf32> to vector<4x64xf32>
    %933 = arith.mulf %930, %932 : vector<4x64xf32>
    %934 = arith.addf %928, %933 : vector<4x64xf32>
    %c0_744 = arith.constant 0 : index
    %c0_745 = arith.constant 0 : index
    %c1_746 = arith.constant 1 : index
    %c1_747 = arith.constant 1 : index
    %c8_748 = arith.constant 8 : index
    %935 = vector.load %arg7[%c0_744, %c0_745, %c1_746, %c1_747, %c8_748] : memref<2x2x4x6x80xf32, #tpu.memory_space<vmem>>, vector<1x1x1x4x64xf32>
    %936 = vector.shape_cast %935 : vector<1x1x1x4x64xf32> to vector<4x64xf32>
    %937 = vector.shape_cast %137 : vector<64xf32> to vector<1x64xf32>
    %938 = vector.broadcast %937 : vector<1x64xf32> to vector<4x64xf32>
    %939 = arith.mulf %936, %938 : vector<4x64xf32>
    %940 = arith.addf %934, %939 : vector<4x64xf32>
    %c0_749 = arith.constant 0 : index
    %c0_750 = arith.constant 0 : index
    %c1_751 = arith.constant 1 : index
    %c1_752 = arith.constant 1 : index
    %c16_753 = arith.constant 16 : index
    %941 = vector.load %arg7[%c0_749, %c0_750, %c1_751, %c1_752, %c16_753] : memref<2x2x4x6x80xf32, #tpu.memory_space<vmem>>, vector<1x1x1x4x64xf32>
    %942 = vector.shape_cast %941 : vector<1x1x1x4x64xf32> to vector<4x64xf32>
    %943 = vector.shape_cast %139 : vector<64xf32> to vector<1x64xf32>
    %944 = vector.broadcast %943 : vector<1x64xf32> to vector<4x64xf32>
    %945 = arith.mulf %942, %944 : vector<4x64xf32>
    %946 = arith.addf %940, %945 : vector<4x64xf32>
    %c0_754 = arith.constant 0 : index
    %c1_755 = arith.constant 1 : index
    %c1_756 = arith.constant 1 : index
    %c1_757 = arith.constant 1 : index
    %c0_758 = arith.constant 0 : index
    %947 = vector.load %arg7[%c0_754, %c1_755, %c1_756, %c1_757, %c0_758] : memref<2x2x4x6x80xf32, #tpu.memory_space<vmem>>, vector<1x1x1x4x64xf32>
    %948 = vector.shape_cast %947 : vector<1x1x1x4x64xf32> to vector<4x64xf32>
    %949 = vector.shape_cast %141 : vector<64xf32> to vector<1x64xf32>
    %950 = vector.broadcast %949 : vector<1x64xf32> to vector<4x64xf32>
    %951 = arith.mulf %948, %950 : vector<4x64xf32>
    %952 = arith.addf %946, %951 : vector<4x64xf32>
    %c0_759 = arith.constant 0 : index
    %c1_760 = arith.constant 1 : index
    %c1_761 = arith.constant 1 : index
    %c1_762 = arith.constant 1 : index
    %c8_763 = arith.constant 8 : index
    %953 = vector.load %arg7[%c0_759, %c1_760, %c1_761, %c1_762, %c8_763] : memref<2x2x4x6x80xf32, #tpu.memory_space<vmem>>, vector<1x1x1x4x64xf32>
    %954 = vector.shape_cast %953 : vector<1x1x1x4x64xf32> to vector<4x64xf32>
    %955 = vector.shape_cast %143 : vector<64xf32> to vector<1x64xf32>
    %956 = vector.broadcast %955 : vector<1x64xf32> to vector<4x64xf32>
    %957 = arith.mulf %954, %956 : vector<4x64xf32>
    %958 = arith.addf %952, %957 : vector<4x64xf32>
    %c0_764 = arith.constant 0 : index
    %c1_765 = arith.constant 1 : index
    %c1_766 = arith.constant 1 : index
    %c1_767 = arith.constant 1 : index
    %c16_768 = arith.constant 16 : index
    %959 = vector.load %arg7[%c0_764, %c1_765, %c1_766, %c1_767, %c16_768] : memref<2x2x4x6x80xf32, #tpu.memory_space<vmem>>, vector<1x1x1x4x64xf32>
    %960 = vector.shape_cast %959 : vector<1x1x1x4x64xf32> to vector<4x64xf32>
    %961 = vector.shape_cast %145 : vector<64xf32> to vector<1x64xf32>
    %962 = vector.broadcast %961 : vector<1x64xf32> to vector<4x64xf32>
    %963 = arith.mulf %960, %962 : vector<4x64xf32>
    %964 = arith.addf %958, %963 : vector<4x64xf32>
    %c1_769 = arith.constant 1 : index
    %c1_770 = arith.constant 1 : index
    %c1_771 = arith.constant 1 : index
    %c0_772 = arith.constant 0 : index
    %c0_773 = arith.constant 0 : index
    %965 = vector.load %arg7[%c1_769, %c1_770, %c1_771, %c0_772, %c0_773] : memref<2x2x4x6x80xf32, #tpu.memory_space<vmem>>, vector<1x1x1x4x64xf32>
    %966 = vector.shape_cast %965 : vector<1x1x1x4x64xf32> to vector<4x64xf32>
    %967 = vector.shape_cast %147 : vector<64xf32> to vector<1x64xf32>
    %968 = vector.broadcast %967 : vector<1x64xf32> to vector<4x64xf32>
    %969 = arith.mulf %966, %968 : vector<4x64xf32>
    %970 = arith.addf %964, %969 : vector<4x64xf32>
    %c1_774 = arith.constant 1 : index
    %c1_775 = arith.constant 1 : index
    %c1_776 = arith.constant 1 : index
    %c0_777 = arith.constant 0 : index
    %c8_778 = arith.constant 8 : index
    %971 = vector.load %arg7[%c1_774, %c1_775, %c1_776, %c0_777, %c8_778] : memref<2x2x4x6x80xf32, #tpu.memory_space<vmem>>, vector<1x1x1x4x64xf32>
    %972 = vector.shape_cast %971 : vector<1x1x1x4x64xf32> to vector<4x64xf32>
    %973 = vector.shape_cast %149 : vector<64xf32> to vector<1x64xf32>
    %974 = vector.broadcast %973 : vector<1x64xf32> to vector<4x64xf32>
    %975 = arith.mulf %972, %974 : vector<4x64xf32>
    %976 = arith.addf %970, %975 : vector<4x64xf32>
    %c1_779 = arith.constant 1 : index
    %c1_780 = arith.constant 1 : index
    %c1_781 = arith.constant 1 : index
    %c0_782 = arith.constant 0 : index
    %c16_783 = arith.constant 16 : index
    %977 = vector.load %arg7[%c1_779, %c1_780, %c1_781, %c0_782, %c16_783] : memref<2x2x4x6x80xf32, #tpu.memory_space<vmem>>, vector<1x1x1x4x64xf32>
    %978 = vector.shape_cast %977 : vector<1x1x1x4x64xf32> to vector<4x64xf32>
    %979 = vector.shape_cast %151 : vector<64xf32> to vector<1x64xf32>
    %980 = vector.broadcast %979 : vector<1x64xf32> to vector<4x64xf32>
    %981 = arith.mulf %978, %980 : vector<4x64xf32>
    %982 = arith.addf %976, %981 : vector<4x64xf32>
    %c1_784 = arith.constant 1 : index
    %c0_785 = arith.constant 0 : index
    %c1_786 = arith.constant 1 : index
    %c1_787 = arith.constant 1 : index
    %c0_788 = arith.constant 0 : index
    %983 = vector.load %arg7[%c1_784, %c0_785, %c1_786, %c1_787, %c0_788] : memref<2x2x4x6x80xf32, #tpu.memory_space<vmem>>, vector<1x1x1x4x64xf32>
    %984 = vector.shape_cast %983 : vector<1x1x1x4x64xf32> to vector<4x64xf32>
    %985 = vector.shape_cast %153 : vector<64xf32> to vector<1x64xf32>
    %986 = vector.broadcast %985 : vector<1x64xf32> to vector<4x64xf32>
    %987 = arith.mulf %984, %986 : vector<4x64xf32>
    %988 = arith.addf %982, %987 : vector<4x64xf32>
    %c1_789 = arith.constant 1 : index
    %c0_790 = arith.constant 0 : index
    %c1_791 = arith.constant 1 : index
    %c1_792 = arith.constant 1 : index
    %c8_793 = arith.constant 8 : index
    %989 = vector.load %arg7[%c1_789, %c0_790, %c1_791, %c1_792, %c8_793] : memref<2x2x4x6x80xf32, #tpu.memory_space<vmem>>, vector<1x1x1x4x64xf32>
    %990 = vector.shape_cast %989 : vector<1x1x1x4x64xf32> to vector<4x64xf32>
    %991 = vector.shape_cast %155 : vector<64xf32> to vector<1x64xf32>
    %992 = vector.broadcast %991 : vector<1x64xf32> to vector<4x64xf32>
    %993 = arith.mulf %990, %992 : vector<4x64xf32>
    %994 = arith.addf %988, %993 : vector<4x64xf32>
    %c1_794 = arith.constant 1 : index
    %c0_795 = arith.constant 0 : index
    %c1_796 = arith.constant 1 : index
    %c1_797 = arith.constant 1 : index
    %c16_798 = arith.constant 16 : index
    %995 = vector.load %arg7[%c1_794, %c0_795, %c1_796, %c1_797, %c16_798] : memref<2x2x4x6x80xf32, #tpu.memory_space<vmem>>, vector<1x1x1x4x64xf32>
    %996 = vector.shape_cast %995 : vector<1x1x1x4x64xf32> to vector<4x64xf32>
    %997 = vector.shape_cast %157 : vector<64xf32> to vector<1x64xf32>
    %998 = vector.broadcast %997 : vector<1x64xf32> to vector<4x64xf32>
    %999 = arith.mulf %996, %998 : vector<4x64xf32>
    %1000 = arith.addf %994, %999 : vector<4x64xf32>
    %c1_799 = arith.constant 1 : index
    %c1_800 = arith.constant 1 : index
    %c1_801 = arith.constant 1 : index
    %c1_802 = arith.constant 1 : index
    %c0_803 = arith.constant 0 : index
    %1001 = vector.load %arg7[%c1_799, %c1_800, %c1_801, %c1_802, %c0_803] : memref<2x2x4x6x80xf32, #tpu.memory_space<vmem>>, vector<1x1x1x4x64xf32>
    %1002 = vector.shape_cast %1001 : vector<1x1x1x4x64xf32> to vector<4x64xf32>
    %1003 = vector.shape_cast %159 : vector<64xf32> to vector<1x64xf32>
    %1004 = vector.broadcast %1003 : vector<1x64xf32> to vector<4x64xf32>
    %1005 = arith.mulf %1002, %1004 : vector<4x64xf32>
    %1006 = arith.addf %1000, %1005 : vector<4x64xf32>
    %c1_804 = arith.constant 1 : index
    %c1_805 = arith.constant 1 : index
    %c1_806 = arith.constant 1 : index
    %c1_807 = arith.constant 1 : index
    %c8_808 = arith.constant 8 : index
    %1007 = vector.load %arg7[%c1_804, %c1_805, %c1_806, %c1_807, %c8_808] : memref<2x2x4x6x80xf32, #tpu.memory_space<vmem>>, vector<1x1x1x4x64xf32>
    %1008 = vector.shape_cast %1007 : vector<1x1x1x4x64xf32> to vector<4x64xf32>
    %1009 = vector.shape_cast %161 : vector<64xf32> to vector<1x64xf32>
    %1010 = vector.broadcast %1009 : vector<1x64xf32> to vector<4x64xf32>
    %1011 = arith.mulf %1008, %1010 : vector<4x64xf32>
    %1012 = arith.addf %1006, %1011 : vector<4x64xf32>
    %c1_809 = arith.constant 1 : index
    %c1_810 = arith.constant 1 : index
    %c1_811 = arith.constant 1 : index
    %c1_812 = arith.constant 1 : index
    %c16_813 = arith.constant 16 : index
    %1013 = vector.load %arg7[%c1_809, %c1_810, %c1_811, %c1_812, %c16_813] : memref<2x2x4x6x80xf32, #tpu.memory_space<vmem>>, vector<1x1x1x4x64xf32>
    %1014 = vector.shape_cast %1013 : vector<1x1x1x4x64xf32> to vector<4x64xf32>
    %1015 = vector.shape_cast %163 : vector<64xf32> to vector<1x64xf32>
    %1016 = vector.broadcast %1015 : vector<1x64xf32> to vector<4x64xf32>
    %1017 = arith.mulf %1014, %1016 : vector<4x64xf32>
    %1018 = arith.addf %1012, %1017 : vector<4x64xf32>
    %c0_814 = arith.constant 0 : index
    %c1_815 = arith.constant 1 : index
    %c2_816 = arith.constant 2 : index
    %c0_817 = arith.constant 0 : index
    %c0_818 = arith.constant 0 : index
    %1019 = vector.load %arg7[%c0_814, %c1_815, %c2_816, %c0_817, %c0_818] : memref<2x2x4x6x80xf32, #tpu.memory_space<vmem>>, vector<1x1x1x4x64xf32>
    %1020 = vector.shape_cast %1019 : vector<1x1x1x4x64xf32> to vector<4x64xf32>
    %1021 = vector.shape_cast %165 : vector<64xf32> to vector<1x64xf32>
    %1022 = vector.broadcast %1021 : vector<1x64xf32> to vector<4x64xf32>
    %1023 = arith.mulf %1020, %1022 : vector<4x64xf32>
    %1024 = arith.addf %1018, %1023 : vector<4x64xf32>
    %c0_819 = arith.constant 0 : index
    %c1_820 = arith.constant 1 : index
    %c2_821 = arith.constant 2 : index
    %c0_822 = arith.constant 0 : index
    %c8_823 = arith.constant 8 : index
    %1025 = vector.load %arg7[%c0_819, %c1_820, %c2_821, %c0_822, %c8_823] : memref<2x2x4x6x80xf32, #tpu.memory_space<vmem>>, vector<1x1x1x4x64xf32>
    %1026 = vector.shape_cast %1025 : vector<1x1x1x4x64xf32> to vector<4x64xf32>
    %1027 = vector.shape_cast %167 : vector<64xf32> to vector<1x64xf32>
    %1028 = vector.broadcast %1027 : vector<1x64xf32> to vector<4x64xf32>
    %1029 = arith.mulf %1026, %1028 : vector<4x64xf32>
    %1030 = arith.addf %1024, %1029 : vector<4x64xf32>
    %c0_824 = arith.constant 0 : index
    %c1_825 = arith.constant 1 : index
    %c2_826 = arith.constant 2 : index
    %c0_827 = arith.constant 0 : index
    %c16_828 = arith.constant 16 : index
    %1031 = vector.load %arg7[%c0_824, %c1_825, %c2_826, %c0_827, %c16_828] : memref<2x2x4x6x80xf32, #tpu.memory_space<vmem>>, vector<1x1x1x4x64xf32>
    %1032 = vector.shape_cast %1031 : vector<1x1x1x4x64xf32> to vector<4x64xf32>
    %1033 = vector.shape_cast %169 : vector<64xf32> to vector<1x64xf32>
    %1034 = vector.broadcast %1033 : vector<1x64xf32> to vector<4x64xf32>
    %1035 = arith.mulf %1032, %1034 : vector<4x64xf32>
    %1036 = arith.addf %1030, %1035 : vector<4x64xf32>
    %c0_829 = arith.constant 0 : index
    %c0_830 = arith.constant 0 : index
    %c2_831 = arith.constant 2 : index
    %c1_832 = arith.constant 1 : index
    %c0_833 = arith.constant 0 : index
    %1037 = vector.load %arg7[%c0_829, %c0_830, %c2_831, %c1_832, %c0_833] : memref<2x2x4x6x80xf32, #tpu.memory_space<vmem>>, vector<1x1x1x4x64xf32>
    %1038 = vector.shape_cast %1037 : vector<1x1x1x4x64xf32> to vector<4x64xf32>
    %1039 = vector.shape_cast %171 : vector<64xf32> to vector<1x64xf32>
    %1040 = vector.broadcast %1039 : vector<1x64xf32> to vector<4x64xf32>
    %1041 = arith.mulf %1038, %1040 : vector<4x64xf32>
    %1042 = arith.addf %1036, %1041 : vector<4x64xf32>
    %c0_834 = arith.constant 0 : index
    %c0_835 = arith.constant 0 : index
    %c2_836 = arith.constant 2 : index
    %c1_837 = arith.constant 1 : index
    %c8_838 = arith.constant 8 : index
    %1043 = vector.load %arg7[%c0_834, %c0_835, %c2_836, %c1_837, %c8_838] : memref<2x2x4x6x80xf32, #tpu.memory_space<vmem>>, vector<1x1x1x4x64xf32>
    %1044 = vector.shape_cast %1043 : vector<1x1x1x4x64xf32> to vector<4x64xf32>
    %1045 = vector.shape_cast %173 : vector<64xf32> to vector<1x64xf32>
    %1046 = vector.broadcast %1045 : vector<1x64xf32> to vector<4x64xf32>
    %1047 = arith.mulf %1044, %1046 : vector<4x64xf32>
    %1048 = arith.addf %1042, %1047 : vector<4x64xf32>
    %c0_839 = arith.constant 0 : index
    %c0_840 = arith.constant 0 : index
    %c2_841 = arith.constant 2 : index
    %c1_842 = arith.constant 1 : index
    %c16_843 = arith.constant 16 : index
    %1049 = vector.load %arg7[%c0_839, %c0_840, %c2_841, %c1_842, %c16_843] : memref<2x2x4x6x80xf32, #tpu.memory_space<vmem>>, vector<1x1x1x4x64xf32>
    %1050 = vector.shape_cast %1049 : vector<1x1x1x4x64xf32> to vector<4x64xf32>
    %1051 = vector.shape_cast %175 : vector<64xf32> to vector<1x64xf32>
    %1052 = vector.broadcast %1051 : vector<1x64xf32> to vector<4x64xf32>
    %1053 = arith.mulf %1050, %1052 : vector<4x64xf32>
    %1054 = arith.addf %1048, %1053 : vector<4x64xf32>
    %c0_844 = arith.constant 0 : index
    %c1_845 = arith.constant 1 : index
    %c2_846 = arith.constant 2 : index
    %c1_847 = arith.constant 1 : index
    %c0_848 = arith.constant 0 : index
    %1055 = vector.load %arg7[%c0_844, %c1_845, %c2_846, %c1_847, %c0_848] : memref<2x2x4x6x80xf32, #tpu.memory_space<vmem>>, vector<1x1x1x4x64xf32>
    %1056 = vector.shape_cast %1055 : vector<1x1x1x4x64xf32> to vector<4x64xf32>
    %1057 = vector.shape_cast %177 : vector<64xf32> to vector<1x64xf32>
    %1058 = vector.broadcast %1057 : vector<1x64xf32> to vector<4x64xf32>
    %1059 = arith.mulf %1056, %1058 : vector<4x64xf32>
    %1060 = arith.addf %1054, %1059 : vector<4x64xf32>
    %c0_849 = arith.constant 0 : index
    %c1_850 = arith.constant 1 : index
    %c2_851 = arith.constant 2 : index
    %c1_852 = arith.constant 1 : index
    %c8_853 = arith.constant 8 : index
    %1061 = vector.load %arg7[%c0_849, %c1_850, %c2_851, %c1_852, %c8_853] : memref<2x2x4x6x80xf32, #tpu.memory_space<vmem>>, vector<1x1x1x4x64xf32>
    %1062 = vector.shape_cast %1061 : vector<1x1x1x4x64xf32> to vector<4x64xf32>
    %1063 = vector.shape_cast %179 : vector<64xf32> to vector<1x64xf32>
    %1064 = vector.broadcast %1063 : vector<1x64xf32> to vector<4x64xf32>
    %1065 = arith.mulf %1062, %1064 : vector<4x64xf32>
    %1066 = arith.addf %1060, %1065 : vector<4x64xf32>
    %c0_854 = arith.constant 0 : index
    %c1_855 = arith.constant 1 : index
    %c2_856 = arith.constant 2 : index
    %c1_857 = arith.constant 1 : index
    %c16_858 = arith.constant 16 : index
    %1067 = vector.load %arg7[%c0_854, %c1_855, %c2_856, %c1_857, %c16_858] : memref<2x2x4x6x80xf32, #tpu.memory_space<vmem>>, vector<1x1x1x4x64xf32>
    %1068 = vector.shape_cast %1067 : vector<1x1x1x4x64xf32> to vector<4x64xf32>
    %1069 = vector.shape_cast %181 : vector<64xf32> to vector<1x64xf32>
    %1070 = vector.broadcast %1069 : vector<1x64xf32> to vector<4x64xf32>
    %1071 = arith.mulf %1068, %1070 : vector<4x64xf32>
    %1072 = arith.addf %1066, %1071 : vector<4x64xf32>
    %1073 = vector.shape_cast %123 : vector<64xf32> to vector<1x64xf32>
    %1074 = vector.broadcast %1073 : vector<1x64xf32> to vector<4x64xf32>
    %1075 = arith.addf %1072, %1074 : vector<4x64xf32>
    %cst_859 = arith.constant 0.000000e+00 : f32
    %cst_860 = arith.constant 6.000000e+00 : f32
    %1076 = vector.broadcast %cst_859 : f32 to vector<4x64xf32>
    %1077 = arith.maximumf %1076, %1075 : vector<4x64xf32>
    %1078 = vector.broadcast %cst_860 : f32 to vector<4x64xf32>
    %1079 = arith.minimumf %1078, %1077 : vector<4x64xf32>
    %cst_861 = arith.constant dense<0.000000e+00> : vector<4x64xf32>
    %1080 = tpu.matmul %1079, %121, %cst_861 {dimension_numbers = #tpu.dot_dimension_numbers<[1], [0], [0], [1], [0, 0, 1, 1], [], []>} : vector<4x64xf32>, vector<64x64xf32>, vector<4x64xf32> -> vector<4x64xf32>
    %c1_862 = arith.constant 1 : index
    %c0_863 = arith.constant 0 : index
    %c1_864 = arith.constant 1 : index
    %c1_865 = arith.constant 1 : index
    %c8_866 = arith.constant 8 : index
    %1081 = vector.load %arg7[%c1_862, %c0_863, %c1_864, %c1_865, %c8_866] : memref<2x2x4x6x80xf32, #tpu.memory_space<vmem>>, vector<1x1x1x4x64xf32>
    %1082 = vector.shape_cast %1081 : vector<1x1x1x4x64xf32> to vector<4x64xf32>
    %1083 = vector.shape_cast %125 : vector<64xf32> to vector<1x64xf32>
    %1084 = vector.broadcast %1083 : vector<1x64xf32> to vector<4x64xf32>
    %1085 = arith.mulf %1082, %1084 : vector<4x64xf32>
    %1086 = arith.addf %1085, %1080 : vector<4x64xf32>
    %1087 = vector.shape_cast %127 : vector<64xf32> to vector<1x64xf32>
    %1088 = vector.broadcast %1087 : vector<1x64xf32> to vector<4x64xf32>
    %1089 = arith.addf %1086, %1088 : vector<4x64xf32>
    %cst_867 = arith.constant 0.000000e+00 : f32
    %1090 = vector.broadcast %cst_867 : f32 to vector<4x64xf32>
    %c0_868 = arith.constant 0 : index
    %c0_869 = arith.constant 0 : index
    %c1_870 = arith.constant 1 : index
    %c1_871 = arith.constant 1 : index
    %c0_872 = arith.constant 0 : index
    %1091 = vector.load %arg7[%c0_868, %c0_869, %c1_870, %c1_871, %c0_872] : memref<2x2x4x6x80xf32, #tpu.memory_space<vmem>>, vector<1x1x1x4x64xf32>
    %1092 = vector.shape_cast %1091 : vector<1x1x1x4x64xf32> to vector<4x64xf32>
    %1093 = vector.shape_cast %129 : vector<64xf32> to vector<1x64xf32>
    %1094 = vector.broadcast %1093 : vector<1x64xf32> to vector<4x64xf32>
    %1095 = arith.mulf %1092, %1094 : vector<4x64xf32>
    %1096 = arith.addf %1090, %1095 : vector<4x64xf32>
    %c0_873 = arith.constant 0 : index
    %c0_874 = arith.constant 0 : index
    %c1_875 = arith.constant 1 : index
    %c1_876 = arith.constant 1 : index
    %c8_877 = arith.constant 8 : index
    %1097 = vector.load %arg7[%c0_873, %c0_874, %c1_875, %c1_876, %c8_877] : memref<2x2x4x6x80xf32, #tpu.memory_space<vmem>>, vector<1x1x1x4x64xf32>
    %1098 = vector.shape_cast %1097 : vector<1x1x1x4x64xf32> to vector<4x64xf32>
    %1099 = vector.shape_cast %131 : vector<64xf32> to vector<1x64xf32>
    %1100 = vector.broadcast %1099 : vector<1x64xf32> to vector<4x64xf32>
    %1101 = arith.mulf %1098, %1100 : vector<4x64xf32>
    %1102 = arith.addf %1096, %1101 : vector<4x64xf32>
    %c0_878 = arith.constant 0 : index
    %c0_879 = arith.constant 0 : index
    %c1_880 = arith.constant 1 : index
    %c1_881 = arith.constant 1 : index
    %c16_882 = arith.constant 16 : index
    %1103 = vector.load %arg7[%c0_878, %c0_879, %c1_880, %c1_881, %c16_882] : memref<2x2x4x6x80xf32, #tpu.memory_space<vmem>>, vector<1x1x1x4x64xf32>
    %1104 = vector.shape_cast %1103 : vector<1x1x1x4x64xf32> to vector<4x64xf32>
    %1105 = vector.shape_cast %133 : vector<64xf32> to vector<1x64xf32>
    %1106 = vector.broadcast %1105 : vector<1x64xf32> to vector<4x64xf32>
    %1107 = arith.mulf %1104, %1106 : vector<4x64xf32>
    %1108 = arith.addf %1102, %1107 : vector<4x64xf32>
    %c0_883 = arith.constant 0 : index
    %c1_884 = arith.constant 1 : index
    %c1_885 = arith.constant 1 : index
    %c1_886 = arith.constant 1 : index
    %c0_887 = arith.constant 0 : index
    %1109 = vector.load %arg7[%c0_883, %c1_884, %c1_885, %c1_886, %c0_887] : memref<2x2x4x6x80xf32, #tpu.memory_space<vmem>>, vector<1x1x1x4x64xf32>
    %1110 = vector.shape_cast %1109 : vector<1x1x1x4x64xf32> to vector<4x64xf32>
    %1111 = vector.shape_cast %135 : vector<64xf32> to vector<1x64xf32>
    %1112 = vector.broadcast %1111 : vector<1x64xf32> to vector<4x64xf32>
    %1113 = arith.mulf %1110, %1112 : vector<4x64xf32>
    %1114 = arith.addf %1108, %1113 : vector<4x64xf32>
    %c0_888 = arith.constant 0 : index
    %c1_889 = arith.constant 1 : index
    %c1_890 = arith.constant 1 : index
    %c1_891 = arith.constant 1 : index
    %c8_892 = arith.constant 8 : index
    %1115 = vector.load %arg7[%c0_888, %c1_889, %c1_890, %c1_891, %c8_892] : memref<2x2x4x6x80xf32, #tpu.memory_space<vmem>>, vector<1x1x1x4x64xf32>
    %1116 = vector.shape_cast %1115 : vector<1x1x1x4x64xf32> to vector<4x64xf32>
    %1117 = vector.shape_cast %137 : vector<64xf32> to vector<1x64xf32>
    %1118 = vector.broadcast %1117 : vector<1x64xf32> to vector<4x64xf32>
    %1119 = arith.mulf %1116, %1118 : vector<4x64xf32>
    %1120 = arith.addf %1114, %1119 : vector<4x64xf32>
    %c0_893 = arith.constant 0 : index
    %c1_894 = arith.constant 1 : index
    %c1_895 = arith.constant 1 : index
    %c1_896 = arith.constant 1 : index
    %c16_897 = arith.constant 16 : index
    %1121 = vector.load %arg7[%c0_893, %c1_894, %c1_895, %c1_896, %c16_897] : memref<2x2x4x6x80xf32, #tpu.memory_space<vmem>>, vector<1x1x1x4x64xf32>
    %1122 = vector.shape_cast %1121 : vector<1x1x1x4x64xf32> to vector<4x64xf32>
    %1123 = vector.shape_cast %139 : vector<64xf32> to vector<1x64xf32>
    %1124 = vector.broadcast %1123 : vector<1x64xf32> to vector<4x64xf32>
    %1125 = arith.mulf %1122, %1124 : vector<4x64xf32>
    %1126 = arith.addf %1120, %1125 : vector<4x64xf32>
    %c0_898 = arith.constant 0 : index
    %c0_899 = arith.constant 0 : index
    %c1_900 = arith.constant 1 : index
    %c2_901 = arith.constant 2 : index
    %c0_902 = arith.constant 0 : index
    %1127 = vector.load %arg7[%c0_898, %c0_899, %c1_900, %c2_901, %c0_902] : memref<2x2x4x6x80xf32, #tpu.memory_space<vmem>>, vector<1x1x1x4x64xf32>
    %1128 = vector.shape_cast %1127 : vector<1x1x1x4x64xf32> to vector<4x64xf32>
    %1129 = vector.shape_cast %141 : vector<64xf32> to vector<1x64xf32>
    %1130 = vector.broadcast %1129 : vector<1x64xf32> to vector<4x64xf32>
    %1131 = arith.mulf %1128, %1130 : vector<4x64xf32>
    %1132 = arith.addf %1126, %1131 : vector<4x64xf32>
    %c0_903 = arith.constant 0 : index
    %c0_904 = arith.constant 0 : index
    %c1_905 = arith.constant 1 : index
    %c2_906 = arith.constant 2 : index
    %c8_907 = arith.constant 8 : index
    %1133 = vector.load %arg7[%c0_903, %c0_904, %c1_905, %c2_906, %c8_907] : memref<2x2x4x6x80xf32, #tpu.memory_space<vmem>>, vector<1x1x1x4x64xf32>
    %1134 = vector.shape_cast %1133 : vector<1x1x1x4x64xf32> to vector<4x64xf32>
    %1135 = vector.shape_cast %143 : vector<64xf32> to vector<1x64xf32>
    %1136 = vector.broadcast %1135 : vector<1x64xf32> to vector<4x64xf32>
    %1137 = arith.mulf %1134, %1136 : vector<4x64xf32>
    %1138 = arith.addf %1132, %1137 : vector<4x64xf32>
    %c0_908 = arith.constant 0 : index
    %c0_909 = arith.constant 0 : index
    %c1_910 = arith.constant 1 : index
    %c2_911 = arith.constant 2 : index
    %c16_912 = arith.constant 16 : index
    %1139 = vector.load %arg7[%c0_908, %c0_909, %c1_910, %c2_911, %c16_912] : memref<2x2x4x6x80xf32, #tpu.memory_space<vmem>>, vector<1x1x1x4x64xf32>
    %1140 = vector.shape_cast %1139 : vector<1x1x1x4x64xf32> to vector<4x64xf32>
    %1141 = vector.shape_cast %145 : vector<64xf32> to vector<1x64xf32>
    %1142 = vector.broadcast %1141 : vector<1x64xf32> to vector<4x64xf32>
    %1143 = arith.mulf %1140, %1142 : vector<4x64xf32>
    %1144 = arith.addf %1138, %1143 : vector<4x64xf32>
    %c1_913 = arith.constant 1 : index
    %c0_914 = arith.constant 0 : index
    %c1_915 = arith.constant 1 : index
    %c1_916 = arith.constant 1 : index
    %c0_917 = arith.constant 0 : index
    %1145 = vector.load %arg7[%c1_913, %c0_914, %c1_915, %c1_916, %c0_917] : memref<2x2x4x6x80xf32, #tpu.memory_space<vmem>>, vector<1x1x1x4x64xf32>
    %1146 = vector.shape_cast %1145 : vector<1x1x1x4x64xf32> to vector<4x64xf32>
    %1147 = vector.shape_cast %147 : vector<64xf32> to vector<1x64xf32>
    %1148 = vector.broadcast %1147 : vector<1x64xf32> to vector<4x64xf32>
    %1149 = arith.mulf %1146, %1148 : vector<4x64xf32>
    %1150 = arith.addf %1144, %1149 : vector<4x64xf32>
    %c1_918 = arith.constant 1 : index
    %c0_919 = arith.constant 0 : index
    %c1_920 = arith.constant 1 : index
    %c1_921 = arith.constant 1 : index
    %c8_922 = arith.constant 8 : index
    %1151 = vector.load %arg7[%c1_918, %c0_919, %c1_920, %c1_921, %c8_922] : memref<2x2x4x6x80xf32, #tpu.memory_space<vmem>>, vector<1x1x1x4x64xf32>
    %1152 = vector.shape_cast %1151 : vector<1x1x1x4x64xf32> to vector<4x64xf32>
    %1153 = vector.shape_cast %149 : vector<64xf32> to vector<1x64xf32>
    %1154 = vector.broadcast %1153 : vector<1x64xf32> to vector<4x64xf32>
    %1155 = arith.mulf %1152, %1154 : vector<4x64xf32>
    %1156 = arith.addf %1150, %1155 : vector<4x64xf32>
    %c1_923 = arith.constant 1 : index
    %c0_924 = arith.constant 0 : index
    %c1_925 = arith.constant 1 : index
    %c1_926 = arith.constant 1 : index
    %c16_927 = arith.constant 16 : index
    %1157 = vector.load %arg7[%c1_923, %c0_924, %c1_925, %c1_926, %c16_927] : memref<2x2x4x6x80xf32, #tpu.memory_space<vmem>>, vector<1x1x1x4x64xf32>
    %1158 = vector.shape_cast %1157 : vector<1x1x1x4x64xf32> to vector<4x64xf32>
    %1159 = vector.shape_cast %151 : vector<64xf32> to vector<1x64xf32>
    %1160 = vector.broadcast %1159 : vector<1x64xf32> to vector<4x64xf32>
    %1161 = arith.mulf %1158, %1160 : vector<4x64xf32>
    %1162 = arith.addf %1156, %1161 : vector<4x64xf32>
    %c1_928 = arith.constant 1 : index
    %c1_929 = arith.constant 1 : index
    %c1_930 = arith.constant 1 : index
    %c1_931 = arith.constant 1 : index
    %c0_932 = arith.constant 0 : index
    %1163 = vector.load %arg7[%c1_928, %c1_929, %c1_930, %c1_931, %c0_932] : memref<2x2x4x6x80xf32, #tpu.memory_space<vmem>>, vector<1x1x1x4x64xf32>
    %1164 = vector.shape_cast %1163 : vector<1x1x1x4x64xf32> to vector<4x64xf32>
    %1165 = vector.shape_cast %153 : vector<64xf32> to vector<1x64xf32>
    %1166 = vector.broadcast %1165 : vector<1x64xf32> to vector<4x64xf32>
    %1167 = arith.mulf %1164, %1166 : vector<4x64xf32>
    %1168 = arith.addf %1162, %1167 : vector<4x64xf32>
    %c1_933 = arith.constant 1 : index
    %c1_934 = arith.constant 1 : index
    %c1_935 = arith.constant 1 : index
    %c1_936 = arith.constant 1 : index
    %c8_937 = arith.constant 8 : index
    %1169 = vector.load %arg7[%c1_933, %c1_934, %c1_935, %c1_936, %c8_937] : memref<2x2x4x6x80xf32, #tpu.memory_space<vmem>>, vector<1x1x1x4x64xf32>
    %1170 = vector.shape_cast %1169 : vector<1x1x1x4x64xf32> to vector<4x64xf32>
    %1171 = vector.shape_cast %155 : vector<64xf32> to vector<1x64xf32>
    %1172 = vector.broadcast %1171 : vector<1x64xf32> to vector<4x64xf32>
    %1173 = arith.mulf %1170, %1172 : vector<4x64xf32>
    %1174 = arith.addf %1168, %1173 : vector<4x64xf32>
    %c1_938 = arith.constant 1 : index
    %c1_939 = arith.constant 1 : index
    %c1_940 = arith.constant 1 : index
    %c1_941 = arith.constant 1 : index
    %c16_942 = arith.constant 16 : index
    %1175 = vector.load %arg7[%c1_938, %c1_939, %c1_940, %c1_941, %c16_942] : memref<2x2x4x6x80xf32, #tpu.memory_space<vmem>>, vector<1x1x1x4x64xf32>
    %1176 = vector.shape_cast %1175 : vector<1x1x1x4x64xf32> to vector<4x64xf32>
    %1177 = vector.shape_cast %157 : vector<64xf32> to vector<1x64xf32>
    %1178 = vector.broadcast %1177 : vector<1x64xf32> to vector<4x64xf32>
    %1179 = arith.mulf %1176, %1178 : vector<4x64xf32>
    %1180 = arith.addf %1174, %1179 : vector<4x64xf32>
    %c1_943 = arith.constant 1 : index
    %c0_944 = arith.constant 0 : index
    %c1_945 = arith.constant 1 : index
    %c2_946 = arith.constant 2 : index
    %c0_947 = arith.constant 0 : index
    %1181 = vector.load %arg7[%c1_943, %c0_944, %c1_945, %c2_946, %c0_947] : memref<2x2x4x6x80xf32, #tpu.memory_space<vmem>>, vector<1x1x1x4x64xf32>
    %1182 = vector.shape_cast %1181 : vector<1x1x1x4x64xf32> to vector<4x64xf32>
    %1183 = vector.shape_cast %159 : vector<64xf32> to vector<1x64xf32>
    %1184 = vector.broadcast %1183 : vector<1x64xf32> to vector<4x64xf32>
    %1185 = arith.mulf %1182, %1184 : vector<4x64xf32>
    %1186 = arith.addf %1180, %1185 : vector<4x64xf32>
    %c1_948 = arith.constant 1 : index
    %c0_949 = arith.constant 0 : index
    %c1_950 = arith.constant 1 : index
    %c2_951 = arith.constant 2 : index
    %c8_952 = arith.constant 8 : index
    %1187 = vector.load %arg7[%c1_948, %c0_949, %c1_950, %c2_951, %c8_952] : memref<2x2x4x6x80xf32, #tpu.memory_space<vmem>>, vector<1x1x1x4x64xf32>
    %1188 = vector.shape_cast %1187 : vector<1x1x1x4x64xf32> to vector<4x64xf32>
    %1189 = vector.shape_cast %161 : vector<64xf32> to vector<1x64xf32>
    %1190 = vector.broadcast %1189 : vector<1x64xf32> to vector<4x64xf32>
    %1191 = arith.mulf %1188, %1190 : vector<4x64xf32>
    %1192 = arith.addf %1186, %1191 : vector<4x64xf32>
    %c1_953 = arith.constant 1 : index
    %c0_954 = arith.constant 0 : index
    %c1_955 = arith.constant 1 : index
    %c2_956 = arith.constant 2 : index
    %c16_957 = arith.constant 16 : index
    %1193 = vector.load %arg7[%c1_953, %c0_954, %c1_955, %c2_956, %c16_957] : memref<2x2x4x6x80xf32, #tpu.memory_space<vmem>>, vector<1x1x1x4x64xf32>
    %1194 = vector.shape_cast %1193 : vector<1x1x1x4x64xf32> to vector<4x64xf32>
    %1195 = vector.shape_cast %163 : vector<64xf32> to vector<1x64xf32>
    %1196 = vector.broadcast %1195 : vector<1x64xf32> to vector<4x64xf32>
    %1197 = arith.mulf %1194, %1196 : vector<4x64xf32>
    %1198 = arith.addf %1192, %1197 : vector<4x64xf32>
    %c0_958 = arith.constant 0 : index
    %c0_959 = arith.constant 0 : index
    %c2_960 = arith.constant 2 : index
    %c1_961 = arith.constant 1 : index
    %c0_962 = arith.constant 0 : index
    %1199 = vector.load %arg7[%c0_958, %c0_959, %c2_960, %c1_961, %c0_962] : memref<2x2x4x6x80xf32, #tpu.memory_space<vmem>>, vector<1x1x1x4x64xf32>
    %1200 = vector.shape_cast %1199 : vector<1x1x1x4x64xf32> to vector<4x64xf32>
    %1201 = vector.shape_cast %165 : vector<64xf32> to vector<1x64xf32>
    %1202 = vector.broadcast %1201 : vector<1x64xf32> to vector<4x64xf32>
    %1203 = arith.mulf %1200, %1202 : vector<4x64xf32>
    %1204 = arith.addf %1198, %1203 : vector<4x64xf32>
    %c0_963 = arith.constant 0 : index
    %c0_964 = arith.constant 0 : index
    %c2_965 = arith.constant 2 : index
    %c1_966 = arith.constant 1 : index
    %c8_967 = arith.constant 8 : index
    %1205 = vector.load %arg7[%c0_963, %c0_964, %c2_965, %c1_966, %c8_967] : memref<2x2x4x6x80xf32, #tpu.memory_space<vmem>>, vector<1x1x1x4x64xf32>
    %1206 = vector.shape_cast %1205 : vector<1x1x1x4x64xf32> to vector<4x64xf32>
    %1207 = vector.shape_cast %167 : vector<64xf32> to vector<1x64xf32>
    %1208 = vector.broadcast %1207 : vector<1x64xf32> to vector<4x64xf32>
    %1209 = arith.mulf %1206, %1208 : vector<4x64xf32>
    %1210 = arith.addf %1204, %1209 : vector<4x64xf32>
    %c0_968 = arith.constant 0 : index
    %c0_969 = arith.constant 0 : index
    %c2_970 = arith.constant 2 : index
    %c1_971 = arith.constant 1 : index
    %c16_972 = arith.constant 16 : index
    %1211 = vector.load %arg7[%c0_968, %c0_969, %c2_970, %c1_971, %c16_972] : memref<2x2x4x6x80xf32, #tpu.memory_space<vmem>>, vector<1x1x1x4x64xf32>
    %1212 = vector.shape_cast %1211 : vector<1x1x1x4x64xf32> to vector<4x64xf32>
    %1213 = vector.shape_cast %169 : vector<64xf32> to vector<1x64xf32>
    %1214 = vector.broadcast %1213 : vector<1x64xf32> to vector<4x64xf32>
    %1215 = arith.mulf %1212, %1214 : vector<4x64xf32>
    %1216 = arith.addf %1210, %1215 : vector<4x64xf32>
    %c0_973 = arith.constant 0 : index
    %c1_974 = arith.constant 1 : index
    %c2_975 = arith.constant 2 : index
    %c1_976 = arith.constant 1 : index
    %c0_977 = arith.constant 0 : index
    %1217 = vector.load %arg7[%c0_973, %c1_974, %c2_975, %c1_976, %c0_977] : memref<2x2x4x6x80xf32, #tpu.memory_space<vmem>>, vector<1x1x1x4x64xf32>
    %1218 = vector.shape_cast %1217 : vector<1x1x1x4x64xf32> to vector<4x64xf32>
    %1219 = vector.shape_cast %171 : vector<64xf32> to vector<1x64xf32>
    %1220 = vector.broadcast %1219 : vector<1x64xf32> to vector<4x64xf32>
    %1221 = arith.mulf %1218, %1220 : vector<4x64xf32>
    %1222 = arith.addf %1216, %1221 : vector<4x64xf32>
    %c0_978 = arith.constant 0 : index
    %c1_979 = arith.constant 1 : index
    %c2_980 = arith.constant 2 : index
    %c1_981 = arith.constant 1 : index
    %c8_982 = arith.constant 8 : index
    %1223 = vector.load %arg7[%c0_978, %c1_979, %c2_980, %c1_981, %c8_982] : memref<2x2x4x6x80xf32, #tpu.memory_space<vmem>>, vector<1x1x1x4x64xf32>
    %1224 = vector.shape_cast %1223 : vector<1x1x1x4x64xf32> to vector<4x64xf32>
    %1225 = vector.shape_cast %173 : vector<64xf32> to vector<1x64xf32>
    %1226 = vector.broadcast %1225 : vector<1x64xf32> to vector<4x64xf32>
    %1227 = arith.mulf %1224, %1226 : vector<4x64xf32>
    %1228 = arith.addf %1222, %1227 : vector<4x64xf32>
    %c0_983 = arith.constant 0 : index
    %c1_984 = arith.constant 1 : index
    %c2_985 = arith.constant 2 : index
    %c1_986 = arith.constant 1 : index
    %c16_987 = arith.constant 16 : index
    %1229 = vector.load %arg7[%c0_983, %c1_984, %c2_985, %c1_986, %c16_987] : memref<2x2x4x6x80xf32, #tpu.memory_space<vmem>>, vector<1x1x1x4x64xf32>
    %1230 = vector.shape_cast %1229 : vector<1x1x1x4x64xf32> to vector<4x64xf32>
    %1231 = vector.shape_cast %175 : vector<64xf32> to vector<1x64xf32>
    %1232 = vector.broadcast %1231 : vector<1x64xf32> to vector<4x64xf32>
    %1233 = arith.mulf %1230, %1232 : vector<4x64xf32>
    %1234 = arith.addf %1228, %1233 : vector<4x64xf32>
    %c0_988 = arith.constant 0 : index
    %c0_989 = arith.constant 0 : index
    %c2_990 = arith.constant 2 : index
    %c2_991 = arith.constant 2 : index
    %c0_992 = arith.constant 0 : index
    %1235 = vector.load %arg7[%c0_988, %c0_989, %c2_990, %c2_991, %c0_992] : memref<2x2x4x6x80xf32, #tpu.memory_space<vmem>>, vector<1x1x1x4x64xf32>
    %1236 = vector.shape_cast %1235 : vector<1x1x1x4x64xf32> to vector<4x64xf32>
    %1237 = vector.shape_cast %177 : vector<64xf32> to vector<1x64xf32>
    %1238 = vector.broadcast %1237 : vector<1x64xf32> to vector<4x64xf32>
    %1239 = arith.mulf %1236, %1238 : vector<4x64xf32>
    %1240 = arith.addf %1234, %1239 : vector<4x64xf32>
    %c0_993 = arith.constant 0 : index
    %c0_994 = arith.constant 0 : index
    %c2_995 = arith.constant 2 : index
    %c2_996 = arith.constant 2 : index
    %c8_997 = arith.constant 8 : index
    %1241 = vector.load %arg7[%c0_993, %c0_994, %c2_995, %c2_996, %c8_997] : memref<2x2x4x6x80xf32, #tpu.memory_space<vmem>>, vector<1x1x1x4x64xf32>
    %1242 = vector.shape_cast %1241 : vector<1x1x1x4x64xf32> to vector<4x64xf32>
    %1243 = vector.shape_cast %179 : vector<64xf32> to vector<1x64xf32>
    %1244 = vector.broadcast %1243 : vector<1x64xf32> to vector<4x64xf32>
    %1245 = arith.mulf %1242, %1244 : vector<4x64xf32>
    %1246 = arith.addf %1240, %1245 : vector<4x64xf32>
    %c0_998 = arith.constant 0 : index
    %c0_999 = arith.constant 0 : index
    %c2_1000 = arith.constant 2 : index
    %c2_1001 = arith.constant 2 : index
    %c16_1002 = arith.constant 16 : index
    %1247 = vector.load %arg7[%c0_998, %c0_999, %c2_1000, %c2_1001, %c16_1002] : memref<2x2x4x6x80xf32, #tpu.memory_space<vmem>>, vector<1x1x1x4x64xf32>
    %1248 = vector.shape_cast %1247 : vector<1x1x1x4x64xf32> to vector<4x64xf32>
    %1249 = vector.shape_cast %181 : vector<64xf32> to vector<1x64xf32>
    %1250 = vector.broadcast %1249 : vector<1x64xf32> to vector<4x64xf32>
    %1251 = arith.mulf %1248, %1250 : vector<4x64xf32>
    %1252 = arith.addf %1246, %1251 : vector<4x64xf32>
    %1253 = vector.shape_cast %123 : vector<64xf32> to vector<1x64xf32>
    %1254 = vector.broadcast %1253 : vector<1x64xf32> to vector<4x64xf32>
    %1255 = arith.addf %1252, %1254 : vector<4x64xf32>
    %cst_1003 = arith.constant 0.000000e+00 : f32
    %cst_1004 = arith.constant 6.000000e+00 : f32
    %1256 = vector.broadcast %cst_1003 : f32 to vector<4x64xf32>
    %1257 = arith.maximumf %1256, %1255 : vector<4x64xf32>
    %1258 = vector.broadcast %cst_1004 : f32 to vector<4x64xf32>
    %1259 = arith.minimumf %1258, %1257 : vector<4x64xf32>
    %cst_1005 = arith.constant dense<0.000000e+00> : vector<4x64xf32>
    %1260 = tpu.matmul %1259, %121, %cst_1005 {dimension_numbers = #tpu.dot_dimension_numbers<[1], [0], [0], [1], [0, 0, 1, 1], [], []>} : vector<4x64xf32>, vector<64x64xf32>, vector<4x64xf32> -> vector<4x64xf32>
    %c1_1006 = arith.constant 1 : index
    %c1_1007 = arith.constant 1 : index
    %c1_1008 = arith.constant 1 : index
    %c1_1009 = arith.constant 1 : index
    %c8_1010 = arith.constant 8 : index
    %1261 = vector.load %arg7[%c1_1006, %c1_1007, %c1_1008, %c1_1009, %c8_1010] : memref<2x2x4x6x80xf32, #tpu.memory_space<vmem>>, vector<1x1x1x4x64xf32>
    %1262 = vector.shape_cast %1261 : vector<1x1x1x4x64xf32> to vector<4x64xf32>
    %1263 = vector.shape_cast %125 : vector<64xf32> to vector<1x64xf32>
    %1264 = vector.broadcast %1263 : vector<1x64xf32> to vector<4x64xf32>
    %1265 = arith.mulf %1262, %1264 : vector<4x64xf32>
    %1266 = arith.addf %1265, %1260 : vector<4x64xf32>
    %1267 = vector.shape_cast %127 : vector<64xf32> to vector<1x64xf32>
    %1268 = vector.broadcast %1267 : vector<1x64xf32> to vector<4x64xf32>
    %1269 = arith.addf %1266, %1268 : vector<4x64xf32>
    %1270 = tpu.concatenate %1089, %1269 in 1 : vector<4x64xf32>, vector<4x64xf32> -> vector<4x128xf32>
    %c0_1011 = arith.constant 0 : index
    %c0_1012 = arith.constant 0 : index
    %c1_1013 = arith.constant 1 : index
    %c0_1014 = arith.constant 0 : index
    %c0_1015 = arith.constant 0 : index
    %1271 = vector.load %arg6[%c0_1011, %c0_1012, %c1_1013, %c0_1014, %c0_1015] : memref<1x2x2x4x128xf32, #tpu.memory_space<vmem>>, vector<1x1x1x4x128xf32>
    %1272 = vector.shape_cast %1271 : vector<1x1x1x4x128xf32> to vector<4x128xf32>
    %1273 = vector.shape_cast %1270 : vector<4x128xf32> to vector<1x1x1x4x128xf32>
    tpu.vector_store %arg6[%c0_1011, %c0_1012, %c1_1013, %c0_1014, %c0_1015], %1273 {strides = array<i32>} : memref<1x2x2x4x128xf32, #tpu.memory_space<vmem>>, vector<1x1x1x4x128xf32>,
    %cst_1016 = arith.constant 0.000000e+00 : f32
    %1274 = vector.broadcast %cst_1016 : f32 to vector<4x64xf32>
    %c0_1017 = arith.constant 0 : index
    %c1_1018 = arith.constant 1 : index
    %c2_1019 = arith.constant 2 : index
    %c0_1020 = arith.constant 0 : index
    %c0_1021 = arith.constant 0 : index
    %1275 = vector.load %arg7[%c0_1017, %c1_1018, %c2_1019, %c0_1020, %c0_1021] : memref<2x2x4x6x80xf32, #tpu.memory_space<vmem>>, vector<1x1x1x4x64xf32>
    %1276 = vector.shape_cast %1275 : vector<1x1x1x4x64xf32> to vector<4x64xf32>
    %1277 = vector.shape_cast %129 : vector<64xf32> to vector<1x64xf32>
    %1278 = vector.broadcast %1277 : vector<1x64xf32> to vector<4x64xf32>
    %1279 = arith.mulf %1276, %1278 : vector<4x64xf32>
    %1280 = arith.addf %1274, %1279 : vector<4x64xf32>
    %c0_1022 = arith.constant 0 : index
    %c1_1023 = arith.constant 1 : index
    %c2_1024 = arith.constant 2 : index
    %c0_1025 = arith.constant 0 : index
    %c8_1026 = arith.constant 8 : index
    %1281 = vector.load %arg7[%c0_1022, %c1_1023, %c2_1024, %c0_1025, %c8_1026] : memref<2x2x4x6x80xf32, #tpu.memory_space<vmem>>, vector<1x1x1x4x64xf32>
    %1282 = vector.shape_cast %1281 : vector<1x1x1x4x64xf32> to vector<4x64xf32>
    %1283 = vector.shape_cast %131 : vector<64xf32> to vector<1x64xf32>
    %1284 = vector.broadcast %1283 : vector<1x64xf32> to vector<4x64xf32>
    %1285 = arith.mulf %1282, %1284 : vector<4x64xf32>
    %1286 = arith.addf %1280, %1285 : vector<4x64xf32>
    %c0_1027 = arith.constant 0 : index
    %c1_1028 = arith.constant 1 : index
    %c2_1029 = arith.constant 2 : index
    %c0_1030 = arith.constant 0 : index
    %c16_1031 = arith.constant 16 : index
    %1287 = vector.load %arg7[%c0_1027, %c1_1028, %c2_1029, %c0_1030, %c16_1031] : memref<2x2x4x6x80xf32, #tpu.memory_space<vmem>>, vector<1x1x1x4x64xf32>
    %1288 = vector.shape_cast %1287 : vector<1x1x1x4x64xf32> to vector<4x64xf32>
    %1289 = vector.shape_cast %133 : vector<64xf32> to vector<1x64xf32>
    %1290 = vector.broadcast %1289 : vector<1x64xf32> to vector<4x64xf32>
    %1291 = arith.mulf %1288, %1290 : vector<4x64xf32>
    %1292 = arith.addf %1286, %1291 : vector<4x64xf32>
    %c0_1032 = arith.constant 0 : index
    %c0_1033 = arith.constant 0 : index
    %c2_1034 = arith.constant 2 : index
    %c1_1035 = arith.constant 1 : index
    %c0_1036 = arith.constant 0 : index
    %1293 = vector.load %arg7[%c0_1032, %c0_1033, %c2_1034, %c1_1035, %c0_1036] : memref<2x2x4x6x80xf32, #tpu.memory_space<vmem>>, vector<1x1x1x4x64xf32>
    %1294 = vector.shape_cast %1293 : vector<1x1x1x4x64xf32> to vector<4x64xf32>
    %1295 = vector.shape_cast %135 : vector<64xf32> to vector<1x64xf32>
    %1296 = vector.broadcast %1295 : vector<1x64xf32> to vector<4x64xf32>
    %1297 = arith.mulf %1294, %1296 : vector<4x64xf32>
    %1298 = arith.addf %1292, %1297 : vector<4x64xf32>
    %c0_1037 = arith.constant 0 : index
    %c0_1038 = arith.constant 0 : index
    %c2_1039 = arith.constant 2 : index
    %c1_1040 = arith.constant 1 : index
    %c8_1041 = arith.constant 8 : index
    %1299 = vector.load %arg7[%c0_1037, %c0_1038, %c2_1039, %c1_1040, %c8_1041] : memref<2x2x4x6x80xf32, #tpu.memory_space<vmem>>, vector<1x1x1x4x64xf32>
    %1300 = vector.shape_cast %1299 : vector<1x1x1x4x64xf32> to vector<4x64xf32>
    %1301 = vector.shape_cast %137 : vector<64xf32> to vector<1x64xf32>
    %1302 = vector.broadcast %1301 : vector<1x64xf32> to vector<4x64xf32>
    %1303 = arith.mulf %1300, %1302 : vector<4x64xf32>
    %1304 = arith.addf %1298, %1303 : vector<4x64xf32>
    %c0_1042 = arith.constant 0 : index
    %c0_1043 = arith.constant 0 : index
    %c2_1044 = arith.constant 2 : index
    %c1_1045 = arith.constant 1 : index
    %c16_1046 = arith.constant 16 : index
    %1305 = vector.load %arg7[%c0_1042, %c0_1043, %c2_1044, %c1_1045, %c16_1046] : memref<2x2x4x6x80xf32, #tpu.memory_space<vmem>>, vector<1x1x1x4x64xf32>
    %1306 = vector.shape_cast %1305 : vector<1x1x1x4x64xf32> to vector<4x64xf32>
    %1307 = vector.shape_cast %139 : vector<64xf32> to vector<1x64xf32>
    %1308 = vector.broadcast %1307 : vector<1x64xf32> to vector<4x64xf32>
    %1309 = arith.mulf %1306, %1308 : vector<4x64xf32>
    %1310 = arith.addf %1304, %1309 : vector<4x64xf32>
    %c0_1047 = arith.constant 0 : index
    %c1_1048 = arith.constant 1 : index
    %c2_1049 = arith.constant 2 : index
    %c1_1050 = arith.constant 1 : index
    %c0_1051 = arith.constant 0 : index
    %1311 = vector.load %arg7[%c0_1047, %c1_1048, %c2_1049, %c1_1050, %c0_1051] : memref<2x2x4x6x80xf32, #tpu.memory_space<vmem>>, vector<1x1x1x4x64xf32>
    %1312 = vector.shape_cast %1311 : vector<1x1x1x4x64xf32> to vector<4x64xf32>
    %1313 = vector.shape_cast %141 : vector<64xf32> to vector<1x64xf32>
    %1314 = vector.broadcast %1313 : vector<1x64xf32> to vector<4x64xf32>
    %1315 = arith.mulf %1312, %1314 : vector<4x64xf32>
    %1316 = arith.addf %1310, %1315 : vector<4x64xf32>
    %c0_1052 = arith.constant 0 : index
    %c1_1053 = arith.constant 1 : index
    %c2_1054 = arith.constant 2 : index
    %c1_1055 = arith.constant 1 : index
    %c8_1056 = arith.constant 8 : index
    %1317 = vector.load %arg7[%c0_1052, %c1_1053, %c2_1054, %c1_1055, %c8_1056] : memref<2x2x4x6x80xf32, #tpu.memory_space<vmem>>, vector<1x1x1x4x64xf32>
    %1318 = vector.shape_cast %1317 : vector<1x1x1x4x64xf32> to vector<4x64xf32>
    %1319 = vector.shape_cast %143 : vector<64xf32> to vector<1x64xf32>
    %1320 = vector.broadcast %1319 : vector<1x64xf32> to vector<4x64xf32>
    %1321 = arith.mulf %1318, %1320 : vector<4x64xf32>
    %1322 = arith.addf %1316, %1321 : vector<4x64xf32>
    %c0_1057 = arith.constant 0 : index
    %c1_1058 = arith.constant 1 : index
    %c2_1059 = arith.constant 2 : index
    %c1_1060 = arith.constant 1 : index
    %c16_1061 = arith.constant 16 : index
    %1323 = vector.load %arg7[%c0_1057, %c1_1058, %c2_1059, %c1_1060, %c16_1061] : memref<2x2x4x6x80xf32, #tpu.memory_space<vmem>>, vector<1x1x1x4x64xf32>
    %1324 = vector.shape_cast %1323 : vector<1x1x1x4x64xf32> to vector<4x64xf32>
    %1325 = vector.shape_cast %145 : vector<64xf32> to vector<1x64xf32>
    %1326 = vector.broadcast %1325 : vector<1x64xf32> to vector<4x64xf32>
    %1327 = arith.mulf %1324, %1326 : vector<4x64xf32>
    %1328 = arith.addf %1322, %1327 : vector<4x64xf32>
    %c1_1062 = arith.constant 1 : index
    %c1_1063 = arith.constant 1 : index
    %c2_1064 = arith.constant 2 : index
    %c0_1065 = arith.constant 0 : index
    %c0_1066 = arith.constant 0 : index
    %1329 = vector.load %arg7[%c1_1062, %c1_1063, %c2_1064, %c0_1065, %c0_1066] : memref<2x2x4x6x80xf32, #tpu.memory_space<vmem>>, vector<1x1x1x4x64xf32>
    %1330 = vector.shape_cast %1329 : vector<1x1x1x4x64xf32> to vector<4x64xf32>
    %1331 = vector.shape_cast %147 : vector<64xf32> to vector<1x64xf32>
    %1332 = vector.broadcast %1331 : vector<1x64xf32> to vector<4x64xf32>
    %1333 = arith.mulf %1330, %1332 : vector<4x64xf32>
    %1334 = arith.addf %1328, %1333 : vector<4x64xf32>
    %c1_1067 = arith.constant 1 : index
    %c1_1068 = arith.constant 1 : index
    %c2_1069 = arith.constant 2 : index
    %c0_1070 = arith.constant 0 : index
    %c8_1071 = arith.constant 8 : index
    %1335 = vector.load %arg7[%c1_1067, %c1_1068, %c2_1069, %c0_1070, %c8_1071] : memref<2x2x4x6x80xf32, #tpu.memory_space<vmem>>, vector<1x1x1x4x64xf32>
    %1336 = vector.shape_cast %1335 : vector<1x1x1x4x64xf32> to vector<4x64xf32>
    %1337 = vector.shape_cast %149 : vector<64xf32> to vector<1x64xf32>
    %1338 = vector.broadcast %1337 : vector<1x64xf32> to vector<4x64xf32>
    %1339 = arith.mulf %1336, %1338 : vector<4x64xf32>
    %1340 = arith.addf %1334, %1339 : vector<4x64xf32>
    %c1_1072 = arith.constant 1 : index
    %c1_1073 = arith.constant 1 : index
    %c2_1074 = arith.constant 2 : index
    %c0_1075 = arith.constant 0 : index
    %c16_1076 = arith.constant 16 : index
    %1341 = vector.load %arg7[%c1_1072, %c1_1073, %c2_1074, %c0_1075, %c16_1076] : memref<2x2x4x6x80xf32, #tpu.memory_space<vmem>>, vector<1x1x1x4x64xf32>
    %1342 = vector.shape_cast %1341 : vector<1x1x1x4x64xf32> to vector<4x64xf32>
    %1343 = vector.shape_cast %151 : vector<64xf32> to vector<1x64xf32>
    %1344 = vector.broadcast %1343 : vector<1x64xf32> to vector<4x64xf32>
    %1345 = arith.mulf %1342, %1344 : vector<4x64xf32>
    %1346 = arith.addf %1340, %1345 : vector<4x64xf32>
    %c1_1077 = arith.constant 1 : index
    %c0_1078 = arith.constant 0 : index
    %c2_1079 = arith.constant 2 : index
    %c1_1080 = arith.constant 1 : index
    %c0_1081 = arith.constant 0 : index
    %1347 = vector.load %arg7[%c1_1077, %c0_1078, %c2_1079, %c1_1080, %c0_1081] : memref<2x2x4x6x80xf32, #tpu.memory_space<vmem>>, vector<1x1x1x4x64xf32>
    %1348 = vector.shape_cast %1347 : vector<1x1x1x4x64xf32> to vector<4x64xf32>
    %1349 = vector.shape_cast %153 : vector<64xf32> to vector<1x64xf32>
    %1350 = vector.broadcast %1349 : vector<1x64xf32> to vector<4x64xf32>
    %1351 = arith.mulf %1348, %1350 : vector<4x64xf32>
    %1352 = arith.addf %1346, %1351 : vector<4x64xf32>
    %c1_1082 = arith.constant 1 : index
    %c0_1083 = arith.constant 0 : index
    %c2_1084 = arith.constant 2 : index
    %c1_1085 = arith.constant 1 : index
    %c8_1086 = arith.constant 8 : index
    %1353 = vector.load %arg7[%c1_1082, %c0_1083, %c2_1084, %c1_1085, %c8_1086] : memref<2x2x4x6x80xf32, #tpu.memory_space<vmem>>, vector<1x1x1x4x64xf32>
    %1354 = vector.shape_cast %1353 : vector<1x1x1x4x64xf32> to vector<4x64xf32>
    %1355 = vector.shape_cast %155 : vector<64xf32> to vector<1x64xf32>
    %1356 = vector.broadcast %1355 : vector<1x64xf32> to vector<4x64xf32>
    %1357 = arith.mulf %1354, %1356 : vector<4x64xf32>
    %1358 = arith.addf %1352, %1357 : vector<4x64xf32>
    %c1_1087 = arith.constant 1 : index
    %c0_1088 = arith.constant 0 : index
    %c2_1089 = arith.constant 2 : index
    %c1_1090 = arith.constant 1 : index
    %c16_1091 = arith.constant 16 : index
    %1359 = vector.load %arg7[%c1_1087, %c0_1088, %c2_1089, %c1_1090, %c16_1091] : memref<2x2x4x6x80xf32, #tpu.memory_space<vmem>>, vector<1x1x1x4x64xf32>
    %1360 = vector.shape_cast %1359 : vector<1x1x1x4x64xf32> to vector<4x64xf32>
    %1361 = vector.shape_cast %157 : vector<64xf32> to vector<1x64xf32>
    %1362 = vector.broadcast %1361 : vector<1x64xf32> to vector<4x64xf32>
    %1363 = arith.mulf %1360, %1362 : vector<4x64xf32>
    %1364 = arith.addf %1358, %1363 : vector<4x64xf32>
    %c1_1092 = arith.constant 1 : index
    %c1_1093 = arith.constant 1 : index
    %c2_1094 = arith.constant 2 : index
    %c1_1095 = arith.constant 1 : index
    %c0_1096 = arith.constant 0 : index
    %1365 = vector.load %arg7[%c1_1092, %c1_1093, %c2_1094, %c1_1095, %c0_1096] : memref<2x2x4x6x80xf32, #tpu.memory_space<vmem>>, vector<1x1x1x4x64xf32>
    %1366 = vector.shape_cast %1365 : vector<1x1x1x4x64xf32> to vector<4x64xf32>
    %1367 = vector.shape_cast %159 : vector<64xf32> to vector<1x64xf32>
    %1368 = vector.broadcast %1367 : vector<1x64xf32> to vector<4x64xf32>
    %1369 = arith.mulf %1366, %1368 : vector<4x64xf32>
    %1370 = arith.addf %1364, %1369 : vector<4x64xf32>
    %c1_1097 = arith.constant 1 : index
    %c1_1098 = arith.constant 1 : index
    %c2_1099 = arith.constant 2 : index
    %c1_1100 = arith.constant 1 : index
    %c8_1101 = arith.constant 8 : index
    %1371 = vector.load %arg7[%c1_1097, %c1_1098, %c2_1099, %c1_1100, %c8_1101] : memref<2x2x4x6x80xf32, #tpu.memory_space<vmem>>, vector<1x1x1x4x64xf32>
    %1372 = vector.shape_cast %1371 : vector<1x1x1x4x64xf32> to vector<4x64xf32>
    %1373 = vector.shape_cast %161 : vector<64xf32> to vector<1x64xf32>
    %1374 = vector.broadcast %1373 : vector<1x64xf32> to vector<4x64xf32>
    %1375 = arith.mulf %1372, %1374 : vector<4x64xf32>
    %1376 = arith.addf %1370, %1375 : vector<4x64xf32>
    %c1_1102 = arith.constant 1 : index
    %c1_1103 = arith.constant 1 : index
    %c2_1104 = arith.constant 2 : index
    %c1_1105 = arith.constant 1 : index
    %c16_1106 = arith.constant 16 : index
    %1377 = vector.load %arg7[%c1_1102, %c1_1103, %c2_1104, %c1_1105, %c16_1106] : memref<2x2x4x6x80xf32, #tpu.memory_space<vmem>>, vector<1x1x1x4x64xf32>
    %1378 = vector.shape_cast %1377 : vector<1x1x1x4x64xf32> to vector<4x64xf32>
    %1379 = vector.shape_cast %163 : vector<64xf32> to vector<1x64xf32>
    %1380 = vector.broadcast %1379 : vector<1x64xf32> to vector<4x64xf32>
    %1381 = arith.mulf %1378, %1380 : vector<4x64xf32>
    %1382 = arith.addf %1376, %1381 : vector<4x64xf32>
    %c0_1107 = arith.constant 0 : index
    %c1_1108 = arith.constant 1 : index
    %c3_1109 = arith.constant 3 : index
    %c0_1110 = arith.constant 0 : index
    %c0_1111 = arith.constant 0 : index
    %1383 = vector.load %arg7[%c0_1107, %c1_1108, %c3_1109, %c0_1110, %c0_1111] : memref<2x2x4x6x80xf32, #tpu.memory_space<vmem>>, vector<1x1x1x4x64xf32>
    %1384 = vector.shape_cast %1383 : vector<1x1x1x4x64xf32> to vector<4x64xf32>
    %1385 = vector.shape_cast %165 : vector<64xf32> to vector<1x64xf32>
    %1386 = vector.broadcast %1385 : vector<1x64xf32> to vector<4x64xf32>
    %1387 = arith.mulf %1384, %1386 : vector<4x64xf32>
    %1388 = arith.addf %1382, %1387 : vector<4x64xf32>
    %c0_1112 = arith.constant 0 : index
    %c1_1113 = arith.constant 1 : index
    %c3_1114 = arith.constant 3 : index
    %c0_1115 = arith.constant 0 : index
    %c8_1116 = arith.constant 8 : index
    %1389 = vector.load %arg7[%c0_1112, %c1_1113, %c3_1114, %c0_1115, %c8_1116] : memref<2x2x4x6x80xf32, #tpu.memory_space<vmem>>, vector<1x1x1x4x64xf32>
    %1390 = vector.shape_cast %1389 : vector<1x1x1x4x64xf32> to vector<4x64xf32>
    %1391 = vector.shape_cast %167 : vector<64xf32> to vector<1x64xf32>
    %1392 = vector.broadcast %1391 : vector<1x64xf32> to vector<4x64xf32>
    %1393 = arith.mulf %1390, %1392 : vector<4x64xf32>
    %1394 = arith.addf %1388, %1393 : vector<4x64xf32>
    %c0_1117 = arith.constant 0 : index
    %c1_1118 = arith.constant 1 : index
    %c3_1119 = arith.constant 3 : index
    %c0_1120 = arith.constant 0 : index
    %c16_1121 = arith.constant 16 : index
    %1395 = vector.load %arg7[%c0_1117, %c1_1118, %c3_1119, %c0_1120, %c16_1121] : memref<2x2x4x6x80xf32, #tpu.memory_space<vmem>>, vector<1x1x1x4x64xf32>
    %1396 = vector.shape_cast %1395 : vector<1x1x1x4x64xf32> to vector<4x64xf32>
    %1397 = vector.shape_cast %169 : vector<64xf32> to vector<1x64xf32>
    %1398 = vector.broadcast %1397 : vector<1x64xf32> to vector<4x64xf32>
    %1399 = arith.mulf %1396, %1398 : vector<4x64xf32>
    %1400 = arith.addf %1394, %1399 : vector<4x64xf32>
    %c0_1122 = arith.constant 0 : index
    %c0_1123 = arith.constant 0 : index
    %c3_1124 = arith.constant 3 : index
    %c1_1125 = arith.constant 1 : index
    %c0_1126 = arith.constant 0 : index
    %1401 = vector.load %arg7[%c0_1122, %c0_1123, %c3_1124, %c1_1125, %c0_1126] : memref<2x2x4x6x80xf32, #tpu.memory_space<vmem>>, vector<1x1x1x4x64xf32>
    %1402 = vector.shape_cast %1401 : vector<1x1x1x4x64xf32> to vector<4x64xf32>
    %1403 = vector.shape_cast %171 : vector<64xf32> to vector<1x64xf32>
    %1404 = vector.broadcast %1403 : vector<1x64xf32> to vector<4x64xf32>
    %1405 = arith.mulf %1402, %1404 : vector<4x64xf32>
    %1406 = arith.addf %1400, %1405 : vector<4x64xf32>
    %c0_1127 = arith.constant 0 : index
    %c0_1128 = arith.constant 0 : index
    %c3_1129 = arith.constant 3 : index
    %c1_1130 = arith.constant 1 : index
    %c8_1131 = arith.constant 8 : index
    %1407 = vector.load %arg7[%c0_1127, %c0_1128, %c3_1129, %c1_1130, %c8_1131] : memref<2x2x4x6x80xf32, #tpu.memory_space<vmem>>, vector<1x1x1x4x64xf32>
    %1408 = vector.shape_cast %1407 : vector<1x1x1x4x64xf32> to vector<4x64xf32>
    %1409 = vector.shape_cast %173 : vector<64xf32> to vector<1x64xf32>
    %1410 = vector.broadcast %1409 : vector<1x64xf32> to vector<4x64xf32>
    %1411 = arith.mulf %1408, %1410 : vector<4x64xf32>
    %1412 = arith.addf %1406, %1411 : vector<4x64xf32>
    %c0_1132 = arith.constant 0 : index
    %c0_1133 = arith.constant 0 : index
    %c3_1134 = arith.constant 3 : index
    %c1_1135 = arith.constant 1 : index
    %c16_1136 = arith.constant 16 : index
    %1413 = vector.load %arg7[%c0_1132, %c0_1133, %c3_1134, %c1_1135, %c16_1136] : memref<2x2x4x6x80xf32, #tpu.memory_space<vmem>>, vector<1x1x1x4x64xf32>
    %1414 = vector.shape_cast %1413 : vector<1x1x1x4x64xf32> to vector<4x64xf32>
    %1415 = vector.shape_cast %175 : vector<64xf32> to vector<1x64xf32>
    %1416 = vector.broadcast %1415 : vector<1x64xf32> to vector<4x64xf32>
    %1417 = arith.mulf %1414, %1416 : vector<4x64xf32>
    %1418 = arith.addf %1412, %1417 : vector<4x64xf32>
    %c0_1137 = arith.constant 0 : index
    %c1_1138 = arith.constant 1 : index
    %c3_1139 = arith.constant 3 : index
    %c1_1140 = arith.constant 1 : index
    %c0_1141 = arith.constant 0 : index
    %1419 = vector.load %arg7[%c0_1137, %c1_1138, %c3_1139, %c1_1140, %c0_1141] : memref<2x2x4x6x80xf32, #tpu.memory_space<vmem>>, vector<1x1x1x4x64xf32>
    %1420 = vector.shape_cast %1419 : vector<1x1x1x4x64xf32> to vector<4x64xf32>
    %1421 = vector.shape_cast %177 : vector<64xf32> to vector<1x64xf32>
    %1422 = vector.broadcast %1421 : vector<1x64xf32> to vector<4x64xf32>
    %1423 = arith.mulf %1420, %1422 : vector<4x64xf32>
    %1424 = arith.addf %1418, %1423 : vector<4x64xf32>
    %c0_1142 = arith.constant 0 : index
    %c1_1143 = arith.constant 1 : index
    %c3_1144 = arith.constant 3 : index
    %c1_1145 = arith.constant 1 : index
    %c8_1146 = arith.constant 8 : index
    %1425 = vector.load %arg7[%c0_1142, %c1_1143, %c3_1144, %c1_1145, %c8_1146] : memref<2x2x4x6x80xf32, #tpu.memory_space<vmem>>, vector<1x1x1x4x64xf32>
    %1426 = vector.shape_cast %1425 : vector<1x1x1x4x64xf32> to vector<4x64xf32>
    %1427 = vector.shape_cast %179 : vector<64xf32> to vector<1x64xf32>
    %1428 = vector.broadcast %1427 : vector<1x64xf32> to vector<4x64xf32>
    %1429 = arith.mulf %1426, %1428 : vector<4x64xf32>
    %1430 = arith.addf %1424, %1429 : vector<4x64xf32>
    %c0_1147 = arith.constant 0 : index
    %c1_1148 = arith.constant 1 : index
    %c3_1149 = arith.constant 3 : index
    %c1_1150 = arith.constant 1 : index
    %c16_1151 = arith.constant 16 : index
    %1431 = vector.load %arg7[%c0_1147, %c1_1148, %c3_1149, %c1_1150, %c16_1151] : memref<2x2x4x6x80xf32, #tpu.memory_space<vmem>>, vector<1x1x1x4x64xf32>
    %1432 = vector.shape_cast %1431 : vector<1x1x1x4x64xf32> to vector<4x64xf32>
    %1433 = vector.shape_cast %181 : vector<64xf32> to vector<1x64xf32>
    %1434 = vector.broadcast %1433 : vector<1x64xf32> to vector<4x64xf32>
    %1435 = arith.mulf %1432, %1434 : vector<4x64xf32>
    %1436 = arith.addf %1430, %1435 : vector<4x64xf32>
    %1437 = vector.shape_cast %123 : vector<64xf32> to vector<1x64xf32>
    %1438 = vector.broadcast %1437 : vector<1x64xf32> to vector<4x64xf32>
    %1439 = arith.addf %1436, %1438 : vector<4x64xf32>
    %cst_1152 = arith.constant 0.000000e+00 : f32
    %cst_1153 = arith.constant 6.000000e+00 : f32
    %1440 = vector.broadcast %cst_1152 : f32 to vector<4x64xf32>
    %1441 = arith.maximumf %1440, %1439 : vector<4x64xf32>
    %1442 = vector.broadcast %cst_1153 : f32 to vector<4x64xf32>
    %1443 = arith.minimumf %1442, %1441 : vector<4x64xf32>
    %cst_1154 = arith.constant dense<0.000000e+00> : vector<4x64xf32>
    %1444 = tpu.matmul %1443, %121, %cst_1154 {dimension_numbers = #tpu.dot_dimension_numbers<[1], [0], [0], [1], [0, 0, 1, 1], [], []>} : vector<4x64xf32>, vector<64x64xf32>, vector<4x64xf32> -> vector<4x64xf32>
    %c1_1155 = arith.constant 1 : index
    %c0_1156 = arith.constant 0 : index
    %c2_1157 = arith.constant 2 : index
    %c1_1158 = arith.constant 1 : index
    %c8_1159 = arith.constant 8 : index
    %1445 = vector.load %arg7[%c1_1155, %c0_1156, %c2_1157, %c1_1158, %c8_1159] : memref<2x2x4x6x80xf32, #tpu.memory_space<vmem>>, vector<1x1x1x4x64xf32>
    %1446 = vector.shape_cast %1445 : vector<1x1x1x4x64xf32> to vector<4x64xf32>
    %1447 = vector.shape_cast %125 : vector<64xf32> to vector<1x64xf32>
    %1448 = vector.broadcast %1447 : vector<1x64xf32> to vector<4x64xf32>
    %1449 = arith.mulf %1446, %1448 : vector<4x64xf32>
    %1450 = arith.addf %1449, %1444 : vector<4x64xf32>
    %1451 = vector.shape_cast %127 : vector<64xf32> to vector<1x64xf32>
    %1452 = vector.broadcast %1451 : vector<1x64xf32> to vector<4x64xf32>
    %1453 = arith.addf %1450, %1452 : vector<4x64xf32>
    %cst_1160 = arith.constant 0.000000e+00 : f32
    %1454 = vector.broadcast %cst_1160 : f32 to vector<4x64xf32>
    %c0_1161 = arith.constant 0 : index
    %c0_1162 = arith.constant 0 : index
    %c2_1163 = arith.constant 2 : index
    %c1_1164 = arith.constant 1 : index
    %c0_1165 = arith.constant 0 : index
    %1455 = vector.load %arg7[%c0_1161, %c0_1162, %c2_1163, %c1_1164, %c0_1165] : memref<2x2x4x6x80xf32, #tpu.memory_space<vmem>>, vector<1x1x1x4x64xf32>
    %1456 = vector.shape_cast %1455 : vector<1x1x1x4x64xf32> to vector<4x64xf32>
    %1457 = vector.shape_cast %129 : vector<64xf32> to vector<1x64xf32>
    %1458 = vector.broadcast %1457 : vector<1x64xf32> to vector<4x64xf32>
    %1459 = arith.mulf %1456, %1458 : vector<4x64xf32>
    %1460 = arith.addf %1454, %1459 : vector<4x64xf32>
    %c0_1166 = arith.constant 0 : index
    %c0_1167 = arith.constant 0 : index
    %c2_1168 = arith.constant 2 : index
    %c1_1169 = arith.constant 1 : index
    %c8_1170 = arith.constant 8 : index
    %1461 = vector.load %arg7[%c0_1166, %c0_1167, %c2_1168, %c1_1169, %c8_1170] : memref<2x2x4x6x80xf32, #tpu.memory_space<vmem>>, vector<1x1x1x4x64xf32>
    %1462 = vector.shape_cast %1461 : vector<1x1x1x4x64xf32> to vector<4x64xf32>
    %1463 = vector.shape_cast %131 : vector<64xf32> to vector<1x64xf32>
    %1464 = vector.broadcast %1463 : vector<1x64xf32> to vector<4x64xf32>
    %1465 = arith.mulf %1462, %1464 : vector<4x64xf32>
    %1466 = arith.addf %1460, %1465 : vector<4x64xf32>
    %c0_1171 = arith.constant 0 : index
    %c0_1172 = arith.constant 0 : index
    %c2_1173 = arith.constant 2 : index
    %c1_1174 = arith.constant 1 : index
    %c16_1175 = arith.constant 16 : index
    %1467 = vector.load %arg7[%c0_1171, %c0_1172, %c2_1173, %c1_1174, %c16_1175] : memref<2x2x4x6x80xf32, #tpu.memory_space<vmem>>, vector<1x1x1x4x64xf32>
    %1468 = vector.shape_cast %1467 : vector<1x1x1x4x64xf32> to vector<4x64xf32>
    %1469 = vector.shape_cast %133 : vector<64xf32> to vector<1x64xf32>
    %1470 = vector.broadcast %1469 : vector<1x64xf32> to vector<4x64xf32>
    %1471 = arith.mulf %1468, %1470 : vector<4x64xf32>
    %1472 = arith.addf %1466, %1471 : vector<4x64xf32>
    %c0_1176 = arith.constant 0 : index
    %c1_1177 = arith.constant 1 : index
    %c2_1178 = arith.constant 2 : index
    %c1_1179 = arith.constant 1 : index
    %c0_1180 = arith.constant 0 : index
    %1473 = vector.load %arg7[%c0_1176, %c1_1177, %c2_1178, %c1_1179, %c0_1180] : memref<2x2x4x6x80xf32, #tpu.memory_space<vmem>>, vector<1x1x1x4x64xf32>
    %1474 = vector.shape_cast %1473 : vector<1x1x1x4x64xf32> to vector<4x64xf32>
    %1475 = vector.shape_cast %135 : vector<64xf32> to vector<1x64xf32>
    %1476 = vector.broadcast %1475 : vector<1x64xf32> to vector<4x64xf32>
    %1477 = arith.mulf %1474, %1476 : vector<4x64xf32>
    %1478 = arith.addf %1472, %1477 : vector<4x64xf32>
    %c0_1181 = arith.constant 0 : index
    %c1_1182 = arith.constant 1 : index
    %c2_1183 = arith.constant 2 : index
    %c1_1184 = arith.constant 1 : index
    %c8_1185 = arith.constant 8 : index
    %1479 = vector.load %arg7[%c0_1181, %c1_1182, %c2_1183, %c1_1184, %c8_1185] : memref<2x2x4x6x80xf32, #tpu.memory_space<vmem>>, vector<1x1x1x4x64xf32>
    %1480 = vector.shape_cast %1479 : vector<1x1x1x4x64xf32> to vector<4x64xf32>
    %1481 = vector.shape_cast %137 : vector<64xf32> to vector<1x64xf32>
    %1482 = vector.broadcast %1481 : vector<1x64xf32> to vector<4x64xf32>
    %1483 = arith.mulf %1480, %1482 : vector<4x64xf32>
    %1484 = arith.addf %1478, %1483 : vector<4x64xf32>
    %c0_1186 = arith.constant 0 : index
    %c1_1187 = arith.constant 1 : index
    %c2_1188 = arith.constant 2 : index
    %c1_1189 = arith.constant 1 : index
    %c16_1190 = arith.constant 16 : index
    %1485 = vector.load %arg7[%c0_1186, %c1_1187, %c2_1188, %c1_1189, %c16_1190] : memref<2x2x4x6x80xf32, #tpu.memory_space<vmem>>, vector<1x1x1x4x64xf32>
    %1486 = vector.shape_cast %1485 : vector<1x1x1x4x64xf32> to vector<4x64xf32>
    %1487 = vector.shape_cast %139 : vector<64xf32> to vector<1x64xf32>
    %1488 = vector.broadcast %1487 : vector<1x64xf32> to vector<4x64xf32>
    %1489 = arith.mulf %1486, %1488 : vector<4x64xf32>
    %1490 = arith.addf %1484, %1489 : vector<4x64xf32>
    %c0_1191 = arith.constant 0 : index
    %c0_1192 = arith.constant 0 : index
    %c2_1193 = arith.constant 2 : index
    %c2_1194 = arith.constant 2 : index
    %c0_1195 = arith.constant 0 : index
    %1491 = vector.load %arg7[%c0_1191, %c0_1192, %c2_1193, %c2_1194, %c0_1195] : memref<2x2x4x6x80xf32, #tpu.memory_space<vmem>>, vector<1x1x1x4x64xf32>
    %1492 = vector.shape_cast %1491 : vector<1x1x1x4x64xf32> to vector<4x64xf32>
    %1493 = vector.shape_cast %141 : vector<64xf32> to vector<1x64xf32>
    %1494 = vector.broadcast %1493 : vector<1x64xf32> to vector<4x64xf32>
    %1495 = arith.mulf %1492, %1494 : vector<4x64xf32>
    %1496 = arith.addf %1490, %1495 : vector<4x64xf32>
    %c0_1196 = arith.constant 0 : index
    %c0_1197 = arith.constant 0 : index
    %c2_1198 = arith.constant 2 : index
    %c2_1199 = arith.constant 2 : index
    %c8_1200 = arith.constant 8 : index
    %1497 = vector.load %arg7[%c0_1196, %c0_1197, %c2_1198, %c2_1199, %c8_1200] : memref<2x2x4x6x80xf32, #tpu.memory_space<vmem>>, vector<1x1x1x4x64xf32>
    %1498 = vector.shape_cast %1497 : vector<1x1x1x4x64xf32> to vector<4x64xf32>
    %1499 = vector.shape_cast %143 : vector<64xf32> to vector<1x64xf32>
    %1500 = vector.broadcast %1499 : vector<1x64xf32> to vector<4x64xf32>
    %1501 = arith.mulf %1498, %1500 : vector<4x64xf32>
    %1502 = arith.addf %1496, %1501 : vector<4x64xf32>
    %c0_1201 = arith.constant 0 : index
    %c0_1202 = arith.constant 0 : index
    %c2_1203 = arith.constant 2 : index
    %c2_1204 = arith.constant 2 : index
    %c16_1205 = arith.constant 16 : index
    %1503 = vector.load %arg7[%c0_1201, %c0_1202, %c2_1203, %c2_1204, %c16_1205] : memref<2x2x4x6x80xf32, #tpu.memory_space<vmem>>, vector<1x1x1x4x64xf32>
    %1504 = vector.shape_cast %1503 : vector<1x1x1x4x64xf32> to vector<4x64xf32>
    %1505 = vector.shape_cast %145 : vector<64xf32> to vector<1x64xf32>
    %1506 = vector.broadcast %1505 : vector<1x64xf32> to vector<4x64xf32>
    %1507 = arith.mulf %1504, %1506 : vector<4x64xf32>
    %1508 = arith.addf %1502, %1507 : vector<4x64xf32>
    %c1_1206 = arith.constant 1 : index
    %c0_1207 = arith.constant 0 : index
    %c2_1208 = arith.constant 2 : index
    %c1_1209 = arith.constant 1 : index
    %c0_1210 = arith.constant 0 : index
    %1509 = vector.load %arg7[%c1_1206, %c0_1207, %c2_1208, %c1_1209, %c0_1210] : memref<2x2x4x6x80xf32, #tpu.memory_space<vmem>>, vector<1x1x1x4x64xf32>
    %1510 = vector.shape_cast %1509 : vector<1x1x1x4x64xf32> to vector<4x64xf32>
    %1511 = vector.shape_cast %147 : vector<64xf32> to vector<1x64xf32>
    %1512 = vector.broadcast %1511 : vector<1x64xf32> to vector<4x64xf32>
    %1513 = arith.mulf %1510, %1512 : vector<4x64xf32>
    %1514 = arith.addf %1508, %1513 : vector<4x64xf32>
    %c1_1211 = arith.constant 1 : index
    %c0_1212 = arith.constant 0 : index
    %c2_1213 = arith.constant 2 : index
    %c1_1214 = arith.constant 1 : index
    %c8_1215 = arith.constant 8 : index
    %1515 = vector.load %arg7[%c1_1211, %c0_1212, %c2_1213, %c1_1214, %c8_1215] : memref<2x2x4x6x80xf32, #tpu.memory_space<vmem>>, vector<1x1x1x4x64xf32>
    %1516 = vector.shape_cast %1515 : vector<1x1x1x4x64xf32> to vector<4x64xf32>
    %1517 = vector.shape_cast %149 : vector<64xf32> to vector<1x64xf32>
    %1518 = vector.broadcast %1517 : vector<1x64xf32> to vector<4x64xf32>
    %1519 = arith.mulf %1516, %1518 : vector<4x64xf32>
    %1520 = arith.addf %1514, %1519 : vector<4x64xf32>
    %c1_1216 = arith.constant 1 : index
    %c0_1217 = arith.constant 0 : index
    %c2_1218 = arith.constant 2 : index
    %c1_1219 = arith.constant 1 : index
    %c16_1220 = arith.constant 16 : index
    %1521 = vector.load %arg7[%c1_1216, %c0_1217, %c2_1218, %c1_1219, %c16_1220] : memref<2x2x4x6x80xf32, #tpu.memory_space<vmem>>, vector<1x1x1x4x64xf32>
    %1522 = vector.shape_cast %1521 : vector<1x1x1x4x64xf32> to vector<4x64xf32>
    %1523 = vector.shape_cast %151 : vector<64xf32> to vector<1x64xf32>
    %1524 = vector.broadcast %1523 : vector<1x64xf32> to vector<4x64xf32>
    %1525 = arith.mulf %1522, %1524 : vector<4x64xf32>
    %1526 = arith.addf %1520, %1525 : vector<4x64xf32>
    %c1_1221 = arith.constant 1 : index
    %c1_1222 = arith.constant 1 : index
    %c2_1223 = arith.constant 2 : index
    %c1_1224 = arith.constant 1 : index
    %c0_1225 = arith.constant 0 : index
    %1527 = vector.load %arg7[%c1_1221, %c1_1222, %c2_1223, %c1_1224, %c0_1225] : memref<2x2x4x6x80xf32, #tpu.memory_space<vmem>>, vector<1x1x1x4x64xf32>
    %1528 = vector.shape_cast %1527 : vector<1x1x1x4x64xf32> to vector<4x64xf32>
    %1529 = vector.shape_cast %153 : vector<64xf32> to vector<1x64xf32>
    %1530 = vector.broadcast %1529 : vector<1x64xf32> to vector<4x64xf32>
    %1531 = arith.mulf %1528, %1530 : vector<4x64xf32>
    %1532 = arith.addf %1526, %1531 : vector<4x64xf32>
    %c1_1226 = arith.constant 1 : index
    %c1_1227 = arith.constant 1 : index
    %c2_1228 = arith.constant 2 : index
    %c1_1229 = arith.constant 1 : index
    %c8_1230 = arith.constant 8 : index
    %1533 = vector.load %arg7[%c1_1226, %c1_1227, %c2_1228, %c1_1229, %c8_1230] : memref<2x2x4x6x80xf32, #tpu.memory_space<vmem>>, vector<1x1x1x4x64xf32>
    %1534 = vector.shape_cast %1533 : vector<1x1x1x4x64xf32> to vector<4x64xf32>
    %1535 = vector.shape_cast %155 : vector<64xf32> to vector<1x64xf32>
    %1536 = vector.broadcast %1535 : vector<1x64xf32> to vector<4x64xf32>
    %1537 = arith.mulf %1534, %1536 : vector<4x64xf32>
    %1538 = arith.addf %1532, %1537 : vector<4x64xf32>
    %c1_1231 = arith.constant 1 : index
    %c1_1232 = arith.constant 1 : index
    %c2_1233 = arith.constant 2 : index
    %c1_1234 = arith.constant 1 : index
    %c16_1235 = arith.constant 16 : index
    %1539 = vector.load %arg7[%c1_1231, %c1_1232, %c2_1233, %c1_1234, %c16_1235] : memref<2x2x4x6x80xf32, #tpu.memory_space<vmem>>, vector<1x1x1x4x64xf32>
    %1540 = vector.shape_cast %1539 : vector<1x1x1x4x64xf32> to vector<4x64xf32>
    %1541 = vector.shape_cast %157 : vector<64xf32> to vector<1x64xf32>
    %1542 = vector.broadcast %1541 : vector<1x64xf32> to vector<4x64xf32>
    %1543 = arith.mulf %1540, %1542 : vector<4x64xf32>
    %1544 = arith.addf %1538, %1543 : vector<4x64xf32>
    %c1_1236 = arith.constant 1 : index
    %c0_1237 = arith.constant 0 : index
    %c2_1238 = arith.constant 2 : index
    %c2_1239 = arith.constant 2 : index
    %c0_1240 = arith.constant 0 : index
    %1545 = vector.load %arg7[%c1_1236, %c0_1237, %c2_1238, %c2_1239, %c0_1240] : memref<2x2x4x6x80xf32, #tpu.memory_space<vmem>>, vector<1x1x1x4x64xf32>
    %1546 = vector.shape_cast %1545 : vector<1x1x1x4x64xf32> to vector<4x64xf32>
    %1547 = vector.shape_cast %159 : vector<64xf32> to vector<1x64xf32>
    %1548 = vector.broadcast %1547 : vector<1x64xf32> to vector<4x64xf32>
    %1549 = arith.mulf %1546, %1548 : vector<4x64xf32>
    %1550 = arith.addf %1544, %1549 : vector<4x64xf32>
    %c1_1241 = arith.constant 1 : index
    %c0_1242 = arith.constant 0 : index
    %c2_1243 = arith.constant 2 : index
    %c2_1244 = arith.constant 2 : index
    %c8_1245 = arith.constant 8 : index
    %1551 = vector.load %arg7[%c1_1241, %c0_1242, %c2_1243, %c2_1244, %c8_1245] : memref<2x2x4x6x80xf32, #tpu.memory_space<vmem>>, vector<1x1x1x4x64xf32>
    %1552 = vector.shape_cast %1551 : vector<1x1x1x4x64xf32> to vector<4x64xf32>
    %1553 = vector.shape_cast %161 : vector<64xf32> to vector<1x64xf32>
    %1554 = vector.broadcast %1553 : vector<1x64xf32> to vector<4x64xf32>
    %1555 = arith.mulf %1552, %1554 : vector<4x64xf32>
    %1556 = arith.addf %1550, %1555 : vector<4x64xf32>
    %c1_1246 = arith.constant 1 : index
    %c0_1247 = arith.constant 0 : index
    %c2_1248 = arith.constant 2 : index
    %c2_1249 = arith.constant 2 : index
    %c16_1250 = arith.constant 16 : index
    %1557 = vector.load %arg7[%c1_1246, %c0_1247, %c2_1248, %c2_1249, %c16_1250] : memref<2x2x4x6x80xf32, #tpu.memory_space<vmem>>, vector<1x1x1x4x64xf32>
    %1558 = vector.shape_cast %1557 : vector<1x1x1x4x64xf32> to vector<4x64xf32>
    %1559 = vector.shape_cast %163 : vector<64xf32> to vector<1x64xf32>
    %1560 = vector.broadcast %1559 : vector<1x64xf32> to vector<4x64xf32>
    %1561 = arith.mulf %1558, %1560 : vector<4x64xf32>
    %1562 = arith.addf %1556, %1561 : vector<4x64xf32>
    %c0_1251 = arith.constant 0 : index
    %c0_1252 = arith.constant 0 : index
    %c3_1253 = arith.constant 3 : index
    %c1_1254 = arith.constant 1 : index
    %c0_1255 = arith.constant 0 : index
    %1563 = vector.load %arg7[%c0_1251, %c0_1252, %c3_1253, %c1_1254, %c0_1255] : memref<2x2x4x6x80xf32, #tpu.memory_space<vmem>>, vector<1x1x1x4x64xf32>
    %1564 = vector.shape_cast %1563 : vector<1x1x1x4x64xf32> to vector<4x64xf32>
    %1565 = vector.shape_cast %165 : vector<64xf32> to vector<1x64xf32>
    %1566 = vector.broadcast %1565 : vector<1x64xf32> to vector<4x64xf32>
    %1567 = arith.mulf %1564, %1566 : vector<4x64xf32>
    %1568 = arith.addf %1562, %1567 : vector<4x64xf32>
    %c0_1256 = arith.constant 0 : index
    %c0_1257 = arith.constant 0 : index
    %c3_1258 = arith.constant 3 : index
    %c1_1259 = arith.constant 1 : index
    %c8_1260 = arith.constant 8 : index
    %1569 = vector.load %arg7[%c0_1256, %c0_1257, %c3_1258, %c1_1259, %c8_1260] : memref<2x2x4x6x80xf32, #tpu.memory_space<vmem>>, vector<1x1x1x4x64xf32>
    %1570 = vector.shape_cast %1569 : vector<1x1x1x4x64xf32> to vector<4x64xf32>
    %1571 = vector.shape_cast %167 : vector<64xf32> to vector<1x64xf32>
    %1572 = vector.broadcast %1571 : vector<1x64xf32> to vector<4x64xf32>
    %1573 = arith.mulf %1570, %1572 : vector<4x64xf32>
    %1574 = arith.addf %1568, %1573 : vector<4x64xf32>
    %c0_1261 = arith.constant 0 : index
    %c0_1262 = arith.constant 0 : index
    %c3_1263 = arith.constant 3 : index
    %c1_1264 = arith.constant 1 : index
    %c16_1265 = arith.constant 16 : index
    %1575 = vector.load %arg7[%c0_1261, %c0_1262, %c3_1263, %c1_1264, %c16_1265] : memref<2x2x4x6x80xf32, #tpu.memory_space<vmem>>, vector<1x1x1x4x64xf32>
    %1576 = vector.shape_cast %1575 : vector<1x1x1x4x64xf32> to vector<4x64xf32>
    %1577 = vector.shape_cast %169 : vector<64xf32> to vector<1x64xf32>
    %1578 = vector.broadcast %1577 : vector<1x64xf32> to vector<4x64xf32>
    %1579 = arith.mulf %1576, %1578 : vector<4x64xf32>
    %1580 = arith.addf %1574, %1579 : vector<4x64xf32>
    %c0_1266 = arith.constant 0 : index
    %c1_1267 = arith.constant 1 : index
    %c3_1268 = arith.constant 3 : index
    %c1_1269 = arith.constant 1 : index
    %c0_1270 = arith.constant 0 : index
    %1581 = vector.load %arg7[%c0_1266, %c1_1267, %c3_1268, %c1_1269, %c0_1270] : memref<2x2x4x6x80xf32, #tpu.memory_space<vmem>>, vector<1x1x1x4x64xf32>
    %1582 = vector.shape_cast %1581 : vector<1x1x1x4x64xf32> to vector<4x64xf32>
    %1583 = vector.shape_cast %171 : vector<64xf32> to vector<1x64xf32>
    %1584 = vector.broadcast %1583 : vector<1x64xf32> to vector<4x64xf32>
    %1585 = arith.mulf %1582, %1584 : vector<4x64xf32>
    %1586 = arith.addf %1580, %1585 : vector<4x64xf32>
    %c0_1271 = arith.constant 0 : index
    %c1_1272 = arith.constant 1 : index
    %c3_1273 = arith.constant 3 : index
    %c1_1274 = arith.constant 1 : index
    %c8_1275 = arith.constant 8 : index
    %1587 = vector.load %arg7[%c0_1271, %c1_1272, %c3_1273, %c1_1274, %c8_1275] : memref<2x2x4x6x80xf32, #tpu.memory_space<vmem>>, vector<1x1x1x4x64xf32>
    %1588 = vector.shape_cast %1587 : vector<1x1x1x4x64xf32> to vector<4x64xf32>
    %1589 = vector.shape_cast %173 : vector<64xf32> to vector<1x64xf32>
    %1590 = vector.broadcast %1589 : vector<1x64xf32> to vector<4x64xf32>
    %1591 = arith.mulf %1588, %1590 : vector<4x64xf32>
    %1592 = arith.addf %1586, %1591 : vector<4x64xf32>
    %c0_1276 = arith.constant 0 : index
    %c1_1277 = arith.constant 1 : index
    %c3_1278 = arith.constant 3 : index
    %c1_1279 = arith.constant 1 : index
    %c16_1280 = arith.constant 16 : index
    %1593 = vector.load %arg7[%c0_1276, %c1_1277, %c3_1278, %c1_1279, %c16_1280] : memref<2x2x4x6x80xf32, #tpu.memory_space<vmem>>, vector<1x1x1x4x64xf32>
    %1594 = vector.shape_cast %1593 : vector<1x1x1x4x64xf32> to vector<4x64xf32>
    %1595 = vector.shape_cast %175 : vector<64xf32> to vector<1x64xf32>
    %1596 = vector.broadcast %1595 : vector<1x64xf32> to vector<4x64xf32>
    %1597 = arith.mulf %1594, %1596 : vector<4x64xf32>
    %1598 = arith.addf %1592, %1597 : vector<4x64xf32>
    %c0_1281 = arith.constant 0 : index
    %c0_1282 = arith.constant 0 : index
    %c3_1283 = arith.constant 3 : index
    %c2_1284 = arith.constant 2 : index
    %c0_1285 = arith.constant 0 : index
    %1599 = vector.load %arg7[%c0_1281, %c0_1282, %c3_1283, %c2_1284, %c0_1285] : memref<2x2x4x6x80xf32, #tpu.memory_space<vmem>>, vector<1x1x1x4x64xf32>
    %1600 = vector.shape_cast %1599 : vector<1x1x1x4x64xf32> to vector<4x64xf32>
    %1601 = vector.shape_cast %177 : vector<64xf32> to vector<1x64xf32>
    %1602 = vector.broadcast %1601 : vector<1x64xf32> to vector<4x64xf32>
    %1603 = arith.mulf %1600, %1602 : vector<4x64xf32>
    %1604 = arith.addf %1598, %1603 : vector<4x64xf32>
    %c0_1286 = arith.constant 0 : index
    %c0_1287 = arith.constant 0 : index
    %c3_1288 = arith.constant 3 : index
    %c2_1289 = arith.constant 2 : index
    %c8_1290 = arith.constant 8 : index
    %1605 = vector.load %arg7[%c0_1286, %c0_1287, %c3_1288, %c2_1289, %c8_1290] : memref<2x2x4x6x80xf32, #tpu.memory_space<vmem>>, vector<1x1x1x4x64xf32>
    %1606 = vector.shape_cast %1605 : vector<1x1x1x4x64xf32> to vector<4x64xf32>
    %1607 = vector.shape_cast %179 : vector<64xf32> to vector<1x64xf32>
    %1608 = vector.broadcast %1607 : vector<1x64xf32> to vector<4x64xf32>
    %1609 = arith.mulf %1606, %1608 : vector<4x64xf32>
    %1610 = arith.addf %1604, %1609 : vector<4x64xf32>
    %c0_1291 = arith.constant 0 : index
    %c0_1292 = arith.constant 0 : index
    %c3_1293 = arith.constant 3 : index
    %c2_1294 = arith.constant 2 : index
    %c16_1295 = arith.constant 16 : index
    %1611 = vector.load %arg7[%c0_1291, %c0_1292, %c3_1293, %c2_1294, %c16_1295] : memref<2x2x4x6x80xf32, #tpu.memory_space<vmem>>, vector<1x1x1x4x64xf32>
    %1612 = vector.shape_cast %1611 : vector<1x1x1x4x64xf32> to vector<4x64xf32>
    %1613 = vector.shape_cast %181 : vector<64xf32> to vector<1x64xf32>
    %1614 = vector.broadcast %1613 : vector<1x64xf32> to vector<4x64xf32>
    %1615 = arith.mulf %1612, %1614 : vector<4x64xf32>
    %1616 = arith.addf %1610, %1615 : vector<4x64xf32>
    %1617 = vector.shape_cast %123 : vector<64xf32> to vector<1x64xf32>
    %1618 = vector.broadcast %1617 : vector<1x64xf32> to vector<4x64xf32>
    %1619 = arith.addf %1616, %1618 : vector<4x64xf32>
    %cst_1296 = arith.constant 0.000000e+00 : f32
    %cst_1297 = arith.constant 6.000000e+00 : f32
    %1620 = vector.broadcast %cst_1296 : f32 to vector<4x64xf32>
    %1621 = arith.maximumf %1620, %1619 : vector<4x64xf32>
    %1622 = vector.broadcast %cst_1297 : f32 to vector<4x64xf32>
    %1623 = arith.minimumf %1622, %1621 : vector<4x64xf32>
    %cst_1298 = arith.constant dense<0.000000e+00> : vector<4x64xf32>
    %1624 = tpu.matmul %1623, %121, %cst_1298 {dimension_numbers = #tpu.dot_dimension_numbers<[1], [0], [0], [1], [0, 0, 1, 1], [], []>} : vector<4x64xf32>, vector<64x64xf32>, vector<4x64xf32> -> vector<4x64xf32>
    %c1_1299 = arith.constant 1 : index
    %c1_1300 = arith.constant 1 : index
    %c2_1301 = arith.constant 2 : index
    %c1_1302 = arith.constant 1 : index
    %c8_1303 = arith.constant 8 : index
    %1625 = vector.load %arg7[%c1_1299, %c1_1300, %c2_1301, %c1_1302, %c8_1303] : memref<2x2x4x6x80xf32, #tpu.memory_space<vmem>>, vector<1x1x1x4x64xf32>
    %1626 = vector.shape_cast %1625 : vector<1x1x1x4x64xf32> to vector<4x64xf32>
    %1627 = vector.shape_cast %125 : vector<64xf32> to vector<1x64xf32>
    %1628 = vector.broadcast %1627 : vector<1x64xf32> to vector<4x64xf32>
    %1629 = arith.mulf %1626, %1628 : vector<4x64xf32>
    %1630 = arith.addf %1629, %1624 : vector<4x64xf32>
    %1631 = vector.shape_cast %127 : vector<64xf32> to vector<1x64xf32>
    %1632 = vector.broadcast %1631 : vector<1x64xf32> to vector<4x64xf32>
    %1633 = arith.addf %1630, %1632 : vector<4x64xf32>
    %1634 = tpu.concatenate %1453, %1633 in 1 : vector<4x64xf32>, vector<4x64xf32> -> vector<4x128xf32>
    %c0_1304 = arith.constant 0 : index
    %c1_1305 = arith.constant 1 : index
    %c1_1306 = arith.constant 1 : index
    %c0_1307 = arith.constant 0 : index
    %c0_1308 = arith.constant 0 : index
    %1635 = vector.load %arg6[%c0_1304, %c1_1305, %c1_1306, %c0_1307, %c0_1308] : memref<1x2x2x4x128xf32, #tpu.memory_space<vmem>>, vector<1x1x1x4x128xf32>
    %1636 = vector.shape_cast %1635 : vector<1x1x1x4x128xf32> to vector<4x128xf32>
    %1637 = vector.shape_cast %1634 : vector<4x128xf32> to vector<1x1x1x4x128xf32>
    tpu.vector_store %arg6[%c0_1304, %c1_1305, %c1_1306, %c0_1307, %c0_1308], %1637 {strides = array<i32>} : memref<1x2x2x4x128xf32, #tpu.memory_space<vmem>>, vector<1x1x1x4x128xf32>,
    return
  }
  func.func @transform_0(%arg0: i32, %arg1: i32) -> (i32, i32, i32) {
    %c0_i32 = arith.constant 0 : i32
    %c0_i32_0 = arith.constant 0 : i32
    %c0_i32_1 = arith.constant 0 : i32
    return %arg0, %c0_i32, %c0_i32_0 : i32, i32, i32
  }
  func.func @transform_1(%arg0: i32, %arg1: i32) -> (i32, i32, i32) {
    %c0_i32 = arith.constant 0 : i32
    %c0_i32_0 = arith.constant 0 : i32
    %c0_i32_1 = arith.constant 0 : i32
    %c0_i32_2 = arith.constant 0 : i32
    return %c0_i32, %c0_i32_0, %c0_i32_1 : i32, i32, i32
  }
  func.func @transform_2(%arg0: i32, %arg1: i32) -> (i32, i32) {
    %c0_i32 = arith.constant 0 : i32
    %c0_i32_0 = arith.constant 0 : i32
    %c0_i32_1 = arith.constant 0 : i32
    return %c0_i32, %c0_i32_0 : i32, i32
  }
  func.func @transform_3(%arg0: i32, %arg1: i32) -> (i32, i32) {
    %c0_i32 = arith.constant 0 : i32
    %c0_i32_0 = arith.constant 0 : i32
    %c0_i32_1 = arith.constant 0 : i32
    return %c0_i32, %c0_i32_0 : i32, i32
  }
  func.func @transform_4(%arg0: i32, %arg1: i32) -> (i32, i32, i32, i32, i32) {
    %c0_i32 = arith.constant 0 : i32
    %c0_i32_0 = arith.constant 0 : i32
    %c0_i32_1 = arith.constant 0 : i32
    %c0_i32_2 = arith.constant 0 : i32
    return %arg0, %arg1, %c0_i32, %c0_i32_0, %c0_i32_1 : i32, i32, i32, i32, i32
  }
}

</mosaic_0001>

<llo_original>
// kernel: tpu_custom_call.1
$region0: #{tpu_custom_call.1}
  #allocation0 [shape = 'u32[]', space=smem, size = 0x4, offset = 0x4, fixed_abs, tag = 'smem constant byte address 0x4 - core index']
  #allocation1 [shape = 'u32[144,128]{1,0:T(1,128)}', space=vmem, size = 0x12000, scoped, tag = 'internal scratch']
  #allocation2 [shape = 'f32[2,2,4,6,80]{4,3,2,1,0:T(8,128)}', space=vmem, size = 0x10000, scoped, tag = 'scratch operand']
  %s0 = inlined_call_operand.vmem [shape: f32[2,24,16], index: 0, kind: input, shape index: {}]
  %s1 = inlined_call_operand.vmem [shape: f32[4,16,64], index: 1, kind: input, shape index: {}]
  %s2 = inlined_call_operand.hbm [shape: f32[64,64], index: 2, kind: input, shape index: {}]
  %s3 = inlined_call_operand.hbm [shape: f32[31,64], index: 3, kind: input, shape index: {}]
  %s4 = inlined_call_operand.hbm [shape: f32[2,4,2,4,128], index: 4, kind: output, shape index: {}]
  %s5 = sld [smem:[#allocation0]]
  $region57: #{tpu_custom_call.1} parent=0
    _
  %s7 = ssub.s32 1, %s5
  %s8 = scalar_select 0, %s7, %s5
  $region1: #{tpu_custom_call.1} parent=0
    #allocation3 [shape = 'u8[32768]{0}', space=vmem, size = 0x8000, scoped, tag = 'input window, operand 2, single buffered']
    #allocation4 [shape = 's32[2]{0}', space=sflag, size = 0x8, scoped, tag = 'scoped memory for tpu_custom_call.1']
    #allocation5 [shape = 's32[2]{0}', space=sflag, size = 0x8, scoped, tag = 'scoped memory for tpu_custom_call.1']
    #allocation6 [shape = 'u8[16384]{0}', space=vmem, size = 0x4000, scoped, tag = 'input window, operand 3, single buffered']
    #allocation7 [shape = 's32[1]{0}', space=sflag, size = 0x4, scoped, tag = 'scoped memory for tpu_custom_call.1']
    #allocation8 [shape = 'u8[16384]{0}', space=vmem, size = 0x4000, scoped, tag = 'output window, operand 0']
    %9 = vsyncpa [#allocation4], 0
    %10 = vsyncpa [#allocation7], 0
    %11 = vsyncpa [#allocation5], 0
    %s12 = scalar_lea.sflag [#allocation5], 1
    %13 = vsyncpa %s12, 0
    loop: start=0, step=1, limit=6
    $region2: #{tpu_custom_call.1} parent=1 // loop_pre_header
      _
    $region3: #{tpu_custom_call.1} parent=1 // loop_header
      %s15 = sphi 0, %s19
      %p16 = scmp.ge.s32.totalorder %s15, 6
      %s22 = sphi 0, %s34
      %s23 = sphi 0, %s30
      %s24 = sphi 0, %s22
      %s25 = sphi 0, %s23
      %s26 = sphi 0, %s24
      %s27 = sphi 0, %s25
      %s37 = sphi 0, %s39
      %s40 = sphi 0, %s37
      %s41 = sphi 0, %s40
      %s57 = sphi 0, %s41
      %s61 = sphi 0, %s61
      %s63 = sphi 0, %s61
      %s64 = sphi 0, %s63
      %s78 = sphi 0, %s64
      %s82 = sphi 0, %s82
      %s84 = sphi 0, %s82
      %s85 = sphi 0, %s84
      %s99 = sphi 0, %s85
      %s103 = sphi 0, %s103
      %s105 = sphi 0, %s103
      %s106 = sphi 0, %s105
      %s120 = sphi 0, %s106
      %s128 = sphi 0, %s130
      %s131 = sphi 0, %s128
      %s132 = sphi 0, %s131
      %s148 = sphi 0, %s132
    $region4: #{tpu_custom_call.1} parent=1 // loop_header_branch
      %18 = sbr.rel (%p16) target = $region8
    $region5: #{tpu_custom_call.1} parent=1 // loop_body
      %s20 = ssub.s32 %s15, 1
      %s21 = ssub.s32 %s15, 2
      %s28 = sadd.s32 1, %s23
      %p29 = scmp.ge.s32.totalorder %s28, 2
      %s30 = scalar_select %p29, 0, %s28
      %s31 = sadd.s32 1, %s22
      %s32 = scalar_select %p29, %s31, %s22
      %p33 = scmp.ge.s32.totalorder %s32, 2
      %s34 = scalar_select %p33, 0, %s32
      %s35 = ssub.s32 %s22, %s34
      %p36 = scmp.eq.s32.totalorder %s35, 0
      %s38 = sadd.s32 %s37, 1
      %s39 = scalar_select %p36, %s37, %s38
      %p42 = pneg %p36
      %p43 = scmp.eq.s32.totalorder %s15, 3
      %p44 = por %p42, %p43
      %p45 = scmp.ne.s32.totalorder %s37, %s40
      %p46 = scmp.eq.s32.totalorder %s15, 0
      %p47 = por %p45, %p46
      %p48 = scmp.ne.s32.totalorder %s37, %s40
      %p49 = scmp.eq.s32.totalorder %s20, 3
      %p50 = por %p48, %p49
      %p51 = scmp.ne.s32.totalorder %s40, %s41
      %p52 = scmp.eq.s32.totalorder %s20, 0
      %p53 = por %p51, %p52
      %p54 = scmp.ne.s32.totalorder %s40, %s41
      %p55 = scmp.eq.s32.totalorder %s21, 3
      %p56 = por %p54, %p55
      %p58 = scmp.ne.s32.totalorder %s41, %s57
      %p59 = scmp.eq.s32.totalorder %s21, 0
      %p60 = por %p58, %p59
      %s62 = sadd.s32 %s61, 1
      %p65 = scmp.eq.s32.totalorder %s15, 3
      %p66 = scmp.ne.s32.totalorder %s61, %s63
      %p67 = scmp.eq.s32.totalorder %s15, 0
      %p68 = por %p66, %p67
      %p69 = scmp.ne.s32.totalorder %s61, %s63
      %p70 = scmp.eq.s32.totalorder %s20, 3
      %p71 = por %p69, %p70
      %p72 = scmp.ne.s32.totalorder %s63, %s64
      %p73 = scmp.eq.s32.totalorder %s20, 0
      %p74 = por %p72, %p73
      %p75 = scmp.ne.s32.totalorder %s63, %s64
      %p76 = scmp.eq.s32.totalorder %s21, 3
      %p77 = por %p75, %p76
      %p79 = scmp.ne.s32.totalorder %s64, %s78
      %p80 = scmp.eq.s32.totalorder %s21, 0
      %p81 = por %p79, %p80
      %s83 = sadd.s32 %s82, 1
      %p86 = scmp.eq.s32.totalorder %s15, 3
      %p87 = scmp.ne.s32.totalorder %s82, %s84
      %p88 = scmp.eq.s32.totalorder %s15, 0
      %p89 = por %p87, %p88
      %p90 = scmp.ne.s32.totalorder %s82, %s84
      %p91 = scmp.eq.s32.totalorder %s20, 3
      %p92 = por %p90, %p91
      %p93 = scmp.ne.s32.totalorder %s84, %s85
      %p94 = scmp.eq.s32.totalorder %s20, 0
      %p95 = por %p93, %p94
      %p96 = scmp.ne.s32.totalorder %s84, %s85
      %p97 = scmp.eq.s32.totalorder %s21, 3
      %p98 = por %p96, %p97
      %p100 = scmp.ne.s32.totalorder %s85, %s99
      %p101 = scmp.eq.s32.totalorder %s21, 0
      %p102 = por %p100, %p101
      %s104 = sadd.s32 %s103, 1
      %p107 = scmp.eq.s32.totalorder %s15, 3
      %p108 = scmp.ne.s32.totalorder %s103, %s105
      %p109 = scmp.eq.s32.totalorder %s15, 0
      %p110 = por %p108, %p109
      %p111 = scmp.ne.s32.totalorder %s103, %s105
      %p112 = scmp.eq.s32.totalorder %s20, 3
      %p113 = por %p111, %p112
      %p114 = scmp.ne.s32.totalorder %s105, %s106
      %p115 = scmp.eq.s32.totalorder %s20, 0
      %p116 = por %p114, %p115
      %p117 = scmp.ne.s32.totalorder %s105, %s106
      %p118 = scmp.eq.s32.totalorder %s21, 3
      %p119 = por %p117, %p118
      %p121 = scmp.ne.s32.totalorder %s106, %s120
      %p122 = scmp.eq.s32.totalorder %s21, 0
      %p123 = por %p121, %p122
      %s124 = ssub.s32 %s22, %s34
      %s125 = ssub.s32 %s23, %s30
      %s126 = sor.u32 %s124, %s125
      %p127 = scmp.eq.s32.totalorder %s126, 0
      %s129 = sadd.s32 %s128, 1
      %s130 = scalar_select %p127, %s128, %s129
      %p133 = pneg %p127
      %p134 = scmp.eq.s32.totalorder %s15, 3
      %p135 = por %p133, %p134
      %p136 = scmp.ne.s32.totalorder %s128, %s131
      %p137 = scmp.eq.s32.totalorder %s15, 0
      %p138 = por %p136, %p137
      %p139 = scmp.ne.s32.totalorder %s128, %s131
      %p140 = scmp.eq.s32.totalorder %s20, 3
      %p141 = por %p139, %p140
      %p142 = scmp.ne.s32.totalorder %s131, %s132
      %p143 = scmp.eq.s32.totalorder %s20, 0
      %p144 = por %p142, %p143
      %p145 = scmp.ne.s32.totalorder %s131, %s132
      %p146 = scmp.eq.s32.totalorder %s21, 3
      %p147 = por %p145, %p146
      %p149 = scmp.ne.s32.totalorder %s132, %s148
      %p150 = scmp.eq.s32.totalorder %s21, 0
      %p151 = por %p149, %p150
      %p152 = scmp.le.s32.totalorder 1, %s15
      %p153 = scmp.lt.s32.totalorder %s15, 5
      %p154 = pnand %p152, %p153
      %p155 = pneg %p154
      // Predicated region
      $region9: #{tpu_custom_call.1} parent=5 // pred_check
        _
      $region10: #{tpu_custom_call.1} parent=5 // pred_check_branch
        %157 = sbr.rel (%p154) target = $region12
      $region11: #{tpu_custom_call.1} parent=5 // pred_region
        %s158 = ssub.s32 %s15, 1
        // Predicated region
        $region13: #{tpu_custom_call.1} parent=11 // pred_check
          %p159 = pneg %p74
        $region14: #{tpu_custom_call.1} parent=11 // pred_check_branch
          %161 = sbr.rel (%p159) target = $region16
        $region15: #{tpu_custom_call.1} parent=11 // pred_region
          _
        $region16: #{tpu_custom_call.1} parent=11 // pred_fallthru
          _
        // Predicated region
        $region17: #{tpu_custom_call.1} parent=11 // pred_check
          %p162 = pneg %p95
        $region18: #{tpu_custom_call.1} parent=11 // pred_check_branch
          %164 = sbr.rel (%p162) target = $region20
        $region19: #{tpu_custom_call.1} parent=11 // pred_region
          %s166 = ssub.s32 1024, 1024
          %167 = vsyncadd [#allocation4], %s166
          %s168 = sshll.u32 [#allocation3], 4
          %s169 = int_to_ptr.vmem [resolvable:$true] %s168
          %174 = dma.hbm_to_vmem [thread:$0]  %s2, 1024, %s169, [#allocation4], 128, 128, 8
        $region20: #{tpu_custom_call.1} parent=11 // pred_fallthru
          _
        // Predicated region
        $region21: #{tpu_custom_call.1} parent=11 // pred_check
          %p175 = pneg %p116
        $region22: #{tpu_custom_call.1} parent=11 // pred_check_branch
          %177 = sbr.rel (%p175) target = $region24
        $region23: #{tpu_custom_call.1} parent=11 // pred_region
          %s179 = ssub.s32 512, 512
          %180 = vsyncadd [#allocation7], %s179
          %s181 = sshll.u32 [#allocation6], 4
          %s182 = int_to_ptr.vmem [resolvable:$true] %s181
          %187 = dma.hbm_to_vmem [thread:$0]  %s3, 512, %s182, [#allocation7], 128, 128, 8
        $region24: #{tpu_custom_call.1} parent=11 // pred_fallthru
          _
      $region12: #{tpu_custom_call.1} parent=5 // pred_fallthru
        _
      %p188 = scmp.lt.s32.totalorder %s15, 4
      // Predicated region
      $region25: #{tpu_custom_call.1} parent=5 // pred_check
        %p189 = pneg %p188
      $region26: #{tpu_custom_call.1} parent=5 // pred_check_branch
        %191 = sbr.rel (%p189) target = $region28
      $region27: #{tpu_custom_call.1} parent=5 // pred_region
        // Predicated region
        $region29: #{tpu_custom_call.1} parent=27 // pred_check
          %p192 = pneg %p47
        $region30: #{tpu_custom_call.1} parent=27 // pred_check_branch
          %194 = sbr.rel (%p192) target = $region32
        $region31: #{tpu_custom_call.1} parent=27 // pred_region
          %p195 = scmp.lt.s32.totalorder %s22, 1
          %s196 = scalar_select %p195, %s22, 1
          %s197 = smul.addr %s196, 3
          %s198 = smul.addr %s197, 8
          %s199 = scalar_lea.vmem %s0, %s198
        $region32: #{tpu_custom_call.1} parent=27 // pred_fallthru
          _
      $region28: #{tpu_custom_call.1} parent=5 // pred_fallthru
        _
      %p200 = scmp.le.s32.totalorder 1, %s15
      %p201 = scmp.lt.s32.totalorder %s15, 5
      %p202 = pnand %p200, %p201
      %p203 = pneg %p202
      // Predicated region
      $region33: #{tpu_custom_call.1} parent=5 // pred_check
        _
      $region34: #{tpu_custom_call.1} parent=5 // pred_check_branch
        %205 = sbr.rel (%p202) target = $region36
      $region35: #{tpu_custom_call.1} parent=5 // pred_region
        %s206 = ssub.s32 %s15, 1
        // Predicated region
        $region37: #{tpu_custom_call.1} parent=35 // pred_check
          %p207 = pneg %p95
        $region38: #{tpu_custom_call.1} parent=35 // pred_check_branch
          %209 = sbr.rel (%p207) target = $region40
        $region39: #{tpu_custom_call.1} parent=35 // pred_region
          %210 = dma.done [#allocation4], 1024
        $region40: #{tpu_custom_call.1} parent=35 // pred_fallthru
          _
        // Predicated region
        $region41: #{tpu_custom_call.1} parent=35 // pred_check
          %p211 = pneg %p116
        $region42: #{tpu_custom_call.1} parent=35 // pred_check_branch
          %213 = sbr.rel (%p211) target = $region44
        $region43: #{tpu_custom_call.1} parent=35 // pred_region
          %214 = dma.done [#allocation7], 512
        $region44: #{tpu_custom_call.1} parent=35 // pred_fallthru
          _
        %p215 = scmp.lt.s32.totalorder %s24, 1
        %s216 = scalar_select %p215, %s24, 1
        %s217 = smul.addr %s216, 3
        %s218 = smul.addr %s217, 8
        %s219 = scalar_lea.vmem %s0, %s218
        %p220 = pneg %p53
        %p221 = pneg %p50
        %p222 = pneg %p74
        %p223 = pneg %p71
        %p224 = pneg %p95
        %p225 = pneg %p92
        %p226 = pneg %p116
        %p227 = pneg %p113
        %p228 = pneg %p144
        %p229 = pneg %p141
        %s230 = sand.u32 %s131, 1
        %s231 = scalar_lea.sflag [#allocation5], %s230
        %s232 = sand.u32 %s131, 1
        %s233 = smul.addr %s232, 16
        %s234 = scalar_lea.vmem [#allocation8], %s233
        %p235 = scmp.lt.s32.totalorder %s24, 1
        %s236 = scalar_select %p235, %s24, 1
        %s237 = smul.addr %s236, 3
        %s238 = smul.addr %s237, 8
        %s239 = scalar_lea.vmem %s0, %s238
        %s240 = smul.u32 2, %s25
        %s241 = smul.u32 %s25, 2
        %vm242 = vcmask 652288
        %243 = vst.msk [vmem:[#allocation2] sm:$0x3f] %vm242, 0.0
        %244 = vst.msk [vmem:[#allocation2 + $0x8] sm:$0x3f] %vm242, 0.0
        %245 = vst.msk [vmem:[#allocation2 + $0x10] sm:$0x3f] %vm242, 0.0
        %246 = vst.msk [vmem:[#allocation2 + $0x18] sm:$0x3f] %vm242, 0.0
        %247 = vst.msk [vmem:[#allocation2 + $0x20] sm:$0x3f] %vm242, 0.0
        %248 = vst.msk [vmem:[#allocation2 + $0x28] sm:$0x3f] %vm242, 0.0
        %249 = vst.msk [vmem:[#allocation2 + $0x30] sm:$0x3f] %vm242, 0.0
        %250 = vst.msk [vmem:[#allocation2 + $0x38] sm:$0x3f] %vm242, 0.0
        %251 = vst.msk [vmem:[#allocation2 + $0x40] sm:$0x3f] %vm242, 0.0
        %252 = vst.msk [vmem:[#allocation2 + $0x48] sm:$0x3f] %vm242, 0.0
        %253 = vst.msk [vmem:[#allocation2 + $0x50] sm:$0x3f] %vm242, 0.0
        %254 = vst.msk [vmem:[#allocation2 + $0x58] sm:$0x3f] %vm242, 0.0
        %255 = vst.msk [vmem:[#allocation2 + $0x60] sm:$0x3f] %vm242, 0.0
        %256 = vst.msk [vmem:[#allocation2 + $0x68] sm:$0x3f] %vm242, 0.0
        %257 = vst.msk [vmem:[#allocation2 + $0x70] sm:$0x3f] %vm242, 0.0
        %258 = vst.msk [vmem:[#allocation2 + $0x78] sm:$0x3f] %vm242, 0.0
        %s259 = smul.u32 %s25, 8
        %s260 = scalar_lea.vmem %s239, %s259
        %v261 = vld [vmem:[%s260] sm:$0xff]
        %v262 = vld [vmem:[%s260 + $0x8] sm:$0xff]
        %p263 = scmp.ge.s32.totalorder %s241, 1
        %s264 = scalar_select %p263, 1, 0
        %s265 = scvt.s32.f32 %s264
        %s266 = sadd.s32 %s241, 2
        %p267 = scmp.lt.s32.totalorder %s266, 4
        %s268 = scalar_select %p267, 1, 0
        %s269 = scvt.s32.f32 %s268
        %v270 = vld [vmem:[#allocation6 + $0x3] sm:$0x1]
        %v271 = vld [vmem:[%s1] sm:$0xff]
        %v272 = vld [vmem:[%s1 + $0x8] sm:$0xff]
        %v273 = vlaneseq
        %v274 = vshrl.u32 %v273, 7
        %v275 = vsub.s32 0, %v274
        %v276 = vrot.slane %v270, %v275
        %vm277 = vcmask 130048
        %v279 = vsel %vm277, %v261, 0
        %v282 = vsel %vm277, %v262, 0
        %284 = vmatprep.subr.mxu0 0.0
        %285 = vmatpush1.msra.mxu0 0.0
        %286 = vmatprep.subr.mxu0 0.0
        %287 = vmatpush1.msra.mxu0 0.0
        %288 = vmatprep.subr.mxu0 0.0
        %289 = vmatpush1.msra.mxu0 0.0
        %290 = vmatprep.subr.mxu0 0.0
        %291 = vmatpush1.msra.mxu0 0.0
        %292 = vmatprep.subr.mxu0 0.0
        %293 = vmatpush1.msra.mxu0 0.0
        %294 = vmatprep.subr.mxu0 0.0
        %295 = vmatpush1.msra.mxu0 0.0
        %296 = vmatprep.subr.mxu0 0.0
        %297 = vmatpush1.msra.mxu0 0.0
        %298 = vmatprep.subr.mxu0 0.0
        %299 = vmatpush1.msra.mxu0 0.0
        %300 = vmatprep.subr.mxu0 0.0
        %301 = vmatpush1.msra.mxu0 0.0
        %302 = vmatprep.subr.mxu0 0.0
        %303 = vmatpush1.msra.mxu0 0.0
        %304 = vmatprep.subr.mxu0 0.0
        %305 = vmatpush1.msra.mxu0 0.0
        %306 = vmatprep.subr.mxu0 0.0
        %307 = vmatpush1.msra.mxu0 0.0
        %308 = vmatprep.subr.mxu0 0.0
        %309 = vmatpush1.msra.mxu0 0.0
        %310 = vmatprep.subr.mxu0 0.0
        %311 = vmatpush1.msra.mxu0 0.0
        %312 = vmatprep.subr.mxu0 0.0
        %313 = vmatpush1.msra.mxu0 %v272
        %314 = vmatprep.subr.mxu0 0.0
        %315 = vmatpush1.msra.mxu0 %v271
        %316 = vmatprep.subr.mxu0 0.0
        %317 = vmatpush2.msra.mxu0 0.0
        %318 = vmatprep.subr.mxu0 0.0
        %319 = vmatpush2.msra.mxu0 0.0
        %320 = vmatprep.subr.mxu0 0.0
        %321 = vmatpush2.msra.mxu0 0.0
        %322 = vmatprep.subr.mxu0 0.0
        %323 = vmatpush2.msra.mxu0 0.0
        %324 = vmatprep.subr.mxu0 0.0
        %325 = vmatpush2.msra.mxu0 0.0
        %326 = vmatprep.subr.mxu0 0.0
        %327 = vmatpush2.msra.mxu0 0.0
        %328 = vmatprep.subr.mxu0 0.0
        %329 = vmatpush2.msra.mxu0 0.0
        %330 = vmatprep.subr.mxu0 0.0
        %331 = vmatpush2.msra.mxu0 0.0
        %332 = vmatprep.subr.mxu0 0.0
        %333 = vmatpush2.msra.mxu0 0.0
        %334 = vmatprep.subr.mxu0 0.0
        %335 = vmatpush2.msra.mxu0 0.0
        %336 = vmatprep.subr.mxu0 0.0
        %337 = vmatpush2.msra.mxu0 0.0
        %338 = vmatprep.subr.mxu0 0.0
        %339 = vmatpush2.msra.mxu0 0.0
        %340 = vmatprep.subr.mxu0 0.0
        %341 = vmatpush2.msra.mxu0 0.0
        %342 = vmatprep.subr.mxu0 0.0
        %343 = vmatpush2.msra.mxu0 0.0
        %344 = vmatprep.subr.mxu0 0.0
        %345 = vmatpush2.msra.mxu0 0.0
        %346 = vmatprep.subr.mxu0 0.0
        %347 = vmatpush2.msra.mxu0 0.0
        %348 = vmatprep.mubr.f32.mxu0 0.0
        %349 = vmatmul.mubr.f32.gmra.mxu0 %v279
        %v350 = vpop.f32.mrf.mxu0
        %v351 = vadd.f32 %v276, %v350
        %v352 = vpop.f32.mrf.mxu0
        %353 = vmatprep.mubr.f32.mxu0 0.0
        %354 = vmatmul.mubr.f32.gmra.mxu0 %v282
        %v355 = vpop.f32.mrf.mxu0
        %v356 = vadd.f32 %v276, %v355
        %v357 = vpop.f32.mrf.mxu0
        %358 = vdwg.mxu0
        %v359 = vstv %s265
        %v360 = vmul.f32 %v351, %v359
        %362 = vrot.lane.b32.xlu0 %v360, 8
        %v363 = vpop.permute.xlu0 %362
        %vm365 = vcmask 584768
        %366 = vst.msk [vmem:[#allocation2 + $0x1] sm:$0xf] %vm365, %v363
        %368 = vrot.lane.b32.xlu0 %v351, 8
        %v369 = vpop.permute.xlu0 %368
        %s371 = scalar_lea.vmem [#allocation2], 8
        %vm372 = vcmask 588868
        %373 = vst.msk [vmem:[%s371 - $0x3] sm:$0xf0] %vm372, %v369
        %375 = vrot.lane.b32.xlu0 %v356, 8
        %v376 = vpop.permute.xlu0 %375
        %s378 = scalar_lea.vmem [#allocation2], 16
        %379 = vst.msk [vmem:[%s378 + $0x1] sm:$0xf] %vm365, %v376
        %v380 = vstv %s269
        %v381 = vmul.f32 %v356, %v380
        %383 = vrot.lane.b32.xlu0 %v381, 8
        %v384 = vpop.permute.xlu0 %383
        %s386 = scalar_lea.vmem [#allocation2], 24
        %387 = vst.msk [vmem:[%s386 - $0x3] sm:$0xf0] %vm372, %v384
        %s388 = scalar_lea.vmem %s1, 16
        %v389 = vld [vmem:[%s388] sm:$0xff]
        %v390 = vld [vmem:[%s388 + $0x8] sm:$0xff]
        %391 = vmatprep.subr.mxu0 0.0
        %392 = vmatpush1.msra.mxu0 0.0
        %393 = vmatprep.subr.mxu0 0.0
        %394 = vmatpush1.msra.mxu0 0.0
        %395 = vmatprep.subr.mxu0 0.0
        %396 = vmatpush1.msra.mxu0 0.0
        %397 = vmatprep.subr.mxu0 0.0
        %398 = vmatpush1.msra.mxu0 0.0
        %399 = vmatprep.subr.mxu0 0.0
        %400 = vmatpush1.msra.mxu0 0.0
        %401 = vmatprep.subr.mxu0 0.0
        %402 = vmatpush1.msra.mxu0 0.0
        %403 = vmatprep.subr.mxu0 0.0
        %404 = vmatpush1.msra.mxu0 0.0
        %405 = vmatprep.subr.mxu0 0.0
        %406 = vmatpush1.msra.mxu0 0.0
        %407 = vmatprep.subr.mxu0 0.0
        %408 = vmatpush1.msra.mxu0 0.0
        %409 = vmatprep.subr.mxu0 0.0
        %410 = vmatpush1.msra.mxu0 0.0
        %411 = vmatprep.subr.mxu0 0.0
        %412 = vmatpush1.msra.mxu0 0.0
        %413 = vmatprep.subr.mxu0 0.0
        %414 = vmatpush1.msra.mxu0 0.0
        %415 = vmatprep.subr.mxu0 0.0
        %416 = vmatpush1.msra.mxu0 0.0
        %417 = vmatprep.subr.mxu0 0.0
        %418 = vmatpush1.msra.mxu0 0.0
        %419 = vmatprep.subr.mxu0 0.0
        %420 = vmatpush1.msra.mxu0 %v390
        %421 = vmatprep.subr.mxu0 0.0
        %422 = vmatpush1.msra.mxu0 %v389
        %423 = vmatprep.subr.mxu0 0.0
        %424 = vmatpush2.msra.mxu0 0.0
        %425 = vmatprep.subr.mxu0 0.0
        %426 = vmatpush2.msra.mxu0 0.0
        %427 = vmatprep.subr.mxu0 0.0
        %428 = vmatpush2.msra.mxu0 0.0
        %429 = vmatprep.subr.mxu0 0.0
        %430 = vmatpush2.msra.mxu0 0.0
        %431 = vmatprep.subr.mxu0 0.0
        %432 = vmatpush2.msra.mxu0 0.0
        %433 = vmatprep.subr.mxu0 0.0
        %434 = vmatpush2.msra.mxu0 0.0
        %435 = vmatprep.subr.mxu0 0.0
        %436 = vmatpush2.msra.mxu0 0.0
        %437 = vmatprep.subr.mxu0 0.0
        %438 = vmatpush2.msra.mxu0 0.0
        %439 = vmatprep.subr.mxu0 0.0
        %440 = vmatpush2.msra.mxu0 0.0
        %441 = vmatprep.subr.mxu0 0.0
        %442 = vmatpush2.msra.mxu0 0.0
        %443 = vmatprep.subr.mxu0 0.0
        %444 = vmatpush2.msra.mxu0 0.0
        %445 = vmatprep.subr.mxu0 0.0
        %446 = vmatpush2.msra.mxu0 0.0
        %447 = vmatprep.subr.mxu0 0.0
        %448 = vmatpush2.msra.mxu0 0.0
        %449 = vmatprep.subr.mxu0 0.0
        %450 = vmatpush2.msra.mxu0 0.0
        %451 = vmatprep.subr.mxu0 0.0
        %452 = vmatpush2.msra.mxu0 0.0
        %453 = vmatprep.subr.mxu0 0.0
        %454 = vmatpush2.msra.mxu0 0.0
        %455 = vmatprep.mubr.f32.mxu0 0.0
        %456 = vmatmul.mubr.f32.gmra.mxu0 %v279
        %v457 = vpop.f32.mrf.mxu0
        %v458 = vadd.f32 %v276, %v457
        %v459 = vpop.f32.mrf.mxu0
        %460 = vmatprep.mubr.f32.mxu0 0.0
        %461 = vmatmul.mubr.f32.gmra.mxu0 %v282
        %v462 = vpop.f32.mrf.mxu0
        %v463 = vadd.f32 %v276, %v462
        %v464 = vpop.f32.mrf.mxu0
        %465 = vdwg.mxu0
        %v466 = vmul.f32 %v458, %v359
        %468 = vrot.lane.b32.xlu0 %v466, 8
        %v469 = vpop.permute.xlu0 %468
        %s471 = scalar_lea.vmem [#allocation2], 32
        %472 = vst.msk [vmem:[%s471 + $0x1] sm:$0xf] %vm365, %v469
        %474 = vrot.lane.b32.xlu0 %v458, 8
        %v475 = vpop.permute.xlu0 %474
        %s477 = scalar_lea.vmem [#allocation2], 40
        %478 = vst.msk [vmem:[%s477 - $0x3] sm:$0xf0] %vm372, %v475
        %480 = vrot.lane.b32.xlu0 %v463, 8
        %v481 = vpop.permute.xlu0 %480
        %s483 = scalar_lea.vmem [#allocation2], 48
        %484 = vst.msk [vmem:[%s483 + $0x1] sm:$0xf] %vm365, %v481
        %v485 = vmul.f32 %v463, %v380
        %487 = vrot.lane.b32.xlu0 %v485, 8
        %v488 = vpop.permute.xlu0 %487
        %s490 = scalar_lea.vmem [#allocation2], 56
        %491 = vst.msk [vmem:[%s490 - $0x3] sm:$0xf0] %vm372, %v488
        %s492 = scalar_lea.vmem %s1, 32
        %v493 = vld [vmem:[%s492] sm:$0xff]
        %v494 = vld [vmem:[%s492 + $0x8] sm:$0xff]
        %495 = vmatprep.subr.mxu0 0.0
        %496 = vmatpush1.msra.mxu0 0.0
        %497 = vmatprep.subr.mxu0 0.0
        %498 = vmatpush1.msra.mxu0 0.0
        %499 = vmatprep.subr.mxu0 0.0
        %500 = vmatpush1.msra.mxu0 0.0
        %501 = vmatprep.subr.mxu0 0.0
        %502 = vmatpush1.msra.mxu0 0.0
        %503 = vmatprep.subr.mxu0 0.0
        %504 = vmatpush1.msra.mxu0 0.0
        %505 = vmatprep.subr.mxu0 0.0
        %506 = vmatpush1.msra.mxu0 0.0
        %507 = vmatprep.subr.mxu0 0.0
        %508 = vmatpush1.msra.mxu0 0.0
        %509 = vmatprep.subr.mxu0 0.0
        %510 = vmatpush1.msra.mxu0 0.0
        %511 = vmatprep.subr.mxu0 0.0
        %512 = vmatpush1.msra.mxu0 0.0
        %513 = vmatprep.subr.mxu0 0.0
        %514 = vmatpush1.msra.mxu0 0.0
        %515 = vmatprep.subr.mxu0 0.0
        %516 = vmatpush1.msra.mxu0 0.0
        %517 = vmatprep.subr.mxu0 0.0
        %518 = vmatpush1.msra.mxu0 0.0
        %519 = vmatprep.subr.mxu0 0.0
        %520 = vmatpush1.msra.mxu0 0.0
        %521 = vmatprep.subr.mxu0 0.0
        %522 = vmatpush1.msra.mxu0 0.0
        %523 = vmatprep.subr.mxu0 0.0
        %524 = vmatpush1.msra.mxu0 %v494
        %525 = vmatprep.subr.mxu0 0.0
        %526 = vmatpush1.msra.mxu0 %v493
        %527 = vmatprep.subr.mxu0 0.0
        %528 = vmatpush2.msra.mxu0 0.0
        %529 = vmatprep.subr.mxu0 0.0
        %530 = vmatpush2.msra.mxu0 0.0
        %531 = vmatprep.subr.mxu0 0.0
        %532 = vmatpush2.msra.mxu0 0.0
        %533 = vmatprep.subr.mxu0 0.0
        %534 = vmatpush2.msra.mxu0 0.0
        %535 = vmatprep.subr.mxu0 0.0
        %536 = vmatpush2.msra.mxu0 0.0
        %537 = vmatprep.subr.mxu0 0.0
        %538 = vmatpush2.msra.mxu0 0.0
        %539 = vmatprep.subr.mxu0 0.0
        %540 = vmatpush2.msra.mxu0 0.0
        %541 = vmatprep.subr.mxu0 0.0
        %542 = vmatpush2.msra.mxu0 0.0
        %543 = vmatprep.subr.mxu0 0.0
        %544 = vmatpush2.msra.mxu0 0.0
        %545 = vmatprep.subr.mxu0 0.0
        %546 = vmatpush2.msra.mxu0 0.0
        %547 = vmatprep.subr.mxu0 0.0
        %548 = vmatpush2.msra.mxu0 0.0
        %549 = vmatprep.subr.mxu0 0.0
        %550 = vmatpush2.msra.mxu0 0.0
        %551 = vmatprep.subr.mxu0 0.0
        %552 = vmatpush2.msra.mxu0 0.0
        %553 = vmatprep.subr.mxu0 0.0
        %554 = vmatpush2.msra.mxu0 0.0
        %555 = vmatprep.subr.mxu0 0.0
        %556 = vmatpush2.msra.mxu0 0.0
        %557 = vmatprep.subr.mxu0 0.0
        %558 = vmatpush2.msra.mxu0 0.0
        %559 = vmatprep.mubr.f32.mxu0 0.0
        %560 = vmatmul.mubr.f32.gmra.mxu0 %v279
        %v561 = vpop.f32.mrf.mxu0
        %v562 = vadd.f32 %v276, %v561
        %v563 = vpop.f32.mrf.mxu0
        %564 = vmatprep.mubr.f32.mxu0 0.0
        %565 = vmatmul.mubr.f32.gmra.mxu0 %v282
        %v566 = vpop.f32.mrf.mxu0
        %v567 = vadd.f32 %v276, %v566
        %v568 = vpop.f32.mrf.mxu0
        %569 = vdwg.mxu0
        %v570 = vmul.f32 %v562, %v359
        %572 = vrot.lane.b32.xlu0 %v570, 8
        %v573 = vpop.permute.xlu0 %572
        %s575 = scalar_lea.vmem [#allocation2], 64
        %576 = vst.msk [vmem:[%s575 + $0x1] sm:$0xf] %vm365, %v573
        %578 = vrot.lane.b32.xlu0 %v562, 8
        %v579 = vpop.permute.xlu0 %578
        %s581 = scalar_lea.vmem [#allocation2], 72
        %582 = vst.msk [vmem:[%s581 - $0x3] sm:$0xf0] %vm372, %v579
        %584 = vrot.lane.b32.xlu0 %v567, 8
        %v585 = vpop.permute.xlu0 %584
        %s587 = scalar_lea.vmem [#allocation2], 80
        %588 = vst.msk [vmem:[%s587 + $0x1] sm:$0xf] %vm365, %v585
        %v589 = vmul.f32 %v567, %v380
        %591 = vrot.lane.b32.xlu0 %v589, 8
        %v592 = vpop.permute.xlu0 %591
        %s594 = scalar_lea.vmem [#allocation2], 88
        %595 = vst.msk [vmem:[%s594 - $0x3] sm:$0xf0] %vm372, %v592
        %s596 = scalar_lea.vmem %s1, 48
        %v597 = vld [vmem:[%s596] sm:$0xff]
        %v598 = vld [vmem:[%s596 + $0x8] sm:$0xff]
        %599 = vmatprep.subr.mxu0 0.0
        %600 = vmatpush1.msra.mxu0 0.0
        %601 = vmatprep.subr.mxu0 0.0
        %602 = vmatpush1.msra.mxu0 0.0
        %603 = vmatprep.subr.mxu0 0.0
        %604 = vmatpush1.msra.mxu0 0.0
        %605 = vmatprep.subr.mxu0 0.0
        %606 = vmatpush1.msra.mxu0 0.0
        %607 = vmatprep.subr.mxu0 0.0
        %608 = vmatpush1.msra.mxu0 0.0
        %609 = vmatprep.subr.mxu0 0.0
        %610 = vmatpush1.msra.mxu0 0.0
        %611 = vmatprep.subr.mxu0 0.0
        %612 = vmatpush1.msra.mxu0 0.0
        %613 = vmatprep.subr.mxu0 0.0
        %614 = vmatpush1.msra.mxu0 0.0
        %615 = vmatprep.subr.mxu0 0.0
        %616 = vmatpush1.msra.mxu0 0.0
        %617 = vmatprep.subr.mxu0 0.0
        %618 = vmatpush1.msra.mxu0 0.0
        %619 = vmatprep.subr.mxu0 0.0
        %620 = vmatpush1.msra.mxu0 0.0
        %621 = vmatprep.subr.mxu0 0.0
        %622 = vmatpush1.msra.mxu0 0.0
        %623 = vmatprep.subr.mxu0 0.0
        %624 = vmatpush1.msra.mxu0 0.0
        %625 = vmatprep.subr.mxu0 0.0
        %626 = vmatpush1.msra.mxu0 0.0
        %627 = vmatprep.subr.mxu0 0.0
        %628 = vmatpush1.msra.mxu0 %v598
        %629 = vmatprep.subr.mxu0 0.0
        %630 = vmatpush1.msra.mxu0 %v597
        %631 = vmatprep.subr.mxu0 0.0
        %632 = vmatpush2.msra.mxu0 0.0
        %633 = vmatprep.subr.mxu0 0.0
        %634 = vmatpush2.msra.mxu0 0.0
        %635 = vmatprep.subr.mxu0 0.0
        %636 = vmatpush2.msra.mxu0 0.0
        %637 = vmatprep.subr.mxu0 0.0
        %638 = vmatpush2.msra.mxu0 0.0
        %639 = vmatprep.subr.mxu0 0.0
        %640 = vmatpush2.msra.mxu0 0.0
        %641 = vmatprep.subr.mxu0 0.0
        %642 = vmatpush2.msra.mxu0 0.0
        %643 = vmatprep.subr.mxu0 0.0
        %644 = vmatpush2.msra.mxu0 0.0
        %645 = vmatprep.subr.mxu0 0.0
        %646 = vmatpush2.msra.mxu0 0.0
        %647 = vmatprep.subr.mxu0 0.0
        %648 = vmatpush2.msra.mxu0 0.0
        %649 = vmatprep.subr.mxu0 0.0
        %650 = vmatpush2.msra.mxu0 0.0
        %651 = vmatprep.subr.mxu0 0.0
        %652 = vmatpush2.msra.mxu0 0.0
        %653 = vmatprep.subr.mxu0 0.0
        %654 = vmatpush2.msra.mxu0 0.0
        %655 = vmatprep.subr.mxu0 0.0
        %656 = vmatpush2.msra.mxu0 0.0
        %657 = vmatprep.subr.mxu0 0.0
        %658 = vmatpush2.msra.mxu0 0.0
        %659 = vmatprep.subr.mxu0 0.0
        %660 = vmatpush2.msra.mxu0 0.0
        %661 = vmatprep.subr.mxu0 0.0
        %662 = vmatpush2.msra.mxu0 0.0
        %663 = vmatprep.mubr.f32.mxu0 0.0
        %664 = vmatmul.mubr.f32.gmra.mxu0 %v279
        %v665 = vpop.f32.mrf.mxu0
        %v666 = vadd.f32 %v276, %v665
        %v667 = vpop.f32.mrf.mxu0
        %668 = vmatprep.mubr.f32.mxu0 0.0
        %669 = vmatmul.mubr.f32.gmra.mxu0 %v282
        %v670 = vpop.f32.mrf.mxu0
        %v671 = vadd.f32 %v276, %v670
        %v672 = vpop.f32.mrf.mxu0
        %673 = vdwg.mxu0
        %v674 = vmul.f32 %v666, %v359
        %676 = vrot.lane.b32.xlu0 %v674, 8
        %v677 = vpop.permute.xlu0 %676
        %s679 = scalar_lea.vmem [#allocation2], 96
        %680 = vst.msk [vmem:[%s679 + $0x1] sm:$0xf] %vm365, %v677
        %682 = vrot.lane.b32.xlu0 %v666, 8
        %v683 = vpop.permute.xlu0 %682
        %s685 = scalar_lea.vmem [#allocation2], 104
        %686 = vst.msk [vmem:[%s685 - $0x3] sm:$0xf0] %vm372, %v683
        %688 = vrot.lane.b32.xlu0 %v671, 8
        %v689 = vpop.permute.xlu0 %688
        %s691 = scalar_lea.vmem [#allocation2], 112
        %692 = vst.msk [vmem:[%s691 + $0x1] sm:$0xf] %vm365, %v689
        %v693 = vmul.f32 %v671, %v380
        %695 = vrot.lane.b32.xlu0 %v693, 8
        %v696 = vpop.permute.xlu0 %695
        %s698 = scalar_lea.vmem [#allocation2], 120
        %699 = vst.msk [vmem:[%s698 - $0x3] sm:$0xf0] %vm372, %v696
        %v700 = vld [vmem:[#allocation3] sm:$0xff]
        %v701 = vld [vmem:[#allocation3 + $0x8] sm:$0xff]
        %v702 = vld [vmem:[#allocation3 + $0x10] sm:$0xff]
        %v703 = vld [vmem:[#allocation3 + $0x18] sm:$0xff]
        %v704 = vld [vmem:[#allocation3 + $0x20] sm:$0xff]
        %v705 = vld [vmem:[#allocation3 + $0x28] sm:$0xff]
        %v706 = vld [vmem:[#allocation3 + $0x30] sm:$0xff]
        %v707 = vld [vmem:[#allocation3 + $0x38] sm:$0xff]
        %v708 = vld [vmem:[#allocation6] sm:$0x1]
        %v709 = vld [vmem:[#allocation6 + $0x1] sm:$0x1]
        %v710 = vld [vmem:[#allocation6 + $0x2] sm:$0x1]
        %v711 = vld [vmem:[#allocation6 + $0x4] sm:$0x1]
        %v712 = vld [vmem:[#allocation6 + $0x5] sm:$0x1]
        %v713 = vld [vmem:[#allocation6 + $0x6] sm:$0x1]
        %v714 = vld [vmem:[#allocation6 + $0x7] sm:$0x1]
        %v715 = vld [vmem:[#allocation6 + $0x8] sm:$0x1]
        %v716 = vld [vmem:[#allocation6 + $0x9] sm:$0x1]
        %v717 = vld [vmem:[#allocation6 + $0xa] sm:$0x1]
        %v718 = vld [vmem:[#allocation6 + $0xb] sm:$0x1]
        %v719 = vld [vmem:[#allocation6 + $0xc] sm:$0x1]
        %v720 = vld [vmem:[#allocation6 + $0xd] sm:$0x1]
        %v721 = vld [vmem:[#allocation6 + $0xe] sm:$0x1]
        %v722 = vld [vmem:[#allocation6 + $0xf] sm:$0x1]
        %v723 = vld [vmem:[#allocation6 + $0x10] sm:$0x1]
        %v724 = vld [vmem:[#allocation6 + $0x11] sm:$0x1]
        %v725 = vld [vmem:[#allocation6 + $0x12] sm:$0x1]
        %v726 = vld [vmem:[#allocation6 + $0x13] sm:$0x1]
        %v727 = vld [vmem:[#allocation6 + $0x14] sm:$0x1]
        %v728 = vld [vmem:[#allocation6 + $0x15] sm:$0x1]
        %v729 = vld [vmem:[#allocation6 + $0x16] sm:$0x1]
        %v730 = vld [vmem:[#allocation6 + $0x17] sm:$0x1]
        %v731 = vld [vmem:[#allocation6 + $0x18] sm:$0x1]
        %v732 = vld [vmem:[#allocation6 + $0x19] sm:$0x1]
        %v733 = vld [vmem:[#allocation6 + $0x1a] sm:$0x1]
        %v734 = vld [vmem:[#allocation6 + $0x1b] sm:$0x1]
        %v735 = vld [vmem:[#allocation6 + $0x1c] sm:$0x1]
        %v736 = vld [vmem:[#allocation6 + $0x1d] sm:$0x1]
        %v737 = vld [vmem:[#allocation6 + $0x1e] sm:$0x1]
        %v738 = vld [vmem:[%s679] sm:$0xf]
        %v739 = vlaneseq
        %v740 = vshrl.u32 %v739, 7
        %v741 = vsub.s32 0, %v740
        %v742 = vrot.slane %v711, %v741
        %v743 = vmul.f32 %v738, %v742
        %v744 = vadd.f32 %v743, 0.0
        %v745 = vlaneseq
        %v746 = vshrl.u32 %v745, 7
        %v747 = vsub.s32 0, %v746
        %v748 = vrot.slane %v712, %v747
        %750 = vrot.lane.b32.xlu0 %v748, 8
        %v751 = vpop.permute.xlu0 %750
        %v753 = vmul.f32 %v738, %v751
        %755 = vrot.lane.b32.xlu0 %v753, 120
        %v756 = vpop.permute.xlu0 %755
        %v758 = vadd.f32 %v744, %v756
        %v759 = vlaneseq
        %v760 = vshrl.u32 %v759, 7
        %v761 = vsub.s32 0, %v760
        %v762 = vrot.slane %v713, %v761
        %764 = vrot.lane.b32.xlu0 %v762, 16
        %v765 = vpop.permute.xlu0 %764
        %v767 = vmul.f32 %v738, %v765
        %769 = vrot.lane.b32.xlu0 %v767, 112
        %v770 = vpop.permute.xlu0 %769
        %v772 = vadd.f32 %v758, %v770
        %v773 = vld [vmem:[%s575 + $0x1] sm:$0xf]
        %v774 = vlaneseq
        %v775 = vshrl.u32 %v774, 7
        %v776 = vsub.s32 0, %v775
        %v777 = vrot.slane %v714, %v776
        %v778 = vmul.f32 %v773, %v777
        %v779 = vadd.f32 %v772, %v778
        %v780 = vlaneseq
        %v781 = vshrl.u32 %v780, 7
        %v782 = vsub.s32 0, %v781
        %v783 = vrot.slane %v715, %v782
        %785 = vrot.lane.b32.xlu0 %v783, 8
        %v786 = vpop.permute.xlu0 %785
        %v788 = vmul.f32 %v773, %v786
        %790 = vrot.lane.b32.xlu0 %v788, 120
        %v791 = vpop.permute.xlu0 %790
        %v793 = vadd.f32 %v779, %v791
        %v794 = vlaneseq
        %v795 = vshrl.u32 %v794, 7
        %v796 = vsub.s32 0, %v795
        %v797 = vrot.slane %v716, %v796
        %799 = vrot.lane.b32.xlu0 %v797, 16
        %v800 = vpop.permute.xlu0 %799
        %v802 = vmul.f32 %v773, %v800
        %804 = vrot.lane.b32.xlu0 %v802, 112
        %v805 = vpop.permute.xlu0 %804
        %v807 = vadd.f32 %v793, %v805
        %v808 = vld [vmem:[%s679 + $0x1] sm:$0xf]
        %v809 = vlaneseq
        %v810 = vshrl.u32 %v809, 7
        %v811 = vsub.s32 0, %v810
        %v812 = vrot.slane %v717, %v811
        %v813 = vmul.f32 %v808, %v812
        %v814 = vadd.f32 %v807, %v813
        %v815 = vlaneseq
        %v816 = vshrl.u32 %v815, 7
        %v817 = vsub.s32 0, %v816
        %v818 = vrot.slane %v718, %v817
        %820 = vrot.lane.b32.xlu0 %v818, 8
        %v821 = vpop.permute.xlu0 %820
        %v823 = vmul.f32 %v808, %v821
        %825 = vrot.lane.b32.xlu0 %v823, 120
        %v826 = vpop.permute.xlu0 %825
        %v828 = vadd.f32 %v814, %v826
        %v829 = vlaneseq
        %v830 = vshrl.u32 %v829, 7
        %v831 = vsub.s32 0, %v830
        %v832 = vrot.slane %v719, %v831
        %834 = vrot.lane.b32.xlu0 %v832, 16
        %v835 = vpop.permute.xlu0 %834
        %v837 = vmul.f32 %v808, %v835
        %839 = vrot.lane.b32.xlu0 %v837, 112
        %v840 = vpop.permute.xlu0 %839
        %v842 = vadd.f32 %v828, %v840
        %v843 = vld [vmem:[%s477] sm:$0xf]
        %v844 = vlaneseq
        %v845 = vshrl.u32 %v844, 7
        %v846 = vsub.s32 0, %v845
        %v847 = vrot.slane %v720, %v846
        %v848 = vmul.f32 %v843, %v847
        %v849 = vadd.f32 %v842, %v848
        %v850 = vlaneseq
        %v851 = vshrl.u32 %v850, 7
        %v852 = vsub.s32 0, %v851
        %v853 = vrot.slane %v721, %v852
        %855 = vrot.lane.b32.xlu0 %v853, 8
        %v856 = vpop.permute.xlu0 %855
        %v858 = vmul.f32 %v843, %v856
        %860 = vrot.lane.b32.xlu0 %v858, 120
        %v861 = vpop.permute.xlu0 %860
        %v863 = vadd.f32 %v849, %v861
        %v864 = vlaneseq
        %v865 = vshrl.u32 %v864, 7
        %v866 = vsub.s32 0, %v865
        %v867 = vrot.slane %v722, %v866
        %869 = vrot.lane.b32.xlu0 %v867, 16
        %v870 = vpop.permute.xlu0 %869
        %v872 = vmul.f32 %v843, %v870
        %874 = vrot.lane.b32.xlu0 %v872, 112
        %v875 = vpop.permute.xlu0 %874
        %v877 = vadd.f32 %v863, %v875
        %v878 = vld [vmem:[%s371 + $0x1] sm:$0xf]
        %v879 = vlaneseq
        %v880 = vshrl.u32 %v879, 7
        %v881 = vsub.s32 0, %v880
        %v882 = vrot.slane %v723, %v881
        %v883 = vmul.f32 %v878, %v882
        %v884 = vadd.f32 %v877, %v883
        %v885 = vlaneseq
        %v886 = vshrl.u32 %v885, 7
        %v887 = vsub.s32 0, %v886
        %v888 = vrot.slane %v724, %v887
        %890 = vrot.lane.b32.xlu0 %v888, 8
        %v891 = vpop.permute.xlu0 %890
        %v893 = vmul.f32 %v878, %v891
        %895 = vrot.lane.b32.xlu0 %v893, 120
        %v896 = vpop.permute.xlu0 %895
        %v898 = vadd.f32 %v884, %v896
        %v899 = vlaneseq
        %v900 = vshrl.u32 %v899, 7
        %v901 = vsub.s32 0, %v900
        %v902 = vrot.slane %v725, %v901
        %904 = vrot.lane.b32.xlu0 %v902, 16
        %v905 = vpop.permute.xlu0 %904
        %v907 = vmul.f32 %v878, %v905
        %909 = vrot.lane.b32.xlu0 %v907, 112
        %v910 = vpop.permute.xlu0 %909
        %v912 = vadd.f32 %v898, %v910
        %v913 = vld [vmem:[%s477 + $0x1] sm:$0xf]
        %v914 = vlaneseq
        %v915 = vshrl.u32 %v914, 7
        %v916 = vsub.s32 0, %v915
        %v917 = vrot.slane %v726, %v916
        %v918 = vmul.f32 %v913, %v917
        %v919 = vadd.f32 %v912, %v918
        %v920 = vlaneseq
        %v921 = vshrl.u32 %v920, 7
        %v922 = vsub.s32 0, %v921
        %v923 = vrot.slane %v727, %v922
        %925 = vrot.lane.b32.xlu0 %v923, 8
        %v926 = vpop.permute.xlu0 %925
        %v928 = vmul.f32 %v913, %v926
        %930 = vrot.lane.b32.xlu0 %v928, 120
        %v931 = vpop.permute.xlu0 %930
        %v933 = vadd.f32 %v919, %v931
        %v934 = vlaneseq
        %v935 = vshrl.u32 %v934, 7
        %v936 = vsub.s32 0, %v935
        %v937 = vrot.slane %v728, %v936
        %939 = vrot.lane.b32.xlu0 %v937, 16
        %v940 = vpop.permute.xlu0 %939
        %v942 = vmul.f32 %v913, %v940
        %944 = vrot.lane.b32.xlu0 %v942, 112
        %v945 = vpop.permute.xlu0 %944
        %v947 = vadd.f32 %v933, %v945
        %v948 = vld [vmem:[%s685] sm:$0xf]
        %v949 = vlaneseq
        %v950 = vshrl.u32 %v949, 7
        %v951 = vsub.s32 0, %v950
        %v952 = vrot.slane %v729, %v951
        %v953 = vmul.f32 %v948, %v952
        %v954 = vadd.f32 %v947, %v953
        %v955 = vlaneseq
        %v956 = vshrl.u32 %v955, 7
        %v957 = vsub.s32 0, %v956
        %v958 = vrot.slane %v730, %v957
        %960 = vrot.lane.b32.xlu0 %v958, 8
        %v961 = vpop.permute.xlu0 %960
        %v963 = vmul.f32 %v948, %v961
        %965 = vrot.lane.b32.xlu0 %v963, 120
        %v966 = vpop.permute.xlu0 %965
        %v968 = vadd.f32 %v954, %v966
        %v969 = vlaneseq
        %v970 = vshrl.u32 %v969, 7
        %v971 = vsub.s32 0, %v970
        %v972 = vrot.slane %v731, %v971
        %974 = vrot.lane.b32.xlu0 %v972, 16
        %v975 = vpop.permute.xlu0 %974
        %v977 = vmul.f32 %v948, %v975
        %979 = vrot.lane.b32.xlu0 %v977, 112
        %v980 = vpop.permute.xlu0 %979
        %v982 = vadd.f32 %v968, %v980
        %v983 = vld [vmem:[%s581 + $0x1] sm:$0xf]
        %v984 = vlaneseq
        %v985 = vshrl.u32 %v984, 7
        %v986 = vsub.s32 0, %v985
        %v987 = vrot.slane %v732, %v986
        %v988 = vmul.f32 %v983, %v987
        %v989 = vadd.f32 %v982, %v988
        %v990 = vlaneseq
        %v991 = vshrl.u32 %v990, 7
        %v992 = vsub.s32 0, %v991
        %v993 = vrot.slane %v733, %v992
        %995 = vrot.lane.b32.xlu0 %v993, 8
        %v996 = vpop.permute.xlu0 %995
        %v998 = vmul.f32 %v983, %v996
        %1000 = vrot.lane.b32.xlu0 %v998, 120
        %v1001 = vpop.permute.xlu0 %1000
        %v1003 = vadd.f32 %v989, %v1001
        %v1004 = vlaneseq
        %v1005 = vshrl.u32 %v1004, 7
        %v1006 = vsub.s32 0, %v1005
        %v1007 = vrot.slane %v734, %v1006
        %1009 = vrot.lane.b32.xlu0 %v1007, 16
        %v1010 = vpop.permute.xlu0 %1009
        %v1012 = vmul.f32 %v983, %v1010
        %1014 = vrot.lane.b32.xlu0 %v1012, 112
        %v1015 = vpop.permute.xlu0 %1014
        %v1017 = vadd.f32 %v1003, %v1015
        %v1018 = vld [vmem:[%s685 + $0x1] sm:$0xf]
        %v1019 = vlaneseq
        %v1020 = vshrl.u32 %v1019, 7
        %v1021 = vsub.s32 0, %v1020
        %v1022 = vrot.slane %v735, %v1021
        %v1023 = vmul.f32 %v1018, %v1022
        %v1024 = vadd.f32 %v1017, %v1023
        %v1025 = vlaneseq
        %v1026 = vshrl.u32 %v1025, 7
        %v1027 = vsub.s32 0, %v1026
        %v1028 = vrot.slane %v736, %v1027
        %1030 = vrot.lane.b32.xlu0 %v1028, 8
        %v1031 = vpop.permute.xlu0 %1030
        %v1033 = vmul.f32 %v1018, %v1031
        %1035 = vrot.lane.b32.xlu0 %v1033, 120
        %v1036 = vpop.permute.xlu0 %1035
        %v1038 = vadd.f32 %v1024, %v1036
        %v1039 = vlaneseq
        %v1040 = vshrl.u32 %v1039, 7
        %v1041 = vsub.s32 0, %v1040
        %v1042 = vrot.slane %v737, %v1041
        %1044 = vrot.lane.b32.xlu0 %v1042, 16
        %v1045 = vpop.permute.xlu0 %1044
        %v1047 = vmul.f32 %v1018, %v1045
        %1049 = vrot.lane.b32.xlu0 %v1047, 112
        %v1050 = vpop.permute.xlu0 %1049
        %v1052 = vadd.f32 %v1038, %v1050
        %v1053 = vlaneseq
        %v1054 = vshrl.u32 %v1053, 7
        %v1055 = vsub.s32 0, %v1054
        %v1056 = vrot.slane %v708, %v1055
        %v1057 = vadd.f32 %v1052, %v1056
        %v1058 = vmax.f32 %v1057, 0.0
        %v1059 = vmin.f32 %v1058, 6.0
        %vm1060 = vcmask 523264
        %v1062 = vsel %vm1060, %v1059, 0
        %1064 = vmatprep.subr.mxu0 0.0
        %1065 = vmatpush1.msra.mxu0 0.0
        %1066 = vmatprep.subr.mxu0 0.0
        %1067 = vmatpush1.msra.mxu0 0.0
        %1068 = vmatprep.subr.mxu0 0.0
        %1069 = vmatpush1.msra.mxu0 0.0
        %1070 = vmatprep.subr.mxu0 0.0
        %1071 = vmatpush1.msra.mxu0 0.0
        %1072 = vmatprep.subr.mxu0 0.0
        %1073 = vmatpush1.msra.mxu0 0.0
        %1074 = vmatprep.subr.mxu0 0.0
        %1075 = vmatpush1.msra.mxu0 0.0
        %1076 = vmatprep.subr.mxu0 0.0
        %1077 = vmatpush1.msra.mxu0 0.0
        %1078 = vmatprep.subr.mxu0 0.0
        %1079 = vmatpush1.msra.mxu0 0.0
        %1080 = vmatprep.subr.mxu0 0.0
        %1081 = vmatpush1.msra.mxu0 %v707
        %1082 = vmatprep.subr.mxu0 0.0
        %1083 = vmatpush1.msra.mxu0 %v706
        %1084 = vmatprep.subr.mxu0 0.0
        %1085 = vmatpush1.msra.mxu0 %v705
        %1086 = vmatprep.subr.mxu0 0.0
        %1087 = vmatpush1.msra.mxu0 %v704
        %1088 = vmatprep.subr.mxu0 0.0
        %1089 = vmatpush1.msra.mxu0 %v703
        %1090 = vmatprep.subr.mxu0 0.0
        %1091 = vmatpush1.msra.mxu0 %v702
        %1092 = vmatprep.subr.mxu0 0.0
        %1093 = vmatpush1.msra.mxu0 %v701
        %1094 = vmatprep.subr.mxu0 0.0
        %1095 = vmatpush1.msra.mxu0 %v700
        %1096 = vmatprep.subr.mxu0 0.0
        %1097 = vmatpush2.msra.mxu0 0.0
        %1098 = vmatprep.subr.mxu0 0.0
        %1099 = vmatpush2.msra.mxu0 0.0
        %1100 = vmatprep.subr.mxu0 0.0
        %1101 = vmatpush2.msra.mxu0 0.0
        %1102 = vmatprep.subr.mxu0 0.0
        %1103 = vmatpush2.msra.mxu0 0.0
        %1104 = vmatprep.subr.mxu0 0.0
        %1105 = vmatpush2.msra.mxu0 0.0
        %1106 = vmatprep.subr.mxu0 0.0
        %1107 = vmatpush2.msra.mxu0 0.0
        %1108 = vmatprep.subr.mxu0 0.0
        %1109 = vmatpush2.msra.mxu0 0.0
        %1110 = vmatprep.subr.mxu0 0.0
        %1111 = vmatpush2.msra.mxu0 0.0
        %1112 = vmatprep.subr.mxu0 0.0
        %1113 = vmatpush2.msra.mxu0 0.0
        %1114 = vmatprep.subr.mxu0 0.0
        %1115 = vmatpush2.msra.mxu0 0.0
        %1116 = vmatprep.subr.mxu0 0.0
        %1117 = vmatpush2.msra.mxu0 0.0
        %1118 = vmatprep.subr.mxu0 0.0
        %1119 = vmatpush2.msra.mxu0 0.0
        %1120 = vmatprep.subr.mxu0 0.0
        %1121 = vmatpush2.msra.mxu0 0.0
        %1122 = vmatprep.subr.mxu0 0.0
        %1123 = vmatpush2.msra.mxu0 0.0
        %1124 = vmatprep.subr.mxu0 0.0
        %1125 = vmatpush2.msra.mxu0 0.0
        %1126 = vmatprep.subr.mxu0 0.0
        %1127 = vmatpush2.msra.mxu0 0.0
        %1128 = vmatprep.mubr.f32.mxu0 0.0
        %1129 = vmatmul.mubr.f32.gmra.mxu0 %v1062
        %v1130 = vpop.f32.mrf.mxu0
        %v1131 = vadd.f32 0.0, %v1130
        %v1132 = vpop.f32.mrf.mxu0
        %1133 = vdwg.mxu0
        %v1134 = vlaneseq
        %v1135 = vshrl.u32 %v1134, 7
        %v1136 = vsub.s32 0, %v1135
        %v1137 = vrot.slane %v709, %v1136
        %1139 = vrot.lane.b32.xlu0 %v1137, 8
        %v1140 = vpop.permute.xlu0 %1139
        %v1142 = vmul.f32 %v878, %v1140
        %1144 = vrot.lane.b32.xlu0 %v1131, 8
        %v1145 = vpop.permute.xlu0 %1144
        %v1147 = vadd.f32 %v1142, %v1145
        %v1148 = vlaneseq
        %v1149 = vshrl.u32 %v1148, 7
        %v1150 = vsub.s32 0, %v1149
        %v1151 = vrot.slane %v710, %v1150
        %1153 = vrot.lane.b32.xlu0 %v1151, 8
        %v1154 = vpop.permute.xlu0 %1153
        %v1156 = vadd.f32 %v1147, %v1154
        %v1157 = vmul.f32 %v773, %v742
        %v1158 = vadd.f32 %v1157, 0.0
        %v1159 = vmul.f32 %v773, %v751
        %1161 = vrot.lane.b32.xlu0 %v1159, 120
        %v1162 = vpop.permute.xlu0 %1161
        %v1164 = vadd.f32 %v1158, %v1162
        %v1165 = vmul.f32 %v773, %v765
        %1167 = vrot.lane.b32.xlu0 %v1165, 112
        %v1168 = vpop.permute.xlu0 %1167
        %v1170 = vadd.f32 %v1164, %v1168
        %v1171 = vmul.f32 %v808, %v777
        %v1172 = vadd.f32 %v1170, %v1171
        %v1173 = vmul.f32 %v808, %v786
        %1175 = vrot.lane.b32.xlu0 %v1173, 120
        %v1176 = vpop.permute.xlu0 %1175
        %v1178 = vadd.f32 %v1172, %v1176
        %v1179 = vmul.f32 %v808, %v800
        %1181 = vrot.lane.b32.xlu0 %v1179, 112
        %v1182 = vpop.permute.xlu0 %1181
        %v1184 = vadd.f32 %v1178, %v1182
        %v1185 = vld [vmem:[%s575 + $0x2] sm:$0xf]
        %v1186 = vmul.f32 %v1185, %v812
        %v1187 = vadd.f32 %v1184, %v1186
        %v1188 = vmul.f32 %v1185, %v821
        %1190 = vrot.lane.b32.xlu0 %v1188, 120
        %v1191 = vpop.permute.xlu0 %1190
        %v1193 = vadd.f32 %v1187, %v1191
        %v1194 = vmul.f32 %v1185, %v835
        %1196 = vrot.lane.b32.xlu0 %v1194, 112
        %v1197 = vpop.permute.xlu0 %1196
        %v1199 = vadd.f32 %v1193, %v1197
        %v1200 = vmul.f32 %v878, %v847
        %v1201 = vadd.f32 %v1199, %v1200
        %v1202 = vmul.f32 %v878, %v856
        %1204 = vrot.lane.b32.xlu0 %v1202, 120
        %v1205 = vpop.permute.xlu0 %1204
        %v1207 = vadd.f32 %v1201, %v1205
        %v1208 = vmul.f32 %v878, %v870
        %1210 = vrot.lane.b32.xlu0 %v1208, 112
        %v1211 = vpop.permute.xlu0 %1210
        %v1213 = vadd.f32 %v1207, %v1211
        %v1214 = vmul.f32 %v913, %v882
        %v1215 = vadd.f32 %v1213, %v1214
        %v1216 = vmul.f32 %v913, %v891
        %1218 = vrot.lane.b32.xlu0 %v1216, 120
        %v1219 = vpop.permute.xlu0 %1218
        %v1221 = vadd.f32 %v1215, %v1219
        %v1222 = vmul.f32 %v913, %v905
        %1224 = vrot.lane.b32.xlu0 %v1222, 112
        %v1225 = vpop.permute.xlu0 %1224
        %v1227 = vadd.f32 %v1221, %v1225
        %v1228 = vld [vmem:[%s371 + $0x2] sm:$0xf]
        %v1229 = vmul.f32 %v1228, %v917
        %v1230 = vadd.f32 %v1227, %v1229
        %v1231 = vmul.f32 %v1228, %v926
        %1233 = vrot.lane.b32.xlu0 %v1231, 120
        %v1234 = vpop.permute.xlu0 %1233
        %v1236 = vadd.f32 %v1230, %v1234
        %v1237 = vmul.f32 %v1228, %v940
        %1239 = vrot.lane.b32.xlu0 %v1237, 112
        %v1240 = vpop.permute.xlu0 %1239
        %v1242 = vadd.f32 %v1236, %v1240
        %v1243 = vmul.f32 %v983, %v952
        %v1244 = vadd.f32 %v1242, %v1243
        %v1245 = vmul.f32 %v983, %v961
        %1247 = vrot.lane.b32.xlu0 %v1245, 120
        %v1248 = vpop.permute.xlu0 %1247
        %v1250 = vadd.f32 %v1244, %v1248
        %v1251 = vmul.f32 %v983, %v975
        %1253 = vrot.lane.b32.xlu0 %v1251, 112
        %v1254 = vpop.permute.xlu0 %1253
        %v1256 = vadd.f32 %v1250, %v1254
        %v1257 = vmul.f32 %v1018, %v987
        %v1258 = vadd.f32 %v1256, %v1257
        %v1259 = vmul.f32 %v1018, %v996
        %1261 = vrot.lane.b32.xlu0 %v1259, 120
        %v1262 = vpop.permute.xlu0 %1261
        %v1264 = vadd.f32 %v1258, %v1262
        %v1265 = vmul.f32 %v1018, %v1010
        %1267 = vrot.lane.b32.xlu0 %v1265, 112
        %v1268 = vpop.permute.xlu0 %1267
        %v1270 = vadd.f32 %v1264, %v1268
        %v1271 = vld [vmem:[%s581 + $0x2] sm:$0xf]
        %v1272 = vmul.f32 %v1271, %v1022
        %v1273 = vadd.f32 %v1270, %v1272
        %v1274 = vmul.f32 %v1271, %v1031
        %1276 = vrot.lane.b32.xlu0 %v1274, 120
        %v1277 = vpop.permute.xlu0 %1276
        %v1279 = vadd.f32 %v1273, %v1277
        %v1280 = vmul.f32 %v1271, %v1045
        %1282 = vrot.lane.b32.xlu0 %v1280, 112
        %v1283 = vpop.permute.xlu0 %1282
        %v1285 = vadd.f32 %v1279, %v1283
        %v1286 = vadd.f32 %v1285, %v1056
        %v1287 = vmax.f32 %v1286, 0.0
        %v1288 = vmin.f32 %v1287, 6.0
        %v1290 = vsel %vm1060, %v1288, 0
        %1292 = vmatprep.subr.mxu0 0.0
        %1293 = vmatpush1.msra.mxu0 0.0
        %1294 = vmatprep.subr.mxu0 0.0
        %1295 = vmatpush1.msra.mxu0 0.0
        %1296 = vmatprep.subr.mxu0 0.0
        %1297 = vmatpush1.msra.mxu0 0.0
        %1298 = vmatprep.subr.mxu0 0.0
        %1299 = vmatpush1.msra.mxu0 0.0
        %1300 = vmatprep.subr.mxu0 0.0
        %1301 = vmatpush1.msra.mxu0 0.0
        %1302 = vmatprep.subr.mxu0 0.0
        %1303 = vmatpush1.msra.mxu0 0.0
        %1304 = vmatprep.subr.mxu0 0.0
        %1305 = vmatpush1.msra.mxu0 0.0
        %1306 = vmatprep.subr.mxu0 0.0
        %1307 = vmatpush1.msra.mxu0 0.0
        %1308 = vmatprep.subr.mxu0 0.0
        %1309 = vmatpush1.msra.mxu0 %v707
        %1310 = vmatprep.subr.mxu0 0.0
        %1311 = vmatpush1.msra.mxu0 %v706
        %1312 = vmatprep.subr.mxu0 0.0
        %1313 = vmatpush1.msra.mxu0 %v705
        %1314 = vmatprep.subr.mxu0 0.0
        %1315 = vmatpush1.msra.mxu0 %v704
        %1316 = vmatprep.subr.mxu0 0.0
        %1317 = vmatpush1.msra.mxu0 %v703
        %1318 = vmatprep.subr.mxu0 0.0
        %1319 = vmatpush1.msra.mxu0 %v702
        %1320 = vmatprep.subr.mxu0 0.0
        %1321 = vmatpush1.msra.mxu0 %v701
        %1322 = vmatprep.subr.mxu0 0.0
        %1323 = vmatpush1.msra.mxu0 %v700
        %1324 = vmatprep.subr.mxu0 0.0
        %1325 = vmatpush2.msra.mxu0 0.0
        %1326 = vmatprep.subr.mxu0 0.0
        %1327 = vmatpush2.msra.mxu0 0.0
        %1328 = vmatprep.subr.mxu0 0.0
        %1329 = vmatpush2.msra.mxu0 0.0
        %1330 = vmatprep.subr.mxu0 0.0
        %1331 = vmatpush2.msra.mxu0 0.0
        %1332 = vmatprep.subr.mxu0 0.0
        %1333 = vmatpush2.msra.mxu0 0.0
        %1334 = vmatprep.subr.mxu0 0.0
        %1335 = vmatpush2.msra.mxu0 0.0
        %1336 = vmatprep.subr.mxu0 0.0
        %1337 = vmatpush2.msra.mxu0 0.0
        %1338 = vmatprep.subr.mxu0 0.0
        %1339 = vmatpush2.msra.mxu0 0.0
        %1340 = vmatprep.subr.mxu0 0.0
        %1341 = vmatpush2.msra.mxu0 0.0
        %1342 = vmatprep.subr.mxu0 0.0
        %1343 = vmatpush2.msra.mxu0 0.0
        %1344 = vmatprep.subr.mxu0 0.0
        %1345 = vmatpush2.msra.mxu0 0.0
        %1346 = vmatprep.subr.mxu0 0.0
        %1347 = vmatpush2.msra.mxu0 0.0
        %1348 = vmatprep.subr.mxu0 0.0
        %1349 = vmatpush2.msra.mxu0 0.0
        %1350 = vmatprep.subr.mxu0 0.0
        %1351 = vmatpush2.msra.mxu0 0.0
        %1352 = vmatprep.subr.mxu0 0.0
        %1353 = vmatpush2.msra.mxu0 0.0
        %1354 = vmatprep.subr.mxu0 0.0
        %1355 = vmatpush2.msra.mxu0 0.0
        %1356 = vmatprep.mubr.f32.mxu0 0.0
        %1357 = vmatmul.mubr.f32.gmra.mxu0 %v1290
        %v1358 = vpop.f32.mrf.mxu0
        %v1359 = vadd.f32 0.0, %v1358
        %v1360 = vpop.f32.mrf.mxu0
        %1361 = vdwg.mxu0
        %v1362 = vmul.f32 %v913, %v1140
        %1364 = vrot.lane.b32.xlu0 %v1359, 8
        %v1365 = vpop.permute.xlu0 %1364
        %v1367 = vadd.f32 %v1362, %v1365
        %v1368 = vadd.f32 %v1367, %v1154
        %1370 = vrot.lane.b32.xlu0 %v1156, 120
        %v1371 = vpop.permute.xlu0 %1370
        %1374 = vrot.lane.b32.xlu0 %v1368, 56
        %v1375 = vpop.permute.xlu0 %1374
        %v1377 = vsel %vm1060, %v1371, %v1375
        %1378 = vst [vmem:[%s234] sm:$0xf] %v1377
        %v1379 = vld [vmem:[%s685] sm:$0xf]
        %v1380 = vmul.f32 %v1379, %v742
        %v1381 = vadd.f32 %v1380, 0.0
        %v1382 = vmul.f32 %v1379, %v751
        %1384 = vrot.lane.b32.xlu0 %v1382, 120
        %v1385 = vpop.permute.xlu0 %1384
        %v1387 = vadd.f32 %v1381, %v1385
        %v1388 = vmul.f32 %v1379, %v765
        %1390 = vrot.lane.b32.xlu0 %v1388, 112
        %v1391 = vpop.permute.xlu0 %1390
        %v1393 = vadd.f32 %v1387, %v1391
        %v1394 = vld [vmem:[%s581 + $0x1] sm:$0xf]
        %v1395 = vmul.f32 %v1394, %v777
        %v1396 = vadd.f32 %v1393, %v1395
        %v1397 = vmul.f32 %v1394, %v786
        %1399 = vrot.lane.b32.xlu0 %v1397, 120
        %v1400 = vpop.permute.xlu0 %1399
        %v1402 = vadd.f32 %v1396, %v1400
        %v1403 = vmul.f32 %v1394, %v800
        %1405 = vrot.lane.b32.xlu0 %v1403, 112
        %v1406 = vpop.permute.xlu0 %1405
        %v1408 = vadd.f32 %v1402, %v1406
        %v1409 = vld [vmem:[%s685 + $0x1] sm:$0xf]
        %v1410 = vmul.f32 %v1409, %v812
        %v1411 = vadd.f32 %v1408, %v1410
        %v1412 = vmul.f32 %v1409, %v821
        %1414 = vrot.lane.b32.xlu0 %v1412, 120
        %v1415 = vpop.permute.xlu0 %1414
        %v1417 = vadd.f32 %v1411, %v1415
        %v1418 = vmul.f32 %v1409, %v835
        %1420 = vrot.lane.b32.xlu0 %v1418, 112
        %v1421 = vpop.permute.xlu0 %1420
        %v1423 = vadd.f32 %v1417, %v1421
        %v1424 = vld [vmem:[%s483] sm:$0xf]
        %v1425 = vmul.f32 %v1424, %v847
        %v1426 = vadd.f32 %v1423, %v1425
        %v1427 = vmul.f32 %v1424, %v856
        %1429 = vrot.lane.b32.xlu0 %v1427, 120
        %v1430 = vpop.permute.xlu0 %1429
        %v1432 = vadd.f32 %v1426, %v1430
        %v1433 = vmul.f32 %v1424, %v870
        %1435 = vrot.lane.b32.xlu0 %v1433, 112
        %v1436 = vpop.permute.xlu0 %1435
        %v1438 = vadd.f32 %v1432, %v1436
        %v1439 = vld [vmem:[%s378 + $0x1] sm:$0xf]
        %v1440 = vmul.f32 %v1439, %v882
        %v1441 = vadd.f32 %v1438, %v1440
        %v1442 = vmul.f32 %v1439, %v891
        %1444 = vrot.lane.b32.xlu0 %v1442, 120
        %v1445 = vpop.permute.xlu0 %1444
        %v1447 = vadd.f32 %v1441, %v1445
        %v1448 = vmul.f32 %v1439, %v905
        %1450 = vrot.lane.b32.xlu0 %v1448, 112
        %v1451 = vpop.permute.xlu0 %1450
        %v1453 = vadd.f32 %v1447, %v1451
        %v1454 = vld [vmem:[%s483 + $0x1] sm:$0xf]
        %v1455 = vmul.f32 %v1454, %v917
        %v1456 = vadd.f32 %v1453, %v1455
        %v1457 = vmul.f32 %v1454, %v926
        %1459 = vrot.lane.b32.xlu0 %v1457, 120
        %v1460 = vpop.permute.xlu0 %1459
        %v1462 = vadd.f32 %v1456, %v1460
        %v1463 = vmul.f32 %v1454, %v940
        %1465 = vrot.lane.b32.xlu0 %v1463, 112
        %v1466 = vpop.permute.xlu0 %1465
        %v1468 = vadd.f32 %v1462, %v1466
        %v1469 = vld [vmem:[%s691] sm:$0xf]
        %v1470 = vmul.f32 %v1469, %v952
        %v1471 = vadd.f32 %v1468, %v1470
        %v1472 = vmul.f32 %v1469, %v961
        %1474 = vrot.lane.b32.xlu0 %v1472, 120
        %v1475 = vpop.permute.xlu0 %1474
        %v1477 = vadd.f32 %v1471, %v1475
        %v1478 = vmul.f32 %v1469, %v975
        %1480 = vrot.lane.b32.xlu0 %v1478, 112
        %v1481 = vpop.permute.xlu0 %1480
        %v1483 = vadd.f32 %v1477, %v1481
        %v1484 = vld [vmem:[%s587 + $0x1] sm:$0xf]
        %v1485 = vmul.f32 %v1484, %v987
        %v1486 = vadd.f32 %v1483, %v1485
        %v1487 = vmul.f32 %v1484, %v996
        %1489 = vrot.lane.b32.xlu0 %v1487, 120
        %v1490 = vpop.permute.xlu0 %1489
        %v1492 = vadd.f32 %v1486, %v1490
        %v1493 = vmul.f32 %v1484, %v1010
        %1495 = vrot.lane.b32.xlu0 %v1493, 112
        %v1496 = vpop.permute.xlu0 %1495
        %v1498 = vadd.f32 %v1492, %v1496
        %v1499 = vld [vmem:[%s691 + $0x1] sm:$0xf]
        %v1500 = vmul.f32 %v1499, %v1022
        %v1501 = vadd.f32 %v1498, %v1500
        %v1502 = vmul.f32 %v1499, %v1031
        %1504 = vrot.lane.b32.xlu0 %v1502, 120
        %v1505 = vpop.permute.xlu0 %1504
        %v1507 = vadd.f32 %v1501, %v1505
        %v1508 = vmul.f32 %v1499, %v1045
        %1510 = vrot.lane.b32.xlu0 %v1508, 112
        %v1511 = vpop.permute.xlu0 %1510
        %v1513 = vadd.f32 %v1507, %v1511
        %v1514 = vadd.f32 %v1513, %v1056
        %v1515 = vmax.f32 %v1514, 0.0
        %v1516 = vmin.f32 %v1515, 6.0
        %v1518 = vsel %vm1060, %v1516, 0
        %1520 = vmatprep.subr.mxu0 0.0
        %1521 = vmatpush1.msra.mxu0 0.0
        %1522 = vmatprep.subr.mxu0 0.0
        %1523 = vmatpush1.msra.mxu0 0.0
        %1524 = vmatprep.subr.mxu0 0.0
        %1525 = vmatpush1.msra.mxu0 0.0
        %1526 = vmatprep.subr.mxu0 0.0
        %1527 = vmatpush1.msra.mxu0 0.0
        %1528 = vmatprep.subr.mxu0 0.0
        %1529 = vmatpush1.msra.mxu0 0.0
        %1530 = vmatprep.subr.mxu0 0.0
        %1531 = vmatpush1.msra.mxu0 0.0
        %1532 = vmatprep.subr.mxu0 0.0
        %1533 = vmatpush1.msra.mxu0 0.0
        %1534 = vmatprep.subr.mxu0 0.0
        %1535 = vmatpush1.msra.mxu0 0.0
        %1536 = vmatprep.subr.mxu0 0.0
        %1537 = vmatpush1.msra.mxu0 %v707
        %1538 = vmatprep.subr.mxu0 0.0
        %1539 = vmatpush1.msra.mxu0 %v706
        %1540 = vmatprep.subr.mxu0 0.0
        %1541 = vmatpush1.msra.mxu0 %v705
        %1542 = vmatprep.subr.mxu0 0.0
        %1543 = vmatpush1.msra.mxu0 %v704
        %1544 = vmatprep.subr.mxu0 0.0
        %1545 = vmatpush1.msra.mxu0 %v703
        %1546 = vmatprep.subr.mxu0 0.0
        %1547 = vmatpush1.msra.mxu0 %v702
        %1548 = vmatprep.subr.mxu0 0.0
        %1549 = vmatpush1.msra.mxu0 %v701
        %1550 = vmatprep.subr.mxu0 0.0
        %1551 = vmatpush1.msra.mxu0 %v700
        %1552 = vmatprep.subr.mxu0 0.0
        %1553 = vmatpush2.msra.mxu0 0.0
        %1554 = vmatprep.subr.mxu0 0.0
        %1555 = vmatpush2.msra.mxu0 0.0
        %1556 = vmatprep.subr.mxu0 0.0
        %1557 = vmatpush2.msra.mxu0 0.0
        %1558 = vmatprep.subr.mxu0 0.0
        %1559 = vmatpush2.msra.mxu0 0.0
        %1560 = vmatprep.subr.mxu0 0.0
        %1561 = vmatpush2.msra.mxu0 0.0
        %1562 = vmatprep.subr.mxu0 0.0
        %1563 = vmatpush2.msra.mxu0 0.0
        %1564 = vmatprep.subr.mxu0 0.0
        %1565 = vmatpush2.msra.mxu0 0.0
        %1566 = vmatprep.subr.mxu0 0.0
        %1567 = vmatpush2.msra.mxu0 0.0
        %1568 = vmatprep.subr.mxu0 0.0
        %1569 = vmatpush2.msra.mxu0 0.0
        %1570 = vmatprep.subr.mxu0 0.0
        %1571 = vmatpush2.msra.mxu0 0.0
        %1572 = vmatprep.subr.mxu0 0.0
        %1573 = vmatpush2.msra.mxu0 0.0
        %1574 = vmatprep.subr.mxu0 0.0
        %1575 = vmatpush2.msra.mxu0 0.0
        %1576 = vmatprep.subr.mxu0 0.0
        %1577 = vmatpush2.msra.mxu0 0.0
        %1578 = vmatprep.subr.mxu0 0.0
        %1579 = vmatpush2.msra.mxu0 0.0
        %1580 = vmatprep.subr.mxu0 0.0
        %1581 = vmatpush2.msra.mxu0 0.0
        %1582 = vmatprep.subr.mxu0 0.0
        %1583 = vmatpush2.msra.mxu0 0.0
        %1584 = vmatprep.mubr.f32.mxu0 0.0
        %1585 = vmatmul.mubr.f32.gmra.mxu0 %v1518
        %v1586 = vpop.f32.mrf.mxu0
        %v1587 = vadd.f32 0.0, %v1586
        %v1588 = vpop.f32.mrf.mxu0
        %1589 = vdwg.mxu0
        %v1590 = vmul.f32 %v1439, %v1140
        %1592 = vrot.lane.b32.xlu0 %v1587, 8
        %v1593 = vpop.permute.xlu0 %1592
        %v1595 = vadd.f32 %v1590, %v1593
        %v1596 = vadd.f32 %v1595, %v1154
        %v1597 = vmul.f32 %v1394, %v742
        %v1598 = vadd.f32 %v1597, 0.0
        %v1599 = vmul.f32 %v1394, %v751
        %1601 = vrot.lane.b32.xlu0 %v1599, 120
        %v1602 = vpop.permute.xlu0 %1601
        %v1604 = vadd.f32 %v1598, %v1602
        %v1605 = vmul.f32 %v1394, %v765
        %1607 = vrot.lane.b32.xlu0 %v1605, 112
        %v1608 = vpop.permute.xlu0 %1607
        %v1610 = vadd.f32 %v1604, %v1608
        %v1611 = vmul.f32 %v1409, %v777
        %v1612 = vadd.f32 %v1610, %v1611
        %v1613 = vmul.f32 %v1409, %v786
        %1615 = vrot.lane.b32.xlu0 %v1613, 120
        %v1616 = vpop.permute.xlu0 %1615
        %v1618 = vadd.f32 %v1612, %v1616
        %v1619 = vmul.f32 %v1409, %v800
        %1621 = vrot.lane.b32.xlu0 %v1619, 112
        %v1622 = vpop.permute.xlu0 %1621
        %v1624 = vadd.f32 %v1618, %v1622
        %v1625 = vld [vmem:[%s581 + $0x2] sm:$0xf]
        %v1626 = vmul.f32 %v1625, %v812
        %v1627 = vadd.f32 %v1624, %v1626
        %v1628 = vmul.f32 %v1625, %v821
        %1630 = vrot.lane.b32.xlu0 %v1628, 120
        %v1631 = vpop.permute.xlu0 %1630
        %v1633 = vadd.f32 %v1627, %v1631
        %v1634 = vmul.f32 %v1625, %v835
        %1636 = vrot.lane.b32.xlu0 %v1634, 112
        %v1637 = vpop.permute.xlu0 %1636
        %v1639 = vadd.f32 %v1633, %v1637
        %v1640 = vmul.f32 %v1439, %v847
        %v1641 = vadd.f32 %v1639, %v1640
        %v1642 = vmul.f32 %v1439, %v856
        %1644 = vrot.lane.b32.xlu0 %v1642, 120
        %v1645 = vpop.permute.xlu0 %1644
        %v1647 = vadd.f32 %v1641, %v1645
        %v1648 = vmul.f32 %v1439, %v870
        %1650 = vrot.lane.b32.xlu0 %v1648, 112
        %v1651 = vpop.permute.xlu0 %1650
        %v1653 = vadd.f32 %v1647, %v1651
        %v1654 = vmul.f32 %v1454, %v882
        %v1655 = vadd.f32 %v1653, %v1654
        %v1656 = vmul.f32 %v1454, %v891
        %1658 = vrot.lane.b32.xlu0 %v1656, 120
        %v1659 = vpop.permute.xlu0 %1658
        %v1661 = vadd.f32 %v1655, %v1659
        %v1662 = vmul.f32 %v1454, %v905
        %1664 = vrot.lane.b32.xlu0 %v1662, 112
        %v1665 = vpop.permute.xlu0 %1664
        %v1667 = vadd.f32 %v1661, %v1665
        %v1668 = vld [vmem:[%s378 + $0x2] sm:$0xf]
        %v1669 = vmul.f32 %v1668, %v917
        %v1670 = vadd.f32 %v1667, %v1669
        %v1671 = vmul.f32 %v1668, %v926
        %1673 = vrot.lane.b32.xlu0 %v1671, 120
        %v1674 = vpop.permute.xlu0 %1673
        %v1676 = vadd.f32 %v1670, %v1674
        %v1677 = vmul.f32 %v1668, %v940
        %1679 = vrot.lane.b32.xlu0 %v1677, 112
        %v1680 = vpop.permute.xlu0 %1679
        %v1682 = vadd.f32 %v1676, %v1680
        %v1683 = vmul.f32 %v1484, %v952
        %v1684 = vadd.f32 %v1682, %v1683
        %v1685 = vmul.f32 %v1484, %v961
        %1687 = vrot.lane.b32.xlu0 %v1685, 120
        %v1688 = vpop.permute.xlu0 %1687
        %v1690 = vadd.f32 %v1684, %v1688
        %v1691 = vmul.f32 %v1484, %v975
        %1693 = vrot.lane.b32.xlu0 %v1691, 112
        %v1694 = vpop.permute.xlu0 %1693
        %v1696 = vadd.f32 %v1690, %v1694
        %v1697 = vmul.f32 %v1499, %v987
        %v1698 = vadd.f32 %v1696, %v1697
        %v1699 = vmul.f32 %v1499, %v996
        %1701 = vrot.lane.b32.xlu0 %v1699, 120
        %v1702 = vpop.permute.xlu0 %1701
        %v1704 = vadd.f32 %v1698, %v1702
        %v1705 = vmul.f32 %v1499, %v1010
        %1707 = vrot.lane.b32.xlu0 %v1705, 112
        %v1708 = vpop.permute.xlu0 %1707
        %v1710 = vadd.f32 %v1704, %v1708
        %v1711 = vld [vmem:[%s587 + $0x2] sm:$0xf]
        %v1712 = vmul.f32 %v1711, %v1022
        %v1713 = vadd.f32 %v1710, %v1712
        %v1714 = vmul.f32 %v1711, %v1031
        %1716 = vrot.lane.b32.xlu0 %v1714, 120
        %v1717 = vpop.permute.xlu0 %1716
        %v1719 = vadd.f32 %v1713, %v1717
        %v1720 = vmul.f32 %v1711, %v1045
        %1722 = vrot.lane.b32.xlu0 %v1720, 112
        %v1723 = vpop.permute.xlu0 %1722
        %v1725 = vadd.f32 %v1719, %v1723
        %v1726 = vadd.f32 %v1725, %v1056
        %v1727 = vmax.f32 %v1726, 0.0
        %v1728 = vmin.f32 %v1727, 6.0
        %v1730 = vsel %vm1060, %v1728, 0
        %1732 = vmatprep.subr.mxu0 0.0
        %1733 = vmatpush1.msra.mxu0 0.0
        %1734 = vmatprep.subr.mxu0 0.0
        %1735 = vmatpush1.msra.mxu0 0.0
        %1736 = vmatprep.subr.mxu0 0.0
        %1737 = vmatpush1.msra.mxu0 0.0
        %1738 = vmatprep.subr.mxu0 0.0
        %1739 = vmatpush1.msra.mxu0 0.0
        %1740 = vmatprep.subr.mxu0 0.0
        %1741 = vmatpush1.msra.mxu0 0.0
        %1742 = vmatprep.subr.mxu0 0.0
        %1743 = vmatpush1.msra.mxu0 0.0
        %1744 = vmatprep.subr.mxu0 0.0
        %1745 = vmatpush1.msra.mxu0 0.0
        %1746 = vmatprep.subr.mxu0 0.0
        %1747 = vmatpush1.msra.mxu0 0.0
        %1748 = vmatprep.subr.mxu0 0.0
        %1749 = vmatpush1.msra.mxu0 %v707
        %1750 = vmatprep.subr.mxu0 0.0
        %1751 = vmatpush1.msra.mxu0 %v706
        %1752 = vmatprep.subr.mxu0 0.0
        %1753 = vmatpush1.msra.mxu0 %v705
        %1754 = vmatprep.subr.mxu0 0.0
        %1755 = vmatpush1.msra.mxu0 %v704
        %1756 = vmatprep.subr.mxu0 0.0
        %1757 = vmatpush1.msra.mxu0 %v703
        %1758 = vmatprep.subr.mxu0 0.0
        %1759 = vmatpush1.msra.mxu0 %v702
        %1760 = vmatprep.subr.mxu0 0.0
        %1761 = vmatpush1.msra.mxu0 %v701
        %1762 = vmatprep.subr.mxu0 0.0
        %1763 = vmatpush1.msra.mxu0 %v700
        %1764 = vmatprep.subr.mxu0 0.0
        %1765 = vmatpush2.msra.mxu0 0.0
        %1766 = vmatprep.subr.mxu0 0.0
        %1767 = vmatpush2.msra.mxu0 0.0
        %1768 = vmatprep.subr.mxu0 0.0
        %1769 = vmatpush2.msra.mxu0 0.0
        %1770 = vmatprep.subr.mxu0 0.0
        %1771 = vmatpush2.msra.mxu0 0.0
        %1772 = vmatprep.subr.mxu0 0.0
        %1773 = vmatpush2.msra.mxu0 0.0
        %1774 = vmatprep.subr.mxu0 0.0
        %1775 = vmatpush2.msra.mxu0 0.0
        %1776 = vmatprep.subr.mxu0 0.0
        %1777 = vmatpush2.msra.mxu0 0.0
        %1778 = vmatprep.subr.mxu0 0.0
        %1779 = vmatpush2.msra.mxu0 0.0
        %1780 = vmatprep.subr.mxu0 0.0
        %1781 = vmatpush2.msra.mxu0 0.0
        %1782 = vmatprep.subr.mxu0 0.0
        %1783 = vmatpush2.msra.mxu0 0.0
        %1784 = vmatprep.subr.mxu0 0.0
        %1785 = vmatpush2.msra.mxu0 0.0
        %1786 = vmatprep.subr.mxu0 0.0
        %1787 = vmatpush2.msra.mxu0 0.0
        %1788 = vmatprep.subr.mxu0 0.0
        %1789 = vmatpush2.msra.mxu0 0.0
        %1790 = vmatprep.subr.mxu0 0.0
        %1791 = vmatpush2.msra.mxu0 0.0
        %1792 = vmatprep.subr.mxu0 0.0
        %1793 = vmatpush2.msra.mxu0 0.0
        %1794 = vmatprep.subr.mxu0 0.0
        %1795 = vmatpush2.msra.mxu0 0.0
        %1796 = vmatprep.mubr.f32.mxu0 0.0
        %1797 = vmatmul.mubr.f32.gmra.mxu0 %v1730
        %v1798 = vpop.f32.mrf.mxu0
        %v1799 = vadd.f32 0.0, %v1798
        %v1800 = vpop.f32.mrf.mxu0
        %1801 = vdwg.mxu0
        %v1802 = vmul.f32 %v1454, %v1140
        %1804 = vrot.lane.b32.xlu0 %v1799, 8
        %v1805 = vpop.permute.xlu0 %1804
        %v1807 = vadd.f32 %v1802, %v1805
        %v1808 = vadd.f32 %v1807, %v1154
        %1810 = vrot.lane.b32.xlu0 %v1596, 120
        %v1811 = vpop.permute.xlu0 %1810
        %1814 = vrot.lane.b32.xlu0 %v1808, 56
        %v1815 = vpop.permute.xlu0 %1814
        %v1817 = vsel %vm1060, %v1811, %v1815
        %s1818 = scalar_lea.vmem %s234, 8 [#allocation8]
        %1819 = vst [vmem:[%s1818] sm:$0xf] %v1817
        %v1820 = vld [vmem:[%s477] sm:$0xf]
        %v1821 = vmul.f32 %v1820, %v742
        %v1822 = vadd.f32 %v1821, 0.0
        %v1823 = vmul.f32 %v1820, %v751
        %1825 = vrot.lane.b32.xlu0 %v1823, 120
        %v1826 = vpop.permute.xlu0 %1825
        %v1828 = vadd.f32 %v1822, %v1826
        %v1829 = vmul.f32 %v1820, %v765
        %1831 = vrot.lane.b32.xlu0 %v1829, 112
        %v1832 = vpop.permute.xlu0 %1831
        %v1834 = vadd.f32 %v1828, %v1832
        %v1835 = vld [vmem:[%s371 + $0x1] sm:$0xf]
        %v1836 = vmul.f32 %v1835, %v777
        %v1837 = vadd.f32 %v1834, %v1836
        %v1838 = vmul.f32 %v1835, %v786
        %1840 = vrot.lane.b32.xlu0 %v1838, 120
        %v1841 = vpop.permute.xlu0 %1840
        %v1843 = vadd.f32 %v1837, %v1841
        %v1844 = vmul.f32 %v1835, %v800
        %1846 = vrot.lane.b32.xlu0 %v1844, 112
        %v1847 = vpop.permute.xlu0 %1846
        %v1849 = vadd.f32 %v1843, %v1847
        %v1850 = vld [vmem:[%s477 + $0x1] sm:$0xf]
        %v1851 = vmul.f32 %v1850, %v812
        %v1852 = vadd.f32 %v1849, %v1851
        %v1853 = vmul.f32 %v1850, %v821
        %1855 = vrot.lane.b32.xlu0 %v1853, 120
        %v1856 = vpop.permute.xlu0 %1855
        %v1858 = vadd.f32 %v1852, %v1856
        %v1859 = vmul.f32 %v1850, %v835
        %1861 = vrot.lane.b32.xlu0 %v1859, 112
        %v1862 = vpop.permute.xlu0 %1861
        %v1864 = vadd.f32 %v1858, %v1862
        %v1865 = vld [vmem:[%s685] sm:$0xf]
        %v1866 = vmul.f32 %v1865, %v847
        %v1867 = vadd.f32 %v1864, %v1866
        %v1868 = vmul.f32 %v1865, %v856
        %1870 = vrot.lane.b32.xlu0 %v1868, 120
        %v1871 = vpop.permute.xlu0 %1870
        %v1873 = vadd.f32 %v1867, %v1871
        %v1874 = vmul.f32 %v1865, %v870
        %1876 = vrot.lane.b32.xlu0 %v1874, 112
        %v1877 = vpop.permute.xlu0 %1876
        %v1879 = vadd.f32 %v1873, %v1877
        %v1880 = vld [vmem:[%s581 + $0x1] sm:$0xf]
        %v1881 = vmul.f32 %v1880, %v882
        %v1882 = vadd.f32 %v1879, %v1881
        %v1883 = vmul.f32 %v1880, %v891
        %1885 = vrot.lane.b32.xlu0 %v1883, 120
        %v1886 = vpop.permute.xlu0 %1885
        %v1888 = vadd.f32 %v1882, %v1886
        %v1889 = vmul.f32 %v1880, %v905
        %1891 = vrot.lane.b32.xlu0 %v1889, 112
        %v1892 = vpop.permute.xlu0 %1891
        %v1894 = vadd.f32 %v1888, %v1892
        %v1895 = vld [vmem:[%s685 + $0x1] sm:$0xf]
        %v1896 = vmul.f32 %v1895, %v917
        %v1897 = vadd.f32 %v1894, %v1896
        %v1898 = vmul.f32 %v1895, %v926
        %1900 = vrot.lane.b32.xlu0 %v1898, 120
        %v1901 = vpop.permute.xlu0 %1900
        %v1903 = vadd.f32 %v1897, %v1901
        %v1904 = vmul.f32 %v1895, %v940
        %1906 = vrot.lane.b32.xlu0 %v1904, 112
        %v1907 = vpop.permute.xlu0 %1906
        %v1909 = vadd.f32 %v1903, %v1907
        %v1910 = vld [vmem:[%s483] sm:$0xf]
        %v1911 = vmul.f32 %v1910, %v952
        %v1912 = vadd.f32 %v1909, %v1911
        %v1913 = vmul.f32 %v1910, %v961
        %1915 = vrot.lane.b32.xlu0 %v1913, 120
        %v1916 = vpop.permute.xlu0 %1915
        %v1918 = vadd.f32 %v1912, %v1916
        %v1919 = vmul.f32 %v1910, %v975
        %1921 = vrot.lane.b32.xlu0 %v1919, 112
        %v1922 = vpop.permute.xlu0 %1921
        %v1924 = vadd.f32 %v1918, %v1922
        %v1925 = vld [vmem:[%s378 + $0x1] sm:$0xf]
        %v1926 = vmul.f32 %v1925, %v987
        %v1927 = vadd.f32 %v1924, %v1926
        %v1928 = vmul.f32 %v1925, %v996
        %1930 = vrot.lane.b32.xlu0 %v1928, 120
        %v1931 = vpop.permute.xlu0 %1930
        %v1933 = vadd.f32 %v1927, %v1931
        %v1934 = vmul.f32 %v1925, %v1010
        %1936 = vrot.lane.b32.xlu0 %v1934, 112
        %v1937 = vpop.permute.xlu0 %1936
        %v1939 = vadd.f32 %v1933, %v1937
        %v1940 = vld [vmem:[%s483 + $0x1] sm:$0xf]
        %v1941 = vmul.f32 %v1940, %v1022
        %v1942 = vadd.f32 %v1939, %v1941
        %v1943 = vmul.f32 %v1940, %v1031
        %1945 = vrot.lane.b32.xlu0 %v1943, 120
        %v1946 = vpop.permute.xlu0 %1945
        %v1948 = vadd.f32 %v1942, %v1946
        %v1949 = vmul.f32 %v1940, %v1045
        %1951 = vrot.lane.b32.xlu0 %v1949, 112
        %v1952 = vpop.permute.xlu0 %1951
        %v1954 = vadd.f32 %v1948, %v1952
        %v1955 = vadd.f32 %v1954, %v1056
        %v1956 = vmax.f32 %v1955, 0.0
        %v1957 = vmin.f32 %v1956, 6.0
        %v1959 = vsel %vm1060, %v1957, 0
        %1961 = vmatprep.subr.mxu0 0.0
        %1962 = vmatpush1.msra.mxu0 0.0
        %1963 = vmatprep.subr.mxu0 0.0
        %1964 = vmatpush1.msra.mxu0 0.0
        %1965 = vmatprep.subr.mxu0 0.0
        %1966 = vmatpush1.msra.mxu0 0.0
        %1967 = vmatprep.subr.mxu0 0.0
        %1968 = vmatpush1.msra.mxu0 0.0
        %1969 = vmatprep.subr.mxu0 0.0
        %1970 = vmatpush1.msra.mxu0 0.0
        %1971 = vmatprep.subr.mxu0 0.0
        %1972 = vmatpush1.msra.mxu0 0.0
        %1973 = vmatprep.subr.mxu0 0.0
        %1974 = vmatpush1.msra.mxu0 0.0
        %1975 = vmatprep.subr.mxu0 0.0
        %1976 = vmatpush1.msra.mxu0 0.0
        %1977 = vmatprep.subr.mxu0 0.0
        %1978 = vmatpush1.msra.mxu0 %v707
        %1979 = vmatprep.subr.mxu0 0.0
        %1980 = vmatpush1.msra.mxu0 %v706
        %1981 = vmatprep.subr.mxu0 0.0
        %1982 = vmatpush1.msra.mxu0 %v705
        %1983 = vmatprep.subr.mxu0 0.0
        %1984 = vmatpush1.msra.mxu0 %v704
        %1985 = vmatprep.subr.mxu0 0.0
        %1986 = vmatpush1.msra.mxu0 %v703
        %1987 = vmatprep.subr.mxu0 0.0
        %1988 = vmatpush1.msra.mxu0 %v702
        %1989 = vmatprep.subr.mxu0 0.0
        %1990 = vmatpush1.msra.mxu0 %v701
        %1991 = vmatprep.subr.mxu0 0.0
        %1992 = vmatpush1.msra.mxu0 %v700
        %1993 = vmatprep.subr.mxu0 0.0
        %1994 = vmatpush2.msra.mxu0 0.0
        %1995 = vmatprep.subr.mxu0 0.0
        %1996 = vmatpush2.msra.mxu0 0.0
        %1997 = vmatprep.subr.mxu0 0.0
        %1998 = vmatpush2.msra.mxu0 0.0
        %1999 = vmatprep.subr.mxu0 0.0
        %2000 = vmatpush2.msra.mxu0 0.0
        %2001 = vmatprep.subr.mxu0 0.0
        %2002 = vmatpush2.msra.mxu0 0.0
        %2003 = vmatprep.subr.mxu0 0.0
        %2004 = vmatpush2.msra.mxu0 0.0
        %2005 = vmatprep.subr.mxu0 0.0
        %2006 = vmatpush2.msra.mxu0 0.0
        %2007 = vmatprep.subr.mxu0 0.0
        %2008 = vmatpush2.msra.mxu0 0.0
        %2009 = vmatprep.subr.mxu0 0.0
        %2010 = vmatpush2.msra.mxu0 0.0
        %2011 = vmatprep.subr.mxu0 0.0
        %2012 = vmatpush2.msra.mxu0 0.0
        %2013 = vmatprep.subr.mxu0 0.0
        %2014 = vmatpush2.msra.mxu0 0.0
        %2015 = vmatprep.subr.mxu0 0.0
        %2016 = vmatpush2.msra.mxu0 0.0
        %2017 = vmatprep.subr.mxu0 0.0
        %2018 = vmatpush2.msra.mxu0 0.0
        %2019 = vmatprep.subr.mxu0 0.0
        %2020 = vmatpush2.msra.mxu0 0.0
        %2021 = vmatprep.subr.mxu0 0.0
        %2022 = vmatpush2.msra.mxu0 0.0
        %2023 = vmatprep.subr.mxu0 0.0
        %2024 = vmatpush2.msra.mxu0 0.0
        %2025 = vmatprep.mubr.f32.mxu0 0.0
        %2026 = vmatmul.mubr.f32.gmra.mxu0 %v1959
        %v2027 = vpop.f32.mrf.mxu0
        %v2028 = vadd.f32 0.0, %v2027
        %v2029 = vpop.f32.mrf.mxu0
        %2030 = vdwg.mxu0
        %v2031 = vmul.f32 %v1880, %v1140
        %2033 = vrot.lane.b32.xlu0 %v2028, 8
        %v2034 = vpop.permute.xlu0 %2033
        %v2036 = vadd.f32 %v2031, %v2034
        %v2037 = vadd.f32 %v2036, %v1154
        %v2038 = vmul.f32 %v1835, %v742
        %v2039 = vadd.f32 %v2038, 0.0
        %v2040 = vmul.f32 %v1835, %v751
        %2042 = vrot.lane.b32.xlu0 %v2040, 120
        %v2043 = vpop.permute.xlu0 %2042
        %v2045 = vadd.f32 %v2039, %v2043
        %v2046 = vmul.f32 %v1835, %v765
        %2048 = vrot.lane.b32.xlu0 %v2046, 112
        %v2049 = vpop.permute.xlu0 %2048
        %v2051 = vadd.f32 %v2045, %v2049
        %v2052 = vmul.f32 %v1850, %v777
        %v2053 = vadd.f32 %v2051, %v2052
        %v2054 = vmul.f32 %v1850, %v786
        %2056 = vrot.lane.b32.xlu0 %v2054, 120
        %v2057 = vpop.permute.xlu0 %2056
        %v2059 = vadd.f32 %v2053, %v2057
        %v2060 = vmul.f32 %v1850, %v800
        %2062 = vrot.lane.b32.xlu0 %v2060, 112
        %v2063 = vpop.permute.xlu0 %2062
        %v2065 = vadd.f32 %v2059, %v2063
        %v2066 = vld [vmem:[%s371 + $0x2] sm:$0xf]
        %v2067 = vmul.f32 %v2066, %v812
        %v2068 = vadd.f32 %v2065, %v2067
        %v2069 = vmul.f32 %v2066, %v821
        %2071 = vrot.lane.b32.xlu0 %v2069, 120
        %v2072 = vpop.permute.xlu0 %2071
        %v2074 = vadd.f32 %v2068, %v2072
        %v2075 = vmul.f32 %v2066, %v835
        %2077 = vrot.lane.b32.xlu0 %v2075, 112
        %v2078 = vpop.permute.xlu0 %2077
        %v2080 = vadd.f32 %v2074, %v2078
        %v2081 = vmul.f32 %v1880, %v847
        %v2082 = vadd.f32 %v2080, %v2081
        %v2083 = vmul.f32 %v1880, %v856
        %2085 = vrot.lane.b32.xlu0 %v2083, 120
        %v2086 = vpop.permute.xlu0 %2085
        %v2088 = vadd.f32 %v2082, %v2086
        %v2089 = vmul.f32 %v1880, %v870
        %2091 = vrot.lane.b32.xlu0 %v2089, 112
        %v2092 = vpop.permute.xlu0 %2091
        %v2094 = vadd.f32 %v2088, %v2092
        %v2095 = vmul.f32 %v1895, %v882
        %v2096 = vadd.f32 %v2094, %v2095
        %v2097 = vmul.f32 %v1895, %v891
        %2099 = vrot.lane.b32.xlu0 %v2097, 120
        %v2100 = vpop.permute.xlu0 %2099
        %v2102 = vadd.f32 %v2096, %v2100
        %v2103 = vmul.f32 %v1895, %v905
        %2105 = vrot.lane.b32.xlu0 %v2103, 112
        %v2106 = vpop.permute.xlu0 %2105
        %v2108 = vadd.f32 %v2102, %v2106
        %v2109 = vld [vmem:[%s581 + $0x2] sm:$0xf]
        %v2110 = vmul.f32 %v2109, %v917
        %v2111 = vadd.f32 %v2108, %v2110
        %v2112 = vmul.f32 %v2109, %v926
        %2114 = vrot.lane.b32.xlu0 %v2112, 120
        %v2115 = vpop.permute.xlu0 %2114
        %v2117 = vadd.f32 %v2111, %v2115
        %v2118 = vmul.f32 %v2109, %v940
        %2120 = vrot.lane.b32.xlu0 %v2118, 112
        %v2121 = vpop.permute.xlu0 %2120
        %v2123 = vadd.f32 %v2117, %v2121
        %v2124 = vmul.f32 %v1925, %v952
        %v2125 = vadd.f32 %v2123, %v2124
        %v2126 = vmul.f32 %v1925, %v961
        %2128 = vrot.lane.b32.xlu0 %v2126, 120
        %v2129 = vpop.permute.xlu0 %2128
        %v2131 = vadd.f32 %v2125, %v2129
        %v2132 = vmul.f32 %v1925, %v975
        %2134 = vrot.lane.b32.xlu0 %v2132, 112
        %v2135 = vpop.permute.xlu0 %2134
        %v2137 = vadd.f32 %v2131, %v2135
        %v2138 = vmul.f32 %v1940, %v987
        %v2139 = vadd.f32 %v2137, %v2138
        %v2140 = vmul.f32 %v1940, %v996
        %2142 = vrot.lane.b32.xlu0 %v2140, 120
        %v2143 = vpop.permute.xlu0 %2142
        %v2145 = vadd.f32 %v2139, %v2143
        %v2146 = vmul.f32 %v1940, %v1010
        %2148 = vrot.lane.b32.xlu0 %v2146, 112
        %v2149 = vpop.permute.xlu0 %2148
        %v2151 = vadd.f32 %v2145, %v2149
        %v2152 = vld [vmem:[%s378 + $0x2] sm:$0xf]
        %v2153 = vmul.f32 %v2152, %v1022
        %v2154 = vadd.f32 %v2151, %v2153
        %v2155 = vmul.f32 %v2152, %v1031
        %2157 = vrot.lane.b32.xlu0 %v2155, 120
        %v2158 = vpop.permute.xlu0 %2157
        %v2160 = vadd.f32 %v2154, %v2158
        %v2161 = vmul.f32 %v2152, %v1045
        %2163 = vrot.lane.b32.xlu0 %v2161, 112
        %v2164 = vpop.permute.xlu0 %2163
        %v2166 = vadd.f32 %v2160, %v2164
        %v2167 = vadd.f32 %v2166, %v1056
        %v2168 = vmax.f32 %v2167, 0.0
        %v2169 = vmin.f32 %v2168, 6.0
        %v2171 = vsel %vm1060, %v2169, 0
        %2173 = vmatprep.subr.mxu0 0.0
        %2174 = vmatpush1.msra.mxu0 0.0
        %2175 = vmatprep.subr.mxu0 0.0
        %2176 = vmatpush1.msra.mxu0 0.0
        %2177 = vmatprep.subr.mxu0 0.0
        %2178 = vmatpush1.msra.mxu0 0.0
        %2179 = vmatprep.subr.mxu0 0.0
        %2180 = vmatpush1.msra.mxu0 0.0
        %2181 = vmatprep.subr.mxu0 0.0
        %2182 = vmatpush1.msra.mxu0 0.0
        %2183 = vmatprep.subr.mxu0 0.0
        %2184 = vmatpush1.msra.mxu0 0.0
        %2185 = vmatprep.subr.mxu0 0.0
        %2186 = vmatpush1.msra.mxu0 0.0
        %2187 = vmatprep.subr.mxu0 0.0
        %2188 = vmatpush1.msra.mxu0 0.0
        %2189 = vmatprep.subr.mxu0 0.0
        %2190 = vmatpush1.msra.mxu0 %v707
        %2191 = vmatprep.subr.mxu0 0.0
        %2192 = vmatpush1.msra.mxu0 %v706
        %2193 = vmatprep.subr.mxu0 0.0
        %2194 = vmatpush1.msra.mxu0 %v705
        %2195 = vmatprep.subr.mxu0 0.0
        %2196 = vmatpush1.msra.mxu0 %v704
        %2197 = vmatprep.subr.mxu0 0.0
        %2198 = vmatpush1.msra.mxu0 %v703
        %2199 = vmatprep.subr.mxu0 0.0
        %2200 = vmatpush1.msra.mxu0 %v702
        %2201 = vmatprep.subr.mxu0 0.0
        %2202 = vmatpush1.msra.mxu0 %v701
        %2203 = vmatprep.subr.mxu0 0.0
        %2204 = vmatpush1.msra.mxu0 %v700
        %2205 = vmatprep.subr.mxu0 0.0
        %2206 = vmatpush2.msra.mxu0 0.0
        %2207 = vmatprep.subr.mxu0 0.0
        %2208 = vmatpush2.msra.mxu0 0.0
        %2209 = vmatprep.subr.mxu0 0.0
        %2210 = vmatpush2.msra.mxu0 0.0
        %2211 = vmatprep.subr.mxu0 0.0
        %2212 = vmatpush2.msra.mxu0 0.0
        %2213 = vmatprep.subr.mxu0 0.0
        %2214 = vmatpush2.msra.mxu0 0.0
        %2215 = vmatprep.subr.mxu0 0.0
        %2216 = vmatpush2.msra.mxu0 0.0
        %2217 = vmatprep.subr.mxu0 0.0
        %2218 = vmatpush2.msra.mxu0 0.0
        %2219 = vmatprep.subr.mxu0 0.0
        %2220 = vmatpush2.msra.mxu0 0.0
        %2221 = vmatprep.subr.mxu0 0.0
        %2222 = vmatpush2.msra.mxu0 0.0
        %2223 = vmatprep.subr.mxu0 0.0
        %2224 = vmatpush2.msra.mxu0 0.0
        %2225 = vmatprep.subr.mxu0 0.0
        %2226 = vmatpush2.msra.mxu0 0.0
        %2227 = vmatprep.subr.mxu0 0.0
        %2228 = vmatpush2.msra.mxu0 0.0
        %2229 = vmatprep.subr.mxu0 0.0
        %2230 = vmatpush2.msra.mxu0 0.0
        %2231 = vmatprep.subr.mxu0 0.0
        %2232 = vmatpush2.msra.mxu0 0.0
        %2233 = vmatprep.subr.mxu0 0.0
        %2234 = vmatpush2.msra.mxu0 0.0
        %2235 = vmatprep.subr.mxu0 0.0
        %2236 = vmatpush2.msra.mxu0 0.0
        %2237 = vmatprep.mubr.f32.mxu0 0.0
        %2238 = vmatmul.mubr.f32.gmra.mxu0 %v2171
        %v2239 = vpop.f32.mrf.mxu0
        %v2240 = vadd.f32 0.0, %v2239
        %v2241 = vpop.f32.mrf.mxu0
        %2242 = vdwg.mxu0
        %v2243 = vmul.f32 %v1895, %v1140
        %2245 = vrot.lane.b32.xlu0 %v2240, 8
        %v2246 = vpop.permute.xlu0 %2245
        %v2248 = vadd.f32 %v2243, %v2246
        %v2249 = vadd.f32 %v2248, %v1154
        %2251 = vrot.lane.b32.xlu0 %v2037, 120
        %v2252 = vpop.permute.xlu0 %2251
        %2255 = vrot.lane.b32.xlu0 %v2249, 56
        %v2256 = vpop.permute.xlu0 %2255
        %v2258 = vsel %vm1060, %v2252, %v2256
        %s2259 = scalar_lea.vmem %s234, 4 [#allocation8]
        %2260 = vst [vmem:[%s2259] sm:$0xf] %v2258
        %v2261 = vld [vmem:[%s483] sm:$0xf]
        %v2262 = vmul.f32 %v2261, %v742
        %v2263 = vadd.f32 %v2262, 0.0
        %v2264 = vmul.f32 %v2261, %v751
        %2266 = vrot.lane.b32.xlu0 %v2264, 120
        %v2267 = vpop.permute.xlu0 %2266
        %v2269 = vadd.f32 %v2263, %v2267
        %v2270 = vmul.f32 %v2261, %v765
        %2272 = vrot.lane.b32.xlu0 %v2270, 112
        %v2273 = vpop.permute.xlu0 %2272
        %v2275 = vadd.f32 %v2269, %v2273
        %v2276 = vld [vmem:[%s378 + $0x1] sm:$0xf]
        %v2277 = vmul.f32 %v2276, %v777
        %v2278 = vadd.f32 %v2275, %v2277
        %v2279 = vmul.f32 %v2276, %v786
        %2281 = vrot.lane.b32.xlu0 %v2279, 120
        %v2282 = vpop.permute.xlu0 %2281
        %v2284 = vadd.f32 %v2278, %v2282
        %v2285 = vmul.f32 %v2276, %v800
        %2287 = vrot.lane.b32.xlu0 %v2285, 112
        %v2288 = vpop.permute.xlu0 %2287
        %v2290 = vadd.f32 %v2284, %v2288
        %v2291 = vld [vmem:[%s483 + $0x1] sm:$0xf]
        %v2292 = vmul.f32 %v2291, %v812
        %v2293 = vadd.f32 %v2290, %v2292
        %v2294 = vmul.f32 %v2291, %v821
        %2296 = vrot.lane.b32.xlu0 %v2294, 120
        %v2297 = vpop.permute.xlu0 %2296
        %v2299 = vadd.f32 %v2293, %v2297
        %v2300 = vmul.f32 %v2291, %v835
        %2302 = vrot.lane.b32.xlu0 %v2300, 112
        %v2303 = vpop.permute.xlu0 %2302
        %v2305 = vadd.f32 %v2299, %v2303
        %v2306 = vld [vmem:[%s691] sm:$0xf]
        %v2307 = vmul.f32 %v2306, %v847
        %v2308 = vadd.f32 %v2305, %v2307
        %v2309 = vmul.f32 %v2306, %v856
        %2311 = vrot.lane.b32.xlu0 %v2309, 120
        %v2312 = vpop.permute.xlu0 %2311
        %v2314 = vadd.f32 %v2308, %v2312
        %v2315 = vmul.f32 %v2306, %v870
        %2317 = vrot.lane.b32.xlu0 %v2315, 112
        %v2318 = vpop.permute.xlu0 %2317
        %v2320 = vadd.f32 %v2314, %v2318
        %v2321 = vld [vmem:[%s587 + $0x1] sm:$0xf]
        %v2322 = vmul.f32 %v2321, %v882
        %v2323 = vadd.f32 %v2320, %v2322
        %v2324 = vmul.f32 %v2321, %v891
        %2326 = vrot.lane.b32.xlu0 %v2324, 120
        %v2327 = vpop.permute.xlu0 %2326
        %v2329 = vadd.f32 %v2323, %v2327
        %v2330 = vmul.f32 %v2321, %v905
        %2332 = vrot.lane.b32.xlu0 %v2330, 112
        %v2333 = vpop.permute.xlu0 %2332
        %v2335 = vadd.f32 %v2329, %v2333
        %v2336 = vld [vmem:[%s691 + $0x1] sm:$0xf]
        %v2337 = vmul.f32 %v2336, %v917
        %v2338 = vadd.f32 %v2335, %v2337
        %v2339 = vmul.f32 %v2336, %v926
        %2341 = vrot.lane.b32.xlu0 %v2339, 120
        %v2342 = vpop.permute.xlu0 %2341
        %v2344 = vadd.f32 %v2338, %v2342
        %v2345 = vmul.f32 %v2336, %v940
        %2347 = vrot.lane.b32.xlu0 %v2345, 112
        %v2348 = vpop.permute.xlu0 %2347
        %v2350 = vadd.f32 %v2344, %v2348
        %v2351 = vld [vmem:[%s490] sm:$0xf]
        %v2352 = vmul.f32 %v2351, %v952
        %v2353 = vadd.f32 %v2350, %v2352
        %v2354 = vmul.f32 %v2351, %v961
        %2356 = vrot.lane.b32.xlu0 %v2354, 120
        %v2357 = vpop.permute.xlu0 %2356
        %v2359 = vadd.f32 %v2353, %v2357
        %v2360 = vmul.f32 %v2351, %v975
        %2362 = vrot.lane.b32.xlu0 %v2360, 112
        %v2363 = vpop.permute.xlu0 %2362
        %v2365 = vadd.f32 %v2359, %v2363
        %v2366 = vld [vmem:[%s386 + $0x1] sm:$0xf]
        %v2367 = vmul.f32 %v2366, %v987
        %v2368 = vadd.f32 %v2365, %v2367
        %v2369 = vmul.f32 %v2366, %v996
        %2371 = vrot.lane.b32.xlu0 %v2369, 120
        %v2372 = vpop.permute.xlu0 %2371
        %v2374 = vadd.f32 %v2368, %v2372
        %v2375 = vmul.f32 %v2366, %v1010
        %2377 = vrot.lane.b32.xlu0 %v2375, 112
        %v2378 = vpop.permute.xlu0 %2377
        %v2380 = vadd.f32 %v2374, %v2378
        %v2381 = vld [vmem:[%s490 + $0x1] sm:$0xf]
        %v2382 = vmul.f32 %v2381, %v1022
        %v2383 = vadd.f32 %v2380, %v2382
        %v2384 = vmul.f32 %v2381, %v1031
        %2386 = vrot.lane.b32.xlu0 %v2384, 120
        %v2387 = vpop.permute.xlu0 %2386
        %v2389 = vadd.f32 %v2383, %v2387
        %v2390 = vmul.f32 %v2381, %v1045
        %2392 = vrot.lane.b32.xlu0 %v2390, 112
        %v2393 = vpop.permute.xlu0 %2392
        %v2395 = vadd.f32 %v2389, %v2393
        %v2396 = vadd.f32 %v2395, %v1056
        %v2397 = vmax.f32 %v2396, 0.0
        %v2398 = vmin.f32 %v2397, 6.0
        %v2400 = vsel %vm1060, %v2398, 0
        %2402 = vmatprep.subr.mxu0 0.0
        %2403 = vmatpush1.msra.mxu0 0.0
        %2404 = vmatprep.subr.mxu0 0.0
        %2405 = vmatpush1.msra.mxu0 0.0
        %2406 = vmatprep.subr.mxu0 0.0
        %2407 = vmatpush1.msra.mxu0 0.0
        %2408 = vmatprep.subr.mxu0 0.0
        %2409 = vmatpush1.msra.mxu0 0.0
        %2410 = vmatprep.subr.mxu0 0.0
        %2411 = vmatpush1.msra.mxu0 0.0
        %2412 = vmatprep.subr.mxu0 0.0
        %2413 = vmatpush1.msra.mxu0 0.0
        %2414 = vmatprep.subr.mxu0 0.0
        %2415 = vmatpush1.msra.mxu0 0.0
        %2416 = vmatprep.subr.mxu0 0.0
        %2417 = vmatpush1.msra.mxu0 0.0
        %2418 = vmatprep.subr.mxu0 0.0
        %2419 = vmatpush1.msra.mxu0 %v707
        %2420 = vmatprep.subr.mxu0 0.0
        %2421 = vmatpush1.msra.mxu0 %v706
        %2422 = vmatprep.subr.mxu0 0.0
        %2423 = vmatpush1.msra.mxu0 %v705
        %2424 = vmatprep.subr.mxu0 0.0
        %2425 = vmatpush1.msra.mxu0 %v704
        %2426 = vmatprep.subr.mxu0 0.0
        %2427 = vmatpush1.msra.mxu0 %v703
        %2428 = vmatprep.subr.mxu0 0.0
        %2429 = vmatpush1.msra.mxu0 %v702
        %2430 = vmatprep.subr.mxu0 0.0
        %2431 = vmatpush1.msra.mxu0 %v701
        %2432 = vmatprep.subr.mxu0 0.0
        %2433 = vmatpush1.msra.mxu0 %v700
        %2434 = vmatprep.subr.mxu0 0.0
        %2435 = vmatpush2.msra.mxu0 0.0
        %2436 = vmatprep.subr.mxu0 0.0
        %2437 = vmatpush2.msra.mxu0 0.0
        %2438 = vmatprep.subr.mxu0 0.0
        %2439 = vmatpush2.msra.mxu0 0.0
        %2440 = vmatprep.subr.mxu0 0.0
        %2441 = vmatpush2.msra.mxu0 0.0
        %2442 = vmatprep.subr.mxu0 0.0
        %2443 = vmatpush2.msra.mxu0 0.0
        %2444 = vmatprep.subr.mxu0 0.0
        %2445 = vmatpush2.msra.mxu0 0.0
        %2446 = vmatprep.subr.mxu0 0.0
        %2447 = vmatpush2.msra.mxu0 0.0
        %2448 = vmatprep.subr.mxu0 0.0
        %2449 = vmatpush2.msra.mxu0 0.0
        %2450 = vmatprep.subr.mxu0 0.0
        %2451 = vmatpush2.msra.mxu0 0.0
        %2452 = vmatprep.subr.mxu0 0.0
        %2453 = vmatpush2.msra.mxu0 0.0
        %2454 = vmatprep.subr.mxu0 0.0
        %2455 = vmatpush2.msra.mxu0 0.0
        %2456 = vmatprep.subr.mxu0 0.0
        %2457 = vmatpush2.msra.mxu0 0.0
        %2458 = vmatprep.subr.mxu0 0.0
        %2459 = vmatpush2.msra.mxu0 0.0
        %2460 = vmatprep.subr.mxu0 0.0
        %2461 = vmatpush2.msra.mxu0 0.0
        %2462 = vmatprep.subr.mxu0 0.0
        %2463 = vmatpush2.msra.mxu0 0.0
        %2464 = vmatprep.subr.mxu0 0.0
        %2465 = vmatpush2.msra.mxu0 0.0
        %2466 = vmatprep.mubr.f32.mxu0 0.0
        %2467 = vmatmul.mubr.f32.gmra.mxu0 %v2400
        %v2468 = vpop.f32.mrf.mxu0
        %v2469 = vadd.f32 0.0, %v2468
        %v2470 = vpop.f32.mrf.mxu0
        %2471 = vdwg.mxu0
        %v2472 = vmul.f32 %v2321, %v1140
        %2474 = vrot.lane.b32.xlu0 %v2469, 8
        %v2475 = vpop.permute.xlu0 %2474
        %v2477 = vadd.f32 %v2472, %v2475
        %v2478 = vadd.f32 %v2477, %v1154
        %v2479 = vmul.f32 %v2276, %v742
        %v2480 = vadd.f32 %v2479, 0.0
        %v2481 = vmul.f32 %v2276, %v751
        %2483 = vrot.lane.b32.xlu0 %v2481, 120
        %v2484 = vpop.permute.xlu0 %2483
        %v2486 = vadd.f32 %v2480, %v2484
        %v2487 = vmul.f32 %v2276, %v765
        %2489 = vrot.lane.b32.xlu0 %v2487, 112
        %v2490 = vpop.permute.xlu0 %2489
        %v2492 = vadd.f32 %v2486, %v2490
        %v2493 = vmul.f32 %v2291, %v777
        %v2494 = vadd.f32 %v2492, %v2493
        %v2495 = vmul.f32 %v2291, %v786
        %2497 = vrot.lane.b32.xlu0 %v2495, 120
        %v2498 = vpop.permute.xlu0 %2497
        %v2500 = vadd.f32 %v2494, %v2498
        %v2501 = vmul.f32 %v2291, %v800
        %2503 = vrot.lane.b32.xlu0 %v2501, 112
        %v2504 = vpop.permute.xlu0 %2503
        %v2506 = vadd.f32 %v2500, %v2504
        %v2507 = vld [vmem:[%s378 + $0x2] sm:$0xf]
        %v2508 = vmul.f32 %v2507, %v812
        %v2509 = vadd.f32 %v2506, %v2508
        %v2510 = vmul.f32 %v2507, %v821
        %2512 = vrot.lane.b32.xlu0 %v2510, 120
        %v2513 = vpop.permute.xlu0 %2512
        %v2515 = vadd.f32 %v2509, %v2513
        %v2516 = vmul.f32 %v2507, %v835
        %2518 = vrot.lane.b32.xlu0 %v2516, 112
        %v2519 = vpop.permute.xlu0 %2518
        %v2521 = vadd.f32 %v2515, %v2519
        %v2522 = vmul.f32 %v2321, %v847
        %v2523 = vadd.f32 %v2521, %v2522
        %v2524 = vmul.f32 %v2321, %v856
        %2526 = vrot.lane.b32.xlu0 %v2524, 120
        %v2527 = vpop.permute.xlu0 %2526
        %v2529 = vadd.f32 %v2523, %v2527
        %v2530 = vmul.f32 %v2321, %v870
        %2532 = vrot.lane.b32.xlu0 %v2530, 112
        %v2533 = vpop.permute.xlu0 %2532
        %v2535 = vadd.f32 %v2529, %v2533
        %v2536 = vmul.f32 %v2336, %v882
        %v2537 = vadd.f32 %v2535, %v2536
        %v2538 = vmul.f32 %v2336, %v891
        %2540 = vrot.lane.b32.xlu0 %v2538, 120
        %v2541 = vpop.permute.xlu0 %2540
        %v2543 = vadd.f32 %v2537, %v2541
        %v2544 = vmul.f32 %v2336, %v905
        %2546 = vrot.lane.b32.xlu0 %v2544, 112
        %v2547 = vpop.permute.xlu0 %2546
        %v2549 = vadd.f32 %v2543, %v2547
        %v2550 = vld [vmem:[%s587 + $0x2] sm:$0xf]
        %v2551 = vmul.f32 %v2550, %v917
        %v2552 = vadd.f32 %v2549, %v2551
        %v2553 = vmul.f32 %v2550, %v926
        %2555 = vrot.lane.b32.xlu0 %v2553, 120
        %v2556 = vpop.permute.xlu0 %2555
        %v2558 = vadd.f32 %v2552, %v2556
        %v2559 = vmul.f32 %v2550, %v940
        %2561 = vrot.lane.b32.xlu0 %v2559, 112
        %v2562 = vpop.permute.xlu0 %2561
        %v2564 = vadd.f32 %v2558, %v2562
        %v2565 = vmul.f32 %v2366, %v952
        %v2566 = vadd.f32 %v2564, %v2565
        %v2567 = vmul.f32 %v2366, %v961
        %2569 = vrot.lane.b32.xlu0 %v2567, 120
        %v2570 = vpop.permute.xlu0 %2569
        %v2572 = vadd.f32 %v2566, %v2570
        %v2573 = vmul.f32 %v2366, %v975
        %2575 = vrot.lane.b32.xlu0 %v2573, 112
        %v2576 = vpop.permute.xlu0 %2575
        %v2578 = vadd.f32 %v2572, %v2576
        %v2579 = vmul.f32 %v2381, %v987
        %v2580 = vadd.f32 %v2578, %v2579
        %v2581 = vmul.f32 %v2381, %v996
        %2583 = vrot.lane.b32.xlu0 %v2581, 120
        %v2584 = vpop.permute.xlu0 %2583
        %v2586 = vadd.f32 %v2580, %v2584
        %v2587 = vmul.f32 %v2381, %v1010
        %2589 = vrot.lane.b32.xlu0 %v2587, 112
        %v2590 = vpop.permute.xlu0 %2589
        %v2592 = vadd.f32 %v2586, %v2590
        %v2593 = vld [vmem:[%s386 + $0x2] sm:$0xf]
        %v2594 = vmul.f32 %v2593, %v1022
        %v2595 = vadd.f32 %v2592, %v2594
        %v2596 = vmul.f32 %v2593, %v1031
        %2598 = vrot.lane.b32.xlu0 %v2596, 120
        %v2599 = vpop.permute.xlu0 %2598
        %v2601 = vadd.f32 %v2595, %v2599
        %v2602 = vmul.f32 %v2593, %v1045
        %2604 = vrot.lane.b32.xlu0 %v2602, 112
        %v2605 = vpop.permute.xlu0 %2604
        %v2607 = vadd.f32 %v2601, %v2605
        %v2608 = vadd.f32 %v2607, %v1056
        %v2609 = vmax.f32 %v2608, 0.0
        %v2610 = vmin.f32 %v2609, 6.0
        %v2612 = vsel %vm1060, %v2610, 0
        %2614 = vmatprep.subr.mxu0 0.0
        %2615 = vmatpush1.msra.mxu0 0.0
        %2616 = vmatprep.subr.mxu0 0.0
        %2617 = vmatpush1.msra.mxu0 0.0
        %2618 = vmatprep.subr.mxu0 0.0
        %2619 = vmatpush1.msra.mxu0 0.0
        %2620 = vmatprep.subr.mxu0 0.0
        %2621 = vmatpush1.msra.mxu0 0.0
        %2622 = vmatprep.subr.mxu0 0.0
        %2623 = vmatpush1.msra.mxu0 0.0
        %2624 = vmatprep.subr.mxu0 0.0
        %2625 = vmatpush1.msra.mxu0 0.0
        %2626 = vmatprep.subr.mxu0 0.0
        %2627 = vmatpush1.msra.mxu0 0.0
        %2628 = vmatprep.subr.mxu0 0.0
        %2629 = vmatpush1.msra.mxu0 0.0
        %2630 = vmatprep.subr.mxu0 0.0
        %2631 = vmatpush1.msra.mxu0 %v707
        %2632 = vmatprep.subr.mxu0 0.0
        %2633 = vmatpush1.msra.mxu0 %v706
        %2634 = vmatprep.subr.mxu0 0.0
        %2635 = vmatpush1.msra.mxu0 %v705
        %2636 = vmatprep.subr.mxu0 0.0
        %2637 = vmatpush1.msra.mxu0 %v704
        %2638 = vmatprep.subr.mxu0 0.0
        %2639 = vmatpush1.msra.mxu0 %v703
        %2640 = vmatprep.subr.mxu0 0.0
        %2641 = vmatpush1.msra.mxu0 %v702
        %2642 = vmatprep.subr.mxu0 0.0
        %2643 = vmatpush1.msra.mxu0 %v701
        %2644 = vmatprep.subr.mxu0 0.0
        %2645 = vmatpush1.msra.mxu0 %v700
        %2646 = vmatprep.subr.mxu0 0.0
        %2647 = vmatpush2.msra.mxu0 0.0
        %2648 = vmatprep.subr.mxu0 0.0
        %2649 = vmatpush2.msra.mxu0 0.0
        %2650 = vmatprep.subr.mxu0 0.0
        %2651 = vmatpush2.msra.mxu0 0.0
        %2652 = vmatprep.subr.mxu0 0.0
        %2653 = vmatpush2.msra.mxu0 0.0
        %2654 = vmatprep.subr.mxu0 0.0
        %2655 = vmatpush2.msra.mxu0 0.0
        %2656 = vmatprep.subr.mxu0 0.0
        %2657 = vmatpush2.msra.mxu0 0.0
        %2658 = vmatprep.subr.mxu0 0.0
        %2659 = vmatpush2.msra.mxu0 0.0
        %2660 = vmatprep.subr.mxu0 0.0
        %2661 = vmatpush2.msra.mxu0 0.0
        %2662 = vmatprep.subr.mxu0 0.0
        %2663 = vmatpush2.msra.mxu0 0.0
        %2664 = vmatprep.subr.mxu0 0.0
        %2665 = vmatpush2.msra.mxu0 0.0
        %2666 = vmatprep.subr.mxu0 0.0
        %2667 = vmatpush2.msra.mxu0 0.0
        %2668 = vmatprep.subr.mxu0 0.0
        %2669 = vmatpush2.msra.mxu0 0.0
        %2670 = vmatprep.subr.mxu0 0.0
        %2671 = vmatpush2.msra.mxu0 0.0
        %2672 = vmatprep.subr.mxu0 0.0
        %2673 = vmatpush2.msra.mxu0 0.0
        %2674 = vmatprep.subr.mxu0 0.0
        %2675 = vmatpush2.msra.mxu0 0.0
        %2676 = vmatprep.subr.mxu0 0.0
        %2677 = vmatpush2.msra.mxu0 0.0
        %2678 = vmatprep.mubr.f32.mxu0 0.0
        %2679 = vmatmul.mubr.f32.gmra.mxu0 %v2612
        %v2680 = vpop.f32.mrf.mxu0
        %v2681 = vadd.f32 0.0, %v2680
        %v2682 = vpop.f32.mrf.mxu0
        %2683 = vdwg.mxu0
        %v2684 = vmul.f32 %v2336, %v1140
        %2686 = vrot.lane.b32.xlu0 %v2681, 8
        %v2687 = vpop.permute.xlu0 %2686
        %v2689 = vadd.f32 %v2684, %v2687
        %v2690 = vadd.f32 %v2689, %v1154
        %2692 = vrot.lane.b32.xlu0 %v2478, 120
        %v2693 = vpop.permute.xlu0 %2692
        %2696 = vrot.lane.b32.xlu0 %v2690, 56
        %v2697 = vpop.permute.xlu0 %2696
        %v2699 = vsel %vm1060, %v2693, %v2697
        %s2700 = scalar_lea.vmem %s234, 12 [#allocation8]
        %2701 = vst [vmem:[%s2700] sm:$0xf] %v2699
        %s2702 = sand.u32 %s131, 1
        %s2703 = scalar_lea.sflag [#allocation5], %s2702
        %s2704 = sand.u32 %s131, 1
        %s2705 = smul.addr %s2704, 16
        %s2706 = scalar_lea.vmem [#allocation8], %s2705
        // Predicated region
        $region45: #{tpu_custom_call.1} parent=35 // pred_check
          %p2707 = pneg %p141
        $region46: #{tpu_custom_call.1} parent=35 // pred_check_branch
          %2709 = sbr.rel (%p2707) target = $region48
        $region47: #{tpu_custom_call.1} parent=35 // pred_region
          %s2710 = smul.u32 2, %s25
          %s2712 = ssub.s32 256, 256
          %2713 = vsyncadd %s2703, %s2712
          %s2714 = smul.addr %s2710, 2
          %s2715 = smul.addr %s24, 8
          %s2716 = sadd.s32 %s2714, %s2715
          %s2717 = smul.addr %s2716, 64
          %s2718 = scalar_lea.hbm %s4, %s2717
          %s2719 = sshll.u32 %s2706, 4
          %s2720 = int_to_ptr.vmem [resolvable:$true] %s2719
          %2725 = dma.vmem_to_hbm [thread:$0]  %s2720, 256, %s2718, %s2703, 64, 64, 4
        $region48: #{tpu_custom_call.1} parent=35 // pred_fallthru
          _
      $region36: #{tpu_custom_call.1} parent=5 // pred_fallthru
        _
      %p2726 = scmp.le.s32.totalorder 2, %s15
      // Predicated region
      $region49: #{tpu_custom_call.1} parent=5 // pred_check
        %p2727 = pneg %p2726
      $region50: #{tpu_custom_call.1} parent=5 // pred_check_branch
        %2729 = sbr.rel (%p2727) target = $region52
      $region51: #{tpu_custom_call.1} parent=5 // pred_region
        %s2730 = ssub.s32 %s15, 2
        // Predicated region
        $region53: #{tpu_custom_call.1} parent=51 // pred_check
          %p2731 = pneg %p147
        $region54: #{tpu_custom_call.1} parent=51 // pred_check_branch
          %2733 = sbr.rel (%p2731) target = $region56
        $region55: #{tpu_custom_call.1} parent=51 // pred_region
          %s2734 = sand.u32 %s132, 1
          %s2735 = scalar_lea.sflag [#allocation5], %s2734
          %s2736 = sand.u32 %s132, 1
          %s2737 = smul.addr %s2736, 16
          %s2738 = scalar_lea.vmem [#allocation8], %s2737
          %2739 = dma.done %s2735, 256
        $region56: #{tpu_custom_call.1} parent=51 // pred_fallthru
          _
      $region52: #{tpu_custom_call.1} parent=5 // pred_fallthru
        _
    $region6: #{tpu_custom_call.1} parent=1 // loop_footer
      %s19 = sadd.s32 1, %s15
    $region7: #{tpu_custom_call.1} parent=1 // loop_footer_branch
      %14 = sbr.rel target = $region3
    $region8: #{tpu_custom_call.1} parent=1 // loop_exit
      _
    %2740 = vsyncpa [#allocation4], 1
    %s2741 = scalar_lea.sflag [#allocation4], 1
    %2742 = vsyncpa %s2741, 1
    %2743 = vsyncpa [#allocation7], 1
    %2744 = vsyncpa [#allocation5], 1
    %s2745 = scalar_lea.sflag [#allocation5], 1
    %2746 = vsyncpa %s2745, 1

</llo_original>
